<compile_context>
chip_gen: v7x
topology: tpu7x:2x2x1
jax: 0.10.0
libtpu: 0.0.40
codegen_flags: <defaults>
</compile_context>

<pallas_src>
import functools
import math

import jax
import jax.numpy as jnp
from jax import lax
from jax.experimental import pallas as pl
from jax.experimental.pallas import tpu as pltpu

# ----------------------- "cfg.mathieu" hyper-parameters -----------------------
Z_DIM = 8
RECON_STD = 0.1
BETA = 1.0
ALPHA = 1.0

Z_PAD = 128          # latent lanes (Z_DIM real dims + zero padding)
CONV_OUT_CH = 16     # synthetic encoder conv output channels
_MMD_SCALES = (0.1, 0.2, 0.5, 1.0, 2.0, 5.0)


# =============================== fused Pallas kernel ===========================
def _fused_vae_kernel(pm_ref, wc_ref, bc_ref,          # conv folded to `feat` lanes
                      we_ref, be_ref,                   # encoder fc -> 256
                      wml_ref, bml_ref,                 # merged fc21|fc22 -> 2*Z_PAD
                      wd1_ref, bd1_ref,                 # decoder fc1 -> 256
                      wd2_ref, bd2_ref,                 # decoder fc2 -> img (padded)
                      x_ref, eps_ref, prior_ref,        # flat image, N(0,1) samples
                      xrec_ref, z_ref, stats_ref,       # outputs
                      *, img_dim, recon_std, beta, alpha):
    f32 = jnp.float32
    kin, b, feat = pm_ref.shape
    zpad = eps_ref.shape[1]
    imgp = x_ref.shape[1]

    # ---- encoder: conv(4x4, s2) as im2col folded into the flat 3136-lane layout ----
    acc = jnp.zeros((b, feat), f32)
    for k in range(kin):                         # static unroll, kin == C*4*4
        acc = acc + pm_ref[k] * wc_ref[k]        # (b, feat) * (1, feat)
    a = jnp.maximum(acc + bc_ref[...], 0.0)      # (b, feat)  [VMEM resident]

    # ---- encoder: fc -> 256 (relu), then merged fc21|fc22 -> [mu | logvar] ----------
    h = jnp.dot(a.astype(jnp.bfloat16), we_ref[...], preferred_element_type=f32)
    h = jnp.maximum(h + be_ref[...], 0.0)                                  # (b, 256)
    ml = jnp.dot(h.astype(jnp.bfloat16), wml_ref[...], preferred_element_type=f32)
    ml = ml + bml_ref[...]                                                 # (b, 2*zpad)
    mu = ml[:, :zpad]                                                      # (b, zpad)
    logvar = ml[:, zpad:]                                                  # (b, zpad)

    # ---- reparameterisation (padded latent dims have mu=logvar=eps=0 -> z=0) -------
    z = mu + jnp.exp(0.5 * logvar) * eps_ref[...]
    z_ref[...] = z

    # ---- decoder: z -> 256 (relu) -> sigmoid(img) -----------------------------------
    d = jnp.dot(z.astype(jnp.bfloat16), wd1_ref[...], preferred_element_type=f32)
    d = jnp.maximum(d + bd1_ref[...], 0.0)
    logits = jnp.dot(d.astype(jnp.bfloat16), wd2_ref[...], preferred_element_type=f32)
    x_rec = jax.nn.sigmoid(logits + bd2_ref[...])                          # (b, imgp)
    xrec_ref[...] = x_rec

    # ---- KL( N(mu, exp(.5 lv)) || N(0,1) ) summed over latent (padding adds 0) -----
    kl = 0.5 * jnp.sum(mu * mu + jnp.exp(logvar) - logvar - 1.0,
                       axis=1, keepdims=True)                              # (b, 1)

    # ---- Gaussian log-likelihood over the real pixels only --------------------------
    pix = lax.broadcasted_iota(jnp.int32, (b, imgp), 1)
    diff = x_ref[...] - x_rec
    lp = (-0.5 / (recon_std * recon_std)) * (diff * diff) \
        - (math.log(recon_std) + 0.5 * math.log(2.0 * math.pi))
    log_like = jnp.sum(jnp.where(pix < img_dim, lp, 0.0),
                       axis=1, keepdims=True)                              # (b, 1)

    # ---- unbiased multi-scale Cauchy MMD (per latent dim, as in the reference) -----
    X = prior_ref[...]                                    # zero-padded prior samples
    Y = z                                                 # zero-padded posterior z
    dx = (X[None, :, :] - X[:, None, :]) ** 2             # (b, b, zpad)
    dy = (Y[None, :, :] - Y[:, None, :]) ** 2
    dc = (X[None, :, :] - Y[:, None, :]) ** 2
    row = lax.broadcasted_iota(jnp.int32, (b, b), 0)
    col = lax.broadcasted_iota(jnp.int32, (b, b), 1)
    off = jnp.where(row == col, 0.0, 1.0)[:, :, None]     # (b, b, 1)
    per_dim = jnp.zeros((1, zpad), f32)
    for scale in _MMD_SCALES:                             # reuse dx/dy/dc across scales
        c2 = 2.0 * scale
        r1 = c2 * pl.reciprocal(c2 + dx, approx=True) \
            + c2 * pl.reciprocal(c2 + dy, approx=True)
        r1 = jnp.sum(off * r1, axis=0).sum(axis=0, keepdims=True) / (b - 1.0)
        r2 = c2 * pl.reciprocal(c2 + dc, approx=True)
        r2 = jnp.sum(r2, axis=0).sum(axis=0, keepdims=True) * (2.0 / b)
        per_dim = per_dim + (r1 - r2)                     # padded dims cancel to 0
    reg = jnp.sum(per_dim) / b                            # scalar

    # ---- ELBO / loss, packed into one lane-dense (b, 128) stats block ---------------
    elbo = log_like - beta * kl - alpha * reg
    loss = -elbo
    lane = lax.broadcasted_iota(jnp.int32, stats_ref.shape, 1)
    stats_ref[...] = (jnp.where(lane == 0, kl, 0.0)
                      + jnp.where(lane == 1, log_like, 0.0)
                      + jnp.where(lane == 2, reg, 0.0)
                      + jnp.where(lane == 3, elbo, 0.0)
                      + jnp.where(lane == 4, loss, 0.0))


# ================================ JAX glue =====================================
def im2col(x, k, stride, pad):
    """x: (B, C, H, W) NCHW -> patch matrix (B, Ho*Wo, C*k*k)."""
    x = jnp.pad(x, ((0, 0), (0, 0), (pad, pad), (pad, pad)))
    B, C, H, W = x.shape
    Ho = (H - k) // stride + 1
    Wo = (W - k) // stride + 1
    cols = []
    for i in range(k):
        for j in range(k):
            cols.append(x[:, :, i:i + stride * Ho:stride, j:j + stride * Wo:stride])
    p = jnp.stack(cols, axis=2)                        # (B, C, k*k, Ho, Wo)
    p = p.transpose(0, 3, 4, 1, 2).reshape(B, Ho * Wo, C * k * k)
    return p, Ho, Wo


def init_params(key, C, H, W, z_dim):
    """Deterministic synthetic weights, pre-packed for the fused lane-dense kernel."""
    ks = jax.random.split(key, 12)
    s = 0.05

    def w(k, shape):
        return (s * jax.random.normal(k, shape)).astype(jnp.float32)

    kk = 4
    Ho, Wo = H // 2, W // 2
    P = Ho * Wo
    kin = C * kk * kk
    feat = P * CONV_OUT_CH
    img = C * H * W
    imgp = int(pl.cdiv(img, 128)) * 128

    # "original" shapes (same as the reference-style module layers)
    w_conv = w(ks[0], (kin, CONV_OUT_CH));  b_conv = w(ks[1], (1, CONV_OUT_CH))
    w_enc = w(ks[2], (feat, 256));          b_enc = w(ks[3], (1, 256))
    w_fc21 = w(ks[4], (256, z_dim));        b_fc21 = w(ks[5], (1, z_dim))
    w_fc22 = w(ks[6], (256, z_dim));        b_fc22 = w(ks[7], (1, z_dim))
    w_dec1 = w(ks[8], (z_dim, 256));        b_dec1 = w(ks[9], (1, 256))
    w_dec2 = w(ks[10], (256, img));         b_dec2 = w(ks[11], (1, img))

    # conv weights folded to the flat layout: wc_fold[k, 0, p*16+c] = w_conv[k, c]
    wc_fold = jnp.tile(w_conv, (1, P)).reshape(kin, 1, feat)
    bc_fold = jnp.tile(b_conv, (1, P))                                    # (1, feat)

    # merged, lane-padded fc21|fc22:  lanes [0,128)=mu, [128,256)=logvar
    w_ml = jnp.zeros((256, 2 * Z_PAD), jnp.float32)
    w_ml = w_ml.at[:, :z_dim].set(w_fc21).at[:, Z_PAD:Z_PAD + z_dim].set(w_fc22)
    b_ml = jnp.zeros((1, 2 * Z_PAD), jnp.float32)
    b_ml = b_ml.at[:, :z_dim].set(b_fc21).at[:, Z_PAD:Z_PAD + z_dim].set(b_fc22)

    # lane/sublane padded decoder weights
    w_dec1_p = jnp.zeros((Z_PAD, 256), jnp.float32).at[:z_dim].set(w_dec1)
    w_dec2_p = jnp.zeros((256, imgp), jnp.float32).at[:, :img].set(w_dec2)
    b_dec2_p = jnp.zeros((1, imgp), jnp.float32).at[:, :img].set(b_dec2)

    bf = jnp.bfloat16
    return {
        "wc_fold": wc_fold, "bc_fold": bc_fold,
        "w_enc": w_enc.astype(bf), "b_enc": b_enc,
        "w_ml": w_ml.astype(bf), "b_ml": b_ml,
        "w_dec1": w_dec1_p.astype(bf), "b_dec1": b_dec1,
        "w_dec2": w_dec2_p.astype(bf), "b_dec2": b_dec2_p,
    }


def base_vae_forward(params, x, key, global_step=0):
    """Mirrors BaseVAE.forward: returns (loss, log)."""
    B, C, H, W = x.shape
    img = C * H * W
    imgp = params["w_dec2"].shape[1]

    # ---- im2col + fold into the flat `feat`-lane layout (plain-JAX data prep) ----
    patches, Ho, Wo = im2col(x, k=4, stride=2, pad=1)          # (B, P, C*16)
    pm_rep = jnp.repeat(patches.transpose(2, 0, 1), CONV_OUT_CH, axis=2)  # (kin, B, feat)

    x_flat = jnp.pad(x.reshape(B, img), ((0, 0), (0, imgp - img)))

    k_eps, k_prior = jax.random.split(key)
    eps = jnp.pad(jax.random.normal(k_eps, (B, Z_DIM), jnp.float32),
                  ((0, 0), (0, Z_PAD - Z_DIM)))
    prior = jnp.pad(jax.random.normal(k_prior, (B, Z_DIM), jnp.float32),
                    ((0, 0), (0, Z_PAD - Z_DIM)))

    kernel = functools.partial(_fused_vae_kernel, img_dim=img,
                               recon_std=RECON_STD, beta=BETA, alpha=ALPHA)

    def spec(shp):
        return pl.BlockSpec(shp, lambda i, n=len(shp): (0,) * n)

    xrec_p, z_p, stats = pl.pallas_call(
        kernel,
        grid=(1,),
        out_shape=(jax.ShapeDtypeStruct((B, imgp), jnp.float32),
                   jax.ShapeDtypeStruct((B, Z_PAD), jnp.float32),
                   jax.ShapeDtypeStruct((B, 128), jnp.float32)),
        in_specs=[
            spec(pm_rep.shape),
            spec(params["wc_fold"].shape), spec(params["bc_fold"].shape),
            spec(params["w_enc"].shape), spec(params["b_enc"].shape),
            spec(params["w_ml"].shape), spec(params["b_ml"].shape),
            spec(params["w_dec1"].shape), spec(params["b_dec1"].shape),
            spec(params["w_dec2"].shape), spec(params["b_dec2"].shape),
            spec(x_flat.shape), spec(eps.shape), spec(prior.shape),
        ],
        out_specs=[spec((B, imgp)), spec((B, Z_PAD)), spec((B, 128))],
        compiler_params=pltpu.CompilerParams(
            dimension_semantics=("arbitrary",),
            vmem_limit_bytes=32 * 1024 * 1024),
    )(pm_rep, params["wc_fold"], params["bc_fold"],
      params["w_enc"], params["b_enc"],
      params["w_ml"], params["b_ml"],
      params["w_dec1"], params["b_dec1"],
      params["w_dec2"], params["b_dec2"],
      x_flat, eps, prior)

    kl = stats[:, 0]
    log_like = stats[:, 1]
    elbo = stats[:, 3]
    loss = stats[:, 4]
    x_recon = xrec_p[:, :img].reshape(B, C, H, W)
    z = z_p[:, :Z_DIM]

    log = {
        "kl": kl,
        "log_like": log_like,
        "imgs": x,
        "y": x_recon,
        "loss": loss,
        "elbo": elbo,
        "z": z,
    }
    return loss, log


# ================================== main =======================================
if __name__ == "__main__":
    key = jax.random.PRNGKey(0)
    k_x, k_params, k_fwd = jax.random.split(key, 3)

    B, C, H, W = 4, 1, 28, 28
    x = jax.random.uniform(k_x, (B, C, H, W), jnp.float32)
    params = init_params(k_params, C, H, W, Z_DIM)

    loss, log = jax.jit(base_vae_forward)(params, x, k_fwd)
    jax.block_until_ready(loss)
    jax.block_until_ready(log["y"])

    assert loss.shape == (B,)
    assert log["y"].shape == (B, C, H, W)
    assert log["z"].shape == (B, Z_DIM)
    assert bool(jnp.all(jnp.isfinite(loss)))
    print("KERNEL_OK")
</pallas_src>

<mosaic_0001>
module attributes {stable_mosaic.version = 11 : i64} {
  func.func @_fused_vae_kernel(%arg0: i32, %arg1: memref<16x4x3136xf32, #tpu.memory_space<vmem>>, %arg2: memref<16x1x3136xf32, #tpu.memory_space<vmem>>, %arg3: memref<1x3136xf32, #tpu.memory_space<vmem>>, %arg4: memref<3136x256xbf16, #tpu.memory_space<vmem>>, %arg5: memref<1x256xf32, #tpu.memory_space<vmem>>, %arg6: memref<256x256xbf16, #tpu.memory_space<vmem>>, %arg7: memref<1x256xf32, #tpu.memory_space<vmem>>, %arg8: memref<128x256xbf16, #tpu.memory_space<vmem>>, %arg9: memref<1x256xf32, #tpu.memory_space<vmem>>, %arg10: memref<256x896xbf16, #tpu.memory_space<vmem>>, %arg11: memref<1x896xf32, #tpu.memory_space<vmem>>, %arg12: memref<4x896xf32, #tpu.memory_space<vmem>>, %arg13: memref<4x128xf32, #tpu.memory_space<vmem>>, %arg14: memref<4x128xf32, #tpu.memory_space<vmem>>, %arg15: memref<4x896xf32, #tpu.memory_space<vmem>>, %arg16: memref<4x128xf32, #tpu.memory_space<vmem>>, %arg17: memref<4x128xf32, #tpu.memory_space<vmem>>) attributes {dimension_semantics = [#tpu.dimension_semantics<arbitrary>], iteration_bounds = array<i64: 1>, scalar_prefetch = 0 : i64, scratch_operands = 0 : i64, tpu.core_type = #tpu.core_type<tc>, window_params = [{pipeline_mode = #tpu.pipeline_mode<synchronous>, transform_indices = @transform_0, window_bounds = array<i64: 16, 4, 3136>}, {pipeline_mode = #tpu.pipeline_mode<synchronous>, transform_indices = @transform_1, window_bounds = array<i64: 16, 1, 3136>}, {pipeline_mode = #tpu.pipeline_mode<synchronous>, transform_indices = @transform_2, window_bounds = array<i64: 1, 3136>}, {pipeline_mode = #tpu.pipeline_mode<synchronous>, transform_indices = @transform_3, window_bounds = array<i64: 3136, 256>}, {pipeline_mode = #tpu.pipeline_mode<synchronous>, transform_indices = @transform_4, window_bounds = array<i64: 1, 256>}, {pipeline_mode = #tpu.pipeline_mode<synchronous>, transform_indices = @transform_5, window_bounds = array<i64: 256, 256>}, {pipeline_mode = #tpu.pipeline_mode<synchronous>, transform_indices = @transform_6, window_bounds = array<i64: 1, 256>}, {pipeline_mode = #tpu.pipeline_mode<synchronous>, transform_indices = @transform_7, window_bounds = array<i64: 128, 256>}, {pipeline_mode = #tpu.pipeline_mode<synchronous>, transform_indices = @transform_8, window_bounds = array<i64: 1, 256>}, {pipeline_mode = #tpu.pipeline_mode<synchronous>, transform_indices = @transform_9, window_bounds = array<i64: 256, 896>}, {pipeline_mode = #tpu.pipeline_mode<synchronous>, transform_indices = @transform_10, window_bounds = array<i64: 1, 896>}, {pipeline_mode = #tpu.pipeline_mode<synchronous>, transform_indices = @transform_11, window_bounds = array<i64: 4, 896>}, {pipeline_mode = #tpu.pipeline_mode<synchronous>, transform_indices = @transform_12, window_bounds = array<i64: 4, 128>}, {pipeline_mode = #tpu.pipeline_mode<synchronous>, transform_indices = @transform_13, window_bounds = array<i64: 4, 128>}, {pipeline_mode = #tpu.pipeline_mode<synchronous>, transform_indices = @transform_14, window_bounds = array<i64: 4, 896>}, {pipeline_mode = #tpu.pipeline_mode<synchronous>, transform_indices = @transform_15, window_bounds = array<i64: 4, 128>}, {pipeline_mode = #tpu.pipeline_mode<synchronous>, transform_indices = @transform_16, window_bounds = array<i64: 4, 128>}]} {
    %cst = arith.constant 0.000000e+00 : f32
    %0 = vector.broadcast %cst : f32 to vector<4x3136xf32>
    %c0 = arith.constant 0 : index
    %c0_0 = arith.constant 0 : index
    %c0_1 = arith.constant 0 : index
    %1 = vector.load %arg1[%c0, %c0_0, %c0_1] : memref<16x4x3136xf32, #tpu.memory_space<vmem>>, vector<1x4x3136xf32>
    %2 = vector.shape_cast %1 : vector<1x4x3136xf32> to vector<4x3136xf32>
    %c0_2 = arith.constant 0 : index
    %c0_3 = arith.constant 0 : index
    %c0_4 = arith.constant 0 : index
    %3 = vector.load %arg2[%c0_2, %c0_3, %c0_4] : memref<16x1x3136xf32, #tpu.memory_space<vmem>>, vector<1x1x3136xf32>
    %4 = vector.shape_cast %3 : vector<1x1x3136xf32> to vector<1x3136xf32>
    %5 = vector.broadcast %4 : vector<1x3136xf32> to vector<4x3136xf32>
    %6 = arith.mulf %2, %5 : vector<4x3136xf32>
    %7 = arith.addf %0, %6 : vector<4x3136xf32>
    %c1 = arith.constant 1 : index
    %c0_5 = arith.constant 0 : index
    %c0_6 = arith.constant 0 : index
    %8 = vector.load %arg1[%c1, %c0_5, %c0_6] : memref<16x4x3136xf32, #tpu.memory_space<vmem>>, vector<1x4x3136xf32>
    %9 = vector.shape_cast %8 : vector<1x4x3136xf32> to vector<4x3136xf32>
    %c1_7 = arith.constant 1 : index
    %c0_8 = arith.constant 0 : index
    %c0_9 = arith.constant 0 : index
    %10 = vector.load %arg2[%c1_7, %c0_8, %c0_9] : memref<16x1x3136xf32, #tpu.memory_space<vmem>>, vector<1x1x3136xf32>
    %11 = vector.shape_cast %10 : vector<1x1x3136xf32> to vector<1x3136xf32>
    %12 = vector.broadcast %11 : vector<1x3136xf32> to vector<4x3136xf32>
    %13 = arith.mulf %9, %12 : vector<4x3136xf32>
    %14 = arith.addf %7, %13 : vector<4x3136xf32>
    %c2 = arith.constant 2 : index
    %c0_10 = arith.constant 0 : index
    %c0_11 = arith.constant 0 : index
    %15 = vector.load %arg1[%c2, %c0_10, %c0_11] : memref<16x4x3136xf32, #tpu.memory_space<vmem>>, vector<1x4x3136xf32>
    %16 = vector.shape_cast %15 : vector<1x4x3136xf32> to vector<4x3136xf32>
    %c2_12 = arith.constant 2 : index
    %c0_13 = arith.constant 0 : index
    %c0_14 = arith.constant 0 : index
    %17 = vector.load %arg2[%c2_12, %c0_13, %c0_14] : memref<16x1x3136xf32, #tpu.memory_space<vmem>>, vector<1x1x3136xf32>
    %18 = vector.shape_cast %17 : vector<1x1x3136xf32> to vector<1x3136xf32>
    %19 = vector.broadcast %18 : vector<1x3136xf32> to vector<4x3136xf32>
    %20 = arith.mulf %16, %19 : vector<4x3136xf32>
    %21 = arith.addf %14, %20 : vector<4x3136xf32>
    %c3 = arith.constant 3 : index
    %c0_15 = arith.constant 0 : index
    %c0_16 = arith.constant 0 : index
    %22 = vector.load %arg1[%c3, %c0_15, %c0_16] : memref<16x4x3136xf32, #tpu.memory_space<vmem>>, vector<1x4x3136xf32>
    %23 = vector.shape_cast %22 : vector<1x4x3136xf32> to vector<4x3136xf32>
    %c3_17 = arith.constant 3 : index
    %c0_18 = arith.constant 0 : index
    %c0_19 = arith.constant 0 : index
    %24 = vector.load %arg2[%c3_17, %c0_18, %c0_19] : memref<16x1x3136xf32, #tpu.memory_space<vmem>>, vector<1x1x3136xf32>
    %25 = vector.shape_cast %24 : vector<1x1x3136xf32> to vector<1x3136xf32>
    %26 = vector.broadcast %25 : vector<1x3136xf32> to vector<4x3136xf32>
    %27 = arith.mulf %23, %26 : vector<4x3136xf32>
    %28 = arith.addf %21, %27 : vector<4x3136xf32>
    %c4 = arith.constant 4 : index
    %c0_20 = arith.constant 0 : index
    %c0_21 = arith.constant 0 : index
    %29 = vector.load %arg1[%c4, %c0_20, %c0_21] : memref<16x4x3136xf32, #tpu.memory_space<vmem>>, vector<1x4x3136xf32>
    %30 = vector.shape_cast %29 : vector<1x4x3136xf32> to vector<4x3136xf32>
    %c4_22 = arith.constant 4 : index
    %c0_23 = arith.constant 0 : index
    %c0_24 = arith.constant 0 : index
    %31 = vector.load %arg2[%c4_22, %c0_23, %c0_24] : memref<16x1x3136xf32, #tpu.memory_space<vmem>>, vector<1x1x3136xf32>
    %32 = vector.shape_cast %31 : vector<1x1x3136xf32> to vector<1x3136xf32>
    %33 = vector.broadcast %32 : vector<1x3136xf32> to vector<4x3136xf32>
    %34 = arith.mulf %30, %33 : vector<4x3136xf32>
    %35 = arith.addf %28, %34 : vector<4x3136xf32>
    %c5 = arith.constant 5 : index
    %c0_25 = arith.constant 0 : index
    %c0_26 = arith.constant 0 : index
    %36 = vector.load %arg1[%c5, %c0_25, %c0_26] : memref<16x4x3136xf32, #tpu.memory_space<vmem>>, vector<1x4x3136xf32>
    %37 = vector.shape_cast %36 : vector<1x4x3136xf32> to vector<4x3136xf32>
    %c5_27 = arith.constant 5 : index
    %c0_28 = arith.constant 0 : index
    %c0_29 = arith.constant 0 : index
    %38 = vector.load %arg2[%c5_27, %c0_28, %c0_29] : memref<16x1x3136xf32, #tpu.memory_space<vmem>>, vector<1x1x3136xf32>
    %39 = vector.shape_cast %38 : vector<1x1x3136xf32> to vector<1x3136xf32>
    %40 = vector.broadcast %39 : vector<1x3136xf32> to vector<4x3136xf32>
    %41 = arith.mulf %37, %40 : vector<4x3136xf32>
    %42 = arith.addf %35, %41 : vector<4x3136xf32>
    %c6 = arith.constant 6 : index
    %c0_30 = arith.constant 0 : index
    %c0_31 = arith.constant 0 : index
    %43 = vector.load %arg1[%c6, %c0_30, %c0_31] : memref<16x4x3136xf32, #tpu.memory_space<vmem>>, vector<1x4x3136xf32>
    %44 = vector.shape_cast %43 : vector<1x4x3136xf32> to vector<4x3136xf32>
    %c6_32 = arith.constant 6 : index
    %c0_33 = arith.constant 0 : index
    %c0_34 = arith.constant 0 : index
    %45 = vector.load %arg2[%c6_32, %c0_33, %c0_34] : memref<16x1x3136xf32, #tpu.memory_space<vmem>>, vector<1x1x3136xf32>
    %46 = vector.shape_cast %45 : vector<1x1x3136xf32> to vector<1x3136xf32>
    %47 = vector.broadcast %46 : vector<1x3136xf32> to vector<4x3136xf32>
    %48 = arith.mulf %44, %47 : vector<4x3136xf32>
    %49 = arith.addf %42, %48 : vector<4x3136xf32>
    %c7 = arith.constant 7 : index
    %c0_35 = arith.constant 0 : index
    %c0_36 = arith.constant 0 : index
    %50 = vector.load %arg1[%c7, %c0_35, %c0_36] : memref<16x4x3136xf32, #tpu.memory_space<vmem>>, vector<1x4x3136xf32>
    %51 = vector.shape_cast %50 : vector<1x4x3136xf32> to vector<4x3136xf32>
    %c7_37 = arith.constant 7 : index
    %c0_38 = arith.constant 0 : index
    %c0_39 = arith.constant 0 : index
    %52 = vector.load %arg2[%c7_37, %c0_38, %c0_39] : memref<16x1x3136xf32, #tpu.memory_space<vmem>>, vector<1x1x3136xf32>
    %53 = vector.shape_cast %52 : vector<1x1x3136xf32> to vector<1x3136xf32>
    %54 = vector.broadcast %53 : vector<1x3136xf32> to vector<4x3136xf32>
    %55 = arith.mulf %51, %54 : vector<4x3136xf32>
    %56 = arith.addf %49, %55 : vector<4x3136xf32>
    %c8 = arith.constant 8 : index
    %c0_40 = arith.constant 0 : index
    %c0_41 = arith.constant 0 : index
    %57 = vector.load %arg1[%c8, %c0_40, %c0_41] : memref<16x4x3136xf32, #tpu.memory_space<vmem>>, vector<1x4x3136xf32>
    %58 = vector.shape_cast %57 : vector<1x4x3136xf32> to vector<4x3136xf32>
    %c8_42 = arith.constant 8 : index
    %c0_43 = arith.constant 0 : index
    %c0_44 = arith.constant 0 : index
    %59 = vector.load %arg2[%c8_42, %c0_43, %c0_44] : memref<16x1x3136xf32, #tpu.memory_space<vmem>>, vector<1x1x3136xf32>
    %60 = vector.shape_cast %59 : vector<1x1x3136xf32> to vector<1x3136xf32>
    %61 = vector.broadcast %60 : vector<1x3136xf32> to vector<4x3136xf32>
    %62 = arith.mulf %58, %61 : vector<4x3136xf32>
    %63 = arith.addf %56, %62 : vector<4x3136xf32>
    %c9 = arith.constant 9 : index
    %c0_45 = arith.constant 0 : index
    %c0_46 = arith.constant 0 : index
    %64 = vector.load %arg1[%c9, %c0_45, %c0_46] : memref<16x4x3136xf32, #tpu.memory_space<vmem>>, vector<1x4x3136xf32>
    %65 = vector.shape_cast %64 : vector<1x4x3136xf32> to vector<4x3136xf32>
    %c9_47 = arith.constant 9 : index
    %c0_48 = arith.constant 0 : index
    %c0_49 = arith.constant 0 : index
    %66 = vector.load %arg2[%c9_47, %c0_48, %c0_49] : memref<16x1x3136xf32, #tpu.memory_space<vmem>>, vector<1x1x3136xf32>
    %67 = vector.shape_cast %66 : vector<1x1x3136xf32> to vector<1x3136xf32>
    %68 = vector.broadcast %67 : vector<1x3136xf32> to vector<4x3136xf32>
    %69 = arith.mulf %65, %68 : vector<4x3136xf32>
    %70 = arith.addf %63, %69 : vector<4x3136xf32>
    %c10 = arith.constant 10 : index
    %c0_50 = arith.constant 0 : index
    %c0_51 = arith.constant 0 : index
    %71 = vector.load %arg1[%c10, %c0_50, %c0_51] : memref<16x4x3136xf32, #tpu.memory_space<vmem>>, vector<1x4x3136xf32>
    %72 = vector.shape_cast %71 : vector<1x4x3136xf32> to vector<4x3136xf32>
    %c10_52 = arith.constant 10 : index
    %c0_53 = arith.constant 0 : index
    %c0_54 = arith.constant 0 : index
    %73 = vector.load %arg2[%c10_52, %c0_53, %c0_54] : memref<16x1x3136xf32, #tpu.memory_space<vmem>>, vector<1x1x3136xf32>
    %74 = vector.shape_cast %73 : vector<1x1x3136xf32> to vector<1x3136xf32>
    %75 = vector.broadcast %74 : vector<1x3136xf32> to vector<4x3136xf32>
    %76 = arith.mulf %72, %75 : vector<4x3136xf32>
    %77 = arith.addf %70, %76 : vector<4x3136xf32>
    %c11 = arith.constant 11 : index
    %c0_55 = arith.constant 0 : index
    %c0_56 = arith.constant 0 : index
    %78 = vector.load %arg1[%c11, %c0_55, %c0_56] : memref<16x4x3136xf32, #tpu.memory_space<vmem>>, vector<1x4x3136xf32>
    %79 = vector.shape_cast %78 : vector<1x4x3136xf32> to vector<4x3136xf32>
    %c11_57 = arith.constant 11 : index
    %c0_58 = arith.constant 0 : index
    %c0_59 = arith.constant 0 : index
    %80 = vector.load %arg2[%c11_57, %c0_58, %c0_59] : memref<16x1x3136xf32, #tpu.memory_space<vmem>>, vector<1x1x3136xf32>
    %81 = vector.shape_cast %80 : vector<1x1x3136xf32> to vector<1x3136xf32>
    %82 = vector.broadcast %81 : vector<1x3136xf32> to vector<4x3136xf32>
    %83 = arith.mulf %79, %82 : vector<4x3136xf32>
    %84 = arith.addf %77, %83 : vector<4x3136xf32>
    %c12 = arith.constant 12 : index
    %c0_60 = arith.constant 0 : index
    %c0_61 = arith.constant 0 : index
    %85 = vector.load %arg1[%c12, %c0_60, %c0_61] : memref<16x4x3136xf32, #tpu.memory_space<vmem>>, vector<1x4x3136xf32>
    %86 = vector.shape_cast %85 : vector<1x4x3136xf32> to vector<4x3136xf32>
    %c12_62 = arith.constant 12 : index
    %c0_63 = arith.constant 0 : index
    %c0_64 = arith.constant 0 : index
    %87 = vector.load %arg2[%c12_62, %c0_63, %c0_64] : memref<16x1x3136xf32, #tpu.memory_space<vmem>>, vector<1x1x3136xf32>
    %88 = vector.shape_cast %87 : vector<1x1x3136xf32> to vector<1x3136xf32>
    %89 = vector.broadcast %88 : vector<1x3136xf32> to vector<4x3136xf32>
    %90 = arith.mulf %86, %89 : vector<4x3136xf32>
    %91 = arith.addf %84, %90 : vector<4x3136xf32>
    %c13 = arith.constant 13 : index
    %c0_65 = arith.constant 0 : index
    %c0_66 = arith.constant 0 : index
    %92 = vector.load %arg1[%c13, %c0_65, %c0_66] : memref<16x4x3136xf32, #tpu.memory_space<vmem>>, vector<1x4x3136xf32>
    %93 = vector.shape_cast %92 : vector<1x4x3136xf32> to vector<4x3136xf32>
    %c13_67 = arith.constant 13 : index
    %c0_68 = arith.constant 0 : index
    %c0_69 = arith.constant 0 : index
    %94 = vector.load %arg2[%c13_67, %c0_68, %c0_69] : memref<16x1x3136xf32, #tpu.memory_space<vmem>>, vector<1x1x3136xf32>
    %95 = vector.shape_cast %94 : vector<1x1x3136xf32> to vector<1x3136xf32>
    %96 = vector.broadcast %95 : vector<1x3136xf32> to vector<4x3136xf32>
    %97 = arith.mulf %93, %96 : vector<4x3136xf32>
    %98 = arith.addf %91, %97 : vector<4x3136xf32>
    %c14 = arith.constant 14 : index
    %c0_70 = arith.constant 0 : index
    %c0_71 = arith.constant 0 : index
    %99 = vector.load %arg1[%c14, %c0_70, %c0_71] : memref<16x4x3136xf32, #tpu.memory_space<vmem>>, vector<1x4x3136xf32>
    %100 = vector.shape_cast %99 : vector<1x4x3136xf32> to vector<4x3136xf32>
    %c14_72 = arith.constant 14 : index
    %c0_73 = arith.constant 0 : index
    %c0_74 = arith.constant 0 : index
    %101 = vector.load %arg2[%c14_72, %c0_73, %c0_74] : memref<16x1x3136xf32, #tpu.memory_space<vmem>>, vector<1x1x3136xf32>
    %102 = vector.shape_cast %101 : vector<1x1x3136xf32> to vector<1x3136xf32>
    %103 = vector.broadcast %102 : vector<1x3136xf32> to vector<4x3136xf32>
    %104 = arith.mulf %100, %103 : vector<4x3136xf32>
    %105 = arith.addf %98, %104 : vector<4x3136xf32>
    %c15 = arith.constant 15 : index
    %c0_75 = arith.constant 0 : index
    %c0_76 = arith.constant 0 : index
    %106 = vector.load %arg1[%c15, %c0_75, %c0_76] : memref<16x4x3136xf32, #tpu.memory_space<vmem>>, vector<1x4x3136xf32>
    %107 = vector.shape_cast %106 : vector<1x4x3136xf32> to vector<4x3136xf32>
    %c15_77 = arith.constant 15 : index
    %c0_78 = arith.constant 0 : index
    %c0_79 = arith.constant 0 : index
    %108 = vector.load %arg2[%c15_77, %c0_78, %c0_79] : memref<16x1x3136xf32, #tpu.memory_space<vmem>>, vector<1x1x3136xf32>
    %109 = vector.shape_cast %108 : vector<1x1x3136xf32> to vector<1x3136xf32>
    %110 = vector.broadcast %109 : vector<1x3136xf32> to vector<4x3136xf32>
    %111 = arith.mulf %107, %110 : vector<4x3136xf32>
    %112 = arith.addf %105, %111 : vector<4x3136xf32>
    %c0_80 = arith.constant 0 : index
    %c0_81 = arith.constant 0 : index
    %113 = vector.load %arg3[%c0_80, %c0_81] : memref<1x3136xf32, #tpu.memory_space<vmem>>, vector<1x3136xf32>
    %114 = vector.broadcast %113 : vector<1x3136xf32> to vector<4x3136xf32>
    %115 = arith.addf %112, %114 : vector<4x3136xf32>
    %cst_82 = arith.constant 0.000000e+00 : f32
    %116 = vector.broadcast %cst_82 : f32 to vector<4x3136xf32>
    %117 = arith.maximumf %115, %116 : vector<4x3136xf32>
    %118 = arith.truncf %117 : vector<4x3136xf32> to vector<4x3136xbf16>
    %c0_83 = arith.constant 0 : index
    %c0_84 = arith.constant 0 : index
    %119 = vector.load %arg4[%c0_83, %c0_84] : memref<3136x256xbf16, #tpu.memory_space<vmem>>, vector<3136x256xbf16>
    %cst_85 = arith.constant dense<0.000000e+00> : vector<4x256xf32>
    %120 = tpu.matmul %118, %119, %cst_85 {dimension_numbers = #tpu.dot_dimension_numbers<[1], [0], [0], [1], [0, 0, 1, 1], [], []>} : vector<4x3136xbf16>, vector<3136x256xbf16>, vector<4x256xf32> -> vector<4x256xf32>
    %c0_86 = arith.constant 0 : index
    %c0_87 = arith.constant 0 : index
    %121 = vector.load %arg5[%c0_86, %c0_87] : memref<1x256xf32, #tpu.memory_space<vmem>>, vector<1x256xf32>
    %122 = vector.broadcast %121 : vector<1x256xf32> to vector<4x256xf32>
    %123 = arith.addf %120, %122 : vector<4x256xf32>
    %cst_88 = arith.constant 0.000000e+00 : f32
    %124 = vector.broadcast %cst_88 : f32 to vector<4x256xf32>
    %125 = arith.maximumf %123, %124 : vector<4x256xf32>
    %126 = arith.truncf %125 : vector<4x256xf32> to vector<4x256xbf16>
    %c0_89 = arith.constant 0 : index
    %c0_90 = arith.constant 0 : index
    %127 = vector.load %arg6[%c0_89, %c0_90] : memref<256x256xbf16, #tpu.memory_space<vmem>>, vector<256x256xbf16>
    %cst_91 = arith.constant dense<0.000000e+00> : vector<4x256xf32>
    %128 = tpu.matmul %126, %127, %cst_91 {dimension_numbers = #tpu.dot_dimension_numbers<[1], [0], [0], [1], [0, 0, 1, 1], [], []>} : vector<4x256xbf16>, vector<256x256xbf16>, vector<4x256xf32> -> vector<4x256xf32>
    %c0_92 = arith.constant 0 : index
    %c0_93 = arith.constant 0 : index
    %129 = vector.load %arg7[%c0_92, %c0_93] : memref<1x256xf32, #tpu.memory_space<vmem>>, vector<1x256xf32>
    %130 = vector.broadcast %129 : vector<1x256xf32> to vector<4x256xf32>
    %131 = arith.addf %128, %130 : vector<4x256xf32>
    %132 = vector.extract_strided_slice %131 {offsets = [0, 0], sizes = [4, 128], strides = [1, 1]} : vector<4x256xf32> to vector<4x128xf32>
    %133 = vector.extract_strided_slice %131 {offsets = [0, 128], sizes = [4, 128], strides = [1, 1]} : vector<4x256xf32> to vector<4x128xf32>
    %cst_94 = arith.constant 5.000000e-01 : f32
    %134 = vector.broadcast %cst_94 : f32 to vector<4x128xf32>
    %135 = arith.mulf %134, %133 : vector<4x128xf32>
    %136 = math.exp %135 : vector<4x128xf32>
    %c0_95 = arith.constant 0 : index
    %c0_96 = arith.constant 0 : index
    %137 = vector.load %arg13[%c0_95, %c0_96] : memref<4x128xf32, #tpu.memory_space<vmem>>, vector<4x128xf32>
    %138 = arith.mulf %136, %137 : vector<4x128xf32>
    %139 = arith.addf %132, %138 : vector<4x128xf32>
    %c0_97 = arith.constant 0 : index
    %c0_98 = arith.constant 0 : index
    %140 = vector.load %arg16[%c0_97, %c0_98] : memref<4x128xf32, #tpu.memory_space<vmem>>, vector<4x128xf32>
    tpu.vector_store %arg16[%c0_97, %c0_98], %139 {strides = array<i32>} : memref<4x128xf32, #tpu.memory_space<vmem>>, vector<4x128xf32>,
    %141 = arith.truncf %139 : vector<4x128xf32> to vector<4x128xbf16>
    %c0_99 = arith.constant 0 : index
    %c0_100 = arith.constant 0 : index
    %142 = vector.load %arg8[%c0_99, %c0_100] : memref<128x256xbf16, #tpu.memory_space<vmem>>, vector<128x256xbf16>
    %cst_101 = arith.constant dense<0.000000e+00> : vector<4x256xf32>
    %143 = tpu.matmul %141, %142, %cst_101 {dimension_numbers = #tpu.dot_dimension_numbers<[1], [0], [0], [1], [0, 0, 1, 1], [], []>} : vector<4x128xbf16>, vector<128x256xbf16>, vector<4x256xf32> -> vector<4x256xf32>
    %c0_102 = arith.constant 0 : index
    %c0_103 = arith.constant 0 : index
    %144 = vector.load %arg9[%c0_102, %c0_103] : memref<1x256xf32, #tpu.memory_space<vmem>>, vector<1x256xf32>
    %145 = vector.broadcast %144 : vector<1x256xf32> to vector<4x256xf32>
    %146 = arith.addf %143, %145 : vector<4x256xf32>
    %cst_104 = arith.constant 0.000000e+00 : f32
    %147 = vector.broadcast %cst_104 : f32 to vector<4x256xf32>
    %148 = arith.maximumf %146, %147 : vector<4x256xf32>
    %149 = arith.truncf %148 : vector<4x256xf32> to vector<4x256xbf16>
    %c0_105 = arith.constant 0 : index
    %c0_106 = arith.constant 0 : index
    %150 = vector.load %arg10[%c0_105, %c0_106] : memref<256x896xbf16, #tpu.memory_space<vmem>>, vector<256x896xbf16>
    %cst_107 = arith.constant dense<0.000000e+00> : vector<4x896xf32>
    %151 = tpu.matmul %149, %150, %cst_107 {dimension_numbers = #tpu.dot_dimension_numbers<[1], [0], [0], [1], [0, 0, 1, 1], [], []>} : vector<4x256xbf16>, vector<256x896xbf16>, vector<4x896xf32> -> vector<4x896xf32>
    %c0_108 = arith.constant 0 : index
    %c0_109 = arith.constant 0 : index
    %152 = vector.load %arg11[%c0_108, %c0_109] : memref<1x896xf32, #tpu.memory_space<vmem>>, vector<1x896xf32>
    %153 = vector.broadcast %152 : vector<1x896xf32> to vector<4x896xf32>
    %154 = arith.addf %151, %153 : vector<4x896xf32>
    %155 = arith.negf %154 : vector<4x896xf32>
    %156 = math.exp %155 : vector<4x896xf32>
    %cst_110 = arith.constant 1.000000e+00 : f32
    %157 = vector.broadcast %cst_110 : f32 to vector<4x896xf32>
    %158 = arith.addf %157, %156 : vector<4x896xf32>
    %159 = arith.divf %157, %158 : vector<4x896xf32>
    %c0_111 = arith.constant 0 : index
    %c0_112 = arith.constant 0 : index
    %160 = vector.load %arg15[%c0_111, %c0_112] : memref<4x896xf32, #tpu.memory_space<vmem>>, vector<4x896xf32>
    tpu.vector_store %arg15[%c0_111, %c0_112], %159 {strides = array<i32>} : memref<4x896xf32, #tpu.memory_space<vmem>>, vector<4x896xf32>,
    %161 = arith.mulf %132, %132 : vector<4x128xf32>
    %162 = math.exp %133 : vector<4x128xf32>
    %163 = arith.addf %161, %162 : vector<4x128xf32>
    %164 = arith.subf %163, %133 : vector<4x128xf32>
    %cst_113 = arith.constant 1.000000e+00 : f32
    %165 = vector.broadcast %cst_113 : f32 to vector<4x128xf32>
    %166 = arith.subf %164, %165 : vector<4x128xf32>
    %cst_114 = arith.constant dense<0.000000e+00> : vector<4xf32>
    %167 = vector.multi_reduction <add>, %166, %cst_114 [1] : vector<4x128xf32> to vector<4xf32>
    %168 = vector.shape_cast %167 : vector<4xf32> to vector<4x1xf32>
    %cst_115 = arith.constant 5.000000e-01 : f32
    %169 = vector.broadcast %cst_115 : f32 to vector<4x1xf32>
    %170 = arith.mulf %169, %168 : vector<4x1xf32>
    %171 = tpu.iota {dimensions = array<i32: 1>} : vector<4x896xi32>
    %c0_116 = arith.constant 0 : index
    %c0_117 = arith.constant 0 : index
    %172 = vector.load %arg12[%c0_116, %c0_117] : memref<4x896xf32, #tpu.memory_space<vmem>>, vector<4x896xf32>
    %173 = arith.subf %172, %159 : vector<4x896xf32>
    %174 = arith.mulf %173, %173 : vector<4x896xf32>
    %cst_118 = arith.constant -5.000000e+01 : f32
    %175 = vector.broadcast %cst_118 : f32 to vector<4x896xf32>
    %176 = arith.mulf %175, %174 : vector<4x896xf32>
    %cst_119 = arith.constant -1.38364661 : f32
    %177 = vector.broadcast %cst_119 : f32 to vector<4x896xf32>
    %178 = arith.subf %176, %177 : vector<4x896xf32>
    %c784_i32 = arith.constant 784 : i32
    %179 = vector.broadcast %c784_i32 : i32 to vector<4x896xi32>
    %180 = arith.cmpi slt, %171, %179 : vector<4x896xi32>
    %cst_120 = arith.constant 0.000000e+00 : f32
    %181 = vector.broadcast %cst_120 : f32 to vector<4x896xf32>
    %182 = arith.select %180, %178, %181 : vector<4x896xi1>, vector<4x896xf32>
    %cst_121 = arith.constant dense<0.000000e+00> : vector<4xf32>
    %183 = vector.multi_reduction <add>, %182, %cst_121 [1] : vector<4x896xf32> to vector<4xf32>
    %184 = vector.shape_cast %183 : vector<4xf32> to vector<4x1xf32>
    %c0_122 = arith.constant 0 : index
    %c0_123 = arith.constant 0 : index
    %185 = vector.load %arg14[%c0_122, %c0_123] : memref<4x128xf32, #tpu.memory_space<vmem>>, vector<4x128xf32>
    %186 = vector.shape_cast %185 : vector<4x128xf32> to vector<1x4x128xf32>
    %187 = vector.shape_cast %185 : vector<4x128xf32> to vector<4x1x128xf32>
    %188 = vector.broadcast %186 : vector<1x4x128xf32> to vector<4x4x128xf32>
    %189 = vector.broadcast %187 : vector<4x1x128xf32> to vector<4x4x128xf32>
    %190 = arith.subf %188, %189 : vector<4x4x128xf32>
    %191 = arith.mulf %190, %190 : vector<4x4x128xf32>
    %192 = vector.shape_cast %139 : vector<4x128xf32> to vector<1x4x128xf32>
    %193 = vector.shape_cast %139 : vector<4x128xf32> to vector<4x1x128xf32>
    %194 = vector.broadcast %192 : vector<1x4x128xf32> to vector<4x4x128xf32>
    %195 = vector.broadcast %193 : vector<4x1x128xf32> to vector<4x4x128xf32>
    %196 = arith.subf %194, %195 : vector<4x4x128xf32>
    %197 = arith.mulf %196, %196 : vector<4x4x128xf32>
    %198 = vector.shape_cast %185 : vector<4x128xf32> to vector<1x4x128xf32>
    %199 = vector.shape_cast %139 : vector<4x128xf32> to vector<4x1x128xf32>
    %200 = vector.broadcast %198 : vector<1x4x128xf32> to vector<4x4x128xf32>
    %201 = vector.broadcast %199 : vector<4x1x128xf32> to vector<4x4x128xf32>
    %202 = arith.subf %200, %201 : vector<4x4x128xf32>
    %203 = arith.mulf %202, %202 : vector<4x4x128xf32>
    %204 = tpu.iota {dimensions = array<i32: 0>} : vector<4x4xi32>
    %205 = tpu.iota {dimensions = array<i32: 1>} : vector<4x4xi32>
    %206 = arith.cmpi eq, %204, %205 : vector<4x4xi32>
    %cst_124 = arith.constant 0.000000e+00 : f32
    %cst_125 = arith.constant 1.000000e+00 : f32
    %207 = vector.broadcast %cst_124 : f32 to vector<4x4xf32>
    %208 = vector.broadcast %cst_125 : f32 to vector<4x4xf32>
    %209 = arith.select %206, %207, %208 : vector<4x4xi1>, vector<4x4xf32>
    %210 = vector.shape_cast %209 : vector<4x4xf32> to vector<4x4x1xf32>
    %cst_126 = arith.constant 0.000000e+00 : f32
    %211 = vector.broadcast %cst_126 : f32 to vector<1x128xf32>
    %cst_127 = arith.constant 2.000000e-01 : f32
    %212 = vector.broadcast %cst_127 : f32 to vector<4x4x128xf32>
    %213 = arith.addf %212, %191 : vector<4x4x128xf32>
    %214 = tpu.reciprocal %213 {approx = true} : vector<4x4x128xf32> -> vector<4x4x128xf32>
    %cst_128 = arith.constant 2.000000e-01 : f32
    %215 = vector.broadcast %cst_128 : f32 to vector<4x4x128xf32>
    %216 = arith.mulf %215, %214 : vector<4x4x128xf32>
    %cst_129 = arith.constant 2.000000e-01 : f32
    %217 = vector.broadcast %cst_129 : f32 to vector<4x4x128xf32>
    %218 = arith.addf %217, %197 : vector<4x4x128xf32>
    %219 = tpu.reciprocal %218 {approx = true} : vector<4x4x128xf32> -> vector<4x4x128xf32>
    %cst_130 = arith.constant 2.000000e-01 : f32
    %220 = vector.broadcast %cst_130 : f32 to vector<4x4x128xf32>
    %221 = arith.mulf %220, %219 : vector<4x4x128xf32>
    %222 = arith.addf %216, %221 : vector<4x4x128xf32>
    %223 = vector.broadcast %210 : vector<4x4x1xf32> to vector<4x4x128xf32>
    %224 = arith.mulf %223, %222 : vector<4x4x128xf32>
    %cst_131 = arith.constant dense<0.000000e+00> : vector<4x128xf32>
    %225 = vector.multi_reduction <add>, %224, %cst_131 [0] : vector<4x4x128xf32> to vector<4x128xf32>
    %cst_132 = arith.constant dense<0.000000e+00> : vector<128xf32>
    %226 = vector.multi_reduction <add>, %225, %cst_132 [0] : vector<4x128xf32> to vector<128xf32>
    %227 = vector.shape_cast %226 : vector<128xf32> to vector<1x128xf32>
    %cst_133 = arith.constant 3.000000e+00 : f32
    %228 = vector.broadcast %cst_133 : f32 to vector<1x128xf32>
    %229 = arith.divf %227, %228 : vector<1x128xf32>
    %cst_134 = arith.constant 2.000000e-01 : f32
    %230 = vector.broadcast %cst_134 : f32 to vector<4x4x128xf32>
    %231 = arith.addf %230, %203 : vector<4x4x128xf32>
    %232 = tpu.reciprocal %231 {approx = true} : vector<4x4x128xf32> -> vector<4x4x128xf32>
    %cst_135 = arith.constant 2.000000e-01 : f32
    %233 = vector.broadcast %cst_135 : f32 to vector<4x4x128xf32>
    %234 = arith.mulf %233, %232 : vector<4x4x128xf32>
    %cst_136 = arith.constant dense<0.000000e+00> : vector<4x128xf32>
    %235 = vector.multi_reduction <add>, %234, %cst_136 [0] : vector<4x4x128xf32> to vector<4x128xf32>
    %cst_137 = arith.constant dense<0.000000e+00> : vector<128xf32>
    %236 = vector.multi_reduction <add>, %235, %cst_137 [0] : vector<4x128xf32> to vector<128xf32>
    %237 = vector.shape_cast %236 : vector<128xf32> to vector<1x128xf32>
    %cst_138 = arith.constant 5.000000e-01 : f32
    %238 = vector.broadcast %cst_138 : f32 to vector<1x128xf32>
    %239 = arith.mulf %237, %238 : vector<1x128xf32>
    %240 = arith.subf %229, %239 : vector<1x128xf32>
    %241 = arith.addf %211, %240 : vector<1x128xf32>
    %cst_139 = arith.constant 4.000000e-01 : f32
    %242 = vector.broadcast %cst_139 : f32 to vector<4x4x128xf32>
    %243 = arith.addf %242, %191 : vector<4x4x128xf32>
    %244 = tpu.reciprocal %243 {approx = true} : vector<4x4x128xf32> -> vector<4x4x128xf32>
    %cst_140 = arith.constant 4.000000e-01 : f32
    %245 = vector.broadcast %cst_140 : f32 to vector<4x4x128xf32>
    %246 = arith.mulf %245, %244 : vector<4x4x128xf32>
    %cst_141 = arith.constant 4.000000e-01 : f32
    %247 = vector.broadcast %cst_141 : f32 to vector<4x4x128xf32>
    %248 = arith.addf %247, %197 : vector<4x4x128xf32>
    %249 = tpu.reciprocal %248 {approx = true} : vector<4x4x128xf32> -> vector<4x4x128xf32>
    %cst_142 = arith.constant 4.000000e-01 : f32
    %250 = vector.broadcast %cst_142 : f32 to vector<4x4x128xf32>
    %251 = arith.mulf %250, %249 : vector<4x4x128xf32>
    %252 = arith.addf %246, %251 : vector<4x4x128xf32>
    %253 = vector.broadcast %210 : vector<4x4x1xf32> to vector<4x4x128xf32>
    %254 = arith.mulf %253, %252 : vector<4x4x128xf32>
    %cst_143 = arith.constant dense<0.000000e+00> : vector<4x128xf32>
    %255 = vector.multi_reduction <add>, %254, %cst_143 [0] : vector<4x4x128xf32> to vector<4x128xf32>
    %cst_144 = arith.constant dense<0.000000e+00> : vector<128xf32>
    %256 = vector.multi_reduction <add>, %255, %cst_144 [0] : vector<4x128xf32> to vector<128xf32>
    %257 = vector.shape_cast %256 : vector<128xf32> to vector<1x128xf32>
    %cst_145 = arith.constant 3.000000e+00 : f32
    %258 = vector.broadcast %cst_145 : f32 to vector<1x128xf32>
    %259 = arith.divf %257, %258 : vector<1x128xf32>
    %cst_146 = arith.constant 4.000000e-01 : f32
    %260 = vector.broadcast %cst_146 : f32 to vector<4x4x128xf32>
    %261 = arith.addf %260, %203 : vector<4x4x128xf32>
    %262 = tpu.reciprocal %261 {approx = true} : vector<4x4x128xf32> -> vector<4x4x128xf32>
    %cst_147 = arith.constant 4.000000e-01 : f32
    %263 = vector.broadcast %cst_147 : f32 to vector<4x4x128xf32>
    %264 = arith.mulf %263, %262 : vector<4x4x128xf32>
    %cst_148 = arith.constant dense<0.000000e+00> : vector<4x128xf32>
    %265 = vector.multi_reduction <add>, %264, %cst_148 [0] : vector<4x4x128xf32> to vector<4x128xf32>
    %cst_149 = arith.constant dense<0.000000e+00> : vector<128xf32>
    %266 = vector.multi_reduction <add>, %265, %cst_149 [0] : vector<4x128xf32> to vector<128xf32>
    %267 = vector.shape_cast %266 : vector<128xf32> to vector<1x128xf32>
    %cst_150 = arith.constant 5.000000e-01 : f32
    %268 = vector.broadcast %cst_150 : f32 to vector<1x128xf32>
    %269 = arith.mulf %267, %268 : vector<1x128xf32>
    %270 = arith.subf %259, %269 : vector<1x128xf32>
    %271 = arith.addf %241, %270 : vector<1x128xf32>
    %cst_151 = arith.constant 1.000000e+00 : f32
    %272 = vector.broadcast %cst_151 : f32 to vector<4x4x128xf32>
    %273 = arith.addf %272, %191 : vector<4x4x128xf32>
    %274 = tpu.reciprocal %273 {approx = true} : vector<4x4x128xf32> -> vector<4x4x128xf32>
    %cst_152 = arith.constant 1.000000e+00 : f32
    %275 = vector.broadcast %cst_152 : f32 to vector<4x4x128xf32>
    %276 = arith.mulf %275, %274 : vector<4x4x128xf32>
    %cst_153 = arith.constant 1.000000e+00 : f32
    %277 = vector.broadcast %cst_153 : f32 to vector<4x4x128xf32>
    %278 = arith.addf %277, %197 : vector<4x4x128xf32>
    %279 = tpu.reciprocal %278 {approx = true} : vector<4x4x128xf32> -> vector<4x4x128xf32>
    %cst_154 = arith.constant 1.000000e+00 : f32
    %280 = vector.broadcast %cst_154 : f32 to vector<4x4x128xf32>
    %281 = arith.mulf %280, %279 : vector<4x4x128xf32>
    %282 = arith.addf %276, %281 : vector<4x4x128xf32>
    %283 = vector.broadcast %210 : vector<4x4x1xf32> to vector<4x4x128xf32>
    %284 = arith.mulf %283, %282 : vector<4x4x128xf32>
    %cst_155 = arith.constant dense<0.000000e+00> : vector<4x128xf32>
    %285 = vector.multi_reduction <add>, %284, %cst_155 [0] : vector<4x4x128xf32> to vector<4x128xf32>
    %cst_156 = arith.constant dense<0.000000e+00> : vector<128xf32>
    %286 = vector.multi_reduction <add>, %285, %cst_156 [0] : vector<4x128xf32> to vector<128xf32>
    %287 = vector.shape_cast %286 : vector<128xf32> to vector<1x128xf32>
    %cst_157 = arith.constant 3.000000e+00 : f32
    %288 = vector.broadcast %cst_157 : f32 to vector<1x128xf32>
    %289 = arith.divf %287, %288 : vector<1x128xf32>
    %cst_158 = arith.constant 1.000000e+00 : f32
    %290 = vector.broadcast %cst_158 : f32 to vector<4x4x128xf32>
    %291 = arith.addf %290, %203 : vector<4x4x128xf32>
    %292 = tpu.reciprocal %291 {approx = true} : vector<4x4x128xf32> -> vector<4x4x128xf32>
    %cst_159 = arith.constant 1.000000e+00 : f32
    %293 = vector.broadcast %cst_159 : f32 to vector<4x4x128xf32>
    %294 = arith.mulf %293, %292 : vector<4x4x128xf32>
    %cst_160 = arith.constant dense<0.000000e+00> : vector<4x128xf32>
    %295 = vector.multi_reduction <add>, %294, %cst_160 [0] : vector<4x4x128xf32> to vector<4x128xf32>
    %cst_161 = arith.constant dense<0.000000e+00> : vector<128xf32>
    %296 = vector.multi_reduction <add>, %295, %cst_161 [0] : vector<4x128xf32> to vector<128xf32>
    %297 = vector.shape_cast %296 : vector<128xf32> to vector<1x128xf32>
    %cst_162 = arith.constant 5.000000e-01 : f32
    %298 = vector.broadcast %cst_162 : f32 to vector<1x128xf32>
    %299 = arith.mulf %297, %298 : vector<1x128xf32>
    %300 = arith.subf %289, %299 : vector<1x128xf32>
    %301 = arith.addf %271, %300 : vector<1x128xf32>
    %cst_163 = arith.constant 2.000000e+00 : f32
    %302 = vector.broadcast %cst_163 : f32 to vector<4x4x128xf32>
    %303 = arith.addf %302, %191 : vector<4x4x128xf32>
    %304 = tpu.reciprocal %303 {approx = true} : vector<4x4x128xf32> -> vector<4x4x128xf32>
    %cst_164 = arith.constant 2.000000e+00 : f32
    %305 = vector.broadcast %cst_164 : f32 to vector<4x4x128xf32>
    %306 = arith.mulf %305, %304 : vector<4x4x128xf32>
    %cst_165 = arith.constant 2.000000e+00 : f32
    %307 = vector.broadcast %cst_165 : f32 to vector<4x4x128xf32>
    %308 = arith.addf %307, %197 : vector<4x4x128xf32>
    %309 = tpu.reciprocal %308 {approx = true} : vector<4x4x128xf32> -> vector<4x4x128xf32>
    %cst_166 = arith.constant 2.000000e+00 : f32
    %310 = vector.broadcast %cst_166 : f32 to vector<4x4x128xf32>
    %311 = arith.mulf %310, %309 : vector<4x4x128xf32>
    %312 = arith.addf %306, %311 : vector<4x4x128xf32>
    %313 = vector.broadcast %210 : vector<4x4x1xf32> to vector<4x4x128xf32>
    %314 = arith.mulf %313, %312 : vector<4x4x128xf32>
    %cst_167 = arith.constant dense<0.000000e+00> : vector<4x128xf32>
    %315 = vector.multi_reduction <add>, %314, %cst_167 [0] : vector<4x4x128xf32> to vector<4x128xf32>
    %cst_168 = arith.constant dense<0.000000e+00> : vector<128xf32>
    %316 = vector.multi_reduction <add>, %315, %cst_168 [0] : vector<4x128xf32> to vector<128xf32>
    %317 = vector.shape_cast %316 : vector<128xf32> to vector<1x128xf32>
    %cst_169 = arith.constant 3.000000e+00 : f32
    %318 = vector.broadcast %cst_169 : f32 to vector<1x128xf32>
    %319 = arith.divf %317, %318 : vector<1x128xf32>
    %cst_170 = arith.constant 2.000000e+00 : f32
    %320 = vector.broadcast %cst_170 : f32 to vector<4x4x128xf32>
    %321 = arith.addf %320, %203 : vector<4x4x128xf32>
    %322 = tpu.reciprocal %321 {approx = true} : vector<4x4x128xf32> -> vector<4x4x128xf32>
    %cst_171 = arith.constant 2.000000e+00 : f32
    %323 = vector.broadcast %cst_171 : f32 to vector<4x4x128xf32>
    %324 = arith.mulf %323, %322 : vector<4x4x128xf32>
    %cst_172 = arith.constant dense<0.000000e+00> : vector<4x128xf32>
    %325 = vector.multi_reduction <add>, %324, %cst_172 [0] : vector<4x4x128xf32> to vector<4x128xf32>
    %cst_173 = arith.constant dense<0.000000e+00> : vector<128xf32>
    %326 = vector.multi_reduction <add>, %325, %cst_173 [0] : vector<4x128xf32> to vector<128xf32>
    %327 = vector.shape_cast %326 : vector<128xf32> to vector<1x128xf32>
    %cst_174 = arith.constant 5.000000e-01 : f32
    %328 = vector.broadcast %cst_174 : f32 to vector<1x128xf32>
    %329 = arith.mulf %327, %328 : vector<1x128xf32>
    %330 = arith.subf %319, %329 : vector<1x128xf32>
    %331 = arith.addf %301, %330 : vector<1x128xf32>
    %cst_175 = arith.constant 4.000000e+00 : f32
    %332 = vector.broadcast %cst_175 : f32 to vector<4x4x128xf32>
    %333 = arith.addf %332, %191 : vector<4x4x128xf32>
    %334 = tpu.reciprocal %333 {approx = true} : vector<4x4x128xf32> -> vector<4x4x128xf32>
    %cst_176 = arith.constant 4.000000e+00 : f32
    %335 = vector.broadcast %cst_176 : f32 to vector<4x4x128xf32>
    %336 = arith.mulf %335, %334 : vector<4x4x128xf32>
    %cst_177 = arith.constant 4.000000e+00 : f32
    %337 = vector.broadcast %cst_177 : f32 to vector<4x4x128xf32>
    %338 = arith.addf %337, %197 : vector<4x4x128xf32>
    %339 = tpu.reciprocal %338 {approx = true} : vector<4x4x128xf32> -> vector<4x4x128xf32>
    %cst_178 = arith.constant 4.000000e+00 : f32
    %340 = vector.broadcast %cst_178 : f32 to vector<4x4x128xf32>
    %341 = arith.mulf %340, %339 : vector<4x4x128xf32>
    %342 = arith.addf %336, %341 : vector<4x4x128xf32>
    %343 = vector.broadcast %210 : vector<4x4x1xf32> to vector<4x4x128xf32>
    %344 = arith.mulf %343, %342 : vector<4x4x128xf32>
    %cst_179 = arith.constant dense<0.000000e+00> : vector<4x128xf32>
    %345 = vector.multi_reduction <add>, %344, %cst_179 [0] : vector<4x4x128xf32> to vector<4x128xf32>
    %cst_180 = arith.constant dense<0.000000e+00> : vector<128xf32>
    %346 = vector.multi_reduction <add>, %345, %cst_180 [0] : vector<4x128xf32> to vector<128xf32>
    %347 = vector.shape_cast %346 : vector<128xf32> to vector<1x128xf32>
    %cst_181 = arith.constant 3.000000e+00 : f32
    %348 = vector.broadcast %cst_181 : f32 to vector<1x128xf32>
    %349 = arith.divf %347, %348 : vector<1x128xf32>
    %cst_182 = arith.constant 4.000000e+00 : f32
    %350 = vector.broadcast %cst_182 : f32 to vector<4x4x128xf32>
    %351 = arith.addf %350, %203 : vector<4x4x128xf32>
    %352 = tpu.reciprocal %351 {approx = true} : vector<4x4x128xf32> -> vector<4x4x128xf32>
    %cst_183 = arith.constant 4.000000e+00 : f32
    %353 = vector.broadcast %cst_183 : f32 to vector<4x4x128xf32>
    %354 = arith.mulf %353, %352 : vector<4x4x128xf32>
    %cst_184 = arith.constant dense<0.000000e+00> : vector<4x128xf32>
    %355 = vector.multi_reduction <add>, %354, %cst_184 [0] : vector<4x4x128xf32> to vector<4x128xf32>
    %cst_185 = arith.constant dense<0.000000e+00> : vector<128xf32>
    %356 = vector.multi_reduction <add>, %355, %cst_185 [0] : vector<4x128xf32> to vector<128xf32>
    %357 = vector.shape_cast %356 : vector<128xf32> to vector<1x128xf32>
    %cst_186 = arith.constant 5.000000e-01 : f32
    %358 = vector.broadcast %cst_186 : f32 to vector<1x128xf32>
    %359 = arith.mulf %357, %358 : vector<1x128xf32>
    %360 = arith.subf %349, %359 : vector<1x128xf32>
    %361 = arith.addf %331, %360 : vector<1x128xf32>
    %cst_187 = arith.constant 1.000000e+01 : f32
    %362 = vector.broadcast %cst_187 : f32 to vector<4x4x128xf32>
    %363 = arith.addf %362, %191 : vector<4x4x128xf32>
    %364 = tpu.reciprocal %363 {approx = true} : vector<4x4x128xf32> -> vector<4x4x128xf32>
    %cst_188 = arith.constant 1.000000e+01 : f32
    %365 = vector.broadcast %cst_188 : f32 to vector<4x4x128xf32>
    %366 = arith.mulf %365, %364 : vector<4x4x128xf32>
    %cst_189 = arith.constant 1.000000e+01 : f32
    %367 = vector.broadcast %cst_189 : f32 to vector<4x4x128xf32>
    %368 = arith.addf %367, %197 : vector<4x4x128xf32>
    %369 = tpu.reciprocal %368 {approx = true} : vector<4x4x128xf32> -> vector<4x4x128xf32>
    %cst_190 = arith.constant 1.000000e+01 : f32
    %370 = vector.broadcast %cst_190 : f32 to vector<4x4x128xf32>
    %371 = arith.mulf %370, %369 : vector<4x4x128xf32>
    %372 = arith.addf %366, %371 : vector<4x4x128xf32>
    %373 = vector.broadcast %210 : vector<4x4x1xf32> to vector<4x4x128xf32>
    %374 = arith.mulf %373, %372 : vector<4x4x128xf32>
    %cst_191 = arith.constant dense<0.000000e+00> : vector<4x128xf32>
    %375 = vector.multi_reduction <add>, %374, %cst_191 [0] : vector<4x4x128xf32> to vector<4x128xf32>
    %cst_192 = arith.constant dense<0.000000e+00> : vector<128xf32>
    %376 = vector.multi_reduction <add>, %375, %cst_192 [0] : vector<4x128xf32> to vector<128xf32>
    %377 = vector.shape_cast %376 : vector<128xf32> to vector<1x128xf32>
    %cst_193 = arith.constant 3.000000e+00 : f32
    %378 = vector.broadcast %cst_193 : f32 to vector<1x128xf32>
    %379 = arith.divf %377, %378 : vector<1x128xf32>
    %cst_194 = arith.constant 1.000000e+01 : f32
    %380 = vector.broadcast %cst_194 : f32 to vector<4x4x128xf32>
    %381 = arith.addf %380, %203 : vector<4x4x128xf32>
    %382 = tpu.reciprocal %381 {approx = true} : vector<4x4x128xf32> -> vector<4x4x128xf32>
    %cst_195 = arith.constant 1.000000e+01 : f32
    %383 = vector.broadcast %cst_195 : f32 to vector<4x4x128xf32>
    %384 = arith.mulf %383, %382 : vector<4x4x128xf32>
    %cst_196 = arith.constant dense<0.000000e+00> : vector<4x128xf32>
    %385 = vector.multi_reduction <add>, %384, %cst_196 [0] : vector<4x4x128xf32> to vector<4x128xf32>
    %cst_197 = arith.constant dense<0.000000e+00> : vector<128xf32>
    %386 = vector.multi_reduction <add>, %385, %cst_197 [0] : vector<4x128xf32> to vector<128xf32>
    %387 = vector.shape_cast %386 : vector<128xf32> to vector<1x128xf32>
    %cst_198 = arith.constant 5.000000e-01 : f32
    %388 = vector.broadcast %cst_198 : f32 to vector<1x128xf32>
    %389 = arith.mulf %387, %388 : vector<1x128xf32>
    %390 = arith.subf %379, %389 : vector<1x128xf32>
    %391 = arith.addf %361, %390 : vector<1x128xf32>
    %392 = vector.shape_cast %391 : vector<1x128xf32> to vector<1x1x128xf32>
    %cst_199 = arith.constant dense<0.000000e+00> : vector<1xf32>
    %393 = vector.multi_reduction <add>, %392, %cst_199 [1, 2] : vector<1x1x128xf32> to vector<1xf32>
    %394 = vector.shape_cast %393 : vector<1xf32> to vector<1x1x1xf32>
    %395 = vector.extract %394[0, 0, 0] : f32 from vector<1x1x1xf32>
    %cst_200 = arith.constant 4.000000e+00 : f32
    %396 = arith.divf %395, %cst_200 : f32
    %cst_201 = arith.constant 1.000000e+00 : f32
    %397 = vector.broadcast %cst_201 : f32 to vector<4x1xf32>
    %398 = arith.mulf %397, %170 : vector<4x1xf32>
    %399 = arith.subf %184, %398 : vector<4x1xf32>
    %cst_202 = arith.constant 1.000000e+00 : f32
    %400 = arith.mulf %cst_202, %396 : f32
    %401 = vector.broadcast %400 : f32 to vector<4x1xf32>
    %402 = arith.subf %399, %401 : vector<4x1xf32>
    %cst_203 = arith.constant 0.000000e+00 : f32
    %403 = vector.broadcast %cst_203 : f32 to vector<4x1xf32>
    %404 = arith.subf %403, %402 : vector<4x1xf32>
    %405 = tpu.iota {dimensions = array<i32: 1>} : vector<4x128xi32>
    %c0_i32 = arith.constant 0 : i32
    %406 = vector.broadcast %c0_i32 : i32 to vector<4x128xi32>
    %407 = arith.cmpi eq, %405, %406 : vector<4x128xi32>
    %cst_204 = arith.constant 0.000000e+00 : f32
    %408 = vector.shape_cast %170 : vector<4x1xf32> to vector<4x1xf32>
    %409 = vector.broadcast %408 : vector<4x1xf32> to vector<4x128xf32>
    %410 = vector.broadcast %cst_204 : f32 to vector<4x128xf32>
    %411 = arith.select %407, %409, %410 : vector<4x128xi1>, vector<4x128xf32>
    %c1_i32 = arith.constant 1 : i32
    %412 = vector.broadcast %c1_i32 : i32 to vector<4x128xi32>
    %413 = arith.cmpi eq, %405, %412 : vector<4x128xi32>
    %cst_205 = arith.constant 0.000000e+00 : f32
    %414 = vector.shape_cast %184 : vector<4x1xf32> to vector<4x1xf32>
    %415 = vector.broadcast %414 : vector<4x1xf32> to vector<4x128xf32>
    %416 = vector.broadcast %cst_205 : f32 to vector<4x128xf32>
    %417 = arith.select %413, %415, %416 : vector<4x128xi1>, vector<4x128xf32>
    %418 = arith.addf %411, %417 : vector<4x128xf32>
    %c2_i32 = arith.constant 2 : i32
    %419 = vector.broadcast %c2_i32 : i32 to vector<4x128xi32>
    %420 = arith.cmpi eq, %405, %419 : vector<4x128xi32>
    %cst_206 = arith.constant 0.000000e+00 : f32
    %421 = vector.broadcast %396 : f32 to vector<4x128xf32>
    %422 = vector.broadcast %cst_206 : f32 to vector<4x128xf32>
    %423 = arith.select %420, %421, %422 : vector<4x128xi1>, vector<4x128xf32>
    %424 = arith.addf %418, %423 : vector<4x128xf32>
    %c3_i32 = arith.constant 3 : i32
    %425 = vector.broadcast %c3_i32 : i32 to vector<4x128xi32>
    %426 = arith.cmpi eq, %405, %425 : vector<4x128xi32>
    %cst_207 = arith.constant 0.000000e+00 : f32
    %427 = vector.shape_cast %402 : vector<4x1xf32> to vector<4x1xf32>
    %428 = vector.broadcast %427 : vector<4x1xf32> to vector<4x128xf32>
    %429 = vector.broadcast %cst_207 : f32 to vector<4x128xf32>
    %430 = arith.select %426, %428, %429 : vector<4x128xi1>, vector<4x128xf32>
    %431 = arith.addf %424, %430 : vector<4x128xf32>
    %c4_i32 = arith.constant 4 : i32
    %432 = vector.broadcast %c4_i32 : i32 to vector<4x128xi32>
    %433 = arith.cmpi eq, %405, %432 : vector<4x128xi32>
    %cst_208 = arith.constant 0.000000e+00 : f32
    %434 = vector.shape_cast %404 : vector<4x1xf32> to vector<4x1xf32>
    %435 = vector.broadcast %434 : vector<4x1xf32> to vector<4x128xf32>
    %436 = vector.broadcast %cst_208 : f32 to vector<4x128xf32>
    %437 = arith.select %433, %435, %436 : vector<4x128xi1>, vector<4x128xf32>
    %438 = arith.addf %431, %437 : vector<4x128xf32>
    %c0_209 = arith.constant 0 : index
    %c0_210 = arith.constant 0 : index
    %439 = vector.load %arg17[%c0_209, %c0_210] : memref<4x128xf32, #tpu.memory_space<vmem>>, vector<4x128xf32>
    tpu.vector_store %arg17[%c0_209, %c0_210], %438 {strides = array<i32>} : memref<4x128xf32, #tpu.memory_space<vmem>>, vector<4x128xf32>,
    return
  }
  func.func @transform_0(%arg0: i32) -> (i32, i32, i32) {
    %c0_i32 = arith.constant 0 : i32
    %c0_i32_0 = arith.constant 0 : i32
    %c0_i32_1 = arith.constant 0 : i32
    %c0_i32_2 = arith.constant 0 : i32
    return %c0_i32, %c0_i32_0, %c0_i32_1 : i32, i32, i32
  }
  func.func @transform_1(%arg0: i32) -> (i32, i32, i32) {
    %c0_i32 = arith.constant 0 : i32
    %c0_i32_0 = arith.constant 0 : i32
    %c0_i32_1 = arith.constant 0 : i32
    %c0_i32_2 = arith.constant 0 : i32
    return %c0_i32, %c0_i32_0, %c0_i32_1 : i32, i32, i32
  }
  func.func @transform_2(%arg0: i32) -> (i32, i32) {
    %c0_i32 = arith.constant 0 : i32
    %c0_i32_0 = arith.constant 0 : i32
    %c0_i32_1 = arith.constant 0 : i32
    return %c0_i32, %c0_i32_0 : i32, i32
  }
  func.func @transform_3(%arg0: i32) -> (i32, i32) {
    %c0_i32 = arith.constant 0 : i32
    %c0_i32_0 = arith.constant 0 : i32
    %c0_i32_1 = arith.constant 0 : i32
    return %c0_i32, %c0_i32_0 : i32, i32
  }
  func.func @transform_4(%arg0: i32) -> (i32, i32) {
    %c0_i32 = arith.constant 0 : i32
    %c0_i32_0 = arith.constant 0 : i32
    %c0_i32_1 = arith.constant 0 : i32
    return %c0_i32, %c0_i32_0 : i32, i32
  }
  func.func @transform_5(%arg0: i32) -> (i32, i32) {
    %c0_i32 = arith.constant 0 : i32
    %c0_i32_0 = arith.constant 0 : i32
    %c0_i32_1 = arith.constant 0 : i32
    return %c0_i32, %c0_i32_0 : i32, i32
  }
  func.func @transform_6(%arg0: i32) -> (i32, i32) {
    %c0_i32 = arith.constant 0 : i32
    %c0_i32_0 = arith.constant 0 : i32
    %c0_i32_1 = arith.constant 0 : i32
    return %c0_i32, %c0_i32_0 : i32, i32
  }
  func.func @transform_7(%arg0: i32) -> (i32, i32) {
    %c0_i32 = arith.constant 0 : i32
    %c0_i32_0 = arith.constant 0 : i32
    %c0_i32_1 = arith.constant 0 : i32
    return %c0_i32, %c0_i32_0 : i32, i32
  }
  func.func @transform_8(%arg0: i32) -> (i32, i32) {
    %c0_i32 = arith.constant 0 : i32
    %c0_i32_0 = arith.constant 0 : i32
    %c0_i32_1 = arith.constant 0 : i32
    return %c0_i32, %c0_i32_0 : i32, i32
  }
  func.func @transform_9(%arg0: i32) -> (i32, i32) {
    %c0_i32 = arith.constant 0 : i32
    %c0_i32_0 = arith.constant 0 : i32
    %c0_i32_1 = arith.constant 0 : i32
    return %c0_i32, %c0_i32_0 : i32, i32
  }
  func.func @transform_10(%arg0: i32) -> (i32, i32) {
    %c0_i32 = arith.constant 0 : i32
    %c0_i32_0 = arith.constant 0 : i32
    %c0_i32_1 = arith.constant 0 : i32
    return %c0_i32, %c0_i32_0 : i32, i32
  }
  func.func @transform_11(%arg0: i32) -> (i32, i32) {
    %c0_i32 = arith.constant 0 : i32
    %c0_i32_0 = arith.constant 0 : i32
    %c0_i32_1 = arith.constant 0 : i32
    return %c0_i32, %c0_i32_0 : i32, i32
  }
  func.func @transform_12(%arg0: i32) -> (i32, i32) {
    %c0_i32 = arith.constant 0 : i32
    %c0_i32_0 = arith.constant 0 : i32
    %c0_i32_1 = arith.constant 0 : i32
    return %c0_i32, %c0_i32_0 : i32, i32
  }
  func.func @transform_13(%arg0: i32) -> (i32, i32) {
    %c0_i32 = arith.constant 0 : i32
    %c0_i32_0 = arith.constant 0 : i32
    %c0_i32_1 = arith.constant 0 : i32
    return %c0_i32, %c0_i32_0 : i32, i32
  }
  func.func @transform_14(%arg0: i32) -> (i32, i32) {
    %c0_i32 = arith.constant 0 : i32
    %c0_i32_0 = arith.constant 0 : i32
    %c0_i32_1 = arith.constant 0 : i32
    return %c0_i32, %c0_i32_0 : i32, i32
  }
  func.func @transform_15(%arg0: i32) -> (i32, i32) {
    %c0_i32 = arith.constant 0 : i32
    %c0_i32_0 = arith.constant 0 : i32
    %c0_i32_1 = arith.constant 0 : i32
    return %c0_i32, %c0_i32_0 : i32, i32
  }
  func.func @transform_16(%arg0: i32) -> (i32, i32) {
    %c0_i32 = arith.constant 0 : i32
    %c0_i32_0 = arith.constant 0 : i32
    %c0_i32_1 = arith.constant 0 : i32
    return %c0_i32, %c0_i32_0 : i32, i32
  }
}

</mosaic_0001>

<llo_original>
// kernel: base_vae_forward.3
$region0: #{base_vae_forward.3}
  #allocation0 [shape = 'u32[]', space=smem, size = 0x4, offset = 0x4, fixed_abs, tag = 'smem constant byte address 0x4 - core index']
  #allocation1 [shape = 'u32[144,128]{1,0:T(1,128)}', space=vmem, size = 0x12000, scoped, tag = 'internal scratch']
  %s0 = inlined_call_operand.vmem [shape: f32[16,4,3136], index: 0, kind: input, shape index: {}]
  %s1 = inlined_call_operand.vmem [shape: f32[16,1,3136], index: 1, kind: input, shape index: {}]
  %s2 = inlined_call_operand.vmem [shape: f32[1,3136], index: 2, kind: input, shape index: {}]
  %s3 = inlined_call_operand.vmem [shape: bf16[3136,256], index: 3, kind: input, shape index: {}]
  %s4 = inlined_call_operand.vmem [shape: f32[1,256], index: 4, kind: input, shape index: {}]
  %s5 = inlined_call_operand.vmem [shape: bf16[256,256], index: 5, kind: input, shape index: {}]
  %s6 = inlined_call_operand.vmem [shape: f32[1,256], index: 6, kind: input, shape index: {}]
  %s7 = inlined_call_operand.vmem [shape: bf16[128,256], index: 7, kind: input, shape index: {}]
  %s8 = inlined_call_operand.vmem [shape: f32[1,256], index: 8, kind: input, shape index: {}]
  %s9 = inlined_call_operand.vmem [shape: bf16[256,896], index: 9, kind: input, shape index: {}]
  %s10 = inlined_call_operand.vmem [shape: f32[1,896], index: 10, kind: input, shape index: {}]
  %s11 = inlined_call_operand.vmem [shape: f32[4,896], index: 11, kind: input, shape index: {}]
  %s12 = inlined_call_operand.vmem [shape: f32[4,128], index: 12, kind: input, shape index: {}]
  %s13 = inlined_call_operand.vmem [shape: f32[4,128], index: 13, kind: input, shape index: {}]
  %s14 = inlined_call_operand.vmem [shape: f32[4,896], index: 14, kind: output, shape index: {0}]
  %s15 = inlined_call_operand.hbm [shape: f32[4,128], index: 15, kind: output, shape index: {1}]
  %s16 = inlined_call_operand.vmem [shape: f32[4,128], index: 16, kind: output, shape index: {2}]
  %17 = xla_tuple %s14, %s15, %s16
  %s18 = sld [smem:[#allocation0]]
  $region82: #{base_vae_forward.3} parent=0
    _
  %s20 = ssub.s32 1, %s18
  %s21 = scalar_select 0, %s20, %s18
  $region1: #{base_vae_forward.3} parent=0
    #allocation2 [shape = 'u8[2048]{0}', space=vmem, size = 0x800, scoped, tag = 'output window, operand 1, single buffered']
    #allocation3 [shape = 's32[1]{0}', space=sflag, size = 0x4, scoped, tag = 'scoped memory for base_vae_forward.3']
    %22 = vsyncpa [#allocation3], 0
    // Predicated region
    $region2: #{base_vae_forward.3} parent=1 // pred_check
      _
    $region3: #{base_vae_forward.3} parent=1 // pred_check_branch
      %24 = sbr.rel (0) target = $region5
    $region4: #{base_vae_forward.3} parent=1 // pred_region
      _
    $region5: #{base_vae_forward.3} parent=1 // pred_fallthru
      _
    // Predicated region
    $region6: #{base_vae_forward.3} parent=1 // pred_check
      _
    $region7: #{base_vae_forward.3} parent=1 // pred_check_branch
      %26 = sbr.rel (0) target = $region9
    $region8: #{base_vae_forward.3} parent=1 // pred_region
      _
    $region9: #{base_vae_forward.3} parent=1 // pred_fallthru
      _
    // Predicated region
    $region10: #{base_vae_forward.3} parent=1 // pred_check
      _
    $region11: #{base_vae_forward.3} parent=1 // pred_check_branch
      %28 = sbr.rel (0) target = $region13
    $region12: #{base_vae_forward.3} parent=1 // pred_region
      _
    $region13: #{base_vae_forward.3} parent=1 // pred_fallthru
      _
    // Predicated region
    $region14: #{base_vae_forward.3} parent=1 // pred_check
      _
    $region15: #{base_vae_forward.3} parent=1 // pred_check_branch
      %30 = sbr.rel (0) target = $region17
    $region16: #{base_vae_forward.3} parent=1 // pred_region
      _
    $region17: #{base_vae_forward.3} parent=1 // pred_fallthru
      _
    // Predicated region
    $region18: #{base_vae_forward.3} parent=1 // pred_check
      _
    $region19: #{base_vae_forward.3} parent=1 // pred_check_branch
      %32 = sbr.rel (0) target = $region21
    $region20: #{base_vae_forward.3} parent=1 // pred_region
      _
    $region21: #{base_vae_forward.3} parent=1 // pred_fallthru
      _
    // Predicated region
    $region22: #{base_vae_forward.3} parent=1 // pred_check
      _
    $region23: #{base_vae_forward.3} parent=1 // pred_check_branch
      %34 = sbr.rel (0) target = $region25
    $region24: #{base_vae_forward.3} parent=1 // pred_region
      _
    $region25: #{base_vae_forward.3} parent=1 // pred_fallthru
      _
    // Predicated region
    $region26: #{base_vae_forward.3} parent=1 // pred_check
      _
    $region27: #{base_vae_forward.3} parent=1 // pred_check_branch
      %36 = sbr.rel (0) target = $region29
    $region28: #{base_vae_forward.3} parent=1 // pred_region
      _
    $region29: #{base_vae_forward.3} parent=1 // pred_fallthru
      _
    // Predicated region
    $region30: #{base_vae_forward.3} parent=1 // pred_check
      _
    $region31: #{base_vae_forward.3} parent=1 // pred_check_branch
      %38 = sbr.rel (0) target = $region33
    $region32: #{base_vae_forward.3} parent=1 // pred_region
      _
    $region33: #{base_vae_forward.3} parent=1 // pred_fallthru
      _
    // Predicated region
    $region34: #{base_vae_forward.3} parent=1 // pred_check
      _
    $region35: #{base_vae_forward.3} parent=1 // pred_check_branch
      %40 = sbr.rel (0) target = $region37
    $region36: #{base_vae_forward.3} parent=1 // pred_region
      _
    $region37: #{base_vae_forward.3} parent=1 // pred_fallthru
      _
    // Predicated region
    $region38: #{base_vae_forward.3} parent=1 // pred_check
      _
    $region39: #{base_vae_forward.3} parent=1 // pred_check_branch
      %42 = sbr.rel (0) target = $region41
    $region40: #{base_vae_forward.3} parent=1 // pred_region
      _
    $region41: #{base_vae_forward.3} parent=1 // pred_fallthru
      _
    // Predicated region
    $region42: #{base_vae_forward.3} parent=1 // pred_check
      _
    $region43: #{base_vae_forward.3} parent=1 // pred_check_branch
      %44 = sbr.rel (0) target = $region45
    $region44: #{base_vae_forward.3} parent=1 // pred_region
      _
    $region45: #{base_vae_forward.3} parent=1 // pred_fallthru
      _
    // Predicated region
    $region46: #{base_vae_forward.3} parent=1 // pred_check
      _
    $region47: #{base_vae_forward.3} parent=1 // pred_check_branch
      %46 = sbr.rel (0) target = $region49
    $region48: #{base_vae_forward.3} parent=1 // pred_region
      _
    $region49: #{base_vae_forward.3} parent=1 // pred_fallthru
      _
    // Predicated region
    $region50: #{base_vae_forward.3} parent=1 // pred_check
      _
    $region51: #{base_vae_forward.3} parent=1 // pred_check_branch
      %48 = sbr.rel (0) target = $region53
    $region52: #{base_vae_forward.3} parent=1 // pred_region
      _
    $region53: #{base_vae_forward.3} parent=1 // pred_fallthru
      _
    // Predicated region
    $region54: #{base_vae_forward.3} parent=1 // pred_check
      _
    $region55: #{base_vae_forward.3} parent=1 // pred_check_branch
      %50 = sbr.rel (0) target = $region57
    $region56: #{base_vae_forward.3} parent=1 // pred_region
      _
    $region57: #{base_vae_forward.3} parent=1 // pred_fallthru
      _
    %v52 = vld [vmem:[%s0] sm:$0xff]
    %v53 = vld [vmem:[%s0 + $0x8] sm:$0xff]
    %v54 = vld [vmem:[%s0 + $0x10] sm:$0xff]
    %v55 = vld [vmem:[%s0 + $0x18] sm:$0xff]
    %v56 = vld [vmem:[%s0 + $0x20] sm:$0xff]
    %v57 = vld [vmem:[%s0 + $0x28] sm:$0xff]
    %v58 = vld [vmem:[%s0 + $0x30] sm:$0xff]
    %v59 = vld [vmem:[%s0 + $0x38] sm:$0xff]
    %v60 = vld [vmem:[%s0 + $0x40] sm:$0xff]
    %v61 = vld [vmem:[%s0 + $0x48] sm:$0xff]
    %v62 = vld [vmem:[%s0 + $0x50] sm:$0xff]
    %v63 = vld [vmem:[%s0 + $0x58] sm:$0xff]
    %v64 = vld [vmem:[%s0 + $0x60] sm:$0xf]
    %v65 = vld [vmem:[%s1] sm:$0xff]
    %v66 = vld [vmem:[%s1 + $0x8] sm:$0xff]
    %v67 = vld [vmem:[%s1 + $0x10] sm:$0xff]
    %v68 = vld [vmem:[%s1 + $0x18] sm:$0x1]
    %v73 = vlaneseq
    %v74 = vshrl.u32 %v73, 7
    %v75 = vsub.s32 0, %v74
    %v76 = vrot.slane %v65, %v75
    %v77 = vlaneseq
    %v78 = vshrl.u32 %v77, 7
    %v79 = vsub.s32 1, %v78
    %v80 = vrot.slane %v65, %v79
    %v81 = vlaneseq
    %v82 = vshrl.u32 %v81, 7
    %v83 = vsub.s32 2, %v82
    %v84 = vrot.slane %v65, %v83
    %v85 = vlaneseq
    %v86 = vshrl.u32 %v85, 7
    %v87 = vsub.s32 3, %v86
    %v88 = vrot.slane %v65, %v87
    %v89 = vlaneseq
    %v90 = vshrl.u32 %v89, 7
    %v91 = vsub.s32 4, %v90
    %v92 = vrot.slane %v65, %v91
    %v93 = vlaneseq
    %v94 = vshrl.u32 %v93, 7
    %v95 = vsub.s32 5, %v94
    %v96 = vrot.slane %v65, %v95
    %v97 = vlaneseq
    %v98 = vshrl.u32 %v97, 7
    %v99 = vsub.s32 6, %v98
    %v100 = vrot.slane %v65, %v99
    %v101 = vlaneseq
    %v102 = vshrl.u32 %v101, 7
    %v103 = vsub.s32 7, %v102
    %v104 = vrot.slane %v65, %v103
    %v105 = vlaneseq
    %v106 = vshrl.u32 %v105, 7
    %v107 = vsub.s32 0, %v106
    %v108 = vrot.slane %v66, %v107
    %v109 = vlaneseq
    %v110 = vshrl.u32 %v109, 7
    %v111 = vsub.s32 1, %v110
    %v112 = vrot.slane %v66, %v111
    %v113 = vlaneseq
    %v114 = vshrl.u32 %v113, 7
    %v115 = vsub.s32 2, %v114
    %v116 = vrot.slane %v66, %v115
    %v117 = vlaneseq
    %v118 = vshrl.u32 %v117, 7
    %v119 = vsub.s32 3, %v118
    %v120 = vrot.slane %v66, %v119
    %v121 = vlaneseq
    %v122 = vshrl.u32 %v121, 7
    %v123 = vsub.s32 4, %v122
    %v124 = vrot.slane %v66, %v123
    %v125 = vlaneseq
    %v126 = vshrl.u32 %v125, 7
    %v127 = vsub.s32 5, %v126
    %v128 = vrot.slane %v66, %v127
    %v129 = vlaneseq
    %v130 = vshrl.u32 %v129, 7
    %v131 = vsub.s32 6, %v130
    %v132 = vrot.slane %v66, %v131
    %v133 = vlaneseq
    %v134 = vshrl.u32 %v133, 7
    %v135 = vsub.s32 7, %v134
    %v136 = vrot.slane %v66, %v135
    %v137 = vlaneseq
    %v138 = vshrl.u32 %v137, 7
    %v139 = vsub.s32 0, %v138
    %v140 = vrot.slane %v67, %v139
    %v141 = vlaneseq
    %v142 = vshrl.u32 %v141, 7
    %v143 = vsub.s32 1, %v142
    %v144 = vrot.slane %v67, %v143
    %v145 = vlaneseq
    %v146 = vshrl.u32 %v145, 7
    %v147 = vsub.s32 2, %v146
    %v148 = vrot.slane %v67, %v147
    %v149 = vlaneseq
    %v150 = vshrl.u32 %v149, 7
    %v151 = vsub.s32 3, %v150
    %v152 = vrot.slane %v67, %v151
    %v153 = vlaneseq
    %v154 = vshrl.u32 %v153, 7
    %v155 = vsub.s32 4, %v154
    %v156 = vrot.slane %v67, %v155
    %v157 = vlaneseq
    %v158 = vshrl.u32 %v157, 7
    %v159 = vsub.s32 5, %v158
    %v160 = vrot.slane %v67, %v159
    %v161 = vlaneseq
    %v162 = vshrl.u32 %v161, 7
    %v163 = vsub.s32 6, %v162
    %v164 = vrot.slane %v67, %v163
    %v165 = vlaneseq
    %v166 = vshrl.u32 %v165, 7
    %v167 = vsub.s32 7, %v166
    %v168 = vrot.slane %v67, %v167
    %v169 = vlaneseq
    %v170 = vshrl.u32 %v169, 7
    %v171 = vsub.s32 0, %v170
    %v172 = vrot.slane %v68, %v171
    %v174 = vcombine.low %v76, %v80
    %v175 = vcombine.low %v84, %v88
    %v176 = vcombine.low %v92, %v96
    %v177 = vcombine.low %v100, %v104
    %v178 = vcombine.low %v108, %v112
    %v179 = vcombine.low %v116, %v120
    %v180 = vcombine.low %v124, %v128
    %v181 = vcombine.low %v132, %v136
    %v182 = vcombine.low %v140, %v144
    %v183 = vcombine.low %v148, %v152
    %v184 = vcombine.low %v156, %v160
    %v185 = vcombine.low %v164, %v168
    %v198 = vmul.f32 %v52, %v174
    %v199 = vmul.f32 %v53, %v175
    %v200 = vmul.f32 %v54, %v176
    %v201 = vmul.f32 %v55, %v177
    %v202 = vmul.f32 %v56, %v178
    %v203 = vmul.f32 %v57, %v179
    %v204 = vmul.f32 %v58, %v180
    %v205 = vmul.f32 %v59, %v181
    %v206 = vmul.f32 %v60, %v182
    %v207 = vmul.f32 %v61, %v183
    %v208 = vmul.f32 %v62, %v184
    %v209 = vmul.f32 %v63, %v185
    %v210 = vmul.f32 %v64, %v172
    %v211 = vadd.f32 %v198, 0.0
    %v212 = vadd.f32 %v199, 0.0
    %v213 = vadd.f32 %v200, 0.0
    %v214 = vadd.f32 %v201, 0.0
    %v215 = vadd.f32 %v202, 0.0
    %v216 = vadd.f32 %v203, 0.0
    %v217 = vadd.f32 %v204, 0.0
    %v218 = vadd.f32 %v205, 0.0
    %v219 = vadd.f32 %v206, 0.0
    %v220 = vadd.f32 %v207, 0.0
    %v221 = vadd.f32 %v208, 0.0
    %v222 = vadd.f32 %v209, 0.0
    %v223 = vadd.f32 %v210, 0.0
    %s224 = scalar_lea.vmem %s0, 100
    %v225 = vld [vmem:[%s224] sm:$0xff]
    %v226 = vld [vmem:[%s224 + $0x8] sm:$0xff]
    %v227 = vld [vmem:[%s224 + $0x10] sm:$0xff]
    %v228 = vld [vmem:[%s224 + $0x18] sm:$0xff]
    %v229 = vld [vmem:[%s224 + $0x20] sm:$0xff]
    %v230 = vld [vmem:[%s224 + $0x28] sm:$0xff]
    %v231 = vld [vmem:[%s224 + $0x30] sm:$0xff]
    %v232 = vld [vmem:[%s224 + $0x38] sm:$0xff]
    %v233 = vld [vmem:[%s224 + $0x40] sm:$0xff]
    %v234 = vld [vmem:[%s224 + $0x48] sm:$0xff]
    %v235 = vld [vmem:[%s224 + $0x50] sm:$0xff]
    %v236 = vld [vmem:[%s224 + $0x58] sm:$0xff]
    %v237 = vld [vmem:[%s224 + $0x60] sm:$0xf]
    %s238 = scalar_lea.vmem %s1, 25
    %v239 = vld [vmem:[%s238] sm:$0xff]
    %v240 = vld [vmem:[%s238 + $0x8] sm:$0xff]
    %v241 = vld [vmem:[%s238 + $0x10] sm:$0xff]
    %v242 = vld [vmem:[%s238 + $0x18] sm:$0x1]
    %v247 = vlaneseq
    %v248 = vshrl.u32 %v247, 7
    %v249 = vsub.s32 0, %v248
    %v250 = vrot.slane %v239, %v249
    %v251 = vlaneseq
    %v252 = vshrl.u32 %v251, 7
    %v253 = vsub.s32 1, %v252
    %v254 = vrot.slane %v239, %v253
    %v255 = vlaneseq
    %v256 = vshrl.u32 %v255, 7
    %v257 = vsub.s32 2, %v256
    %v258 = vrot.slane %v239, %v257
    %v259 = vlaneseq
    %v260 = vshrl.u32 %v259, 7
    %v261 = vsub.s32 3, %v260
    %v262 = vrot.slane %v239, %v261
    %v263 = vlaneseq
    %v264 = vshrl.u32 %v263, 7
    %v265 = vsub.s32 4, %v264
    %v266 = vrot.slane %v239, %v265
    %v267 = vlaneseq
    %v268 = vshrl.u32 %v267, 7
    %v269 = vsub.s32 5, %v268
    %v270 = vrot.slane %v239, %v269
    %v271 = vlaneseq
    %v272 = vshrl.u32 %v271, 7
    %v273 = vsub.s32 6, %v272
    %v274 = vrot.slane %v239, %v273
    %v275 = vlaneseq
    %v276 = vshrl.u32 %v275, 7
    %v277 = vsub.s32 7, %v276
    %v278 = vrot.slane %v239, %v277
    %v279 = vlaneseq
    %v280 = vshrl.u32 %v279, 7
    %v281 = vsub.s32 0, %v280
    %v282 = vrot.slane %v240, %v281
    %v283 = vlaneseq
    %v284 = vshrl.u32 %v283, 7
    %v285 = vsub.s32 1, %v284
    %v286 = vrot.slane %v240, %v285
    %v287 = vlaneseq
    %v288 = vshrl.u32 %v287, 7
    %v289 = vsub.s32 2, %v288
    %v290 = vrot.slane %v240, %v289
    %v291 = vlaneseq
    %v292 = vshrl.u32 %v291, 7
    %v293 = vsub.s32 3, %v292
    %v294 = vrot.slane %v240, %v293
    %v295 = vlaneseq
    %v296 = vshrl.u32 %v295, 7
    %v297 = vsub.s32 4, %v296
    %v298 = vrot.slane %v240, %v297
    %v299 = vlaneseq
    %v300 = vshrl.u32 %v299, 7
    %v301 = vsub.s32 5, %v300
    %v302 = vrot.slane %v240, %v301
    %v303 = vlaneseq
    %v304 = vshrl.u32 %v303, 7
    %v305 = vsub.s32 6, %v304
    %v306 = vrot.slane %v240, %v305
    %v307 = vlaneseq
    %v308 = vshrl.u32 %v307, 7
    %v309 = vsub.s32 7, %v308
    %v310 = vrot.slane %v240, %v309
    %v311 = vlaneseq
    %v312 = vshrl.u32 %v311, 7
    %v313 = vsub.s32 0, %v312
    %v314 = vrot.slane %v241, %v313
    %v315 = vlaneseq
    %v316 = vshrl.u32 %v315, 7
    %v317 = vsub.s32 1, %v316
    %v318 = vrot.slane %v241, %v317
    %v319 = vlaneseq
    %v320 = vshrl.u32 %v319, 7
    %v321 = vsub.s32 2, %v320
    %v322 = vrot.slane %v241, %v321
    %v323 = vlaneseq
    %v324 = vshrl.u32 %v323, 7
    %v325 = vsub.s32 3, %v324
    %v326 = vrot.slane %v241, %v325
    %v327 = vlaneseq
    %v328 = vshrl.u32 %v327, 7
    %v329 = vsub.s32 4, %v328
    %v330 = vrot.slane %v241, %v329
    %v331 = vlaneseq
    %v332 = vshrl.u32 %v331, 7
    %v333 = vsub.s32 5, %v332
    %v334 = vrot.slane %v241, %v333
    %v335 = vlaneseq
    %v336 = vshrl.u32 %v335, 7
    %v337 = vsub.s32 6, %v336
    %v338 = vrot.slane %v241, %v337
    %v339 = vlaneseq
    %v340 = vshrl.u32 %v339, 7
    %v341 = vsub.s32 7, %v340
    %v342 = vrot.slane %v241, %v341
    %v343 = vlaneseq
    %v344 = vshrl.u32 %v343, 7
    %v345 = vsub.s32 0, %v344
    %v346 = vrot.slane %v242, %v345
    %v348 = vcombine.low %v250, %v254
    %v349 = vcombine.low %v258, %v262
    %v350 = vcombine.low %v266, %v270
    %v351 = vcombine.low %v274, %v278
    %v352 = vcombine.low %v282, %v286
    %v353 = vcombine.low %v290, %v294
    %v354 = vcombine.low %v298, %v302
    %v355 = vcombine.low %v306, %v310
    %v356 = vcombine.low %v314, %v318
    %v357 = vcombine.low %v322, %v326
    %v358 = vcombine.low %v330, %v334
    %v359 = vcombine.low %v338, %v342
    %v372 = vmul.f32 %v225, %v348
    %v373 = vmul.f32 %v226, %v349
    %v374 = vmul.f32 %v227, %v350
    %v375 = vmul.f32 %v228, %v351
    %v376 = vmul.f32 %v229, %v352
    %v377 = vmul.f32 %v230, %v353
    %v378 = vmul.f32 %v231, %v354
    %v379 = vmul.f32 %v232, %v355
    %v380 = vmul.f32 %v233, %v356
    %v381 = vmul.f32 %v234, %v357
    %v382 = vmul.f32 %v235, %v358
    %v383 = vmul.f32 %v236, %v359
    %v384 = vmul.f32 %v237, %v346
    %v385 = vadd.f32 %v211, %v372
    %v386 = vadd.f32 %v212, %v373
    %v387 = vadd.f32 %v213, %v374
    %v388 = vadd.f32 %v214, %v375
    %v389 = vadd.f32 %v215, %v376
    %v390 = vadd.f32 %v216, %v377
    %v391 = vadd.f32 %v217, %v378
    %v392 = vadd.f32 %v218, %v379
    %v393 = vadd.f32 %v219, %v380
    %v394 = vadd.f32 %v220, %v381
    %v395 = vadd.f32 %v221, %v382
    %v396 = vadd.f32 %v222, %v383
    %v397 = vadd.f32 %v223, %v384
    %s398 = scalar_lea.vmem %s0, 200
    %v399 = vld [vmem:[%s398] sm:$0xff]
    %v400 = vld [vmem:[%s398 + $0x8] sm:$0xff]
    %v401 = vld [vmem:[%s398 + $0x10] sm:$0xff]
    %v402 = vld [vmem:[%s398 + $0x18] sm:$0xff]
    %v403 = vld [vmem:[%s398 + $0x20] sm:$0xff]
    %v404 = vld [vmem:[%s398 + $0x28] sm:$0xff]
    %v405 = vld [vmem:[%s398 + $0x30] sm:$0xff]
    %v406 = vld [vmem:[%s398 + $0x38] sm:$0xff]
    %v407 = vld [vmem:[%s398 + $0x40] sm:$0xff]
    %v408 = vld [vmem:[%s398 + $0x48] sm:$0xff]
    %v409 = vld [vmem:[%s398 + $0x50] sm:$0xff]
    %v410 = vld [vmem:[%s398 + $0x58] sm:$0xff]
    %v411 = vld [vmem:[%s398 + $0x60] sm:$0xf]
    %s412 = scalar_lea.vmem %s1, 50
    %v413 = vld [vmem:[%s412] sm:$0xff]
    %v414 = vld [vmem:[%s412 + $0x8] sm:$0xff]
    %v415 = vld [vmem:[%s412 + $0x10] sm:$0xff]
    %v416 = vld [vmem:[%s412 + $0x18] sm:$0x1]
    %v421 = vlaneseq
    %v422 = vshrl.u32 %v421, 7
    %v423 = vsub.s32 0, %v422
    %v424 = vrot.slane %v413, %v423
    %v425 = vlaneseq
    %v426 = vshrl.u32 %v425, 7
    %v427 = vsub.s32 1, %v426
    %v428 = vrot.slane %v413, %v427
    %v429 = vlaneseq
    %v430 = vshrl.u32 %v429, 7
    %v431 = vsub.s32 2, %v430
    %v432 = vrot.slane %v413, %v431
    %v433 = vlaneseq
    %v434 = vshrl.u32 %v433, 7
    %v435 = vsub.s32 3, %v434
    %v436 = vrot.slane %v413, %v435
    %v437 = vlaneseq
    %v438 = vshrl.u32 %v437, 7
    %v439 = vsub.s32 4, %v438
    %v440 = vrot.slane %v413, %v439
    %v441 = vlaneseq
    %v442 = vshrl.u32 %v441, 7
    %v443 = vsub.s32 5, %v442
    %v444 = vrot.slane %v413, %v443
    %v445 = vlaneseq
    %v446 = vshrl.u32 %v445, 7
    %v447 = vsub.s32 6, %v446
    %v448 = vrot.slane %v413, %v447
    %v449 = vlaneseq
    %v450 = vshrl.u32 %v449, 7
    %v451 = vsub.s32 7, %v450
    %v452 = vrot.slane %v413, %v451
    %v453 = vlaneseq
    %v454 = vshrl.u32 %v453, 7
    %v455 = vsub.s32 0, %v454
    %v456 = vrot.slane %v414, %v455
    %v457 = vlaneseq
    %v458 = vshrl.u32 %v457, 7
    %v459 = vsub.s32 1, %v458
    %v460 = vrot.slane %v414, %v459
    %v461 = vlaneseq
    %v462 = vshrl.u32 %v461, 7
    %v463 = vsub.s32 2, %v462
    %v464 = vrot.slane %v414, %v463
    %v465 = vlaneseq
    %v466 = vshrl.u32 %v465, 7
    %v467 = vsub.s32 3, %v466
    %v468 = vrot.slane %v414, %v467
    %v469 = vlaneseq
    %v470 = vshrl.u32 %v469, 7
    %v471 = vsub.s32 4, %v470
    %v472 = vrot.slane %v414, %v471
    %v473 = vlaneseq
    %v474 = vshrl.u32 %v473, 7
    %v475 = vsub.s32 5, %v474
    %v476 = vrot.slane %v414, %v475
    %v477 = vlaneseq
    %v478 = vshrl.u32 %v477, 7
    %v479 = vsub.s32 6, %v478
    %v480 = vrot.slane %v414, %v479
    %v481 = vlaneseq
    %v482 = vshrl.u32 %v481, 7
    %v483 = vsub.s32 7, %v482
    %v484 = vrot.slane %v414, %v483
    %v485 = vlaneseq
    %v486 = vshrl.u32 %v485, 7
    %v487 = vsub.s32 0, %v486
    %v488 = vrot.slane %v415, %v487
    %v489 = vlaneseq
    %v490 = vshrl.u32 %v489, 7
    %v491 = vsub.s32 1, %v490
    %v492 = vrot.slane %v415, %v491
    %v493 = vlaneseq
    %v494 = vshrl.u32 %v493, 7
    %v495 = vsub.s32 2, %v494
    %v496 = vrot.slane %v415, %v495
    %v497 = vlaneseq
    %v498 = vshrl.u32 %v497, 7
    %v499 = vsub.s32 3, %v498
    %v500 = vrot.slane %v415, %v499
    %v501 = vlaneseq
    %v502 = vshrl.u32 %v501, 7
    %v503 = vsub.s32 4, %v502
    %v504 = vrot.slane %v415, %v503
    %v505 = vlaneseq
    %v506 = vshrl.u32 %v505, 7
    %v507 = vsub.s32 5, %v506
    %v508 = vrot.slane %v415, %v507
    %v509 = vlaneseq
    %v510 = vshrl.u32 %v509, 7
    %v511 = vsub.s32 6, %v510
    %v512 = vrot.slane %v415, %v511
    %v513 = vlaneseq
    %v514 = vshrl.u32 %v513, 7
    %v515 = vsub.s32 7, %v514
    %v516 = vrot.slane %v415, %v515
    %v517 = vlaneseq
    %v518 = vshrl.u32 %v517, 7
    %v519 = vsub.s32 0, %v518
    %v520 = vrot.slane %v416, %v519
    %v522 = vcombine.low %v424, %v428
    %v523 = vcombine.low %v432, %v436
    %v524 = vcombine.low %v440, %v444
    %v525 = vcombine.low %v448, %v452
    %v526 = vcombine.low %v456, %v460
    %v527 = vcombine.low %v464, %v468
    %v528 = vcombine.low %v472, %v476
    %v529 = vcombine.low %v480, %v484
    %v530 = vcombine.low %v488, %v492
    %v531 = vcombine.low %v496, %v500
    %v532 = vcombine.low %v504, %v508
    %v533 = vcombine.low %v512, %v516
    %v546 = vmul.f32 %v399, %v522
    %v547 = vmul.f32 %v400, %v523
    %v548 = vmul.f32 %v401, %v524
    %v549 = vmul.f32 %v402, %v525
    %v550 = vmul.f32 %v403, %v526
    %v551 = vmul.f32 %v404, %v527
    %v552 = vmul.f32 %v405, %v528
    %v553 = vmul.f32 %v406, %v529
    %v554 = vmul.f32 %v407, %v530
    %v555 = vmul.f32 %v408, %v531
    %v556 = vmul.f32 %v409, %v532
    %v557 = vmul.f32 %v410, %v533
    %v558 = vmul.f32 %v411, %v520
    %v559 = vadd.f32 %v385, %v546
    %v560 = vadd.f32 %v386, %v547
    %v561 = vadd.f32 %v387, %v548
    %v562 = vadd.f32 %v388, %v549
    %v563 = vadd.f32 %v389, %v550
    %v564 = vadd.f32 %v390, %v551
    %v565 = vadd.f32 %v391, %v552
    %v566 = vadd.f32 %v392, %v553
    %v567 = vadd.f32 %v393, %v554
    %v568 = vadd.f32 %v394, %v555
    %v569 = vadd.f32 %v395, %v556
    %v570 = vadd.f32 %v396, %v557
    %v571 = vadd.f32 %v397, %v558
    %s572 = scalar_lea.vmem %s0, 300
    %v573 = vld [vmem:[%s572] sm:$0xff]
    %v574 = vld [vmem:[%s572 + $0x8] sm:$0xff]
    %v575 = vld [vmem:[%s572 + $0x10] sm:$0xff]
    %v576 = vld [vmem:[%s572 + $0x18] sm:$0xff]
    %v577 = vld [vmem:[%s572 + $0x20] sm:$0xff]
    %v578 = vld [vmem:[%s572 + $0x28] sm:$0xff]
    %v579 = vld [vmem:[%s572 + $0x30] sm:$0xff]
    %v580 = vld [vmem:[%s572 + $0x38] sm:$0xff]
    %v581 = vld [vmem:[%s572 + $0x40] sm:$0xff]
    %v582 = vld [vmem:[%s572 + $0x48] sm:$0xff]
    %v583 = vld [vmem:[%s572 + $0x50] sm:$0xff]
    %v584 = vld [vmem:[%s572 + $0x58] sm:$0xff]
    %v585 = vld [vmem:[%s572 + $0x60] sm:$0xf]
    %s586 = scalar_lea.vmem %s1, 75
    %v587 = vld [vmem:[%s586] sm:$0xff]
    %v588 = vld [vmem:[%s586 + $0x8] sm:$0xff]
    %v589 = vld [vmem:[%s586 + $0x10] sm:$0xff]
    %v590 = vld [vmem:[%s586 + $0x18] sm:$0x1]
    %v595 = vlaneseq
    %v596 = vshrl.u32 %v595, 7
    %v597 = vsub.s32 0, %v596
    %v598 = vrot.slane %v587, %v597
    %v599 = vlaneseq
    %v600 = vshrl.u32 %v599, 7
    %v601 = vsub.s32 1, %v600
    %v602 = vrot.slane %v587, %v601
    %v603 = vlaneseq
    %v604 = vshrl.u32 %v603, 7
    %v605 = vsub.s32 2, %v604
    %v606 = vrot.slane %v587, %v605
    %v607 = vlaneseq
    %v608 = vshrl.u32 %v607, 7
    %v609 = vsub.s32 3, %v608
    %v610 = vrot.slane %v587, %v609
    %v611 = vlaneseq
    %v612 = vshrl.u32 %v611, 7
    %v613 = vsub.s32 4, %v612
    %v614 = vrot.slane %v587, %v613
    %v615 = vlaneseq
    %v616 = vshrl.u32 %v615, 7
    %v617 = vsub.s32 5, %v616
    %v618 = vrot.slane %v587, %v617
    %v619 = vlaneseq
    %v620 = vshrl.u32 %v619, 7
    %v621 = vsub.s32 6, %v620
    %v622 = vrot.slane %v587, %v621
    %v623 = vlaneseq
    %v624 = vshrl.u32 %v623, 7
    %v625 = vsub.s32 7, %v624
    %v626 = vrot.slane %v587, %v625
    %v627 = vlaneseq
    %v628 = vshrl.u32 %v627, 7
    %v629 = vsub.s32 0, %v628
    %v630 = vrot.slane %v588, %v629
    %v631 = vlaneseq
    %v632 = vshrl.u32 %v631, 7
    %v633 = vsub.s32 1, %v632
    %v634 = vrot.slane %v588, %v633
    %v635 = vlaneseq
    %v636 = vshrl.u32 %v635, 7
    %v637 = vsub.s32 2, %v636
    %v638 = vrot.slane %v588, %v637
    %v639 = vlaneseq
    %v640 = vshrl.u32 %v639, 7
    %v641 = vsub.s32 3, %v640
    %v642 = vrot.slane %v588, %v641
    %v643 = vlaneseq
    %v644 = vshrl.u32 %v643, 7
    %v645 = vsub.s32 4, %v644
    %v646 = vrot.slane %v588, %v645
    %v647 = vlaneseq
    %v648 = vshrl.u32 %v647, 7
    %v649 = vsub.s32 5, %v648
    %v650 = vrot.slane %v588, %v649
    %v651 = vlaneseq
    %v652 = vshrl.u32 %v651, 7
    %v653 = vsub.s32 6, %v652
    %v654 = vrot.slane %v588, %v653
    %v655 = vlaneseq
    %v656 = vshrl.u32 %v655, 7
    %v657 = vsub.s32 7, %v656
    %v658 = vrot.slane %v588, %v657
    %v659 = vlaneseq
    %v660 = vshrl.u32 %v659, 7
    %v661 = vsub.s32 0, %v660
    %v662 = vrot.slane %v589, %v661
    %v663 = vlaneseq
    %v664 = vshrl.u32 %v663, 7
    %v665 = vsub.s32 1, %v664
    %v666 = vrot.slane %v589, %v665
    %v667 = vlaneseq
    %v668 = vshrl.u32 %v667, 7
    %v669 = vsub.s32 2, %v668
    %v670 = vrot.slane %v589, %v669
    %v671 = vlaneseq
    %v672 = vshrl.u32 %v671, 7
    %v673 = vsub.s32 3, %v672
    %v674 = vrot.slane %v589, %v673
    %v675 = vlaneseq
    %v676 = vshrl.u32 %v675, 7
    %v677 = vsub.s32 4, %v676
    %v678 = vrot.slane %v589, %v677
    %v679 = vlaneseq
    %v680 = vshrl.u32 %v679, 7
    %v681 = vsub.s32 5, %v680
    %v682 = vrot.slane %v589, %v681
    %v683 = vlaneseq
    %v684 = vshrl.u32 %v683, 7
    %v685 = vsub.s32 6, %v684
    %v686 = vrot.slane %v589, %v685
    %v687 = vlaneseq
    %v688 = vshrl.u32 %v687, 7
    %v689 = vsub.s32 7, %v688
    %v690 = vrot.slane %v589, %v689
    %v691 = vlaneseq
    %v692 = vshrl.u32 %v691, 7
    %v693 = vsub.s32 0, %v692
    %v694 = vrot.slane %v590, %v693
    %v696 = vcombine.low %v598, %v602
    %v697 = vcombine.low %v606, %v610
    %v698 = vcombine.low %v614, %v618
    %v699 = vcombine.low %v622, %v626
    %v700 = vcombine.low %v630, %v634
    %v701 = vcombine.low %v638, %v642
    %v702 = vcombine.low %v646, %v650
    %v703 = vcombine.low %v654, %v658
    %v704 = vcombine.low %v662, %v666
    %v705 = vcombine.low %v670, %v674
    %v706 = vcombine.low %v678, %v682
    %v707 = vcombine.low %v686, %v690
    %v720 = vmul.f32 %v573, %v696
    %v721 = vmul.f32 %v574, %v697
    %v722 = vmul.f32 %v575, %v698
    %v723 = vmul.f32 %v576, %v699
    %v724 = vmul.f32 %v577, %v700
    %v725 = vmul.f32 %v578, %v701
    %v726 = vmul.f32 %v579, %v702
    %v727 = vmul.f32 %v580, %v703
    %v728 = vmul.f32 %v581, %v704
    %v729 = vmul.f32 %v582, %v705
    %v730 = vmul.f32 %v583, %v706
    %v731 = vmul.f32 %v584, %v707
    %v732 = vmul.f32 %v585, %v694
    %v733 = vadd.f32 %v559, %v720
    %v734 = vadd.f32 %v560, %v721
    %v735 = vadd.f32 %v561, %v722
    %v736 = vadd.f32 %v562, %v723
    %v737 = vadd.f32 %v563, %v724
    %v738 = vadd.f32 %v564, %v725
    %v739 = vadd.f32 %v565, %v726
    %v740 = vadd.f32 %v566, %v727
    %v741 = vadd.f32 %v567, %v728
    %v742 = vadd.f32 %v568, %v729
    %v743 = vadd.f32 %v569, %v730
    %v744 = vadd.f32 %v570, %v731
    %v745 = vadd.f32 %v571, %v732
    %s746 = scalar_lea.vmem %s0, 400
    %v747 = vld [vmem:[%s746] sm:$0xff]
    %v748 = vld [vmem:[%s746 + $0x8] sm:$0xff]
    %v749 = vld [vmem:[%s746 + $0x10] sm:$0xff]
    %v750 = vld [vmem:[%s746 + $0x18] sm:$0xff]
    %v751 = vld [vmem:[%s746 + $0x20] sm:$0xff]
    %v752 = vld [vmem:[%s746 + $0x28] sm:$0xff]
    %v753 = vld [vmem:[%s746 + $0x30] sm:$0xff]
    %v754 = vld [vmem:[%s746 + $0x38] sm:$0xff]
    %v755 = vld [vmem:[%s746 + $0x40] sm:$0xff]
    %v756 = vld [vmem:[%s746 + $0x48] sm:$0xff]
    %v757 = vld [vmem:[%s746 + $0x50] sm:$0xff]
    %v758 = vld [vmem:[%s746 + $0x58] sm:$0xff]
    %v759 = vld [vmem:[%s746 + $0x60] sm:$0xf]
    %s760 = scalar_lea.vmem %s1, 100
    %v761 = vld [vmem:[%s760] sm:$0xff]
    %v762 = vld [vmem:[%s760 + $0x8] sm:$0xff]
    %v763 = vld [vmem:[%s760 + $0x10] sm:$0xff]
    %v764 = vld [vmem:[%s760 + $0x18] sm:$0x1]
    %v769 = vlaneseq
    %v770 = vshrl.u32 %v769, 7
    %v771 = vsub.s32 0, %v770
    %v772 = vrot.slane %v761, %v771
    %v773 = vlaneseq
    %v774 = vshrl.u32 %v773, 7
    %v775 = vsub.s32 1, %v774
    %v776 = vrot.slane %v761, %v775
    %v777 = vlaneseq
    %v778 = vshrl.u32 %v777, 7
    %v779 = vsub.s32 2, %v778
    %v780 = vrot.slane %v761, %v779
    %v781 = vlaneseq
    %v782 = vshrl.u32 %v781, 7
    %v783 = vsub.s32 3, %v782
    %v784 = vrot.slane %v761, %v783
    %v785 = vlaneseq
    %v786 = vshrl.u32 %v785, 7
    %v787 = vsub.s32 4, %v786
    %v788 = vrot.slane %v761, %v787
    %v789 = vlaneseq
    %v790 = vshrl.u32 %v789, 7
    %v791 = vsub.s32 5, %v790
    %v792 = vrot.slane %v761, %v791
    %v793 = vlaneseq
    %v794 = vshrl.u32 %v793, 7
    %v795 = vsub.s32 6, %v794
    %v796 = vrot.slane %v761, %v795
    %v797 = vlaneseq
    %v798 = vshrl.u32 %v797, 7
    %v799 = vsub.s32 7, %v798
    %v800 = vrot.slane %v761, %v799
    %v801 = vlaneseq
    %v802 = vshrl.u32 %v801, 7
    %v803 = vsub.s32 0, %v802
    %v804 = vrot.slane %v762, %v803
    %v805 = vlaneseq
    %v806 = vshrl.u32 %v805, 7
    %v807 = vsub.s32 1, %v806
    %v808 = vrot.slane %v762, %v807
    %v809 = vlaneseq
    %v810 = vshrl.u32 %v809, 7
    %v811 = vsub.s32 2, %v810
    %v812 = vrot.slane %v762, %v811
    %v813 = vlaneseq
    %v814 = vshrl.u32 %v813, 7
    %v815 = vsub.s32 3, %v814
    %v816 = vrot.slane %v762, %v815
    %v817 = vlaneseq
    %v818 = vshrl.u32 %v817, 7
    %v819 = vsub.s32 4, %v818
    %v820 = vrot.slane %v762, %v819
    %v821 = vlaneseq
    %v822 = vshrl.u32 %v821, 7
    %v823 = vsub.s32 5, %v822
    %v824 = vrot.slane %v762, %v823
    %v825 = vlaneseq
    %v826 = vshrl.u32 %v825, 7
    %v827 = vsub.s32 6, %v826
    %v828 = vrot.slane %v762, %v827
    %v829 = vlaneseq
    %v830 = vshrl.u32 %v829, 7
    %v831 = vsub.s32 7, %v830
    %v832 = vrot.slane %v762, %v831
    %v833 = vlaneseq
    %v834 = vshrl.u32 %v833, 7
    %v835 = vsub.s32 0, %v834
    %v836 = vrot.slane %v763, %v835
    %v837 = vlaneseq
    %v838 = vshrl.u32 %v837, 7
    %v839 = vsub.s32 1, %v838
    %v840 = vrot.slane %v763, %v839
    %v841 = vlaneseq
    %v842 = vshrl.u32 %v841, 7
    %v843 = vsub.s32 2, %v842
    %v844 = vrot.slane %v763, %v843
    %v845 = vlaneseq
    %v846 = vshrl.u32 %v845, 7
    %v847 = vsub.s32 3, %v846
    %v848 = vrot.slane %v763, %v847
    %v849 = vlaneseq
    %v850 = vshrl.u32 %v849, 7
    %v851 = vsub.s32 4, %v850
    %v852 = vrot.slane %v763, %v851
    %v853 = vlaneseq
    %v854 = vshrl.u32 %v853, 7
    %v855 = vsub.s32 5, %v854
    %v856 = vrot.slane %v763, %v855
    %v857 = vlaneseq
    %v858 = vshrl.u32 %v857, 7
    %v859 = vsub.s32 6, %v858
    %v860 = vrot.slane %v763, %v859
    %v861 = vlaneseq
    %v862 = vshrl.u32 %v861, 7
    %v863 = vsub.s32 7, %v862
    %v864 = vrot.slane %v763, %v863
    %v865 = vlaneseq
    %v866 = vshrl.u32 %v865, 7
    %v867 = vsub.s32 0, %v866
    %v868 = vrot.slane %v764, %v867
    %v870 = vcombine.low %v772, %v776
    %v871 = vcombine.low %v780, %v784
    %v872 = vcombine.low %v788, %v792
    %v873 = vcombine.low %v796, %v800
    %v874 = vcombine.low %v804, %v808
    %v875 = vcombine.low %v812, %v816
    %v876 = vcombine.low %v820, %v824
    %v877 = vcombine.low %v828, %v832
    %v878 = vcombine.low %v836, %v840
    %v879 = vcombine.low %v844, %v848
    %v880 = vcombine.low %v852, %v856
    %v881 = vcombine.low %v860, %v864
    %v894 = vmul.f32 %v747, %v870
    %v895 = vmul.f32 %v748, %v871
    %v896 = vmul.f32 %v749, %v872
    %v897 = vmul.f32 %v750, %v873
    %v898 = vmul.f32 %v751, %v874
    %v899 = vmul.f32 %v752, %v875
    %v900 = vmul.f32 %v753, %v876
    %v901 = vmul.f32 %v754, %v877
    %v902 = vmul.f32 %v755, %v878
    %v903 = vmul.f32 %v756, %v879
    %v904 = vmul.f32 %v757, %v880
    %v905 = vmul.f32 %v758, %v881
    %v906 = vmul.f32 %v759, %v868
    %v907 = vadd.f32 %v733, %v894
    %v908 = vadd.f32 %v734, %v895
    %v909 = vadd.f32 %v735, %v896
    %v910 = vadd.f32 %v736, %v897
    %v911 = vadd.f32 %v737, %v898
    %v912 = vadd.f32 %v738, %v899
    %v913 = vadd.f32 %v739, %v900
    %v914 = vadd.f32 %v740, %v901
    %v915 = vadd.f32 %v741, %v902
    %v916 = vadd.f32 %v742, %v903
    %v917 = vadd.f32 %v743, %v904
    %v918 = vadd.f32 %v744, %v905
    %v919 = vadd.f32 %v745, %v906
    %s920 = scalar_lea.vmem %s0, 500
    %v921 = vld [vmem:[%s920] sm:$0xff]
    %v922 = vld [vmem:[%s920 + $0x8] sm:$0xff]
    %v923 = vld [vmem:[%s920 + $0x10] sm:$0xff]
    %v924 = vld [vmem:[%s920 + $0x18] sm:$0xff]
    %v925 = vld [vmem:[%s920 + $0x20] sm:$0xff]
    %v926 = vld [vmem:[%s920 + $0x28] sm:$0xff]
    %v927 = vld [vmem:[%s920 + $0x30] sm:$0xff]
    %v928 = vld [vmem:[%s920 + $0x38] sm:$0xff]
    %v929 = vld [vmem:[%s920 + $0x40] sm:$0xff]
    %v930 = vld [vmem:[%s920 + $0x48] sm:$0xff]
    %v931 = vld [vmem:[%s920 + $0x50] sm:$0xff]
    %v932 = vld [vmem:[%s920 + $0x58] sm:$0xff]
    %v933 = vld [vmem:[%s920 + $0x60] sm:$0xf]
    %s934 = scalar_lea.vmem %s1, 125
    %v935 = vld [vmem:[%s934] sm:$0xff]
    %v936 = vld [vmem:[%s934 + $0x8] sm:$0xff]
    %v937 = vld [vmem:[%s934 + $0x10] sm:$0xff]
    %v938 = vld [vmem:[%s934 + $0x18] sm:$0x1]
    %v943 = vlaneseq
    %v944 = vshrl.u32 %v943, 7
    %v945 = vsub.s32 0, %v944
    %v946 = vrot.slane %v935, %v945
    %v947 = vlaneseq
    %v948 = vshrl.u32 %v947, 7
    %v949 = vsub.s32 1, %v948
    %v950 = vrot.slane %v935, %v949
    %v951 = vlaneseq
    %v952 = vshrl.u32 %v951, 7
    %v953 = vsub.s32 2, %v952
    %v954 = vrot.slane %v935, %v953
    %v955 = vlaneseq
    %v956 = vshrl.u32 %v955, 7
    %v957 = vsub.s32 3, %v956
    %v958 = vrot.slane %v935, %v957
    %v959 = vlaneseq
    %v960 = vshrl.u32 %v959, 7
    %v961 = vsub.s32 4, %v960
    %v962 = vrot.slane %v935, %v961
    %v963 = vlaneseq
    %v964 = vshrl.u32 %v963, 7
    %v965 = vsub.s32 5, %v964
    %v966 = vrot.slane %v935, %v965
    %v967 = vlaneseq
    %v968 = vshrl.u32 %v967, 7
    %v969 = vsub.s32 6, %v968
    %v970 = vrot.slane %v935, %v969
    %v971 = vlaneseq
    %v972 = vshrl.u32 %v971, 7
    %v973 = vsub.s32 7, %v972
    %v974 = vrot.slane %v935, %v973
    %v975 = vlaneseq
    %v976 = vshrl.u32 %v975, 7
    %v977 = vsub.s32 0, %v976
    %v978 = vrot.slane %v936, %v977
    %v979 = vlaneseq
    %v980 = vshrl.u32 %v979, 7
    %v981 = vsub.s32 1, %v980
    %v982 = vrot.slane %v936, %v981
    %v983 = vlaneseq
    %v984 = vshrl.u32 %v983, 7
    %v985 = vsub.s32 2, %v984
    %v986 = vrot.slane %v936, %v985
    %v987 = vlaneseq
    %v988 = vshrl.u32 %v987, 7
    %v989 = vsub.s32 3, %v988
    %v990 = vrot.slane %v936, %v989
    %v991 = vlaneseq
    %v992 = vshrl.u32 %v991, 7
    %v993 = vsub.s32 4, %v992
    %v994 = vrot.slane %v936, %v993
    %v995 = vlaneseq
    %v996 = vshrl.u32 %v995, 7
    %v997 = vsub.s32 5, %v996
    %v998 = vrot.slane %v936, %v997
    %v999 = vlaneseq
    %v1000 = vshrl.u32 %v999, 7
    %v1001 = vsub.s32 6, %v1000
    %v1002 = vrot.slane %v936, %v1001
    %v1003 = vlaneseq
    %v1004 = vshrl.u32 %v1003, 7
    %v1005 = vsub.s32 7, %v1004
    %v1006 = vrot.slane %v936, %v1005
    %v1007 = vlaneseq
    %v1008 = vshrl.u32 %v1007, 7
    %v1009 = vsub.s32 0, %v1008
    %v1010 = vrot.slane %v937, %v1009
    %v1011 = vlaneseq
    %v1012 = vshrl.u32 %v1011, 7
    %v1013 = vsub.s32 1, %v1012
    %v1014 = vrot.slane %v937, %v1013
    %v1015 = vlaneseq
    %v1016 = vshrl.u32 %v1015, 7
    %v1017 = vsub.s32 2, %v1016
    %v1018 = vrot.slane %v937, %v1017
    %v1019 = vlaneseq
    %v1020 = vshrl.u32 %v1019, 7
    %v1021 = vsub.s32 3, %v1020
    %v1022 = vrot.slane %v937, %v1021
    %v1023 = vlaneseq
    %v1024 = vshrl.u32 %v1023, 7
    %v1025 = vsub.s32 4, %v1024
    %v1026 = vrot.slane %v937, %v1025
    %v1027 = vlaneseq
    %v1028 = vshrl.u32 %v1027, 7
    %v1029 = vsub.s32 5, %v1028
    %v1030 = vrot.slane %v937, %v1029
    %v1031 = vlaneseq
    %v1032 = vshrl.u32 %v1031, 7
    %v1033 = vsub.s32 6, %v1032
    %v1034 = vrot.slane %v937, %v1033
    %v1035 = vlaneseq
    %v1036 = vshrl.u32 %v1035, 7
    %v1037 = vsub.s32 7, %v1036
    %v1038 = vrot.slane %v937, %v1037
    %v1039 = vlaneseq
    %v1040 = vshrl.u32 %v1039, 7
    %v1041 = vsub.s32 0, %v1040
    %v1042 = vrot.slane %v938, %v1041
    %v1044 = vcombine.low %v946, %v950
    %v1045 = vcombine.low %v954, %v958
    %v1046 = vcombine.low %v962, %v966
    %v1047 = vcombine.low %v970, %v974
    %v1048 = vcombine.low %v978, %v982
    %v1049 = vcombine.low %v986, %v990
    %v1050 = vcombine.low %v994, %v998
    %v1051 = vcombine.low %v1002, %v1006
    %v1052 = vcombine.low %v1010, %v1014
    %v1053 = vcombine.low %v1018, %v1022
    %v1054 = vcombine.low %v1026, %v1030
    %v1055 = vcombine.low %v1034, %v1038
    %v1068 = vmul.f32 %v921, %v1044
    %v1069 = vmul.f32 %v922, %v1045
    %v1070 = vmul.f32 %v923, %v1046
    %v1071 = vmul.f32 %v924, %v1047
    %v1072 = vmul.f32 %v925, %v1048
    %v1073 = vmul.f32 %v926, %v1049
    %v1074 = vmul.f32 %v927, %v1050
    %v1075 = vmul.f32 %v928, %v1051
    %v1076 = vmul.f32 %v929, %v1052
    %v1077 = vmul.f32 %v930, %v1053
    %v1078 = vmul.f32 %v931, %v1054
    %v1079 = vmul.f32 %v932, %v1055
    %v1080 = vmul.f32 %v933, %v1042
    %v1081 = vadd.f32 %v907, %v1068
    %v1082 = vadd.f32 %v908, %v1069
    %v1083 = vadd.f32 %v909, %v1070
    %v1084 = vadd.f32 %v910, %v1071
    %v1085 = vadd.f32 %v911, %v1072
    %v1086 = vadd.f32 %v912, %v1073
    %v1087 = vadd.f32 %v913, %v1074
    %v1088 = vadd.f32 %v914, %v1075
    %v1089 = vadd.f32 %v915, %v1076
    %v1090 = vadd.f32 %v916, %v1077
    %v1091 = vadd.f32 %v917, %v1078
    %v1092 = vadd.f32 %v918, %v1079
    %v1093 = vadd.f32 %v919, %v1080
    %s1094 = scalar_lea.vmem %s0, 600
    %v1095 = vld [vmem:[%s1094] sm:$0xff]
    %v1096 = vld [vmem:[%s1094 + $0x8] sm:$0xff]
    %v1097 = vld [vmem:[%s1094 + $0x10] sm:$0xff]
    %v1098 = vld [vmem:[%s1094 + $0x18] sm:$0xff]
    %v1099 = vld [vmem:[%s1094 + $0x20] sm:$0xff]
    %v1100 = vld [vmem:[%s1094 + $0x28] sm:$0xff]
    %v1101 = vld [vmem:[%s1094 + $0x30] sm:$0xff]
    %v1102 = vld [vmem:[%s1094 + $0x38] sm:$0xff]
    %v1103 = vld [vmem:[%s1094 + $0x40] sm:$0xff]
    %v1104 = vld [vmem:[%s1094 + $0x48] sm:$0xff]
    %v1105 = vld [vmem:[%s1094 + $0x50] sm:$0xff]
    %v1106 = vld [vmem:[%s1094 + $0x58] sm:$0xff]
    %v1107 = vld [vmem:[%s1094 + $0x60] sm:$0xf]
    %s1108 = scalar_lea.vmem %s1, 150
    %v1109 = vld [vmem:[%s1108] sm:$0xff]
    %v1110 = vld [vmem:[%s1108 + $0x8] sm:$0xff]
    %v1111 = vld [vmem:[%s1108 + $0x10] sm:$0xff]
    %v1112 = vld [vmem:[%s1108 + $0x18] sm:$0x1]
    %v1117 = vlaneseq
    %v1118 = vshrl.u32 %v1117, 7
    %v1119 = vsub.s32 0, %v1118
    %v1120 = vrot.slane %v1109, %v1119
    %v1121 = vlaneseq
    %v1122 = vshrl.u32 %v1121, 7
    %v1123 = vsub.s32 1, %v1122
    %v1124 = vrot.slane %v1109, %v1123
    %v1125 = vlaneseq
    %v1126 = vshrl.u32 %v1125, 7
    %v1127 = vsub.s32 2, %v1126
    %v1128 = vrot.slane %v1109, %v1127
    %v1129 = vlaneseq
    %v1130 = vshrl.u32 %v1129, 7
    %v1131 = vsub.s32 3, %v1130
    %v1132 = vrot.slane %v1109, %v1131
    %v1133 = vlaneseq
    %v1134 = vshrl.u32 %v1133, 7
    %v1135 = vsub.s32 4, %v1134
    %v1136 = vrot.slane %v1109, %v1135
    %v1137 = vlaneseq
    %v1138 = vshrl.u32 %v1137, 7
    %v1139 = vsub.s32 5, %v1138
    %v1140 = vrot.slane %v1109, %v1139
    %v1141 = vlaneseq
    %v1142 = vshrl.u32 %v1141, 7
    %v1143 = vsub.s32 6, %v1142
    %v1144 = vrot.slane %v1109, %v1143
    %v1145 = vlaneseq
    %v1146 = vshrl.u32 %v1145, 7
    %v1147 = vsub.s32 7, %v1146
    %v1148 = vrot.slane %v1109, %v1147
    %v1149 = vlaneseq
    %v1150 = vshrl.u32 %v1149, 7
    %v1151 = vsub.s32 0, %v1150
    %v1152 = vrot.slane %v1110, %v1151
    %v1153 = vlaneseq
    %v1154 = vshrl.u32 %v1153, 7
    %v1155 = vsub.s32 1, %v1154
    %v1156 = vrot.slane %v1110, %v1155
    %v1157 = vlaneseq
    %v1158 = vshrl.u32 %v1157, 7
    %v1159 = vsub.s32 2, %v1158
    %v1160 = vrot.slane %v1110, %v1159
    %v1161 = vlaneseq
    %v1162 = vshrl.u32 %v1161, 7
    %v1163 = vsub.s32 3, %v1162
    %v1164 = vrot.slane %v1110, %v1163
    %v1165 = vlaneseq
    %v1166 = vshrl.u32 %v1165, 7
    %v1167 = vsub.s32 4, %v1166
    %v1168 = vrot.slane %v1110, %v1167
    %v1169 = vlaneseq
    %v1170 = vshrl.u32 %v1169, 7
    %v1171 = vsub.s32 5, %v1170
    %v1172 = vrot.slane %v1110, %v1171
    %v1173 = vlaneseq
    %v1174 = vshrl.u32 %v1173, 7
    %v1175 = vsub.s32 6, %v1174
    %v1176 = vrot.slane %v1110, %v1175
    %v1177 = vlaneseq
    %v1178 = vshrl.u32 %v1177, 7
    %v1179 = vsub.s32 7, %v1178
    %v1180 = vrot.slane %v1110, %v1179
    %v1181 = vlaneseq
    %v1182 = vshrl.u32 %v1181, 7
    %v1183 = vsub.s32 0, %v1182
    %v1184 = vrot.slane %v1111, %v1183
    %v1185 = vlaneseq
    %v1186 = vshrl.u32 %v1185, 7
    %v1187 = vsub.s32 1, %v1186
    %v1188 = vrot.slane %v1111, %v1187
    %v1189 = vlaneseq
    %v1190 = vshrl.u32 %v1189, 7
    %v1191 = vsub.s32 2, %v1190
    %v1192 = vrot.slane %v1111, %v1191
    %v1193 = vlaneseq
    %v1194 = vshrl.u32 %v1193, 7
    %v1195 = vsub.s32 3, %v1194
    %v1196 = vrot.slane %v1111, %v1195
    %v1197 = vlaneseq
    %v1198 = vshrl.u32 %v1197, 7
    %v1199 = vsub.s32 4, %v1198
    %v1200 = vrot.slane %v1111, %v1199
    %v1201 = vlaneseq
    %v1202 = vshrl.u32 %v1201, 7
    %v1203 = vsub.s32 5, %v1202
    %v1204 = vrot.slane %v1111, %v1203
    %v1205 = vlaneseq
    %v1206 = vshrl.u32 %v1205, 7
    %v1207 = vsub.s32 6, %v1206
    %v1208 = vrot.slane %v1111, %v1207
    %v1209 = vlaneseq
    %v1210 = vshrl.u32 %v1209, 7
    %v1211 = vsub.s32 7, %v1210
    %v1212 = vrot.slane %v1111, %v1211
    %v1213 = vlaneseq
    %v1214 = vshrl.u32 %v1213, 7
    %v1215 = vsub.s32 0, %v1214
    %v1216 = vrot.slane %v1112, %v1215
    %v1218 = vcombine.low %v1120, %v1124
    %v1219 = vcombine.low %v1128, %v1132
    %v1220 = vcombine.low %v1136, %v1140
    %v1221 = vcombine.low %v1144, %v1148
    %v1222 = vcombine.low %v1152, %v1156
    %v1223 = vcombine.low %v1160, %v1164
    %v1224 = vcombine.low %v1168, %v1172
    %v1225 = vcombine.low %v1176, %v1180
    %v1226 = vcombine.low %v1184, %v1188
    %v1227 = vcombine.low %v1192, %v1196
    %v1228 = vcombine.low %v1200, %v1204
    %v1229 = vcombine.low %v1208, %v1212
    %v1242 = vmul.f32 %v1095, %v1218
    %v1243 = vmul.f32 %v1096, %v1219
    %v1244 = vmul.f32 %v1097, %v1220
    %v1245 = vmul.f32 %v1098, %v1221
    %v1246 = vmul.f32 %v1099, %v1222
    %v1247 = vmul.f32 %v1100, %v1223
    %v1248 = vmul.f32 %v1101, %v1224
    %v1249 = vmul.f32 %v1102, %v1225
    %v1250 = vmul.f32 %v1103, %v1226
    %v1251 = vmul.f32 %v1104, %v1227
    %v1252 = vmul.f32 %v1105, %v1228
    %v1253 = vmul.f32 %v1106, %v1229
    %v1254 = vmul.f32 %v1107, %v1216
    %v1255 = vadd.f32 %v1081, %v1242
    %v1256 = vadd.f32 %v1082, %v1243
    %v1257 = vadd.f32 %v1083, %v1244
    %v1258 = vadd.f32 %v1084, %v1245
    %v1259 = vadd.f32 %v1085, %v1246
    %v1260 = vadd.f32 %v1086, %v1247
    %v1261 = vadd.f32 %v1087, %v1248
    %v1262 = vadd.f32 %v1088, %v1249
    %v1263 = vadd.f32 %v1089, %v1250
    %v1264 = vadd.f32 %v1090, %v1251
    %v1265 = vadd.f32 %v1091, %v1252
    %v1266 = vadd.f32 %v1092, %v1253
    %v1267 = vadd.f32 %v1093, %v1254
    %s1268 = scalar_lea.vmem %s0, 700
    %v1269 = vld [vmem:[%s1268] sm:$0xff]
    %v1270 = vld [vmem:[%s1268 + $0x8] sm:$0xff]
    %v1271 = vld [vmem:[%s1268 + $0x10] sm:$0xff]
    %v1272 = vld [vmem:[%s1268 + $0x18] sm:$0xff]
    %v1273 = vld [vmem:[%s1268 + $0x20] sm:$0xff]
    %v1274 = vld [vmem:[%s1268 + $0x28] sm:$0xff]
    %v1275 = vld [vmem:[%s1268 + $0x30] sm:$0xff]
    %v1276 = vld [vmem:[%s1268 + $0x38] sm:$0xff]
    %v1277 = vld [vmem:[%s1268 + $0x40] sm:$0xff]
    %v1278 = vld [vmem:[%s1268 + $0x48] sm:$0xff]
    %v1279 = vld [vmem:[%s1268 + $0x50] sm:$0xff]
    %v1280 = vld [vmem:[%s1268 + $0x58] sm:$0xff]
    %v1281 = vld [vmem:[%s1268 + $0x60] sm:$0xf]
    %s1282 = scalar_lea.vmem %s1, 175
    %v1283 = vld [vmem:[%s1282] sm:$0xff]
    %v1284 = vld [vmem:[%s1282 + $0x8] sm:$0xff]
    %v1285 = vld [vmem:[%s1282 + $0x10] sm:$0xff]
    %v1286 = vld [vmem:[%s1282 + $0x18] sm:$0x1]
    %v1291 = vlaneseq
    %v1292 = vshrl.u32 %v1291, 7
    %v1293 = vsub.s32 0, %v1292
    %v1294 = vrot.slane %v1283, %v1293
    %v1295 = vlaneseq
    %v1296 = vshrl.u32 %v1295, 7
    %v1297 = vsub.s32 1, %v1296
    %v1298 = vrot.slane %v1283, %v1297
    %v1299 = vlaneseq
    %v1300 = vshrl.u32 %v1299, 7
    %v1301 = vsub.s32 2, %v1300
    %v1302 = vrot.slane %v1283, %v1301
    %v1303 = vlaneseq
    %v1304 = vshrl.u32 %v1303, 7
    %v1305 = vsub.s32 3, %v1304
    %v1306 = vrot.slane %v1283, %v1305
    %v1307 = vlaneseq
    %v1308 = vshrl.u32 %v1307, 7
    %v1309 = vsub.s32 4, %v1308
    %v1310 = vrot.slane %v1283, %v1309
    %v1311 = vlaneseq
    %v1312 = vshrl.u32 %v1311, 7
    %v1313 = vsub.s32 5, %v1312
    %v1314 = vrot.slane %v1283, %v1313
    %v1315 = vlaneseq
    %v1316 = vshrl.u32 %v1315, 7
    %v1317 = vsub.s32 6, %v1316
    %v1318 = vrot.slane %v1283, %v1317
    %v1319 = vlaneseq
    %v1320 = vshrl.u32 %v1319, 7
    %v1321 = vsub.s32 7, %v1320
    %v1322 = vrot.slane %v1283, %v1321
    %v1323 = vlaneseq
    %v1324 = vshrl.u32 %v1323, 7
    %v1325 = vsub.s32 0, %v1324
    %v1326 = vrot.slane %v1284, %v1325
    %v1327 = vlaneseq
    %v1328 = vshrl.u32 %v1327, 7
    %v1329 = vsub.s32 1, %v1328
    %v1330 = vrot.slane %v1284, %v1329
    %v1331 = vlaneseq
    %v1332 = vshrl.u32 %v1331, 7
    %v1333 = vsub.s32 2, %v1332
    %v1334 = vrot.slane %v1284, %v1333
    %v1335 = vlaneseq
    %v1336 = vshrl.u32 %v1335, 7
    %v1337 = vsub.s32 3, %v1336
    %v1338 = vrot.slane %v1284, %v1337
    %v1339 = vlaneseq
    %v1340 = vshrl.u32 %v1339, 7
    %v1341 = vsub.s32 4, %v1340
    %v1342 = vrot.slane %v1284, %v1341
    %v1343 = vlaneseq
    %v1344 = vshrl.u32 %v1343, 7
    %v1345 = vsub.s32 5, %v1344
    %v1346 = vrot.slane %v1284, %v1345
    %v1347 = vlaneseq
    %v1348 = vshrl.u32 %v1347, 7
    %v1349 = vsub.s32 6, %v1348
    %v1350 = vrot.slane %v1284, %v1349
    %v1351 = vlaneseq
    %v1352 = vshrl.u32 %v1351, 7
    %v1353 = vsub.s32 7, %v1352
    %v1354 = vrot.slane %v1284, %v1353
    %v1355 = vlaneseq
    %v1356 = vshrl.u32 %v1355, 7
    %v1357 = vsub.s32 0, %v1356
    %v1358 = vrot.slane %v1285, %v1357
    %v1359 = vlaneseq
    %v1360 = vshrl.u32 %v1359, 7
    %v1361 = vsub.s32 1, %v1360
    %v1362 = vrot.slane %v1285, %v1361
    %v1363 = vlaneseq
    %v1364 = vshrl.u32 %v1363, 7
    %v1365 = vsub.s32 2, %v1364
    %v1366 = vrot.slane %v1285, %v1365
    %v1367 = vlaneseq
    %v1368 = vshrl.u32 %v1367, 7
    %v1369 = vsub.s32 3, %v1368
    %v1370 = vrot.slane %v1285, %v1369
    %v1371 = vlaneseq
    %v1372 = vshrl.u32 %v1371, 7
    %v1373 = vsub.s32 4, %v1372
    %v1374 = vrot.slane %v1285, %v1373
    %v1375 = vlaneseq
    %v1376 = vshrl.u32 %v1375, 7
    %v1377 = vsub.s32 5, %v1376
    %v1378 = vrot.slane %v1285, %v1377
    %v1379 = vlaneseq
    %v1380 = vshrl.u32 %v1379, 7
    %v1381 = vsub.s32 6, %v1380
    %v1382 = vrot.slane %v1285, %v1381
    %v1383 = vlaneseq
    %v1384 = vshrl.u32 %v1383, 7
    %v1385 = vsub.s32 7, %v1384
    %v1386 = vrot.slane %v1285, %v1385
    %v1387 = vlaneseq
    %v1388 = vshrl.u32 %v1387, 7
    %v1389 = vsub.s32 0, %v1388
    %v1390 = vrot.slane %v1286, %v1389
    %v1392 = vcombine.low %v1294, %v1298
    %v1393 = vcombine.low %v1302, %v1306
    %v1394 = vcombine.low %v1310, %v1314
    %v1395 = vcombine.low %v1318, %v1322
    %v1396 = vcombine.low %v1326, %v1330
    %v1397 = vcombine.low %v1334, %v1338
    %v1398 = vcombine.low %v1342, %v1346
    %v1399 = vcombine.low %v1350, %v1354
    %v1400 = vcombine.low %v1358, %v1362
    %v1401 = vcombine.low %v1366, %v1370
    %v1402 = vcombine.low %v1374, %v1378
    %v1403 = vcombine.low %v1382, %v1386
    %v1416 = vmul.f32 %v1269, %v1392
    %v1417 = vmul.f32 %v1270, %v1393
    %v1418 = vmul.f32 %v1271, %v1394
    %v1419 = vmul.f32 %v1272, %v1395
    %v1420 = vmul.f32 %v1273, %v1396
    %v1421 = vmul.f32 %v1274, %v1397
    %v1422 = vmul.f32 %v1275, %v1398
    %v1423 = vmul.f32 %v1276, %v1399
    %v1424 = vmul.f32 %v1277, %v1400
    %v1425 = vmul.f32 %v1278, %v1401
    %v1426 = vmul.f32 %v1279, %v1402
    %v1427 = vmul.f32 %v1280, %v1403
    %v1428 = vmul.f32 %v1281, %v1390
    %v1429 = vadd.f32 %v1255, %v1416
    %v1430 = vadd.f32 %v1256, %v1417
    %v1431 = vadd.f32 %v1257, %v1418
    %v1432 = vadd.f32 %v1258, %v1419
    %v1433 = vadd.f32 %v1259, %v1420
    %v1434 = vadd.f32 %v1260, %v1421
    %v1435 = vadd.f32 %v1261, %v1422
    %v1436 = vadd.f32 %v1262, %v1423
    %v1437 = vadd.f32 %v1263, %v1424
    %v1438 = vadd.f32 %v1264, %v1425
    %v1439 = vadd.f32 %v1265, %v1426
    %v1440 = vadd.f32 %v1266, %v1427
    %v1441 = vadd.f32 %v1267, %v1428
    %s1442 = scalar_lea.vmem %s0, 800
    %v1443 = vld [vmem:[%s1442] sm:$0xff]
    %v1444 = vld [vmem:[%s1442 + $0x8] sm:$0xff]
    %v1445 = vld [vmem:[%s1442 + $0x10] sm:$0xff]
    %v1446 = vld [vmem:[%s1442 + $0x18] sm:$0xff]
    %v1447 = vld [vmem:[%s1442 + $0x20] sm:$0xff]
    %v1448 = vld [vmem:[%s1442 + $0x28] sm:$0xff]
    %v1449 = vld [vmem:[%s1442 + $0x30] sm:$0xff]
    %v1450 = vld [vmem:[%s1442 + $0x38] sm:$0xff]
    %v1451 = vld [vmem:[%s1442 + $0x40] sm:$0xff]
    %v1452 = vld [vmem:[%s1442 + $0x48] sm:$0xff]
    %v1453 = vld [vmem:[%s1442 + $0x50] sm:$0xff]
    %v1454 = vld [vmem:[%s1442 + $0x58] sm:$0xff]
    %v1455 = vld [vmem:[%s1442 + $0x60] sm:$0xf]
    %s1456 = scalar_lea.vmem %s1, 200
    %v1457 = vld [vmem:[%s1456] sm:$0xff]
    %v1458 = vld [vmem:[%s1456 + $0x8] sm:$0xff]
    %v1459 = vld [vmem:[%s1456 + $0x10] sm:$0xff]
    %v1460 = vld [vmem:[%s1456 + $0x18] sm:$0x1]
    %v1465 = vlaneseq
    %v1466 = vshrl.u32 %v1465, 7
    %v1467 = vsub.s32 0, %v1466
    %v1468 = vrot.slane %v1457, %v1467
    %v1469 = vlaneseq
    %v1470 = vshrl.u32 %v1469, 7
    %v1471 = vsub.s32 1, %v1470
    %v1472 = vrot.slane %v1457, %v1471
    %v1473 = vlaneseq
    %v1474 = vshrl.u32 %v1473, 7
    %v1475 = vsub.s32 2, %v1474
    %v1476 = vrot.slane %v1457, %v1475
    %v1477 = vlaneseq
    %v1478 = vshrl.u32 %v1477, 7
    %v1479 = vsub.s32 3, %v1478
    %v1480 = vrot.slane %v1457, %v1479
    %v1481 = vlaneseq
    %v1482 = vshrl.u32 %v1481, 7
    %v1483 = vsub.s32 4, %v1482
    %v1484 = vrot.slane %v1457, %v1483
    %v1485 = vlaneseq
    %v1486 = vshrl.u32 %v1485, 7
    %v1487 = vsub.s32 5, %v1486
    %v1488 = vrot.slane %v1457, %v1487
    %v1489 = vlaneseq
    %v1490 = vshrl.u32 %v1489, 7
    %v1491 = vsub.s32 6, %v1490
    %v1492 = vrot.slane %v1457, %v1491
    %v1493 = vlaneseq
    %v1494 = vshrl.u32 %v1493, 7
    %v1495 = vsub.s32 7, %v1494
    %v1496 = vrot.slane %v1457, %v1495
    %v1497 = vlaneseq
    %v1498 = vshrl.u32 %v1497, 7
    %v1499 = vsub.s32 0, %v1498
    %v1500 = vrot.slane %v1458, %v1499
    %v1501 = vlaneseq
    %v1502 = vshrl.u32 %v1501, 7
    %v1503 = vsub.s32 1, %v1502
    %v1504 = vrot.slane %v1458, %v1503
    %v1505 = vlaneseq
    %v1506 = vshrl.u32 %v1505, 7
    %v1507 = vsub.s32 2, %v1506
    %v1508 = vrot.slane %v1458, %v1507
    %v1509 = vlaneseq
    %v1510 = vshrl.u32 %v1509, 7
    %v1511 = vsub.s32 3, %v1510
    %v1512 = vrot.slane %v1458, %v1511
    %v1513 = vlaneseq
    %v1514 = vshrl.u32 %v1513, 7
    %v1515 = vsub.s32 4, %v1514
    %v1516 = vrot.slane %v1458, %v1515
    %v1517 = vlaneseq
    %v1518 = vshrl.u32 %v1517, 7
    %v1519 = vsub.s32 5, %v1518
    %v1520 = vrot.slane %v1458, %v1519
    %v1521 = vlaneseq
    %v1522 = vshrl.u32 %v1521, 7
    %v1523 = vsub.s32 6, %v1522
    %v1524 = vrot.slane %v1458, %v1523
    %v1525 = vlaneseq
    %v1526 = vshrl.u32 %v1525, 7
    %v1527 = vsub.s32 7, %v1526
    %v1528 = vrot.slane %v1458, %v1527
    %v1529 = vlaneseq
    %v1530 = vshrl.u32 %v1529, 7
    %v1531 = vsub.s32 0, %v1530
    %v1532 = vrot.slane %v1459, %v1531
    %v1533 = vlaneseq
    %v1534 = vshrl.u32 %v1533, 7
    %v1535 = vsub.s32 1, %v1534
    %v1536 = vrot.slane %v1459, %v1535
    %v1537 = vlaneseq
    %v1538 = vshrl.u32 %v1537, 7
    %v1539 = vsub.s32 2, %v1538
    %v1540 = vrot.slane %v1459, %v1539
    %v1541 = vlaneseq
    %v1542 = vshrl.u32 %v1541, 7
    %v1543 = vsub.s32 3, %v1542
    %v1544 = vrot.slane %v1459, %v1543
    %v1545 = vlaneseq
    %v1546 = vshrl.u32 %v1545, 7
    %v1547 = vsub.s32 4, %v1546
    %v1548 = vrot.slane %v1459, %v1547
    %v1549 = vlaneseq
    %v1550 = vshrl.u32 %v1549, 7
    %v1551 = vsub.s32 5, %v1550
    %v1552 = vrot.slane %v1459, %v1551
    %v1553 = vlaneseq
    %v1554 = vshrl.u32 %v1553, 7
    %v1555 = vsub.s32 6, %v1554
    %v1556 = vrot.slane %v1459, %v1555
    %v1557 = vlaneseq
    %v1558 = vshrl.u32 %v1557, 7
    %v1559 = vsub.s32 7, %v1558
    %v1560 = vrot.slane %v1459, %v1559
    %v1561 = vlaneseq
    %v1562 = vshrl.u32 %v1561, 7
    %v1563 = vsub.s32 0, %v1562
    %v1564 = vrot.slane %v1460, %v1563
    %v1566 = vcombine.low %v1468, %v1472
    %v1567 = vcombine.low %v1476, %v1480
    %v1568 = vcombine.low %v1484, %v1488
    %v1569 = vcombine.low %v1492, %v1496
    %v1570 = vcombine.low %v1500, %v1504
    %v1571 = vcombine.low %v1508, %v1512
    %v1572 = vcombine.low %v1516, %v1520
    %v1573 = vcombine.low %v1524, %v1528
    %v1574 = vcombine.low %v1532, %v1536
    %v1575 = vcombine.low %v1540, %v1544
    %v1576 = vcombine.low %v1548, %v1552
    %v1577 = vcombine.low %v1556, %v1560
    %v1590 = vmul.f32 %v1443, %v1566
    %v1591 = vmul.f32 %v1444, %v1567
    %v1592 = vmul.f32 %v1445, %v1568
    %v1593 = vmul.f32 %v1446, %v1569
    %v1594 = vmul.f32 %v1447, %v1570
    %v1595 = vmul.f32 %v1448, %v1571
    %v1596 = vmul.f32 %v1449, %v1572
    %v1597 = vmul.f32 %v1450, %v1573
    %v1598 = vmul.f32 %v1451, %v1574
    %v1599 = vmul.f32 %v1452, %v1575
    %v1600 = vmul.f32 %v1453, %v1576
    %v1601 = vmul.f32 %v1454, %v1577
    %v1602 = vmul.f32 %v1455, %v1564
    %v1603 = vadd.f32 %v1429, %v1590
    %v1604 = vadd.f32 %v1430, %v1591
    %v1605 = vadd.f32 %v1431, %v1592
    %v1606 = vadd.f32 %v1432, %v1593
    %v1607 = vadd.f32 %v1433, %v1594
    %v1608 = vadd.f32 %v1434, %v1595
    %v1609 = vadd.f32 %v1435, %v1596
    %v1610 = vadd.f32 %v1436, %v1597
    %v1611 = vadd.f32 %v1437, %v1598
    %v1612 = vadd.f32 %v1438, %v1599
    %v1613 = vadd.f32 %v1439, %v1600
    %v1614 = vadd.f32 %v1440, %v1601
    %v1615 = vadd.f32 %v1441, %v1602
    %s1616 = scalar_lea.vmem %s0, 900
    %v1617 = vld [vmem:[%s1616] sm:$0xff]
    %v1618 = vld [vmem:[%s1616 + $0x8] sm:$0xff]
    %v1619 = vld [vmem:[%s1616 + $0x10] sm:$0xff]
    %v1620 = vld [vmem:[%s1616 + $0x18] sm:$0xff]
    %v1621 = vld [vmem:[%s1616 + $0x20] sm:$0xff]
    %v1622 = vld [vmem:[%s1616 + $0x28] sm:$0xff]
    %v1623 = vld [vmem:[%s1616 + $0x30] sm:$0xff]
    %v1624 = vld [vmem:[%s1616 + $0x38] sm:$0xff]
    %v1625 = vld [vmem:[%s1616 + $0x40] sm:$0xff]
    %v1626 = vld [vmem:[%s1616 + $0x48] sm:$0xff]
    %v1627 = vld [vmem:[%s1616 + $0x50] sm:$0xff]
    %v1628 = vld [vmem:[%s1616 + $0x58] sm:$0xff]
    %v1629 = vld [vmem:[%s1616 + $0x60] sm:$0xf]
    %s1630 = scalar_lea.vmem %s1, 225
    %v1631 = vld [vmem:[%s1630] sm:$0xff]
    %v1632 = vld [vmem:[%s1630 + $0x8] sm:$0xff]
    %v1633 = vld [vmem:[%s1630 + $0x10] sm:$0xff]
    %v1634 = vld [vmem:[%s1630 + $0x18] sm:$0x1]
    %v1639 = vlaneseq
    %v1640 = vshrl.u32 %v1639, 7
    %v1641 = vsub.s32 0, %v1640
    %v1642 = vrot.slane %v1631, %v1641
    %v1643 = vlaneseq
    %v1644 = vshrl.u32 %v1643, 7
    %v1645 = vsub.s32 1, %v1644
    %v1646 = vrot.slane %v1631, %v1645
    %v1647 = vlaneseq
    %v1648 = vshrl.u32 %v1647, 7
    %v1649 = vsub.s32 2, %v1648
    %v1650 = vrot.slane %v1631, %v1649
    %v1651 = vlaneseq
    %v1652 = vshrl.u32 %v1651, 7
    %v1653 = vsub.s32 3, %v1652
    %v1654 = vrot.slane %v1631, %v1653
    %v1655 = vlaneseq
    %v1656 = vshrl.u32 %v1655, 7
    %v1657 = vsub.s32 4, %v1656
    %v1658 = vrot.slane %v1631, %v1657
    %v1659 = vlaneseq
    %v1660 = vshrl.u32 %v1659, 7
    %v1661 = vsub.s32 5, %v1660
    %v1662 = vrot.slane %v1631, %v1661
    %v1663 = vlaneseq
    %v1664 = vshrl.u32 %v1663, 7
    %v1665 = vsub.s32 6, %v1664
    %v1666 = vrot.slane %v1631, %v1665
    %v1667 = vlaneseq
    %v1668 = vshrl.u32 %v1667, 7
    %v1669 = vsub.s32 7, %v1668
    %v1670 = vrot.slane %v1631, %v1669
    %v1671 = vlaneseq
    %v1672 = vshrl.u32 %v1671, 7
    %v1673 = vsub.s32 0, %v1672
    %v1674 = vrot.slane %v1632, %v1673
    %v1675 = vlaneseq
    %v1676 = vshrl.u32 %v1675, 7
    %v1677 = vsub.s32 1, %v1676
    %v1678 = vrot.slane %v1632, %v1677
    %v1679 = vlaneseq
    %v1680 = vshrl.u32 %v1679, 7
    %v1681 = vsub.s32 2, %v1680
    %v1682 = vrot.slane %v1632, %v1681
    %v1683 = vlaneseq
    %v1684 = vshrl.u32 %v1683, 7
    %v1685 = vsub.s32 3, %v1684
    %v1686 = vrot.slane %v1632, %v1685
    %v1687 = vlaneseq
    %v1688 = vshrl.u32 %v1687, 7
    %v1689 = vsub.s32 4, %v1688
    %v1690 = vrot.slane %v1632, %v1689
    %v1691 = vlaneseq
    %v1692 = vshrl.u32 %v1691, 7
    %v1693 = vsub.s32 5, %v1692
    %v1694 = vrot.slane %v1632, %v1693
    %v1695 = vlaneseq
    %v1696 = vshrl.u32 %v1695, 7
    %v1697 = vsub.s32 6, %v1696
    %v1698 = vrot.slane %v1632, %v1697
    %v1699 = vlaneseq
    %v1700 = vshrl.u32 %v1699, 7
    %v1701 = vsub.s32 7, %v1700
    %v1702 = vrot.slane %v1632, %v1701
    %v1703 = vlaneseq
    %v1704 = vshrl.u32 %v1703, 7
    %v1705 = vsub.s32 0, %v1704
    %v1706 = vrot.slane %v1633, %v1705
    %v1707 = vlaneseq
    %v1708 = vshrl.u32 %v1707, 7
    %v1709 = vsub.s32 1, %v1708
    %v1710 = vrot.slane %v1633, %v1709
    %v1711 = vlaneseq
    %v1712 = vshrl.u32 %v1711, 7
    %v1713 = vsub.s32 2, %v1712
    %v1714 = vrot.slane %v1633, %v1713
    %v1715 = vlaneseq
    %v1716 = vshrl.u32 %v1715, 7
    %v1717 = vsub.s32 3, %v1716
    %v1718 = vrot.slane %v1633, %v1717
    %v1719 = vlaneseq
    %v1720 = vshrl.u32 %v1719, 7
    %v1721 = vsub.s32 4, %v1720
    %v1722 = vrot.slane %v1633, %v1721
    %v1723 = vlaneseq
    %v1724 = vshrl.u32 %v1723, 7
    %v1725 = vsub.s32 5, %v1724
    %v1726 = vrot.slane %v1633, %v1725
    %v1727 = vlaneseq
    %v1728 = vshrl.u32 %v1727, 7
    %v1729 = vsub.s32 6, %v1728
    %v1730 = vrot.slane %v1633, %v1729
    %v1731 = vlaneseq
    %v1732 = vshrl.u32 %v1731, 7
    %v1733 = vsub.s32 7, %v1732
    %v1734 = vrot.slane %v1633, %v1733
    %v1735 = vlaneseq
    %v1736 = vshrl.u32 %v1735, 7
    %v1737 = vsub.s32 0, %v1736
    %v1738 = vrot.slane %v1634, %v1737
    %v1740 = vcombine.low %v1642, %v1646
    %v1741 = vcombine.low %v1650, %v1654
    %v1742 = vcombine.low %v1658, %v1662
    %v1743 = vcombine.low %v1666, %v1670
    %v1744 = vcombine.low %v1674, %v1678
    %v1745 = vcombine.low %v1682, %v1686
    %v1746 = vcombine.low %v1690, %v1694
    %v1747 = vcombine.low %v1698, %v1702
    %v1748 = vcombine.low %v1706, %v1710
    %v1749 = vcombine.low %v1714, %v1718
    %v1750 = vcombine.low %v1722, %v1726
    %v1751 = vcombine.low %v1730, %v1734
    %v1764 = vmul.f32 %v1617, %v1740
    %v1765 = vmul.f32 %v1618, %v1741
    %v1766 = vmul.f32 %v1619, %v1742
    %v1767 = vmul.f32 %v1620, %v1743
    %v1768 = vmul.f32 %v1621, %v1744
    %v1769 = vmul.f32 %v1622, %v1745
    %v1770 = vmul.f32 %v1623, %v1746
    %v1771 = vmul.f32 %v1624, %v1747
    %v1772 = vmul.f32 %v1625, %v1748
    %v1773 = vmul.f32 %v1626, %v1749
    %v1774 = vmul.f32 %v1627, %v1750
    %v1775 = vmul.f32 %v1628, %v1751
    %v1776 = vmul.f32 %v1629, %v1738
    %v1777 = vadd.f32 %v1603, %v1764
    %v1778 = vadd.f32 %v1604, %v1765
    %v1779 = vadd.f32 %v1605, %v1766
    %v1780 = vadd.f32 %v1606, %v1767
    %v1781 = vadd.f32 %v1607, %v1768
    %v1782 = vadd.f32 %v1608, %v1769
    %v1783 = vadd.f32 %v1609, %v1770
    %v1784 = vadd.f32 %v1610, %v1771
    %v1785 = vadd.f32 %v1611, %v1772
    %v1786 = vadd.f32 %v1612, %v1773
    %v1787 = vadd.f32 %v1613, %v1774
    %v1788 = vadd.f32 %v1614, %v1775
    %v1789 = vadd.f32 %v1615, %v1776
    %s1790 = scalar_lea.vmem %s0, 1000
    %v1791 = vld [vmem:[%s1790] sm:$0xff]
    %v1792 = vld [vmem:[%s1790 + $0x8] sm:$0xff]
    %v1793 = vld [vmem:[%s1790 + $0x10] sm:$0xff]
    %v1794 = vld [vmem:[%s1790 + $0x18] sm:$0xff]
    %v1795 = vld [vmem:[%s1790 + $0x20] sm:$0xff]
    %v1796 = vld [vmem:[%s1790 + $0x28] sm:$0xff]
    %v1797 = vld [vmem:[%s1790 + $0x30] sm:$0xff]
    %v1798 = vld [vmem:[%s1790 + $0x38] sm:$0xff]
    %v1799 = vld [vmem:[%s1790 + $0x40] sm:$0xff]
    %v1800 = vld [vmem:[%s1790 + $0x48] sm:$0xff]
    %v1801 = vld [vmem:[%s1790 + $0x50] sm:$0xff]
    %v1802 = vld [vmem:[%s1790 + $0x58] sm:$0xff]
    %v1803 = vld [vmem:[%s1790 + $0x60] sm:$0xf]
    %s1804 = scalar_lea.vmem %s1, 250
    %v1805 = vld [vmem:[%s1804] sm:$0xff]
    %v1806 = vld [vmem:[%s1804 + $0x8] sm:$0xff]
    %v1807 = vld [vmem:[%s1804 + $0x10] sm:$0xff]
    %v1808 = vld [vmem:[%s1804 + $0x18] sm:$0x1]
    %v1813 = vlaneseq
    %v1814 = vshrl.u32 %v1813, 7
    %v1815 = vsub.s32 0, %v1814
    %v1816 = vrot.slane %v1805, %v1815
    %v1817 = vlaneseq
    %v1818 = vshrl.u32 %v1817, 7
    %v1819 = vsub.s32 1, %v1818
    %v1820 = vrot.slane %v1805, %v1819
    %v1821 = vlaneseq
    %v1822 = vshrl.u32 %v1821, 7
    %v1823 = vsub.s32 2, %v1822
    %v1824 = vrot.slane %v1805, %v1823
    %v1825 = vlaneseq
    %v1826 = vshrl.u32 %v1825, 7
    %v1827 = vsub.s32 3, %v1826
    %v1828 = vrot.slane %v1805, %v1827
    %v1829 = vlaneseq
    %v1830 = vshrl.u32 %v1829, 7
    %v1831 = vsub.s32 4, %v1830
    %v1832 = vrot.slane %v1805, %v1831
    %v1833 = vlaneseq
    %v1834 = vshrl.u32 %v1833, 7
    %v1835 = vsub.s32 5, %v1834
    %v1836 = vrot.slane %v1805, %v1835
    %v1837 = vlaneseq
    %v1838 = vshrl.u32 %v1837, 7
    %v1839 = vsub.s32 6, %v1838
    %v1840 = vrot.slane %v1805, %v1839
    %v1841 = vlaneseq
    %v1842 = vshrl.u32 %v1841, 7
    %v1843 = vsub.s32 7, %v1842
    %v1844 = vrot.slane %v1805, %v1843
    %v1845 = vlaneseq
    %v1846 = vshrl.u32 %v1845, 7
    %v1847 = vsub.s32 0, %v1846
    %v1848 = vrot.slane %v1806, %v1847
    %v1849 = vlaneseq
    %v1850 = vshrl.u32 %v1849, 7
    %v1851 = vsub.s32 1, %v1850
    %v1852 = vrot.slane %v1806, %v1851
    %v1853 = vlaneseq
    %v1854 = vshrl.u32 %v1853, 7
    %v1855 = vsub.s32 2, %v1854
    %v1856 = vrot.slane %v1806, %v1855
    %v1857 = vlaneseq
    %v1858 = vshrl.u32 %v1857, 7
    %v1859 = vsub.s32 3, %v1858
    %v1860 = vrot.slane %v1806, %v1859
    %v1861 = vlaneseq
    %v1862 = vshrl.u32 %v1861, 7
    %v1863 = vsub.s32 4, %v1862
    %v1864 = vrot.slane %v1806, %v1863
    %v1865 = vlaneseq
    %v1866 = vshrl.u32 %v1865, 7
    %v1867 = vsub.s32 5, %v1866
    %v1868 = vrot.slane %v1806, %v1867
    %v1869 = vlaneseq
    %v1870 = vshrl.u32 %v1869, 7
    %v1871 = vsub.s32 6, %v1870
    %v1872 = vrot.slane %v1806, %v1871
    %v1873 = vlaneseq
    %v1874 = vshrl.u32 %v1873, 7
    %v1875 = vsub.s32 7, %v1874
    %v1876 = vrot.slane %v1806, %v1875
    %v1877 = vlaneseq
    %v1878 = vshrl.u32 %v1877, 7
    %v1879 = vsub.s32 0, %v1878
    %v1880 = vrot.slane %v1807, %v1879
    %v1881 = vlaneseq
    %v1882 = vshrl.u32 %v1881, 7
    %v1883 = vsub.s32 1, %v1882
    %v1884 = vrot.slane %v1807, %v1883
    %v1885 = vlaneseq
    %v1886 = vshrl.u32 %v1885, 7
    %v1887 = vsub.s32 2, %v1886
    %v1888 = vrot.slane %v1807, %v1887
    %v1889 = vlaneseq
    %v1890 = vshrl.u32 %v1889, 7
    %v1891 = vsub.s32 3, %v1890
    %v1892 = vrot.slane %v1807, %v1891
    %v1893 = vlaneseq
    %v1894 = vshrl.u32 %v1893, 7
    %v1895 = vsub.s32 4, %v1894
    %v1896 = vrot.slane %v1807, %v1895
    %v1897 = vlaneseq
    %v1898 = vshrl.u32 %v1897, 7
    %v1899 = vsub.s32 5, %v1898
    %v1900 = vrot.slane %v1807, %v1899
    %v1901 = vlaneseq
    %v1902 = vshrl.u32 %v1901, 7
    %v1903 = vsub.s32 6, %v1902
    %v1904 = vrot.slane %v1807, %v1903
    %v1905 = vlaneseq
    %v1906 = vshrl.u32 %v1905, 7
    %v1907 = vsub.s32 7, %v1906
    %v1908 = vrot.slane %v1807, %v1907
    %v1909 = vlaneseq
    %v1910 = vshrl.u32 %v1909, 7
    %v1911 = vsub.s32 0, %v1910
    %v1912 = vrot.slane %v1808, %v1911
    %v1914 = vcombine.low %v1816, %v1820
    %v1915 = vcombine.low %v1824, %v1828
    %v1916 = vcombine.low %v1832, %v1836
    %v1917 = vcombine.low %v1840, %v1844
    %v1918 = vcombine.low %v1848, %v1852
    %v1919 = vcombine.low %v1856, %v1860
    %v1920 = vcombine.low %v1864, %v1868
    %v1921 = vcombine.low %v1872, %v1876
    %v1922 = vcombine.low %v1880, %v1884
    %v1923 = vcombine.low %v1888, %v1892
    %v1924 = vcombine.low %v1896, %v1900
    %v1925 = vcombine.low %v1904, %v1908
    %v1938 = vmul.f32 %v1791, %v1914
    %v1939 = vmul.f32 %v1792, %v1915
    %v1940 = vmul.f32 %v1793, %v1916
    %v1941 = vmul.f32 %v1794, %v1917
    %v1942 = vmul.f32 %v1795, %v1918
    %v1943 = vmul.f32 %v1796, %v1919
    %v1944 = vmul.f32 %v1797, %v1920
    %v1945 = vmul.f32 %v1798, %v1921
    %v1946 = vmul.f32 %v1799, %v1922
    %v1947 = vmul.f32 %v1800, %v1923
    %v1948 = vmul.f32 %v1801, %v1924
    %v1949 = vmul.f32 %v1802, %v1925
    %v1950 = vmul.f32 %v1803, %v1912
    %v1951 = vadd.f32 %v1777, %v1938
    %v1952 = vadd.f32 %v1778, %v1939
    %v1953 = vadd.f32 %v1779, %v1940
    %v1954 = vadd.f32 %v1780, %v1941
    %v1955 = vadd.f32 %v1781, %v1942
    %v1956 = vadd.f32 %v1782, %v1943
    %v1957 = vadd.f32 %v1783, %v1944
    %v1958 = vadd.f32 %v1784, %v1945
    %v1959 = vadd.f32 %v1785, %v1946
    %v1960 = vadd.f32 %v1786, %v1947
    %v1961 = vadd.f32 %v1787, %v1948
    %v1962 = vadd.f32 %v1788, %v1949
    %v1963 = vadd.f32 %v1789, %v1950
    %s1964 = scalar_lea.vmem %s0, 1100
    %v1965 = vld [vmem:[%s1964] sm:$0xff]
    %v1966 = vld [vmem:[%s1964 + $0x8] sm:$0xff]
    %v1967 = vld [vmem:[%s1964 + $0x10] sm:$0xff]
    %v1968 = vld [vmem:[%s1964 + $0x18] sm:$0xff]
    %v1969 = vld [vmem:[%s1964 + $0x20] sm:$0xff]
    %v1970 = vld [vmem:[%s1964 + $0x28] sm:$0xff]
    %v1971 = vld [vmem:[%s1964 + $0x30] sm:$0xff]
    %v1972 = vld [vmem:[%s1964 + $0x38] sm:$0xff]
    %v1973 = vld [vmem:[%s1964 + $0x40] sm:$0xff]
    %v1974 = vld [vmem:[%s1964 + $0x48] sm:$0xff]
    %v1975 = vld [vmem:[%s1964 + $0x50] sm:$0xff]
    %v1976 = vld [vmem:[%s1964 + $0x58] sm:$0xff]
    %v1977 = vld [vmem:[%s1964 + $0x60] sm:$0xf]
    %s1978 = scalar_lea.vmem %s1, 275
    %v1979 = vld [vmem:[%s1978] sm:$0xff]
    %v1980 = vld [vmem:[%s1978 + $0x8] sm:$0xff]
    %v1981 = vld [vmem:[%s1978 + $0x10] sm:$0xff]
    %v1982 = vld [vmem:[%s1978 + $0x18] sm:$0x1]
    %v1987 = vlaneseq
    %v1988 = vshrl.u32 %v1987, 7
    %v1989 = vsub.s32 0, %v1988
    %v1990 = vrot.slane %v1979, %v1989
    %v1991 = vlaneseq
    %v1992 = vshrl.u32 %v1991, 7
    %v1993 = vsub.s32 1, %v1992
    %v1994 = vrot.slane %v1979, %v1993
    %v1995 = vlaneseq
    %v1996 = vshrl.u32 %v1995, 7
    %v1997 = vsub.s32 2, %v1996
    %v1998 = vrot.slane %v1979, %v1997
    %v1999 = vlaneseq
    %v2000 = vshrl.u32 %v1999, 7
    %v2001 = vsub.s32 3, %v2000
    %v2002 = vrot.slane %v1979, %v2001
    %v2003 = vlaneseq
    %v2004 = vshrl.u32 %v2003, 7
    %v2005 = vsub.s32 4, %v2004
    %v2006 = vrot.slane %v1979, %v2005
    %v2007 = vlaneseq
    %v2008 = vshrl.u32 %v2007, 7
    %v2009 = vsub.s32 5, %v2008
    %v2010 = vrot.slane %v1979, %v2009
    %v2011 = vlaneseq
    %v2012 = vshrl.u32 %v2011, 7
    %v2013 = vsub.s32 6, %v2012
    %v2014 = vrot.slane %v1979, %v2013
    %v2015 = vlaneseq
    %v2016 = vshrl.u32 %v2015, 7
    %v2017 = vsub.s32 7, %v2016
    %v2018 = vrot.slane %v1979, %v2017
    %v2019 = vlaneseq
    %v2020 = vshrl.u32 %v2019, 7
    %v2021 = vsub.s32 0, %v2020
    %v2022 = vrot.slane %v1980, %v2021
    %v2023 = vlaneseq
    %v2024 = vshrl.u32 %v2023, 7
    %v2025 = vsub.s32 1, %v2024
    %v2026 = vrot.slane %v1980, %v2025
    %v2027 = vlaneseq
    %v2028 = vshrl.u32 %v2027, 7
    %v2029 = vsub.s32 2, %v2028
    %v2030 = vrot.slane %v1980, %v2029
    %v2031 = vlaneseq
    %v2032 = vshrl.u32 %v2031, 7
    %v2033 = vsub.s32 3, %v2032
    %v2034 = vrot.slane %v1980, %v2033
    %v2035 = vlaneseq
    %v2036 = vshrl.u32 %v2035, 7
    %v2037 = vsub.s32 4, %v2036
    %v2038 = vrot.slane %v1980, %v2037
    %v2039 = vlaneseq
    %v2040 = vshrl.u32 %v2039, 7
    %v2041 = vsub.s32 5, %v2040
    %v2042 = vrot.slane %v1980, %v2041
    %v2043 = vlaneseq
    %v2044 = vshrl.u32 %v2043, 7
    %v2045 = vsub.s32 6, %v2044
    %v2046 = vrot.slane %v1980, %v2045
    %v2047 = vlaneseq
    %v2048 = vshrl.u32 %v2047, 7
    %v2049 = vsub.s32 7, %v2048
    %v2050 = vrot.slane %v1980, %v2049
    %v2051 = vlaneseq
    %v2052 = vshrl.u32 %v2051, 7
    %v2053 = vsub.s32 0, %v2052
    %v2054 = vrot.slane %v1981, %v2053
    %v2055 = vlaneseq
    %v2056 = vshrl.u32 %v2055, 7
    %v2057 = vsub.s32 1, %v2056
    %v2058 = vrot.slane %v1981, %v2057
    %v2059 = vlaneseq
    %v2060 = vshrl.u32 %v2059, 7
    %v2061 = vsub.s32 2, %v2060
    %v2062 = vrot.slane %v1981, %v2061
    %v2063 = vlaneseq
    %v2064 = vshrl.u32 %v2063, 7
    %v2065 = vsub.s32 3, %v2064
    %v2066 = vrot.slane %v1981, %v2065
    %v2067 = vlaneseq
    %v2068 = vshrl.u32 %v2067, 7
    %v2069 = vsub.s32 4, %v2068
    %v2070 = vrot.slane %v1981, %v2069
    %v2071 = vlaneseq
    %v2072 = vshrl.u32 %v2071, 7
    %v2073 = vsub.s32 5, %v2072
    %v2074 = vrot.slane %v1981, %v2073
    %v2075 = vlaneseq
    %v2076 = vshrl.u32 %v2075, 7
    %v2077 = vsub.s32 6, %v2076
    %v2078 = vrot.slane %v1981, %v2077
    %v2079 = vlaneseq
    %v2080 = vshrl.u32 %v2079, 7
    %v2081 = vsub.s32 7, %v2080
    %v2082 = vrot.slane %v1981, %v2081
    %v2083 = vlaneseq
    %v2084 = vshrl.u32 %v2083, 7
    %v2085 = vsub.s32 0, %v2084
    %v2086 = vrot.slane %v1982, %v2085
    %v2088 = vcombine.low %v1990, %v1994
    %v2089 = vcombine.low %v1998, %v2002
    %v2090 = vcombine.low %v2006, %v2010
    %v2091 = vcombine.low %v2014, %v2018
    %v2092 = vcombine.low %v2022, %v2026
    %v2093 = vcombine.low %v2030, %v2034
    %v2094 = vcombine.low %v2038, %v2042
    %v2095 = vcombine.low %v2046, %v2050
    %v2096 = vcombine.low %v2054, %v2058
    %v2097 = vcombine.low %v2062, %v2066
    %v2098 = vcombine.low %v2070, %v2074
    %v2099 = vcombine.low %v2078, %v2082
    %v2112 = vmul.f32 %v1965, %v2088
    %v2113 = vmul.f32 %v1966, %v2089
    %v2114 = vmul.f32 %v1967, %v2090
    %v2115 = vmul.f32 %v1968, %v2091
    %v2116 = vmul.f32 %v1969, %v2092
    %v2117 = vmul.f32 %v1970, %v2093
    %v2118 = vmul.f32 %v1971, %v2094
    %v2119 = vmul.f32 %v1972, %v2095
    %v2120 = vmul.f32 %v1973, %v2096
    %v2121 = vmul.f32 %v1974, %v2097
    %v2122 = vmul.f32 %v1975, %v2098
    %v2123 = vmul.f32 %v1976, %v2099
    %v2124 = vmul.f32 %v1977, %v2086
    %v2125 = vadd.f32 %v1951, %v2112
    %v2126 = vadd.f32 %v1952, %v2113
    %v2127 = vadd.f32 %v1953, %v2114
    %v2128 = vadd.f32 %v1954, %v2115
    %v2129 = vadd.f32 %v1955, %v2116
    %v2130 = vadd.f32 %v1956, %v2117
    %v2131 = vadd.f32 %v1957, %v2118
    %v2132 = vadd.f32 %v1958, %v2119
    %v2133 = vadd.f32 %v1959, %v2120
    %v2134 = vadd.f32 %v1960, %v2121
    %v2135 = vadd.f32 %v1961, %v2122
    %v2136 = vadd.f32 %v1962, %v2123
    %v2137 = vadd.f32 %v1963, %v2124
    %s2138 = scalar_lea.vmem %s0, 1200
    %v2139 = vld [vmem:[%s2138] sm:$0xff]
    %v2140 = vld [vmem:[%s2138 + $0x8] sm:$0xff]
    %v2141 = vld [vmem:[%s2138 + $0x10] sm:$0xff]
    %v2142 = vld [vmem:[%s2138 + $0x18] sm:$0xff]
    %v2143 = vld [vmem:[%s2138 + $0x20] sm:$0xff]
    %v2144 = vld [vmem:[%s2138 + $0x28] sm:$0xff]
    %v2145 = vld [vmem:[%s2138 + $0x30] sm:$0xff]
    %v2146 = vld [vmem:[%s2138 + $0x38] sm:$0xff]
    %v2147 = vld [vmem:[%s2138 + $0x40] sm:$0xff]
    %v2148 = vld [vmem:[%s2138 + $0x48] sm:$0xff]
    %v2149 = vld [vmem:[%s2138 + $0x50] sm:$0xff]
    %v2150 = vld [vmem:[%s2138 + $0x58] sm:$0xff]
    %v2151 = vld [vmem:[%s2138 + $0x60] sm:$0xf]
    %s2152 = scalar_lea.vmem %s1, 300
    %v2153 = vld [vmem:[%s2152] sm:$0xff]
    %v2154 = vld [vmem:[%s2152 + $0x8] sm:$0xff]
    %v2155 = vld [vmem:[%s2152 + $0x10] sm:$0xff]
    %v2156 = vld [vmem:[%s2152 + $0x18] sm:$0x1]
    %v2161 = vlaneseq
    %v2162 = vshrl.u32 %v2161, 7
    %v2163 = vsub.s32 0, %v2162
    %v2164 = vrot.slane %v2153, %v2163
    %v2165 = vlaneseq
    %v2166 = vshrl.u32 %v2165, 7
    %v2167 = vsub.s32 1, %v2166
    %v2168 = vrot.slane %v2153, %v2167
    %v2169 = vlaneseq
    %v2170 = vshrl.u32 %v2169, 7
    %v2171 = vsub.s32 2, %v2170
    %v2172 = vrot.slane %v2153, %v2171
    %v2173 = vlaneseq
    %v2174 = vshrl.u32 %v2173, 7
    %v2175 = vsub.s32 3, %v2174
    %v2176 = vrot.slane %v2153, %v2175
    %v2177 = vlaneseq
    %v2178 = vshrl.u32 %v2177, 7
    %v2179 = vsub.s32 4, %v2178
    %v2180 = vrot.slane %v2153, %v2179
    %v2181 = vlaneseq
    %v2182 = vshrl.u32 %v2181, 7
    %v2183 = vsub.s32 5, %v2182
    %v2184 = vrot.slane %v2153, %v2183
    %v2185 = vlaneseq
    %v2186 = vshrl.u32 %v2185, 7
    %v2187 = vsub.s32 6, %v2186
    %v2188 = vrot.slane %v2153, %v2187
    %v2189 = vlaneseq
    %v2190 = vshrl.u32 %v2189, 7
    %v2191 = vsub.s32 7, %v2190
    %v2192 = vrot.slane %v2153, %v2191
    %v2193 = vlaneseq
    %v2194 = vshrl.u32 %v2193, 7
    %v2195 = vsub.s32 0, %v2194
    %v2196 = vrot.slane %v2154, %v2195
    %v2197 = vlaneseq
    %v2198 = vshrl.u32 %v2197, 7
    %v2199 = vsub.s32 1, %v2198
    %v2200 = vrot.slane %v2154, %v2199
    %v2201 = vlaneseq
    %v2202 = vshrl.u32 %v2201, 7
    %v2203 = vsub.s32 2, %v2202
    %v2204 = vrot.slane %v2154, %v2203
    %v2205 = vlaneseq
    %v2206 = vshrl.u32 %v2205, 7
    %v2207 = vsub.s32 3, %v2206
    %v2208 = vrot.slane %v2154, %v2207
    %v2209 = vlaneseq
    %v2210 = vshrl.u32 %v2209, 7
    %v2211 = vsub.s32 4, %v2210
    %v2212 = vrot.slane %v2154, %v2211
    %v2213 = vlaneseq
    %v2214 = vshrl.u32 %v2213, 7
    %v2215 = vsub.s32 5, %v2214
    %v2216 = vrot.slane %v2154, %v2215
    %v2217 = vlaneseq
    %v2218 = vshrl.u32 %v2217, 7
    %v2219 = vsub.s32 6, %v2218
    %v2220 = vrot.slane %v2154, %v2219
    %v2221 = vlaneseq
    %v2222 = vshrl.u32 %v2221, 7
    %v2223 = vsub.s32 7, %v2222
    %v2224 = vrot.slane %v2154, %v2223
    %v2225 = vlaneseq
    %v2226 = vshrl.u32 %v2225, 7
    %v2227 = vsub.s32 0, %v2226
    %v2228 = vrot.slane %v2155, %v2227
    %v2229 = vlaneseq
    %v2230 = vshrl.u32 %v2229, 7
    %v2231 = vsub.s32 1, %v2230
    %v2232 = vrot.slane %v2155, %v2231
    %v2233 = vlaneseq
    %v2234 = vshrl.u32 %v2233, 7
    %v2235 = vsub.s32 2, %v2234
    %v2236 = vrot.slane %v2155, %v2235
    %v2237 = vlaneseq
    %v2238 = vshrl.u32 %v2237, 7
    %v2239 = vsub.s32 3, %v2238
    %v2240 = vrot.slane %v2155, %v2239
    %v2241 = vlaneseq
    %v2242 = vshrl.u32 %v2241, 7
    %v2243 = vsub.s32 4, %v2242
    %v2244 = vrot.slane %v2155, %v2243
    %v2245 = vlaneseq
    %v2246 = vshrl.u32 %v2245, 7
    %v2247 = vsub.s32 5, %v2246
    %v2248 = vrot.slane %v2155, %v2247
    %v2249 = vlaneseq
    %v2250 = vshrl.u32 %v2249, 7
    %v2251 = vsub.s32 6, %v2250
    %v2252 = vrot.slane %v2155, %v2251
    %v2253 = vlaneseq
    %v2254 = vshrl.u32 %v2253, 7
    %v2255 = vsub.s32 7, %v2254
    %v2256 = vrot.slane %v2155, %v2255
    %v2257 = vlaneseq
    %v2258 = vshrl.u32 %v2257, 7
    %v2259 = vsub.s32 0, %v2258
    %v2260 = vrot.slane %v2156, %v2259
    %v2262 = vcombine.low %v2164, %v2168
    %v2263 = vcombine.low %v2172, %v2176
    %v2264 = vcombine.low %v2180, %v2184
    %v2265 = vcombine.low %v2188, %v2192
    %v2266 = vcombine.low %v2196, %v2200
    %v2267 = vcombine.low %v2204, %v2208
    %v2268 = vcombine.low %v2212, %v2216
    %v2269 = vcombine.low %v2220, %v2224
    %v2270 = vcombine.low %v2228, %v2232
    %v2271 = vcombine.low %v2236, %v2240
    %v2272 = vcombine.low %v2244, %v2248
    %v2273 = vcombine.low %v2252, %v2256
    %v2286 = vmul.f32 %v2139, %v2262
    %v2287 = vmul.f32 %v2140, %v2263
    %v2288 = vmul.f32 %v2141, %v2264
    %v2289 = vmul.f32 %v2142, %v2265
    %v2290 = vmul.f32 %v2143, %v2266
    %v2291 = vmul.f32 %v2144, %v2267
    %v2292 = vmul.f32 %v2145, %v2268
    %v2293 = vmul.f32 %v2146, %v2269
    %v2294 = vmul.f32 %v2147, %v2270
    %v2295 = vmul.f32 %v2148, %v2271
    %v2296 = vmul.f32 %v2149, %v2272
    %v2297 = vmul.f32 %v2150, %v2273
    %v2298 = vmul.f32 %v2151, %v2260
    %v2299 = vadd.f32 %v2125, %v2286
    %v2300 = vadd.f32 %v2126, %v2287
    %v2301 = vadd.f32 %v2127, %v2288
    %v2302 = vadd.f32 %v2128, %v2289
    %v2303 = vadd.f32 %v2129, %v2290
    %v2304 = vadd.f32 %v2130, %v2291
    %v2305 = vadd.f32 %v2131, %v2292
    %v2306 = vadd.f32 %v2132, %v2293
    %v2307 = vadd.f32 %v2133, %v2294
    %v2308 = vadd.f32 %v2134, %v2295
    %v2309 = vadd.f32 %v2135, %v2296
    %v2310 = vadd.f32 %v2136, %v2297
    %v2311 = vadd.f32 %v2137, %v2298
    %s2312 = scalar_lea.vmem %s0, 1300
    %v2313 = vld [vmem:[%s2312] sm:$0xff]
    %v2314 = vld [vmem:[%s2312 + $0x8] sm:$0xff]
    %v2315 = vld [vmem:[%s2312 + $0x10] sm:$0xff]
    %v2316 = vld [vmem:[%s2312 + $0x18] sm:$0xff]
    %v2317 = vld [vmem:[%s2312 + $0x20] sm:$0xff]
    %v2318 = vld [vmem:[%s2312 + $0x28] sm:$0xff]
    %v2319 = vld [vmem:[%s2312 + $0x30] sm:$0xff]
    %v2320 = vld [vmem:[%s2312 + $0x38] sm:$0xff]
    %v2321 = vld [vmem:[%s2312 + $0x40] sm:$0xff]
    %v2322 = vld [vmem:[%s2312 + $0x48] sm:$0xff]
    %v2323 = vld [vmem:[%s2312 + $0x50] sm:$0xff]
    %v2324 = vld [vmem:[%s2312 + $0x58] sm:$0xff]
    %v2325 = vld [vmem:[%s2312 + $0x60] sm:$0xf]
    %s2326 = scalar_lea.vmem %s1, 325
    %v2327 = vld [vmem:[%s2326] sm:$0xff]
    %v2328 = vld [vmem:[%s2326 + $0x8] sm:$0xff]
    %v2329 = vld [vmem:[%s2326 + $0x10] sm:$0xff]
    %v2330 = vld [vmem:[%s2326 + $0x18] sm:$0x1]
    %v2335 = vlaneseq
    %v2336 = vshrl.u32 %v2335, 7
    %v2337 = vsub.s32 0, %v2336
    %v2338 = vrot.slane %v2327, %v2337
    %v2339 = vlaneseq
    %v2340 = vshrl.u32 %v2339, 7
    %v2341 = vsub.s32 1, %v2340
    %v2342 = vrot.slane %v2327, %v2341
    %v2343 = vlaneseq
    %v2344 = vshrl.u32 %v2343, 7
    %v2345 = vsub.s32 2, %v2344
    %v2346 = vrot.slane %v2327, %v2345
    %v2347 = vlaneseq
    %v2348 = vshrl.u32 %v2347, 7
    %v2349 = vsub.s32 3, %v2348
    %v2350 = vrot.slane %v2327, %v2349
    %v2351 = vlaneseq
    %v2352 = vshrl.u32 %v2351, 7
    %v2353 = vsub.s32 4, %v2352
    %v2354 = vrot.slane %v2327, %v2353
    %v2355 = vlaneseq
    %v2356 = vshrl.u32 %v2355, 7
    %v2357 = vsub.s32 5, %v2356
    %v2358 = vrot.slane %v2327, %v2357
    %v2359 = vlaneseq
    %v2360 = vshrl.u32 %v2359, 7
    %v2361 = vsub.s32 6, %v2360
    %v2362 = vrot.slane %v2327, %v2361
    %v2363 = vlaneseq
    %v2364 = vshrl.u32 %v2363, 7
    %v2365 = vsub.s32 7, %v2364
    %v2366 = vrot.slane %v2327, %v2365
    %v2367 = vlaneseq
    %v2368 = vshrl.u32 %v2367, 7
    %v2369 = vsub.s32 0, %v2368
    %v2370 = vrot.slane %v2328, %v2369
    %v2371 = vlaneseq
    %v2372 = vshrl.u32 %v2371, 7
    %v2373 = vsub.s32 1, %v2372
    %v2374 = vrot.slane %v2328, %v2373
    %v2375 = vlaneseq
    %v2376 = vshrl.u32 %v2375, 7
    %v2377 = vsub.s32 2, %v2376
    %v2378 = vrot.slane %v2328, %v2377
    %v2379 = vlaneseq
    %v2380 = vshrl.u32 %v2379, 7
    %v2381 = vsub.s32 3, %v2380
    %v2382 = vrot.slane %v2328, %v2381
    %v2383 = vlaneseq
    %v2384 = vshrl.u32 %v2383, 7
    %v2385 = vsub.s32 4, %v2384
    %v2386 = vrot.slane %v2328, %v2385
    %v2387 = vlaneseq
    %v2388 = vshrl.u32 %v2387, 7
    %v2389 = vsub.s32 5, %v2388
    %v2390 = vrot.slane %v2328, %v2389
    %v2391 = vlaneseq
    %v2392 = vshrl.u32 %v2391, 7
    %v2393 = vsub.s32 6, %v2392
    %v2394 = vrot.slane %v2328, %v2393
    %v2395 = vlaneseq
    %v2396 = vshrl.u32 %v2395, 7
    %v2397 = vsub.s32 7, %v2396
    %v2398 = vrot.slane %v2328, %v2397
    %v2399 = vlaneseq
    %v2400 = vshrl.u32 %v2399, 7
    %v2401 = vsub.s32 0, %v2400
    %v2402 = vrot.slane %v2329, %v2401
    %v2403 = vlaneseq
    %v2404 = vshrl.u32 %v2403, 7
    %v2405 = vsub.s32 1, %v2404
    %v2406 = vrot.slane %v2329, %v2405
    %v2407 = vlaneseq
    %v2408 = vshrl.u32 %v2407, 7
    %v2409 = vsub.s32 2, %v2408
    %v2410 = vrot.slane %v2329, %v2409
    %v2411 = vlaneseq
    %v2412 = vshrl.u32 %v2411, 7
    %v2413 = vsub.s32 3, %v2412
    %v2414 = vrot.slane %v2329, %v2413
    %v2415 = vlaneseq
    %v2416 = vshrl.u32 %v2415, 7
    %v2417 = vsub.s32 4, %v2416
    %v2418 = vrot.slane %v2329, %v2417
    %v2419 = vlaneseq
    %v2420 = vshrl.u32 %v2419, 7
    %v2421 = vsub.s32 5, %v2420
    %v2422 = vrot.slane %v2329, %v2421
    %v2423 = vlaneseq
    %v2424 = vshrl.u32 %v2423, 7
    %v2425 = vsub.s32 6, %v2424
    %v2426 = vrot.slane %v2329, %v2425
    %v2427 = vlaneseq
    %v2428 = vshrl.u32 %v2427, 7
    %v2429 = vsub.s32 7, %v2428
    %v2430 = vrot.slane %v2329, %v2429
    %v2431 = vlaneseq
    %v2432 = vshrl.u32 %v2431, 7
    %v2433 = vsub.s32 0, %v2432
    %v2434 = vrot.slane %v2330, %v2433
    %v2436 = vcombine.low %v2338, %v2342
    %v2437 = vcombine.low %v2346, %v2350
    %v2438 = vcombine.low %v2354, %v2358
    %v2439 = vcombine.low %v2362, %v2366
    %v2440 = vcombine.low %v2370, %v2374
    %v2441 = vcombine.low %v2378, %v2382
    %v2442 = vcombine.low %v2386, %v2390
    %v2443 = vcombine.low %v2394, %v2398
    %v2444 = vcombine.low %v2402, %v2406
    %v2445 = vcombine.low %v2410, %v2414
    %v2446 = vcombine.low %v2418, %v2422
    %v2447 = vcombine.low %v2426, %v2430
    %v2460 = vmul.f32 %v2313, %v2436
    %v2461 = vmul.f32 %v2314, %v2437
    %v2462 = vmul.f32 %v2315, %v2438
    %v2463 = vmul.f32 %v2316, %v2439
    %v2464 = vmul.f32 %v2317, %v2440
    %v2465 = vmul.f32 %v2318, %v2441
    %v2466 = vmul.f32 %v2319, %v2442
    %v2467 = vmul.f32 %v2320, %v2443
    %v2468 = vmul.f32 %v2321, %v2444
    %v2469 = vmul.f32 %v2322, %v2445
    %v2470 = vmul.f32 %v2323, %v2446
    %v2471 = vmul.f32 %v2324, %v2447
    %v2472 = vmul.f32 %v2325, %v2434
    %v2473 = vadd.f32 %v2299, %v2460
    %v2474 = vadd.f32 %v2300, %v2461
    %v2475 = vadd.f32 %v2301, %v2462
    %v2476 = vadd.f32 %v2302, %v2463
    %v2477 = vadd.f32 %v2303, %v2464
    %v2478 = vadd.f32 %v2304, %v2465
    %v2479 = vadd.f32 %v2305, %v2466
    %v2480 = vadd.f32 %v2306, %v2467
    %v2481 = vadd.f32 %v2307, %v2468
    %v2482 = vadd.f32 %v2308, %v2469
    %v2483 = vadd.f32 %v2309, %v2470
    %v2484 = vadd.f32 %v2310, %v2471
    %v2485 = vadd.f32 %v2311, %v2472
    %s2486 = scalar_lea.vmem %s0, 1400
    %v2487 = vld [vmem:[%s2486] sm:$0xff]
    %v2488 = vld [vmem:[%s2486 + $0x8] sm:$0xff]
    %v2489 = vld [vmem:[%s2486 + $0x10] sm:$0xff]
    %v2490 = vld [vmem:[%s2486 + $0x18] sm:$0xff]
    %v2491 = vld [vmem:[%s2486 + $0x20] sm:$0xff]
    %v2492 = vld [vmem:[%s2486 + $0x28] sm:$0xff]
    %v2493 = vld [vmem:[%s2486 + $0x30] sm:$0xff]
    %v2494 = vld [vmem:[%s2486 + $0x38] sm:$0xff]
    %v2495 = vld [vmem:[%s2486 + $0x40] sm:$0xff]
    %v2496 = vld [vmem:[%s2486 + $0x48] sm:$0xff]
    %v2497 = vld [vmem:[%s2486 + $0x50] sm:$0xff]
    %v2498 = vld [vmem:[%s2486 + $0x58] sm:$0xff]
    %v2499 = vld [vmem:[%s2486 + $0x60] sm:$0xf]
    %s2500 = scalar_lea.vmem %s1, 350
    %v2501 = vld [vmem:[%s2500] sm:$0xff]
    %v2502 = vld [vmem:[%s2500 + $0x8] sm:$0xff]
    %v2503 = vld [vmem:[%s2500 + $0x10] sm:$0xff]
    %v2504 = vld [vmem:[%s2500 + $0x18] sm:$0x1]
    %v2509 = vlaneseq
    %v2510 = vshrl.u32 %v2509, 7
    %v2511 = vsub.s32 0, %v2510
    %v2512 = vrot.slane %v2501, %v2511
    %v2513 = vlaneseq
    %v2514 = vshrl.u32 %v2513, 7
    %v2515 = vsub.s32 1, %v2514
    %v2516 = vrot.slane %v2501, %v2515
    %v2517 = vlaneseq
    %v2518 = vshrl.u32 %v2517, 7
    %v2519 = vsub.s32 2, %v2518
    %v2520 = vrot.slane %v2501, %v2519
    %v2521 = vlaneseq
    %v2522 = vshrl.u32 %v2521, 7
    %v2523 = vsub.s32 3, %v2522
    %v2524 = vrot.slane %v2501, %v2523
    %v2525 = vlaneseq
    %v2526 = vshrl.u32 %v2525, 7
    %v2527 = vsub.s32 4, %v2526
    %v2528 = vrot.slane %v2501, %v2527
    %v2529 = vlaneseq
    %v2530 = vshrl.u32 %v2529, 7
    %v2531 = vsub.s32 5, %v2530
    %v2532 = vrot.slane %v2501, %v2531
    %v2533 = vlaneseq
    %v2534 = vshrl.u32 %v2533, 7
    %v2535 = vsub.s32 6, %v2534
    %v2536 = vrot.slane %v2501, %v2535
    %v2537 = vlaneseq
    %v2538 = vshrl.u32 %v2537, 7
    %v2539 = vsub.s32 7, %v2538
    %v2540 = vrot.slane %v2501, %v2539
    %v2541 = vlaneseq
    %v2542 = vshrl.u32 %v2541, 7
    %v2543 = vsub.s32 0, %v2542
    %v2544 = vrot.slane %v2502, %v2543
    %v2545 = vlaneseq
    %v2546 = vshrl.u32 %v2545, 7
    %v2547 = vsub.s32 1, %v2546
    %v2548 = vrot.slane %v2502, %v2547
    %v2549 = vlaneseq
    %v2550 = vshrl.u32 %v2549, 7
    %v2551 = vsub.s32 2, %v2550
    %v2552 = vrot.slane %v2502, %v2551
    %v2553 = vlaneseq
    %v2554 = vshrl.u32 %v2553, 7
    %v2555 = vsub.s32 3, %v2554
    %v2556 = vrot.slane %v2502, %v2555
    %v2557 = vlaneseq
    %v2558 = vshrl.u32 %v2557, 7
    %v2559 = vsub.s32 4, %v2558
    %v2560 = vrot.slane %v2502, %v2559
    %v2561 = vlaneseq
    %v2562 = vshrl.u32 %v2561, 7
    %v2563 = vsub.s32 5, %v2562
    %v2564 = vrot.slane %v2502, %v2563
    %v2565 = vlaneseq
    %v2566 = vshrl.u32 %v2565, 7
    %v2567 = vsub.s32 6, %v2566
    %v2568 = vrot.slane %v2502, %v2567
    %v2569 = vlaneseq
    %v2570 = vshrl.u32 %v2569, 7
    %v2571 = vsub.s32 7, %v2570
    %v2572 = vrot.slane %v2502, %v2571
    %v2573 = vlaneseq
    %v2574 = vshrl.u32 %v2573, 7
    %v2575 = vsub.s32 0, %v2574
    %v2576 = vrot.slane %v2503, %v2575
    %v2577 = vlaneseq
    %v2578 = vshrl.u32 %v2577, 7
    %v2579 = vsub.s32 1, %v2578
    %v2580 = vrot.slane %v2503, %v2579
    %v2581 = vlaneseq
    %v2582 = vshrl.u32 %v2581, 7
    %v2583 = vsub.s32 2, %v2582
    %v2584 = vrot.slane %v2503, %v2583
    %v2585 = vlaneseq
    %v2586 = vshrl.u32 %v2585, 7
    %v2587 = vsub.s32 3, %v2586
    %v2588 = vrot.slane %v2503, %v2587
    %v2589 = vlaneseq
    %v2590 = vshrl.u32 %v2589, 7
    %v2591 = vsub.s32 4, %v2590
    %v2592 = vrot.slane %v2503, %v2591
    %v2593 = vlaneseq
    %v2594 = vshrl.u32 %v2593, 7
    %v2595 = vsub.s32 5, %v2594
    %v2596 = vrot.slane %v2503, %v2595
    %v2597 = vlaneseq
    %v2598 = vshrl.u32 %v2597, 7
    %v2599 = vsub.s32 6, %v2598
    %v2600 = vrot.slane %v2503, %v2599
    %v2601 = vlaneseq
    %v2602 = vshrl.u32 %v2601, 7
    %v2603 = vsub.s32 7, %v2602
    %v2604 = vrot.slane %v2503, %v2603
    %v2605 = vlaneseq
    %v2606 = vshrl.u32 %v2605, 7
    %v2607 = vsub.s32 0, %v2606
    %v2608 = vrot.slane %v2504, %v2607
    %v2610 = vcombine.low %v2512, %v2516
    %v2611 = vcombine.low %v2520, %v2524
    %v2612 = vcombine.low %v2528, %v2532
    %v2613 = vcombine.low %v2536, %v2540
    %v2614 = vcombine.low %v2544, %v2548
    %v2615 = vcombine.low %v2552, %v2556
    %v2616 = vcombine.low %v2560, %v2564
    %v2617 = vcombine.low %v2568, %v2572
    %v2618 = vcombine.low %v2576, %v2580
    %v2619 = vcombine.low %v2584, %v2588
    %v2620 = vcombine.low %v2592, %v2596
    %v2621 = vcombine.low %v2600, %v2604
    %v2634 = vmul.f32 %v2487, %v2610
    %v2635 = vmul.f32 %v2488, %v2611
    %v2636 = vmul.f32 %v2489, %v2612
    %v2637 = vmul.f32 %v2490, %v2613
    %v2638 = vmul.f32 %v2491, %v2614
    %v2639 = vmul.f32 %v2492, %v2615
    %v2640 = vmul.f32 %v2493, %v2616
    %v2641 = vmul.f32 %v2494, %v2617
    %v2642 = vmul.f32 %v2495, %v2618
    %v2643 = vmul.f32 %v2496, %v2619
    %v2644 = vmul.f32 %v2497, %v2620
    %v2645 = vmul.f32 %v2498, %v2621
    %v2646 = vmul.f32 %v2499, %v2608
    %v2647 = vadd.f32 %v2473, %v2634
    %v2648 = vadd.f32 %v2474, %v2635
    %v2649 = vadd.f32 %v2475, %v2636
    %v2650 = vadd.f32 %v2476, %v2637
    %v2651 = vadd.f32 %v2477, %v2638
    %v2652 = vadd.f32 %v2478, %v2639
    %v2653 = vadd.f32 %v2479, %v2640
    %v2654 = vadd.f32 %v2480, %v2641
    %v2655 = vadd.f32 %v2481, %v2642
    %v2656 = vadd.f32 %v2482, %v2643
    %v2657 = vadd.f32 %v2483, %v2644
    %v2658 = vadd.f32 %v2484, %v2645
    %v2659 = vadd.f32 %v2485, %v2646
    %s2660 = scalar_lea.vmem %s0, 1500
    %v2661 = vld [vmem:[%s2660] sm:$0xff]
    %v2662 = vld [vmem:[%s2660 + $0x8] sm:$0xff]
    %v2663 = vld [vmem:[%s2660 + $0x10] sm:$0xff]
    %v2664 = vld [vmem:[%s2660 + $0x18] sm:$0xff]
    %v2665 = vld [vmem:[%s2660 + $0x20] sm:$0xff]
    %v2666 = vld [vmem:[%s2660 + $0x28] sm:$0xff]
    %v2667 = vld [vmem:[%s2660 + $0x30] sm:$0xff]
    %v2668 = vld [vmem:[%s2660 + $0x38] sm:$0xff]
    %v2669 = vld [vmem:[%s2660 + $0x40] sm:$0xff]
    %v2670 = vld [vmem:[%s2660 + $0x48] sm:$0xff]
    %v2671 = vld [vmem:[%s2660 + $0x50] sm:$0xff]
    %v2672 = vld [vmem:[%s2660 + $0x58] sm:$0xff]
    %v2673 = vld [vmem:[%s2660 + $0x60] sm:$0xf]
    %s2674 = scalar_lea.vmem %s1, 375
    %v2675 = vld [vmem:[%s2674] sm:$0xff]
    %v2676 = vld [vmem:[%s2674 + $0x8] sm:$0xff]
    %v2677 = vld [vmem:[%s2674 + $0x10] sm:$0xff]
    %v2678 = vld [vmem:[%s2674 + $0x18] sm:$0x1]
    %v2683 = vlaneseq
    %v2684 = vshrl.u32 %v2683, 7
    %v2685 = vsub.s32 0, %v2684
    %v2686 = vrot.slane %v2675, %v2685
    %v2687 = vlaneseq
    %v2688 = vshrl.u32 %v2687, 7
    %v2689 = vsub.s32 1, %v2688
    %v2690 = vrot.slane %v2675, %v2689
    %v2691 = vlaneseq
    %v2692 = vshrl.u32 %v2691, 7
    %v2693 = vsub.s32 2, %v2692
    %v2694 = vrot.slane %v2675, %v2693
    %v2695 = vlaneseq
    %v2696 = vshrl.u32 %v2695, 7
    %v2697 = vsub.s32 3, %v2696
    %v2698 = vrot.slane %v2675, %v2697
    %v2699 = vlaneseq
    %v2700 = vshrl.u32 %v2699, 7
    %v2701 = vsub.s32 4, %v2700
    %v2702 = vrot.slane %v2675, %v2701
    %v2703 = vlaneseq
    %v2704 = vshrl.u32 %v2703, 7
    %v2705 = vsub.s32 5, %v2704
    %v2706 = vrot.slane %v2675, %v2705
    %v2707 = vlaneseq
    %v2708 = vshrl.u32 %v2707, 7
    %v2709 = vsub.s32 6, %v2708
    %v2710 = vrot.slane %v2675, %v2709
    %v2711 = vlaneseq
    %v2712 = vshrl.u32 %v2711, 7
    %v2713 = vsub.s32 7, %v2712
    %v2714 = vrot.slane %v2675, %v2713
    %v2715 = vlaneseq
    %v2716 = vshrl.u32 %v2715, 7
    %v2717 = vsub.s32 0, %v2716
    %v2718 = vrot.slane %v2676, %v2717
    %v2719 = vlaneseq
    %v2720 = vshrl.u32 %v2719, 7
    %v2721 = vsub.s32 1, %v2720
    %v2722 = vrot.slane %v2676, %v2721
    %v2723 = vlaneseq
    %v2724 = vshrl.u32 %v2723, 7
    %v2725 = vsub.s32 2, %v2724
    %v2726 = vrot.slane %v2676, %v2725
    %v2727 = vlaneseq
    %v2728 = vshrl.u32 %v2727, 7
    %v2729 = vsub.s32 3, %v2728
    %v2730 = vrot.slane %v2676, %v2729
    %v2731 = vlaneseq
    %v2732 = vshrl.u32 %v2731, 7
    %v2733 = vsub.s32 4, %v2732
    %v2734 = vrot.slane %v2676, %v2733
    %v2735 = vlaneseq
    %v2736 = vshrl.u32 %v2735, 7
    %v2737 = vsub.s32 5, %v2736
    %v2738 = vrot.slane %v2676, %v2737
    %v2739 = vlaneseq
    %v2740 = vshrl.u32 %v2739, 7
    %v2741 = vsub.s32 6, %v2740
    %v2742 = vrot.slane %v2676, %v2741
    %v2743 = vlaneseq
    %v2744 = vshrl.u32 %v2743, 7
    %v2745 = vsub.s32 7, %v2744
    %v2746 = vrot.slane %v2676, %v2745
    %v2747 = vlaneseq
    %v2748 = vshrl.u32 %v2747, 7
    %v2749 = vsub.s32 0, %v2748
    %v2750 = vrot.slane %v2677, %v2749
    %v2751 = vlaneseq
    %v2752 = vshrl.u32 %v2751, 7
    %v2753 = vsub.s32 1, %v2752
    %v2754 = vrot.slane %v2677, %v2753
    %v2755 = vlaneseq
    %v2756 = vshrl.u32 %v2755, 7
    %v2757 = vsub.s32 2, %v2756
    %v2758 = vrot.slane %v2677, %v2757
    %v2759 = vlaneseq
    %v2760 = vshrl.u32 %v2759, 7
    %v2761 = vsub.s32 3, %v2760
    %v2762 = vrot.slane %v2677, %v2761
    %v2763 = vlaneseq
    %v2764 = vshrl.u32 %v2763, 7
    %v2765 = vsub.s32 4, %v2764
    %v2766 = vrot.slane %v2677, %v2765
    %v2767 = vlaneseq
    %v2768 = vshrl.u32 %v2767, 7
    %v2769 = vsub.s32 5, %v2768
    %v2770 = vrot.slane %v2677, %v2769
    %v2771 = vlaneseq
    %v2772 = vshrl.u32 %v2771, 7
    %v2773 = vsub.s32 6, %v2772
    %v2774 = vrot.slane %v2677, %v2773
    %v2775 = vlaneseq
    %v2776 = vshrl.u32 %v2775, 7
    %v2777 = vsub.s32 7, %v2776
    %v2778 = vrot.slane %v2677, %v2777
    %v2779 = vlaneseq
    %v2780 = vshrl.u32 %v2779, 7
    %v2781 = vsub.s32 0, %v2780
    %v2782 = vrot.slane %v2678, %v2781
    %v2784 = vcombine.low %v2686, %v2690
    %v2785 = vcombine.low %v2694, %v2698
    %v2786 = vcombine.low %v2702, %v2706
    %v2787 = vcombine.low %v2710, %v2714
    %v2788 = vcombine.low %v2718, %v2722
    %v2789 = vcombine.low %v2726, %v2730
    %v2790 = vcombine.low %v2734, %v2738
    %v2791 = vcombine.low %v2742, %v2746
    %v2792 = vcombine.low %v2750, %v2754
    %v2793 = vcombine.low %v2758, %v2762
    %v2794 = vcombine.low %v2766, %v2770
    %v2795 = vcombine.low %v2774, %v2778
    %v2808 = vmul.f32 %v2661, %v2784
    %v2809 = vmul.f32 %v2662, %v2785
    %v2810 = vmul.f32 %v2663, %v2786
    %v2811 = vmul.f32 %v2664, %v2787
    %v2812 = vmul.f32 %v2665, %v2788
    %v2813 = vmul.f32 %v2666, %v2789
    %v2814 = vmul.f32 %v2667, %v2790
    %v2815 = vmul.f32 %v2668, %v2791
    %v2816 = vmul.f32 %v2669, %v2792
    %v2817 = vmul.f32 %v2670, %v2793
    %v2818 = vmul.f32 %v2671, %v2794
    %v2819 = vmul.f32 %v2672, %v2795
    %v2820 = vmul.f32 %v2673, %v2782
    %v2821 = vadd.f32 %v2647, %v2808
    %v2822 = vadd.f32 %v2648, %v2809
    %v2823 = vadd.f32 %v2649, %v2810
    %v2824 = vadd.f32 %v2650, %v2811
    %v2825 = vadd.f32 %v2651, %v2812
    %v2826 = vadd.f32 %v2652, %v2813
    %v2827 = vadd.f32 %v2653, %v2814
    %v2828 = vadd.f32 %v2654, %v2815
    %v2829 = vadd.f32 %v2655, %v2816
    %v2830 = vadd.f32 %v2656, %v2817
    %v2831 = vadd.f32 %v2657, %v2818
    %v2832 = vadd.f32 %v2658, %v2819
    %v2833 = vadd.f32 %v2659, %v2820
    %v2834 = vld [vmem:[%s2] sm:$0xff]
    %v2835 = vld [vmem:[%s2 + $0x8] sm:$0xff]
    %v2836 = vld [vmem:[%s2 + $0x10] sm:$0xff]
    %v2837 = vld [vmem:[%s2 + $0x18] sm:$0x1]
    %v2842 = vlaneseq
    %v2843 = vshrl.u32 %v2842, 7
    %v2844 = vsub.s32 0, %v2843
    %v2845 = vrot.slane %v2834, %v2844
    %v2846 = vlaneseq
    %v2847 = vshrl.u32 %v2846, 7
    %v2848 = vsub.s32 1, %v2847
    %v2849 = vrot.slane %v2834, %v2848
    %v2850 = vlaneseq
    %v2851 = vshrl.u32 %v2850, 7
    %v2852 = vsub.s32 2, %v2851
    %v2853 = vrot.slane %v2834, %v2852
    %v2854 = vlaneseq
    %v2855 = vshrl.u32 %v2854, 7
    %v2856 = vsub.s32 3, %v2855
    %v2857 = vrot.slane %v2834, %v2856
    %v2858 = vlaneseq
    %v2859 = vshrl.u32 %v2858, 7
    %v2860 = vsub.s32 4, %v2859
    %v2861 = vrot.slane %v2834, %v2860
    %v2862 = vlaneseq
    %v2863 = vshrl.u32 %v2862, 7
    %v2864 = vsub.s32 5, %v2863
    %v2865 = vrot.slane %v2834, %v2864
    %v2866 = vlaneseq
    %v2867 = vshrl.u32 %v2866, 7
    %v2868 = vsub.s32 6, %v2867
    %v2869 = vrot.slane %v2834, %v2868
    %v2870 = vlaneseq
    %v2871 = vshrl.u32 %v2870, 7
    %v2872 = vsub.s32 7, %v2871
    %v2873 = vrot.slane %v2834, %v2872
    %v2874 = vlaneseq
    %v2875 = vshrl.u32 %v2874, 7
    %v2876 = vsub.s32 0, %v2875
    %v2877 = vrot.slane %v2835, %v2876
    %v2878 = vlaneseq
    %v2879 = vshrl.u32 %v2878, 7
    %v2880 = vsub.s32 1, %v2879
    %v2881 = vrot.slane %v2835, %v2880
    %v2882 = vlaneseq
    %v2883 = vshrl.u32 %v2882, 7
    %v2884 = vsub.s32 2, %v2883
    %v2885 = vrot.slane %v2835, %v2884
    %v2886 = vlaneseq
    %v2887 = vshrl.u32 %v2886, 7
    %v2888 = vsub.s32 3, %v2887
    %v2889 = vrot.slane %v2835, %v2888
    %v2890 = vlaneseq
    %v2891 = vshrl.u32 %v2890, 7
    %v2892 = vsub.s32 4, %v2891
    %v2893 = vrot.slane %v2835, %v2892
    %v2894 = vlaneseq
    %v2895 = vshrl.u32 %v2894, 7
    %v2896 = vsub.s32 5, %v2895
    %v2897 = vrot.slane %v2835, %v2896
    %v2898 = vlaneseq
    %v2899 = vshrl.u32 %v2898, 7
    %v2900 = vsub.s32 6, %v2899
    %v2901 = vrot.slane %v2835, %v2900
    %v2902 = vlaneseq
    %v2903 = vshrl.u32 %v2902, 7
    %v2904 = vsub.s32 7, %v2903
    %v2905 = vrot.slane %v2835, %v2904
    %v2906 = vlaneseq
    %v2907 = vshrl.u32 %v2906, 7
    %v2908 = vsub.s32 0, %v2907
    %v2909 = vrot.slane %v2836, %v2908
    %v2910 = vlaneseq
    %v2911 = vshrl.u32 %v2910, 7
    %v2912 = vsub.s32 1, %v2911
    %v2913 = vrot.slane %v2836, %v2912
    %v2914 = vlaneseq
    %v2915 = vshrl.u32 %v2914, 7
    %v2916 = vsub.s32 2, %v2915
    %v2917 = vrot.slane %v2836, %v2916
    %v2918 = vlaneseq
    %v2919 = vshrl.u32 %v2918, 7
    %v2920 = vsub.s32 3, %v2919
    %v2921 = vrot.slane %v2836, %v2920
    %v2922 = vlaneseq
    %v2923 = vshrl.u32 %v2922, 7
    %v2924 = vsub.s32 4, %v2923
    %v2925 = vrot.slane %v2836, %v2924
    %v2926 = vlaneseq
    %v2927 = vshrl.u32 %v2926, 7
    %v2928 = vsub.s32 5, %v2927
    %v2929 = vrot.slane %v2836, %v2928
    %v2930 = vlaneseq
    %v2931 = vshrl.u32 %v2930, 7
    %v2932 = vsub.s32 6, %v2931
    %v2933 = vrot.slane %v2836, %v2932
    %v2934 = vlaneseq
    %v2935 = vshrl.u32 %v2934, 7
    %v2936 = vsub.s32 7, %v2935
    %v2937 = vrot.slane %v2836, %v2936
    %v2938 = vlaneseq
    %v2939 = vshrl.u32 %v2938, 7
    %v2940 = vsub.s32 0, %v2939
    %v2941 = vrot.slane %v2837, %v2940
    %v2943 = vcombine.low %v2845, %v2849
    %v2944 = vcombine.low %v2853, %v2857
    %v2945 = vcombine.low %v2861, %v2865
    %v2946 = vcombine.low %v2869, %v2873
    %v2947 = vcombine.low %v2877, %v2881
    %v2948 = vcombine.low %v2885, %v2889
    %v2949 = vcombine.low %v2893, %v2897
    %v2950 = vcombine.low %v2901, %v2905
    %v2951 = vcombine.low %v2909, %v2913
    %v2952 = vcombine.low %v2917, %v2921
    %v2953 = vcombine.low %v2925, %v2929
    %v2954 = vcombine.low %v2933, %v2937
    %v2967 = vadd.f32 %v2821, %v2943
    %v2968 = vadd.f32 %v2822, %v2944
    %v2969 = vadd.f32 %v2823, %v2945
    %v2970 = vadd.f32 %v2824, %v2946
    %v2971 = vadd.f32 %v2825, %v2947
    %v2972 = vadd.f32 %v2826, %v2948
    %v2973 = vadd.f32 %v2827, %v2949
    %v2974 = vadd.f32 %v2828, %v2950
    %v2975 = vadd.f32 %v2829, %v2951
    %v2976 = vadd.f32 %v2830, %v2952
    %v2977 = vadd.f32 %v2831, %v2953
    %v2978 = vadd.f32 %v2832, %v2954
    %v2979 = vadd.f32 %v2833, %v2941
    %v2980 = vmax.f32 %v2967, 0.0
    %v2981 = vmax.f32 %v2968, 0.0
    %v2982 = vmax.f32 %v2969, 0.0
    %v2983 = vmax.f32 %v2970, 0.0
    %v2984 = vmax.f32 %v2971, 0.0
    %v2985 = vmax.f32 %v2972, 0.0
    %v2986 = vmax.f32 %v2973, 0.0
    %v2987 = vmax.f32 %v2974, 0.0
    %v2988 = vmax.f32 %v2975, 0.0
    %v2989 = vmax.f32 %v2976, 0.0
    %v2990 = vmax.f32 %v2977, 0.0
    %v2991 = vmax.f32 %v2978, 0.0
    %v2992 = vmax.f32 %v2979, 0.0
    %v3005 = vcombine.high %v2980, %v2980
    %v3006 = vcombine.high %v2981, %v2981
    %v3007 = vcombine.high %v2982, %v2982
    %v3008 = vcombine.high %v2983, %v2983
    %v3009 = vcombine.high %v2984, %v2984
    %v3010 = vcombine.high %v2985, %v2985
    %v3011 = vcombine.high %v2986, %v2986
    %v3012 = vcombine.high %v2987, %v2987
    %v3013 = vcombine.high %v2988, %v2988
    %v3014 = vcombine.high %v2989, %v2989
    %v3015 = vcombine.high %v2990, %v2990
    %v3016 = vcombine.high %v2991, %v2991
    %v3029 = vpack.c.bf16 %v2980, %v2980
    %v3030 = vpack.c.bf16 %v3005, %v3005
    %v3031 = vpack.c.bf16 %v2981, %v2981
    %v3032 = vpack.c.bf16 %v3006, %v3006
    %v3033 = vpack.c.bf16 %v2982, %v2982
    %v3034 = vpack.c.bf16 %v3007, %v3007
    %v3035 = vpack.c.bf16 %v2983, %v2983
    %v3036 = vpack.c.bf16 %v3008, %v3008
    %v3037 = vpack.c.bf16 %v2984, %v2984
    %v3038 = vpack.c.bf16 %v3009, %v3009
    %v3039 = vpack.c.bf16 %v2985, %v2985
    %v3040 = vpack.c.bf16 %v3010, %v3010
    %v3041 = vpack.c.bf16 %v2986, %v2986
    %v3042 = vpack.c.bf16 %v3011, %v3011
    %v3043 = vpack.c.bf16 %v2987, %v2987
    %v3044 = vpack.c.bf16 %v3012, %v3012
    %v3045 = vpack.c.bf16 %v2988, %v2988
    %v3046 = vpack.c.bf16 %v3013, %v3013
    %v3047 = vpack.c.bf16 %v2989, %v2989
    %v3048 = vpack.c.bf16 %v3014, %v3014
    %v3049 = vpack.c.bf16 %v2990, %v2990
    %v3050 = vpack.c.bf16 %v3015, %v3015
    %v3051 = vpack.c.bf16 %v2991, %v2991
    %v3052 = vpack.c.bf16 %v3016, %v3016
    %v3053 = vpack.c.bf16 %v2992, %v2992
    %v3054 = vld [vmem:[%s3] sm:$0xff]
    %v3055 = vld [vmem:[%s3 + $0x8] sm:$0xff]
    %v3056 = vld [vmem:[%s3 + $0x10] sm:$0xff]
    %v3057 = vld [vmem:[%s3 + $0x18] sm:$0xff]
    %v3058 = vld [vmem:[%s3 + $0x20] sm:$0xff]
    %v3059 = vld [vmem:[%s3 + $0x28] sm:$0xff]
    %v3060 = vld [vmem:[%s3 + $0x30] sm:$0xff]
    %v3061 = vld [vmem:[%s3 + $0x38] sm:$0xff]
    %v3062 = vld [vmem:[%s3 + $0x40] sm:$0xff]
    %v3063 = vld [vmem:[%s3 + $0x48] sm:$0xff]
    %v3064 = vld [vmem:[%s3 + $0x50] sm:$0xff]
    %v3065 = vld [vmem:[%s3 + $0x58] sm:$0xff]
    %v3066 = vld [vmem:[%s3 + $0x60] sm:$0xff]
    %v3067 = vld [vmem:[%s3 + $0x68] sm:$0xff]
    %v3068 = vld [vmem:[%s3 + $0x70] sm:$0xff]
    %v3069 = vld [vmem:[%s3 + $0x78] sm:$0xff]
    %v3070 = vld [vmem:[%s3 + $0x80] sm:$0xff]
    %v3071 = vld [vmem:[%s3 + $0x88] sm:$0xff]
    %v3072 = vld [vmem:[%s3 + $0x90] sm:$0xff]
    %v3073 = vld [vmem:[%s3 + $0x98] sm:$0xff]
    %v3074 = vld [vmem:[%s3 + $0xa0] sm:$0xff]
    %v3075 = vld [vmem:[%s3 + $0xa8] sm:$0xff]
    %v3076 = vld [vmem:[%s3 + $0xb0] sm:$0xff]
    %v3077 = vld [vmem:[%s3 + $0xb8] sm:$0xff]
    %v3078 = vld [vmem:[%s3 + $0xc0] sm:$0xff]
    %v3079 = vld [vmem:[%s3 + $0xc8] sm:$0xff]
    %v3080 = vld [vmem:[%s3 + $0xd0] sm:$0xff]
    %v3081 = vld [vmem:[%s3 + $0xd8] sm:$0xff]
    %v3082 = vld [vmem:[%s3 + $0xe0] sm:$0xff]
    %v3083 = vld [vmem:[%s3 + $0xe8] sm:$0xff]
    %v3084 = vld [vmem:[%s3 + $0xf0] sm:$0xff]
    %v3085 = vld [vmem:[%s3 + $0xf8] sm:$0xff]
    %v3086 = vld [vmem:[%s3 + $0x100] sm:$0xff]
    %v3087 = vld [vmem:[%s3 + $0x108] sm:$0xff]
    %v3088 = vld [vmem:[%s3 + $0x110] sm:$0xff]
    %v3089 = vld [vmem:[%s3 + $0x118] sm:$0xff]
    %v3090 = vld [vmem:[%s3 + $0x120] sm:$0xff]
    %v3091 = vld [vmem:[%s3 + $0x128] sm:$0xff]
    %v3092 = vld [vmem:[%s3 + $0x130] sm:$0xff]
    %v3093 = vld [vmem:[%s3 + $0x138] sm:$0xff]
    %v3094 = vld [vmem:[%s3 + $0x140] sm:$0xff]
    %v3095 = vld [vmem:[%s3 + $0x148] sm:$0xff]
    %v3096 = vld [vmem:[%s3 + $0x150] sm:$0xff]
    %v3097 = vld [vmem:[%s3 + $0x158] sm:$0xff]
    %v3098 = vld [vmem:[%s3 + $0x160] sm:$0xff]
    %v3099 = vld [vmem:[%s3 + $0x168] sm:$0xff]
    %v3100 = vld [vmem:[%s3 + $0x170] sm:$0xff]
    %v3101 = vld [vmem:[%s3 + $0x178] sm:$0xff]
    %v3102 = vld [vmem:[%s3 + $0x180] sm:$0xff]
    %v3103 = vld [vmem:[%s3 + $0x188] sm:$0xff]
    %v3104 = vld [vmem:[%s3 + $0x190] sm:$0xff]
    %v3105 = vld [vmem:[%s3 + $0x198] sm:$0xff]
    %v3106 = vld [vmem:[%s3 + $0x1a0] sm:$0xff]
    %v3107 = vld [vmem:[%s3 + $0x1a8] sm:$0xff]
    %v3108 = vld [vmem:[%s3 + $0x1b0] sm:$0xff]
    %v3109 = vld [vmem:[%s3 + $0x1b8] sm:$0xff]
    %v3110 = vld [vmem:[%s3 + $0x1c0] sm:$0xff]
    %v3111 = vld [vmem:[%s3 + $0x1c8] sm:$0xff]
    %v3112 = vld [vmem:[%s3 + $0x1d0] sm:$0xff]
    %v3113 = vld [vmem:[%s3 + $0x1d8] sm:$0xff]
    %v3114 = vld [vmem:[%s3 + $0x1e0] sm:$0xff]
    %v3115 = vld [vmem:[%s3 + $0x1e8] sm:$0xff]
    %v3116 = vld [vmem:[%s3 + $0x1f0] sm:$0xff]
    %v3117 = vld [vmem:[%s3 + $0x1f8] sm:$0xff]
    %v3118 = vld [vmem:[%s3 + $0x200] sm:$0xff]
    %v3119 = vld [vmem:[%s3 + $0x208] sm:$0xff]
    %v3120 = vld [vmem:[%s3 + $0x210] sm:$0xff]
    %v3121 = vld [vmem:[%s3 + $0x218] sm:$0xff]
    %v3122 = vld [vmem:[%s3 + $0x220] sm:$0xff]
    %v3123 = vld [vmem:[%s3 + $0x228] sm:$0xff]
    %v3124 = vld [vmem:[%s3 + $0x230] sm:$0xff]
    %v3125 = vld [vmem:[%s3 + $0x238] sm:$0xff]
    %v3126 = vld [vmem:[%s3 + $0x240] sm:$0xff]
    %v3127 = vld [vmem:[%s3 + $0x248] sm:$0xff]
    %v3128 = vld [vmem:[%s3 + $0x250] sm:$0xff]
    %v3129 = vld [vmem:[%s3 + $0x258] sm:$0xff]
    %v3130 = vld [vmem:[%s3 + $0x260] sm:$0xff]
    %v3131 = vld [vmem:[%s3 + $0x268] sm:$0xff]
    %v3132 = vld [vmem:[%s3 + $0x270] sm:$0xff]
    %v3133 = vld [vmem:[%s3 + $0x278] sm:$0xff]
    %v3134 = vld [vmem:[%s3 + $0x280] sm:$0xff]
    %v3135 = vld [vmem:[%s3 + $0x288] sm:$0xff]
    %v3136 = vld [vmem:[%s3 + $0x290] sm:$0xff]
    %v3137 = vld [vmem:[%s3 + $0x298] sm:$0xff]
    %v3138 = vld [vmem:[%s3 + $0x2a0] sm:$0xff]
    %v3139 = vld [vmem:[%s3 + $0x2a8] sm:$0xff]
    %v3140 = vld [vmem:[%s3 + $0x2b0] sm:$0xff]
    %v3141 = vld [vmem:[%s3 + $0x2b8] sm:$0xff]
    %v3142 = vld [vmem:[%s3 + $0x2c0] sm:$0xff]
    %v3143 = vld [vmem:[%s3 + $0x2c8] sm:$0xff]
    %v3144 = vld [vmem:[%s3 + $0x2d0] sm:$0xff]
    %v3145 = vld [vmem:[%s3 + $0x2d8] sm:$0xff]
    %v3146 = vld [vmem:[%s3 + $0x2e0] sm:$0xff]
    %v3147 = vld [vmem:[%s3 + $0x2e8] sm:$0xff]
    %v3148 = vld [vmem:[%s3 + $0x2f0] sm:$0xff]
    %v3149 = vld [vmem:[%s3 + $0x2f8] sm:$0xff]
    %v3150 = vld [vmem:[%s3 + $0x300] sm:$0xff]
    %v3151 = vld [vmem:[%s3 + $0x308] sm:$0xff]
    %v3152 = vld [vmem:[%s3 + $0x310] sm:$0xff]
    %v3153 = vld [vmem:[%s3 + $0x318] sm:$0xff]
    %v3154 = vld [vmem:[%s3 + $0x320] sm:$0xff]
    %v3155 = vld [vmem:[%s3 + $0x328] sm:$0xff]
    %v3156 = vld [vmem:[%s3 + $0x330] sm:$0xff]
    %v3157 = vld [vmem:[%s3 + $0x338] sm:$0xff]
    %v3158 = vld [vmem:[%s3 + $0x340] sm:$0xff]
    %v3159 = vld [vmem:[%s3 + $0x348] sm:$0xff]
    %v3160 = vld [vmem:[%s3 + $0x350] sm:$0xff]
    %v3161 = vld [vmem:[%s3 + $0x358] sm:$0xff]
    %v3162 = vld [vmem:[%s3 + $0x360] sm:$0xff]
    %v3163 = vld [vmem:[%s3 + $0x368] sm:$0xff]
    %v3164 = vld [vmem:[%s3 + $0x370] sm:$0xff]
    %v3165 = vld [vmem:[%s3 + $0x378] sm:$0xff]
    %v3166 = vld [vmem:[%s3 + $0x380] sm:$0xff]
    %v3167 = vld [vmem:[%s3 + $0x388] sm:$0xff]
    %v3168 = vld [vmem:[%s3 + $0x390] sm:$0xff]
    %v3169 = vld [vmem:[%s3 + $0x398] sm:$0xff]
    %v3170 = vld [vmem:[%s3 + $0x3a0] sm:$0xff]
    %v3171 = vld [vmem:[%s3 + $0x3a8] sm:$0xff]
    %v3172 = vld [vmem:[%s3 + $0x3b0] sm:$0xff]
    %v3173 = vld [vmem:[%s3 + $0x3b8] sm:$0xff]
    %v3174 = vld [vmem:[%s3 + $0x3c0] sm:$0xff]
    %v3175 = vld [vmem:[%s3 + $0x3c8] sm:$0xff]
    %v3176 = vld [vmem:[%s3 + $0x3d0] sm:$0xff]
    %v3177 = vld [vmem:[%s3 + $0x3d8] sm:$0xff]
    %v3178 = vld [vmem:[%s3 + $0x3e0] sm:$0xff]
    %v3179 = vld [vmem:[%s3 + $0x3e8] sm:$0xff]
    %v3180 = vld [vmem:[%s3 + $0x3f0] sm:$0xff]
    %v3181 = vld [vmem:[%s3 + $0x3f8] sm:$0xff]
    %v3182 = vld [vmem:[%s3 + $0x400] sm:$0xff]
    %v3183 = vld [vmem:[%s3 + $0x408] sm:$0xff]
    %v3184 = vld [vmem:[%s3 + $0x410] sm:$0xff]
    %v3185 = vld [vmem:[%s3 + $0x418] sm:$0xff]
    %v3186 = vld [vmem:[%s3 + $0x420] sm:$0xff]
    %v3187 = vld [vmem:[%s3 + $0x428] sm:$0xff]
    %v3188 = vld [vmem:[%s3 + $0x430] sm:$0xff]
    %v3189 = vld [vmem:[%s3 + $0x438] sm:$0xff]
    %v3190 = vld [vmem:[%s3 + $0x440] sm:$0xff]
    %v3191 = vld [vmem:[%s3 + $0x448] sm:$0xff]
    %v3192 = vld [vmem:[%s3 + $0x450] sm:$0xff]
    %v3193 = vld [vmem:[%s3 + $0x458] sm:$0xff]
    %v3194 = vld [vmem:[%s3 + $0x460] sm:$0xff]
    %v3195 = vld [vmem:[%s3 + $0x468] sm:$0xff]
    %v3196 = vld [vmem:[%s3 + $0x470] sm:$0xff]
    %v3197 = vld [vmem:[%s3 + $0x478] sm:$0xff]
    %v3198 = vld [vmem:[%s3 + $0x480] sm:$0xff]
    %v3199 = vld [vmem:[%s3 + $0x488] sm:$0xff]
    %v3200 = vld [vmem:[%s3 + $0x490] sm:$0xff]
    %v3201 = vld [vmem:[%s3 + $0x498] sm:$0xff]
    %v3202 = vld [vmem:[%s3 + $0x4a0] sm:$0xff]
    %v3203 = vld [vmem:[%s3 + $0x4a8] sm:$0xff]
    %v3204 = vld [vmem:[%s3 + $0x4b0] sm:$0xff]
    %v3205 = vld [vmem:[%s3 + $0x4b8] sm:$0xff]
    %v3206 = vld [vmem:[%s3 + $0x4c0] sm:$0xff]
    %v3207 = vld [vmem:[%s3 + $0x4c8] sm:$0xff]
    %v3208 = vld [vmem:[%s3 + $0x4d0] sm:$0xff]
    %v3209 = vld [vmem:[%s3 + $0x4d8] sm:$0xff]
    %v3210 = vld [vmem:[%s3 + $0x4e0] sm:$0xff]
    %v3211 = vld [vmem:[%s3 + $0x4e8] sm:$0xff]
    %v3212 = vld [vmem:[%s3 + $0x4f0] sm:$0xff]
    %v3213 = vld [vmem:[%s3 + $0x4f8] sm:$0xff]
    %v3214 = vld [vmem:[%s3 + $0x500] sm:$0xff]
    %v3215 = vld [vmem:[%s3 + $0x508] sm:$0xff]
    %v3216 = vld [vmem:[%s3 + $0x510] sm:$0xff]
    %v3217 = vld [vmem:[%s3 + $0x518] sm:$0xff]
    %v3218 = vld [vmem:[%s3 + $0x520] sm:$0xff]
    %v3219 = vld [vmem:[%s3 + $0x528] sm:$0xff]
    %v3220 = vld [vmem:[%s3 + $0x530] sm:$0xff]
    %v3221 = vld [vmem:[%s3 + $0x538] sm:$0xff]
    %v3222 = vld [vmem:[%s3 + $0x540] sm:$0xff]
    %v3223 = vld [vmem:[%s3 + $0x548] sm:$0xff]
    %v3224 = vld [vmem:[%s3 + $0x550] sm:$0xff]
    %v3225 = vld [vmem:[%s3 + $0x558] sm:$0xff]
    %v3226 = vld [vmem:[%s3 + $0x560] sm:$0xff]
    %v3227 = vld [vmem:[%s3 + $0x568] sm:$0xff]
    %v3228 = vld [vmem:[%s3 + $0x570] sm:$0xff]
    %v3229 = vld [vmem:[%s3 + $0x578] sm:$0xff]
    %v3230 = vld [vmem:[%s3 + $0x580] sm:$0xff]
    %v3231 = vld [vmem:[%s3 + $0x588] sm:$0xff]
    %v3232 = vld [vmem:[%s3 + $0x590] sm:$0xff]
    %v3233 = vld [vmem:[%s3 + $0x598] sm:$0xff]
    %v3234 = vld [vmem:[%s3 + $0x5a0] sm:$0xff]
    %v3235 = vld [vmem:[%s3 + $0x5a8] sm:$0xff]
    %v3236 = vld [vmem:[%s3 + $0x5b0] sm:$0xff]
    %v3237 = vld [vmem:[%s3 + $0x5b8] sm:$0xff]
    %v3238 = vld [vmem:[%s3 + $0x5c0] sm:$0xff]
    %v3239 = vld [vmem:[%s3 + $0x5c8] sm:$0xff]
    %v3240 = vld [vmem:[%s3 + $0x5d0] sm:$0xff]
    %v3241 = vld [vmem:[%s3 + $0x5d8] sm:$0xff]
    %v3242 = vld [vmem:[%s3 + $0x5e0] sm:$0xff]
    %v3243 = vld [vmem:[%s3 + $0x5e8] sm:$0xff]
    %v3244 = vld [vmem:[%s3 + $0x5f0] sm:$0xff]
    %v3245 = vld [vmem:[%s3 + $0x5f8] sm:$0xff]
    %v3246 = vld [vmem:[%s3 + $0x600] sm:$0xff]
    %v3247 = vld [vmem:[%s3 + $0x608] sm:$0xff]
    %v3248 = vld [vmem:[%s3 + $0x610] sm:$0xff]
    %v3249 = vld [vmem:[%s3 + $0x618] sm:$0xff]
    %v3250 = vld [vmem:[%s3 + $0x620] sm:$0xff]
    %v3251 = vld [vmem:[%s3 + $0x628] sm:$0xff]
    %v3252 = vld [vmem:[%s3 + $0x630] sm:$0xff]
    %v3253 = vld [vmem:[%s3 + $0x638] sm:$0xff]
    %v3254 = vld [vmem:[%s3 + $0x640] sm:$0xff]
    %v3255 = vld [vmem:[%s3 + $0x648] sm:$0xff]
    %v3256 = vld [vmem:[%s3 + $0x650] sm:$0xff]
    %v3257 = vld [vmem:[%s3 + $0x658] sm:$0xff]
    %v3258 = vld [vmem:[%s3 + $0x660] sm:$0xff]
    %v3259 = vld [vmem:[%s3 + $0x668] sm:$0xff]
    %v3260 = vld [vmem:[%s3 + $0x670] sm:$0xff]
    %v3261 = vld [vmem:[%s3 + $0x678] sm:$0xff]
    %v3262 = vld [vmem:[%s3 + $0x680] sm:$0xff]
    %v3263 = vld [vmem:[%s3 + $0x688] sm:$0xff]
    %v3264 = vld [vmem:[%s3 + $0x690] sm:$0xff]
    %v3265 = vld [vmem:[%s3 + $0x698] sm:$0xff]
    %v3266 = vld [vmem:[%s3 + $0x6a0] sm:$0xff]
    %v3267 = vld [vmem:[%s3 + $0x6a8] sm:$0xff]
    %v3268 = vld [vmem:[%s3 + $0x6b0] sm:$0xff]
    %v3269 = vld [vmem:[%s3 + $0x6b8] sm:$0xff]
    %v3270 = vld [vmem:[%s3 + $0x6c0] sm:$0xff]
    %v3271 = vld [vmem:[%s3 + $0x6c8] sm:$0xff]
    %v3272 = vld [vmem:[%s3 + $0x6d0] sm:$0xff]
    %v3273 = vld [vmem:[%s3 + $0x6d8] sm:$0xff]
    %v3274 = vld [vmem:[%s3 + $0x6e0] sm:$0xff]
    %v3275 = vld [vmem:[%s3 + $0x6e8] sm:$0xff]
    %v3276 = vld [vmem:[%s3 + $0x6f0] sm:$0xff]
    %v3277 = vld [vmem:[%s3 + $0x6f8] sm:$0xff]
    %v3278 = vld [vmem:[%s3 + $0x700] sm:$0xff]
    %v3279 = vld [vmem:[%s3 + $0x708] sm:$0xff]
    %v3280 = vld [vmem:[%s3 + $0x710] sm:$0xff]
    %v3281 = vld [vmem:[%s3 + $0x718] sm:$0xff]
    %v3282 = vld [vmem:[%s3 + $0x720] sm:$0xff]
    %v3283 = vld [vmem:[%s3 + $0x728] sm:$0xff]
    %v3284 = vld [vmem:[%s3 + $0x730] sm:$0xff]
    %v3285 = vld [vmem:[%s3 + $0x738] sm:$0xff]
    %v3286 = vld [vmem:[%s3 + $0x740] sm:$0xff]
    %v3287 = vld [vmem:[%s3 + $0x748] sm:$0xff]
    %v3288 = vld [vmem:[%s3 + $0x750] sm:$0xff]
    %v3289 = vld [vmem:[%s3 + $0x758] sm:$0xff]
    %v3290 = vld [vmem:[%s3 + $0x760] sm:$0xff]
    %v3291 = vld [vmem:[%s3 + $0x768] sm:$0xff]
    %v3292 = vld [vmem:[%s3 + $0x770] sm:$0xff]
    %v3293 = vld [vmem:[%s3 + $0x778] sm:$0xff]
    %v3294 = vld [vmem:[%s3 + $0x780] sm:$0xff]
    %v3295 = vld [vmem:[%s3 + $0x788] sm:$0xff]
    %v3296 = vld [vmem:[%s3 + $0x790] sm:$0xff]
    %v3297 = vld [vmem:[%s3 + $0x798] sm:$0xff]
    %v3298 = vld [vmem:[%s3 + $0x7a0] sm:$0xff]
    %v3299 = vld [vmem:[%s3 + $0x7a8] sm:$0xff]
    %v3300 = vld [vmem:[%s3 + $0x7b0] sm:$0xff]
    %v3301 = vld [vmem:[%s3 + $0x7b8] sm:$0xff]
    %v3302 = vld [vmem:[%s3 + $0x7c0] sm:$0xff]
    %v3303 = vld [vmem:[%s3 + $0x7c8] sm:$0xff]
    %v3304 = vld [vmem:[%s3 + $0x7d0] sm:$0xff]
    %v3305 = vld [vmem:[%s3 + $0x7d8] sm:$0xff]
    %v3306 = vld [vmem:[%s3 + $0x7e0] sm:$0xff]
    %v3307 = vld [vmem:[%s3 + $0x7e8] sm:$0xff]
    %v3308 = vld [vmem:[%s3 + $0x7f0] sm:$0xff]
    %v3309 = vld [vmem:[%s3 + $0x7f8] sm:$0xff]
    %v3310 = vld [vmem:[%s3 + $0x800] sm:$0xff]
    %v3311 = vld [vmem:[%s3 + $0x808] sm:$0xff]
    %v3312 = vld [vmem:[%s3 + $0x810] sm:$0xff]
    %v3313 = vld [vmem:[%s3 + $0x818] sm:$0xff]
    %v3314 = vld [vmem:[%s3 + $0x820] sm:$0xff]
    %v3315 = vld [vmem:[%s3 + $0x828] sm:$0xff]
    %v3316 = vld [vmem:[%s3 + $0x830] sm:$0xff]
    %v3317 = vld [vmem:[%s3 + $0x838] sm:$0xff]
    %v3318 = vld [vmem:[%s3 + $0x840] sm:$0xff]
    %v3319 = vld [vmem:[%s3 + $0x848] sm:$0xff]
    %v3320 = vld [vmem:[%s3 + $0x850] sm:$0xff]
    %v3321 = vld [vmem:[%s3 + $0x858] sm:$0xff]
    %v3322 = vld [vmem:[%s3 + $0x860] sm:$0xff]
    %v3323 = vld [vmem:[%s3 + $0x868] sm:$0xff]
    %v3324 = vld [vmem:[%s3 + $0x870] sm:$0xff]
    %v3325 = vld [vmem:[%s3 + $0x878] sm:$0xff]
    %v3326 = vld [vmem:[%s3 + $0x880] sm:$0xff]
    %v3327 = vld [vmem:[%s3 + $0x888] sm:$0xff]
    %v3328 = vld [vmem:[%s3 + $0x890] sm:$0xff]
    %v3329 = vld [vmem:[%s3 + $0x898] sm:$0xff]
    %v3330 = vld [vmem:[%s3 + $0x8a0] sm:$0xff]
    %v3331 = vld [vmem:[%s3 + $0x8a8] sm:$0xff]
    %v3332 = vld [vmem:[%s3 + $0x8b0] sm:$0xff]
    %v3333 = vld [vmem:[%s3 + $0x8b8] sm:$0xff]
    %v3334 = vld [vmem:[%s3 + $0x8c0] sm:$0xff]
    %v3335 = vld [vmem:[%s3 + $0x8c8] sm:$0xff]
    %v3336 = vld [vmem:[%s3 + $0x8d0] sm:$0xff]
    %v3337 = vld [vmem:[%s3 + $0x8d8] sm:$0xff]
    %v3338 = vld [vmem:[%s3 + $0x8e0] sm:$0xff]
    %v3339 = vld [vmem:[%s3 + $0x8e8] sm:$0xff]
    %v3340 = vld [vmem:[%s3 + $0x8f0] sm:$0xff]
    %v3341 = vld [vmem:[%s3 + $0x8f8] sm:$0xff]
    %v3342 = vld [vmem:[%s3 + $0x900] sm:$0xff]
    %v3343 = vld [vmem:[%s3 + $0x908] sm:$0xff]
    %v3344 = vld [vmem:[%s3 + $0x910] sm:$0xff]
    %v3345 = vld [vmem:[%s3 + $0x918] sm:$0xff]
    %v3346 = vld [vmem:[%s3 + $0x920] sm:$0xff]
    %v3347 = vld [vmem:[%s3 + $0x928] sm:$0xff]
    %v3348 = vld [vmem:[%s3 + $0x930] sm:$0xff]
    %v3349 = vld [vmem:[%s3 + $0x938] sm:$0xff]
    %v3350 = vld [vmem:[%s3 + $0x940] sm:$0xff]
    %v3351 = vld [vmem:[%s3 + $0x948] sm:$0xff]
    %v3352 = vld [vmem:[%s3 + $0x950] sm:$0xff]
    %v3353 = vld [vmem:[%s3 + $0x958] sm:$0xff]
    %v3354 = vld [vmem:[%s3 + $0x960] sm:$0xff]
    %v3355 = vld [vmem:[%s3 + $0x968] sm:$0xff]
    %v3356 = vld [vmem:[%s3 + $0x970] sm:$0xff]
    %v3357 = vld [vmem:[%s3 + $0x978] sm:$0xff]
    %v3358 = vld [vmem:[%s3 + $0x980] sm:$0xff]
    %v3359 = vld [vmem:[%s3 + $0x988] sm:$0xff]
    %v3360 = vld [vmem:[%s3 + $0x990] sm:$0xff]
    %v3361 = vld [vmem:[%s3 + $0x998] sm:$0xff]
    %v3362 = vld [vmem:[%s3 + $0x9a0] sm:$0xff]
    %v3363 = vld [vmem:[%s3 + $0x9a8] sm:$0xff]
    %v3364 = vld [vmem:[%s3 + $0x9b0] sm:$0xff]
    %v3365 = vld [vmem:[%s3 + $0x9b8] sm:$0xff]
    %v3366 = vld [vmem:[%s3 + $0x9c0] sm:$0xff]
    %v3367 = vld [vmem:[%s3 + $0x9c8] sm:$0xff]
    %v3368 = vld [vmem:[%s3 + $0x9d0] sm:$0xff]
    %v3369 = vld [vmem:[%s3 + $0x9d8] sm:$0xff]
    %v3370 = vld [vmem:[%s3 + $0x9e0] sm:$0xff]
    %v3371 = vld [vmem:[%s3 + $0x9e8] sm:$0xff]
    %v3372 = vld [vmem:[%s3 + $0x9f0] sm:$0xff]
    %v3373 = vld [vmem:[%s3 + $0x9f8] sm:$0xff]
    %v3374 = vld [vmem:[%s3 + $0xa00] sm:$0xff]
    %v3375 = vld [vmem:[%s3 + $0xa08] sm:$0xff]
    %v3376 = vld [vmem:[%s3 + $0xa10] sm:$0xff]
    %v3377 = vld [vmem:[%s3 + $0xa18] sm:$0xff]
    %v3378 = vld [vmem:[%s3 + $0xa20] sm:$0xff]
    %v3379 = vld [vmem:[%s3 + $0xa28] sm:$0xff]
    %v3380 = vld [vmem:[%s3 + $0xa30] sm:$0xff]
    %v3381 = vld [vmem:[%s3 + $0xa38] sm:$0xff]
    %v3382 = vld [vmem:[%s3 + $0xa40] sm:$0xff]
    %v3383 = vld [vmem:[%s3 + $0xa48] sm:$0xff]
    %v3384 = vld [vmem:[%s3 + $0xa50] sm:$0xff]
    %v3385 = vld [vmem:[%s3 + $0xa58] sm:$0xff]
    %v3386 = vld [vmem:[%s3 + $0xa60] sm:$0xff]
    %v3387 = vld [vmem:[%s3 + $0xa68] sm:$0xff]
    %v3388 = vld [vmem:[%s3 + $0xa70] sm:$0xff]
    %v3389 = vld [vmem:[%s3 + $0xa78] sm:$0xff]
    %v3390 = vld [vmem:[%s3 + $0xa80] sm:$0xff]
    %v3391 = vld [vmem:[%s3 + $0xa88] sm:$0xff]
    %v3392 = vld [vmem:[%s3 + $0xa90] sm:$0xff]
    %v3393 = vld [vmem:[%s3 + $0xa98] sm:$0xff]
    %v3394 = vld [vmem:[%s3 + $0xaa0] sm:$0xff]
    %v3395 = vld [vmem:[%s3 + $0xaa8] sm:$0xff]
    %v3396 = vld [vmem:[%s3 + $0xab0] sm:$0xff]
    %v3397 = vld [vmem:[%s3 + $0xab8] sm:$0xff]
    %v3398 = vld [vmem:[%s3 + $0xac0] sm:$0xff]
    %v3399 = vld [vmem:[%s3 + $0xac8] sm:$0xff]
    %v3400 = vld [vmem:[%s3 + $0xad0] sm:$0xff]
    %v3401 = vld [vmem:[%s3 + $0xad8] sm:$0xff]
    %v3402 = vld [vmem:[%s3 + $0xae0] sm:$0xff]
    %v3403 = vld [vmem:[%s3 + $0xae8] sm:$0xff]
    %v3404 = vld [vmem:[%s3 + $0xaf0] sm:$0xff]
    %v3405 = vld [vmem:[%s3 + $0xaf8] sm:$0xff]
    %v3406 = vld [vmem:[%s3 + $0xb00] sm:$0xff]
    %v3407 = vld [vmem:[%s3 + $0xb08] sm:$0xff]
    %v3408 = vld [vmem:[%s3 + $0xb10] sm:$0xff]
    %v3409 = vld [vmem:[%s3 + $0xb18] sm:$0xff]
    %v3410 = vld [vmem:[%s3 + $0xb20] sm:$0xff]
    %v3411 = vld [vmem:[%s3 + $0xb28] sm:$0xff]
    %v3412 = vld [vmem:[%s3 + $0xb30] sm:$0xff]
    %v3413 = vld [vmem:[%s3 + $0xb38] sm:$0xff]
    %v3414 = vld [vmem:[%s3 + $0xb40] sm:$0xff]
    %v3415 = vld [vmem:[%s3 + $0xb48] sm:$0xff]
    %v3416 = vld [vmem:[%s3 + $0xb50] sm:$0xff]
    %v3417 = vld [vmem:[%s3 + $0xb58] sm:$0xff]
    %v3418 = vld [vmem:[%s3 + $0xb60] sm:$0xff]
    %v3419 = vld [vmem:[%s3 + $0xb68] sm:$0xff]
    %v3420 = vld [vmem:[%s3 + $0xb70] sm:$0xff]
    %v3421 = vld [vmem:[%s3 + $0xb78] sm:$0xff]
    %v3422 = vld [vmem:[%s3 + $0xb80] sm:$0xff]
    %v3423 = vld [vmem:[%s3 + $0xb88] sm:$0xff]
    %v3424 = vld [vmem:[%s3 + $0xb90] sm:$0xff]
    %v3425 = vld [vmem:[%s3 + $0xb98] sm:$0xff]
    %v3426 = vld [vmem:[%s3 + $0xba0] sm:$0xff]
    %v3427 = vld [vmem:[%s3 + $0xba8] sm:$0xff]
    %v3428 = vld [vmem:[%s3 + $0xbb0] sm:$0xff]
    %v3429 = vld [vmem:[%s3 + $0xbb8] sm:$0xff]
    %v3430 = vld [vmem:[%s3 + $0xbc0] sm:$0xff]
    %v3431 = vld [vmem:[%s3 + $0xbc8] sm:$0xff]
    %v3432 = vld [vmem:[%s3 + $0xbd0] sm:$0xff]
    %v3433 = vld [vmem:[%s3 + $0xbd8] sm:$0xff]
    %v3434 = vld [vmem:[%s3 + $0xbe0] sm:$0xff]
    %v3435 = vld [vmem:[%s3 + $0xbe8] sm:$0xff]
    %v3436 = vld [vmem:[%s3 + $0xbf0] sm:$0xff]
    %v3437 = vld [vmem:[%s3 + $0xbf8] sm:$0xff]
    %v3438 = vld [vmem:[%s3 + $0xc00] sm:$0xff]
    %v3439 = vld [vmem:[%s3 + $0xc08] sm:$0xff]
    %v3440 = vld [vmem:[%s3 + $0xc10] sm:$0xff]
    %v3441 = vld [vmem:[%s3 + $0xc18] sm:$0xff]
    %v3442 = vld [vmem:[%s3 + $0xc20] sm:$0xff]
    %v3443 = vld [vmem:[%s3 + $0xc28] sm:$0xff]
    %v3444 = vld [vmem:[%s3 + $0xc30] sm:$0xff]
    %v3445 = vld [vmem:[%s3 + $0xc38] sm:$0xff]
    %v3446 = vld [vmem:[%s4] sm:$0x3]
    %v3448 = vlaneseq
    %v3449 = vshrl.u32 %v3448, 7
    %v3450 = vsub.s32 0, %v3449
    %v3451 = vrot.slane %v3446, %v3450
    %v3452 = vlaneseq
    %v3453 = vshrl.u32 %v3452, 7
    %v3454 = vsub.s32 1, %v3453
    %v3455 = vrot.slane %v3446, %v3454
    %v3850 = vunpack.c.l.b16 %v3054
    %v3851 = vunpack.c.h.b16 %v3054
    %v3852 = vunpack.c.l.b16 %v3055
    %v3853 = vunpack.c.h.b16 %v3055
    %v3854 = vunpack.c.l.b16 %v3056
    %v3855 = vunpack.c.h.b16 %v3056
    %v3856 = vunpack.c.l.b16 %v3057
    %v3857 = vunpack.c.h.b16 %v3057
    %v3858 = vunpack.c.l.b16 %v3058
    %v3859 = vunpack.c.h.b16 %v3058
    %v3860 = vunpack.c.l.b16 %v3059
    %v3861 = vunpack.c.h.b16 %v3059
    %v3862 = vunpack.c.l.b16 %v3060
    %v3863 = vunpack.c.h.b16 %v3060
    %v3864 = vunpack.c.l.b16 %v3061
    %v3865 = vunpack.c.h.b16 %v3061
    %v3866 = vunpack.c.l.b16 %v3062
    %v3867 = vunpack.c.h.b16 %v3062
    %v3868 = vunpack.c.l.b16 %v3063
    %v3869 = vunpack.c.h.b16 %v3063
    %v3870 = vunpack.c.l.b16 %v3064
    %v3871 = vunpack.c.h.b16 %v3064
    %v3872 = vunpack.c.l.b16 %v3065
    %v3873 = vunpack.c.h.b16 %v3065
    %v3874 = vunpack.c.l.b16 %v3066
    %v3875 = vunpack.c.h.b16 %v3066
    %v3876 = vunpack.c.l.b16 %v3067
    %v3877 = vunpack.c.h.b16 %v3067
    %v3878 = vunpack.c.l.b16 %v3068
    %v3879 = vunpack.c.h.b16 %v3068
    %v3880 = vunpack.c.l.b16 %v3069
    %v3881 = vunpack.c.h.b16 %v3069
    %v3882 = vunpack.c.l.b16 %v3070
    %v3883 = vunpack.c.h.b16 %v3070
    %v3884 = vunpack.c.l.b16 %v3071
    %v3885 = vunpack.c.h.b16 %v3071
    %v3886 = vunpack.c.l.b16 %v3072
    %v3887 = vunpack.c.h.b16 %v3072
    %v3888 = vunpack.c.l.b16 %v3073
    %v3889 = vunpack.c.h.b16 %v3073
    %v3890 = vunpack.c.l.b16 %v3074
    %v3891 = vunpack.c.h.b16 %v3074
    %v3892 = vunpack.c.l.b16 %v3075
    %v3893 = vunpack.c.h.b16 %v3075
    %v3894 = vunpack.c.l.b16 %v3076
    %v3895 = vunpack.c.h.b16 %v3076
    %v3896 = vunpack.c.l.b16 %v3077
    %v3897 = vunpack.c.h.b16 %v3077
    %v3898 = vunpack.c.l.b16 %v3078
    %v3899 = vunpack.c.h.b16 %v3078
    %v3900 = vunpack.c.l.b16 %v3079
    %v3901 = vunpack.c.h.b16 %v3079
    %v3902 = vunpack.c.l.b16 %v3080
    %v3903 = vunpack.c.h.b16 %v3080
    %v3904 = vunpack.c.l.b16 %v3081
    %v3905 = vunpack.c.h.b16 %v3081
    %v3906 = vunpack.c.l.b16 %v3082
    %v3907 = vunpack.c.h.b16 %v3082
    %v3908 = vunpack.c.l.b16 %v3083
    %v3909 = vunpack.c.h.b16 %v3083
    %v3910 = vunpack.c.l.b16 %v3084
    %v3911 = vunpack.c.h.b16 %v3084
    %v3912 = vunpack.c.l.b16 %v3085
    %v3913 = vunpack.c.h.b16 %v3085
    %v3914 = vunpack.c.l.b16 %v3086
    %v3915 = vunpack.c.h.b16 %v3086
    %v3916 = vunpack.c.l.b16 %v3087
    %v3917 = vunpack.c.h.b16 %v3087
    %v3918 = vunpack.c.l.b16 %v3088
    %v3919 = vunpack.c.h.b16 %v3088
    %v3920 = vunpack.c.l.b16 %v3089
    %v3921 = vunpack.c.h.b16 %v3089
    %v3922 = vunpack.c.l.b16 %v3090
    %v3923 = vunpack.c.h.b16 %v3090
    %v3924 = vunpack.c.l.b16 %v3091
    %v3925 = vunpack.c.h.b16 %v3091
    %v3926 = vunpack.c.l.b16 %v3092
    %v3927 = vunpack.c.h.b16 %v3092
    %v3928 = vunpack.c.l.b16 %v3093
    %v3929 = vunpack.c.h.b16 %v3093
    %v3930 = vunpack.c.l.b16 %v3094
    %v3931 = vunpack.c.h.b16 %v3094
    %v3932 = vunpack.c.l.b16 %v3095
    %v3933 = vunpack.c.h.b16 %v3095
    %v3934 = vunpack.c.l.b16 %v3096
    %v3935 = vunpack.c.h.b16 %v3096
    %v3936 = vunpack.c.l.b16 %v3097
    %v3937 = vunpack.c.h.b16 %v3097
    %v3938 = vunpack.c.l.b16 %v3098
    %v3939 = vunpack.c.h.b16 %v3098
    %v3940 = vunpack.c.l.b16 %v3099
    %v3941 = vunpack.c.h.b16 %v3099
    %v3942 = vunpack.c.l.b16 %v3100
    %v3943 = vunpack.c.h.b16 %v3100
    %v3944 = vunpack.c.l.b16 %v3101
    %v3945 = vunpack.c.h.b16 %v3101
    %v3946 = vunpack.c.l.b16 %v3102
    %v3947 = vunpack.c.h.b16 %v3102
    %v3948 = vunpack.c.l.b16 %v3103
    %v3949 = vunpack.c.h.b16 %v3103
    %v3950 = vunpack.c.l.b16 %v3104
    %v3951 = vunpack.c.h.b16 %v3104
    %v3952 = vunpack.c.l.b16 %v3105
    %v3953 = vunpack.c.h.b16 %v3105
    %v3954 = vunpack.c.l.b16 %v3106
    %v3955 = vunpack.c.h.b16 %v3106
    %v3956 = vunpack.c.l.b16 %v3107
    %v3957 = vunpack.c.h.b16 %v3107
    %v3958 = vunpack.c.l.b16 %v3108
    %v3959 = vunpack.c.h.b16 %v3108
    %v3960 = vunpack.c.l.b16 %v3109
    %v3961 = vunpack.c.h.b16 %v3109
    %v3962 = vunpack.c.l.b16 %v3110
    %v3963 = vunpack.c.h.b16 %v3110
    %v3964 = vunpack.c.l.b16 %v3111
    %v3965 = vunpack.c.h.b16 %v3111
    %v3966 = vunpack.c.l.b16 %v3112
    %v3967 = vunpack.c.h.b16 %v3112
    %v3968 = vunpack.c.l.b16 %v3113
    %v3969 = vunpack.c.h.b16 %v3113
    %v3970 = vunpack.c.l.b16 %v3114
    %v3971 = vunpack.c.h.b16 %v3114
    %v3972 = vunpack.c.l.b16 %v3115
    %v3973 = vunpack.c.h.b16 %v3115
    %v3974 = vunpack.c.l.b16 %v3116
    %v3975 = vunpack.c.h.b16 %v3116
    %v3976 = vunpack.c.l.b16 %v3117
    %v3977 = vunpack.c.h.b16 %v3117
    %v3978 = vunpack.c.l.b16 %v3118
    %v3979 = vunpack.c.h.b16 %v3118
    %v3980 = vunpack.c.l.b16 %v3119
    %v3981 = vunpack.c.h.b16 %v3119
    %v3982 = vunpack.c.l.b16 %v3120
    %v3983 = vunpack.c.h.b16 %v3120
    %v3984 = vunpack.c.l.b16 %v3121
    %v3985 = vunpack.c.h.b16 %v3121
    %v3986 = vunpack.c.l.b16 %v3122
    %v3987 = vunpack.c.h.b16 %v3122
    %v3988 = vunpack.c.l.b16 %v3123
    %v3989 = vunpack.c.h.b16 %v3123
    %v3990 = vunpack.c.l.b16 %v3124
    %v3991 = vunpack.c.h.b16 %v3124
    %v3992 = vunpack.c.l.b16 %v3125
    %v3993 = vunpack.c.h.b16 %v3125
    %v3994 = vunpack.c.l.b16 %v3126
    %v3995 = vunpack.c.h.b16 %v3126
    %v3996 = vunpack.c.l.b16 %v3127
    %v3997 = vunpack.c.h.b16 %v3127
    %v3998 = vunpack.c.l.b16 %v3128
    %v3999 = vunpack.c.h.b16 %v3128
    %v4000 = vunpack.c.l.b16 %v3129
    %v4001 = vunpack.c.h.b16 %v3129
    %v4002 = vunpack.c.l.b16 %v3130
    %v4003 = vunpack.c.h.b16 %v3130
    %v4004 = vunpack.c.l.b16 %v3131
    %v4005 = vunpack.c.h.b16 %v3131
    %v4006 = vunpack.c.l.b16 %v3132
    %v4007 = vunpack.c.h.b16 %v3132
    %v4008 = vunpack.c.l.b16 %v3133
    %v4009 = vunpack.c.h.b16 %v3133
    %v4010 = vunpack.c.l.b16 %v3134
    %v4011 = vunpack.c.h.b16 %v3134
    %v4012 = vunpack.c.l.b16 %v3135
    %v4013 = vunpack.c.h.b16 %v3135
    %v4014 = vunpack.c.l.b16 %v3136
    %v4015 = vunpack.c.h.b16 %v3136
    %v4016 = vunpack.c.l.b16 %v3137
    %v4017 = vunpack.c.h.b16 %v3137
    %v4018 = vunpack.c.l.b16 %v3138
    %v4019 = vunpack.c.h.b16 %v3138
    %v4020 = vunpack.c.l.b16 %v3139
    %v4021 = vunpack.c.h.b16 %v3139
    %v4022 = vunpack.c.l.b16 %v3140
    %v4023 = vunpack.c.h.b16 %v3140
    %v4024 = vunpack.c.l.b16 %v3141
    %v4025 = vunpack.c.h.b16 %v3141
    %v4026 = vunpack.c.l.b16 %v3142
    %v4027 = vunpack.c.h.b16 %v3142
    %v4028 = vunpack.c.l.b16 %v3143
    %v4029 = vunpack.c.h.b16 %v3143
    %v4030 = vunpack.c.l.b16 %v3144
    %v4031 = vunpack.c.h.b16 %v3144
    %v4032 = vunpack.c.l.b16 %v3145
    %v4033 = vunpack.c.h.b16 %v3145
    %v4034 = vunpack.c.l.b16 %v3146
    %v4035 = vunpack.c.h.b16 %v3146
    %v4036 = vunpack.c.l.b16 %v3147
    %v4037 = vunpack.c.h.b16 %v3147
    %v4038 = vunpack.c.l.b16 %v3148
    %v4039 = vunpack.c.h.b16 %v3148
    %v4040 = vunpack.c.l.b16 %v3149
    %v4041 = vunpack.c.h.b16 %v3149
    %v4042 = vunpack.c.l.b16 %v3150
    %v4043 = vunpack.c.h.b16 %v3150
    %v4044 = vunpack.c.l.b16 %v3151
    %v4045 = vunpack.c.h.b16 %v3151
    %v4046 = vunpack.c.l.b16 %v3152
    %v4047 = vunpack.c.h.b16 %v3152
    %v4048 = vunpack.c.l.b16 %v3153
    %v4049 = vunpack.c.h.b16 %v3153
    %v4050 = vunpack.c.l.b16 %v3154
    %v4051 = vunpack.c.h.b16 %v3154
    %v4052 = vunpack.c.l.b16 %v3155
    %v4053 = vunpack.c.h.b16 %v3155
    %v4054 = vunpack.c.l.b16 %v3156
    %v4055 = vunpack.c.h.b16 %v3156
    %v4056 = vunpack.c.l.b16 %v3157
    %v4057 = vunpack.c.h.b16 %v3157
    %v4058 = vunpack.c.l.b16 %v3158
    %v4059 = vunpack.c.h.b16 %v3158
    %v4060 = vunpack.c.l.b16 %v3159
    %v4061 = vunpack.c.h.b16 %v3159
    %v4062 = vunpack.c.l.b16 %v3160
    %v4063 = vunpack.c.h.b16 %v3160
    %v4064 = vunpack.c.l.b16 %v3161
    %v4065 = vunpack.c.h.b16 %v3161
    %v4066 = vunpack.c.l.b16 %v3162
    %v4067 = vunpack.c.h.b16 %v3162
    %v4068 = vunpack.c.l.b16 %v3163
    %v4069 = vunpack.c.h.b16 %v3163
    %v4070 = vunpack.c.l.b16 %v3164
    %v4071 = vunpack.c.h.b16 %v3164
    %v4072 = vunpack.c.l.b16 %v3165
    %v4073 = vunpack.c.h.b16 %v3165
    %v4074 = vunpack.c.l.b16 %v3166
    %v4075 = vunpack.c.h.b16 %v3166
    %v4076 = vunpack.c.l.b16 %v3167
    %v4077 = vunpack.c.h.b16 %v3167
    %v4078 = vunpack.c.l.b16 %v3168
    %v4079 = vunpack.c.h.b16 %v3168
    %v4080 = vunpack.c.l.b16 %v3169
    %v4081 = vunpack.c.h.b16 %v3169
    %v4082 = vunpack.c.l.b16 %v3170
    %v4083 = vunpack.c.h.b16 %v3170
    %v4084 = vunpack.c.l.b16 %v3171
    %v4085 = vunpack.c.h.b16 %v3171
    %v4086 = vunpack.c.l.b16 %v3172
    %v4087 = vunpack.c.h.b16 %v3172
    %v4088 = vunpack.c.l.b16 %v3173
    %v4089 = vunpack.c.h.b16 %v3173
    %v4090 = vunpack.c.l.b16 %v3174
    %v4091 = vunpack.c.h.b16 %v3174
    %v4092 = vunpack.c.l.b16 %v3175
    %v4093 = vunpack.c.h.b16 %v3175
    %v4094 = vunpack.c.l.b16 %v3176
    %v4095 = vunpack.c.h.b16 %v3176
    %v4096 = vunpack.c.l.b16 %v3177
    %v4097 = vunpack.c.h.b16 %v3177
    %v4098 = vunpack.c.l.b16 %v3178
    %v4099 = vunpack.c.h.b16 %v3178
    %v4100 = vunpack.c.l.b16 %v3179
    %v4101 = vunpack.c.h.b16 %v3179
    %v4102 = vunpack.c.l.b16 %v3180
    %v4103 = vunpack.c.h.b16 %v3180
    %v4104 = vunpack.c.l.b16 %v3181
    %v4105 = vunpack.c.h.b16 %v3181
    %v4106 = vunpack.c.l.b16 %v3182
    %v4107 = vunpack.c.h.b16 %v3182
    %v4108 = vunpack.c.l.b16 %v3183
    %v4109 = vunpack.c.h.b16 %v3183
    %v4110 = vunpack.c.l.b16 %v3184
    %v4111 = vunpack.c.h.b16 %v3184
    %v4112 = vunpack.c.l.b16 %v3185
    %v4113 = vunpack.c.h.b16 %v3185
    %v4114 = vunpack.c.l.b16 %v3186
    %v4115 = vunpack.c.h.b16 %v3186
    %v4116 = vunpack.c.l.b16 %v3187
    %v4117 = vunpack.c.h.b16 %v3187
    %v4118 = vunpack.c.l.b16 %v3188
    %v4119 = vunpack.c.h.b16 %v3188
    %v4120 = vunpack.c.l.b16 %v3189
    %v4121 = vunpack.c.h.b16 %v3189
    %v4122 = vunpack.c.l.b16 %v3190
    %v4123 = vunpack.c.h.b16 %v3190
    %v4124 = vunpack.c.l.b16 %v3191
    %v4125 = vunpack.c.h.b16 %v3191
    %v4126 = vunpack.c.l.b16 %v3192
    %v4127 = vunpack.c.h.b16 %v3192
    %v4128 = vunpack.c.l.b16 %v3193
    %v4129 = vunpack.c.h.b16 %v3193
    %v4130 = vunpack.c.l.b16 %v3194
    %v4131 = vunpack.c.h.b16 %v3194
    %v4132 = vunpack.c.l.b16 %v3195
    %v4133 = vunpack.c.h.b16 %v3195
    %v4134 = vunpack.c.l.b16 %v3196
    %v4135 = vunpack.c.h.b16 %v3196
    %v4136 = vunpack.c.l.b16 %v3197
    %v4137 = vunpack.c.h.b16 %v3197
    %v4138 = vunpack.c.l.b16 %v3198
    %v4139 = vunpack.c.h.b16 %v3198
    %v4140 = vunpack.c.l.b16 %v3199
    %v4141 = vunpack.c.h.b16 %v3199
    %v4142 = vunpack.c.l.b16 %v3200
    %v4143 = vunpack.c.h.b16 %v3200
    %v4144 = vunpack.c.l.b16 %v3201
    %v4145 = vunpack.c.h.b16 %v3201
    %v4146 = vunpack.c.l.b16 %v3202
    %v4147 = vunpack.c.h.b16 %v3202
    %v4148 = vunpack.c.l.b16 %v3203
    %v4149 = vunpack.c.h.b16 %v3203
    %v4150 = vunpack.c.l.b16 %v3204
    %v4151 = vunpack.c.h.b16 %v3204
    %v4152 = vunpack.c.l.b16 %v3205
    %v4153 = vunpack.c.h.b16 %v3205
    %v4154 = vunpack.c.l.b16 %v3206
    %v4155 = vunpack.c.h.b16 %v3206
    %v4156 = vunpack.c.l.b16 %v3207
    %v4157 = vunpack.c.h.b16 %v3207
    %v4158 = vunpack.c.l.b16 %v3208
    %v4159 = vunpack.c.h.b16 %v3208
    %v4160 = vunpack.c.l.b16 %v3209
    %v4161 = vunpack.c.h.b16 %v3209
    %v4162 = vunpack.c.l.b16 %v3210
    %v4163 = vunpack.c.h.b16 %v3210
    %v4164 = vunpack.c.l.b16 %v3211
    %v4165 = vunpack.c.h.b16 %v3211
    %v4166 = vunpack.c.l.b16 %v3212
    %v4167 = vunpack.c.h.b16 %v3212
    %v4168 = vunpack.c.l.b16 %v3213
    %v4169 = vunpack.c.h.b16 %v3213
    %v4170 = vunpack.c.l.b16 %v3214
    %v4171 = vunpack.c.h.b16 %v3214
    %v4172 = vunpack.c.l.b16 %v3215
    %v4173 = vunpack.c.h.b16 %v3215
    %v4174 = vunpack.c.l.b16 %v3216
    %v4175 = vunpack.c.h.b16 %v3216
    %v4176 = vunpack.c.l.b16 %v3217
    %v4177 = vunpack.c.h.b16 %v3217
    %v4178 = vunpack.c.l.b16 %v3218
    %v4179 = vunpack.c.h.b16 %v3218
    %v4180 = vunpack.c.l.b16 %v3219
    %v4181 = vunpack.c.h.b16 %v3219
    %v4182 = vunpack.c.l.b16 %v3220
    %v4183 = vunpack.c.h.b16 %v3220
    %v4184 = vunpack.c.l.b16 %v3221
    %v4185 = vunpack.c.h.b16 %v3221
    %v4186 = vunpack.c.l.b16 %v3222
    %v4187 = vunpack.c.h.b16 %v3222
    %v4188 = vunpack.c.l.b16 %v3223
    %v4189 = vunpack.c.h.b16 %v3223
    %v4190 = vunpack.c.l.b16 %v3224
    %v4191 = vunpack.c.h.b16 %v3224
    %v4192 = vunpack.c.l.b16 %v3225
    %v4193 = vunpack.c.h.b16 %v3225
    %v4194 = vunpack.c.l.b16 %v3226
    %v4195 = vunpack.c.h.b16 %v3226
    %v4196 = vunpack.c.l.b16 %v3227
    %v4197 = vunpack.c.h.b16 %v3227
    %v4198 = vunpack.c.l.b16 %v3228
    %v4199 = vunpack.c.h.b16 %v3228
    %v4200 = vunpack.c.l.b16 %v3229
    %v4201 = vunpack.c.h.b16 %v3229
    %v4202 = vunpack.c.l.b16 %v3230
    %v4203 = vunpack.c.h.b16 %v3230
    %v4204 = vunpack.c.l.b16 %v3231
    %v4205 = vunpack.c.h.b16 %v3231
    %v4206 = vunpack.c.l.b16 %v3232
    %v4207 = vunpack.c.h.b16 %v3232
    %v4208 = vunpack.c.l.b16 %v3233
    %v4209 = vunpack.c.h.b16 %v3233
    %v4210 = vunpack.c.l.b16 %v3234
    %v4211 = vunpack.c.h.b16 %v3234
    %v4212 = vunpack.c.l.b16 %v3235
    %v4213 = vunpack.c.h.b16 %v3235
    %v4214 = vunpack.c.l.b16 %v3236
    %v4215 = vunpack.c.h.b16 %v3236
    %v4216 = vunpack.c.l.b16 %v3237
    %v4217 = vunpack.c.h.b16 %v3237
    %v4218 = vunpack.c.l.b16 %v3238
    %v4219 = vunpack.c.h.b16 %v3238
    %v4220 = vunpack.c.l.b16 %v3239
    %v4221 = vunpack.c.h.b16 %v3239
    %v4222 = vunpack.c.l.b16 %v3240
    %v4223 = vunpack.c.h.b16 %v3240
    %v4224 = vunpack.c.l.b16 %v3241
    %v4225 = vunpack.c.h.b16 %v3241
    %v4226 = vunpack.c.l.b16 %v3242
    %v4227 = vunpack.c.h.b16 %v3242
    %v4228 = vunpack.c.l.b16 %v3243
    %v4229 = vunpack.c.h.b16 %v3243
    %v4230 = vunpack.c.l.b16 %v3244
    %v4231 = vunpack.c.h.b16 %v3244
    %v4232 = vunpack.c.l.b16 %v3245
    %v4233 = vunpack.c.h.b16 %v3245
    %v4234 = vunpack.c.l.b16 %v3246
    %v4235 = vunpack.c.h.b16 %v3246
    %v4236 = vunpack.c.l.b16 %v3247
    %v4237 = vunpack.c.h.b16 %v3247
    %v4238 = vunpack.c.l.b16 %v3248
    %v4239 = vunpack.c.h.b16 %v3248
    %v4240 = vunpack.c.l.b16 %v3249
    %v4241 = vunpack.c.h.b16 %v3249
    %v4242 = vunpack.c.l.b16 %v3250
    %v4243 = vunpack.c.h.b16 %v3250
    %v4244 = vunpack.c.l.b16 %v3251
    %v4245 = vunpack.c.h.b16 %v3251
    %v4246 = vunpack.c.l.b16 %v3252
    %v4247 = vunpack.c.h.b16 %v3252
    %v4248 = vunpack.c.l.b16 %v3253
    %v4249 = vunpack.c.h.b16 %v3253
    %v4250 = vunpack.c.l.b16 %v3254
    %v4251 = vunpack.c.h.b16 %v3254
    %v4252 = vunpack.c.l.b16 %v3255
    %v4253 = vunpack.c.h.b16 %v3255
    %v4254 = vunpack.c.l.b16 %v3256
    %v4255 = vunpack.c.h.b16 %v3256
    %v4256 = vunpack.c.l.b16 %v3257
    %v4257 = vunpack.c.h.b16 %v3257
    %v4258 = vunpack.c.l.b16 %v3258
    %v4259 = vunpack.c.h.b16 %v3258
    %v4260 = vunpack.c.l.b16 %v3259
    %v4261 = vunpack.c.h.b16 %v3259
    %v4262 = vunpack.c.l.b16 %v3260
    %v4263 = vunpack.c.h.b16 %v3260
    %v4264 = vunpack.c.l.b16 %v3261
    %v4265 = vunpack.c.h.b16 %v3261
    %v4266 = vunpack.c.l.b16 %v3262
    %v4267 = vunpack.c.h.b16 %v3262
    %v4268 = vunpack.c.l.b16 %v3263
    %v4269 = vunpack.c.h.b16 %v3263
    %v4270 = vunpack.c.l.b16 %v3264
    %v4271 = vunpack.c.h.b16 %v3264
    %v4272 = vunpack.c.l.b16 %v3265
    %v4273 = vunpack.c.h.b16 %v3265
    %v4274 = vunpack.c.l.b16 %v3266
    %v4275 = vunpack.c.h.b16 %v3266
    %v4276 = vunpack.c.l.b16 %v3267
    %v4277 = vunpack.c.h.b16 %v3267
    %v4278 = vunpack.c.l.b16 %v3268
    %v4279 = vunpack.c.h.b16 %v3268
    %v4280 = vunpack.c.l.b16 %v3269
    %v4281 = vunpack.c.h.b16 %v3269
    %v4282 = vunpack.c.l.b16 %v3270
    %v4283 = vunpack.c.h.b16 %v3270
    %v4284 = vunpack.c.l.b16 %v3271
    %v4285 = vunpack.c.h.b16 %v3271
    %v4286 = vunpack.c.l.b16 %v3272
    %v4287 = vunpack.c.h.b16 %v3272
    %v4288 = vunpack.c.l.b16 %v3273
    %v4289 = vunpack.c.h.b16 %v3273
    %v4290 = vunpack.c.l.b16 %v3274
    %v4291 = vunpack.c.h.b16 %v3274
    %v4292 = vunpack.c.l.b16 %v3275
    %v4293 = vunpack.c.h.b16 %v3275
    %v4294 = vunpack.c.l.b16 %v3276
    %v4295 = vunpack.c.h.b16 %v3276
    %v4296 = vunpack.c.l.b16 %v3277
    %v4297 = vunpack.c.h.b16 %v3277
    %v4298 = vunpack.c.l.b16 %v3278
    %v4299 = vunpack.c.h.b16 %v3278
    %v4300 = vunpack.c.l.b16 %v3279
    %v4301 = vunpack.c.h.b16 %v3279
    %v4302 = vunpack.c.l.b16 %v3280
    %v4303 = vunpack.c.h.b16 %v3280
    %v4304 = vunpack.c.l.b16 %v3281
    %v4305 = vunpack.c.h.b16 %v3281
    %v4306 = vunpack.c.l.b16 %v3282
    %v4307 = vunpack.c.h.b16 %v3282
    %v4308 = vunpack.c.l.b16 %v3283
    %v4309 = vunpack.c.h.b16 %v3283
    %v4310 = vunpack.c.l.b16 %v3284
    %v4311 = vunpack.c.h.b16 %v3284
    %v4312 = vunpack.c.l.b16 %v3285
    %v4313 = vunpack.c.h.b16 %v3285
    %v4314 = vunpack.c.l.b16 %v3286
    %v4315 = vunpack.c.h.b16 %v3286
    %v4316 = vunpack.c.l.b16 %v3287
    %v4317 = vunpack.c.h.b16 %v3287
    %v4318 = vunpack.c.l.b16 %v3288
    %v4319 = vunpack.c.h.b16 %v3288
    %v4320 = vunpack.c.l.b16 %v3289
    %v4321 = vunpack.c.h.b16 %v3289
    %v4322 = vunpack.c.l.b16 %v3290
    %v4323 = vunpack.c.h.b16 %v3290
    %v4324 = vunpack.c.l.b16 %v3291
    %v4325 = vunpack.c.h.b16 %v3291
    %v4326 = vunpack.c.l.b16 %v3292
    %v4327 = vunpack.c.h.b16 %v3292
    %v4328 = vunpack.c.l.b16 %v3293
    %v4329 = vunpack.c.h.b16 %v3293
    %v4330 = vunpack.c.l.b16 %v3294
    %v4331 = vunpack.c.h.b16 %v3294
    %v4332 = vunpack.c.l.b16 %v3295
    %v4333 = vunpack.c.h.b16 %v3295
    %v4334 = vunpack.c.l.b16 %v3296
    %v4335 = vunpack.c.h.b16 %v3296
    %v4336 = vunpack.c.l.b16 %v3297
    %v4337 = vunpack.c.h.b16 %v3297
    %v4338 = vunpack.c.l.b16 %v3298
    %v4339 = vunpack.c.h.b16 %v3298
    %v4340 = vunpack.c.l.b16 %v3299
    %v4341 = vunpack.c.h.b16 %v3299
    %v4342 = vunpack.c.l.b16 %v3300
    %v4343 = vunpack.c.h.b16 %v3300
    %v4344 = vunpack.c.l.b16 %v3301
    %v4345 = vunpack.c.h.b16 %v3301
    %v4346 = vunpack.c.l.b16 %v3302
    %v4347 = vunpack.c.h.b16 %v3302
    %v4348 = vunpack.c.l.b16 %v3303
    %v4349 = vunpack.c.h.b16 %v3303
    %v4350 = vunpack.c.l.b16 %v3304
    %v4351 = vunpack.c.h.b16 %v3304
    %v4352 = vunpack.c.l.b16 %v3305
    %v4353 = vunpack.c.h.b16 %v3305
    %v4354 = vunpack.c.l.b16 %v3306
    %v4355 = vunpack.c.h.b16 %v3306
    %v4356 = vunpack.c.l.b16 %v3307
    %v4357 = vunpack.c.h.b16 %v3307
    %v4358 = vunpack.c.l.b16 %v3308
    %v4359 = vunpack.c.h.b16 %v3308
    %v4360 = vunpack.c.l.b16 %v3309
    %v4361 = vunpack.c.h.b16 %v3309
    %v4362 = vunpack.c.l.b16 %v3310
    %v4363 = vunpack.c.h.b16 %v3310
    %v4364 = vunpack.c.l.b16 %v3311
    %v4365 = vunpack.c.h.b16 %v3311
    %v4366 = vunpack.c.l.b16 %v3312
    %v4367 = vunpack.c.h.b16 %v3312
    %v4368 = vunpack.c.l.b16 %v3313
    %v4369 = vunpack.c.h.b16 %v3313
    %v4370 = vunpack.c.l.b16 %v3314
    %v4371 = vunpack.c.h.b16 %v3314
    %v4372 = vunpack.c.l.b16 %v3315
    %v4373 = vunpack.c.h.b16 %v3315
    %v4374 = vunpack.c.l.b16 %v3316
    %v4375 = vunpack.c.h.b16 %v3316
    %v4376 = vunpack.c.l.b16 %v3317
    %v4377 = vunpack.c.h.b16 %v3317
    %v4378 = vunpack.c.l.b16 %v3318
    %v4379 = vunpack.c.h.b16 %v3318
    %v4380 = vunpack.c.l.b16 %v3319
    %v4381 = vunpack.c.h.b16 %v3319
    %v4382 = vunpack.c.l.b16 %v3320
    %v4383 = vunpack.c.h.b16 %v3320
    %v4384 = vunpack.c.l.b16 %v3321
    %v4385 = vunpack.c.h.b16 %v3321
    %v4386 = vunpack.c.l.b16 %v3322
    %v4387 = vunpack.c.h.b16 %v3322
    %v4388 = vunpack.c.l.b16 %v3323
    %v4389 = vunpack.c.h.b16 %v3323
    %v4390 = vunpack.c.l.b16 %v3324
    %v4391 = vunpack.c.h.b16 %v3324
    %v4392 = vunpack.c.l.b16 %v3325
    %v4393 = vunpack.c.h.b16 %v3325
    %v4394 = vunpack.c.l.b16 %v3326
    %v4395 = vunpack.c.h.b16 %v3326
    %v4396 = vunpack.c.l.b16 %v3327
    %v4397 = vunpack.c.h.b16 %v3327
    %v4398 = vunpack.c.l.b16 %v3328
    %v4399 = vunpack.c.h.b16 %v3328
    %v4400 = vunpack.c.l.b16 %v3329
    %v4401 = vunpack.c.h.b16 %v3329
    %v4402 = vunpack.c.l.b16 %v3330
    %v4403 = vunpack.c.h.b16 %v3330
    %v4404 = vunpack.c.l.b16 %v3331
    %v4405 = vunpack.c.h.b16 %v3331
    %v4406 = vunpack.c.l.b16 %v3332
    %v4407 = vunpack.c.h.b16 %v3332
    %v4408 = vunpack.c.l.b16 %v3333
    %v4409 = vunpack.c.h.b16 %v3333
    %v4410 = vunpack.c.l.b16 %v3334
    %v4411 = vunpack.c.h.b16 %v3334
    %v4412 = vunpack.c.l.b16 %v3335
    %v4413 = vunpack.c.h.b16 %v3335
    %v4414 = vunpack.c.l.b16 %v3336
    %v4415 = vunpack.c.h.b16 %v3336
    %v4416 = vunpack.c.l.b16 %v3337
    %v4417 = vunpack.c.h.b16 %v3337
    %v4418 = vunpack.c.l.b16 %v3338
    %v4419 = vunpack.c.h.b16 %v3338
    %v4420 = vunpack.c.l.b16 %v3339
    %v4421 = vunpack.c.h.b16 %v3339
    %v4422 = vunpack.c.l.b16 %v3340
    %v4423 = vunpack.c.h.b16 %v3340
    %v4424 = vunpack.c.l.b16 %v3341
    %v4425 = vunpack.c.h.b16 %v3341
    %v4426 = vunpack.c.l.b16 %v3342
    %v4427 = vunpack.c.h.b16 %v3342
    %v4428 = vunpack.c.l.b16 %v3343
    %v4429 = vunpack.c.h.b16 %v3343
    %v4430 = vunpack.c.l.b16 %v3344
    %v4431 = vunpack.c.h.b16 %v3344
    %v4432 = vunpack.c.l.b16 %v3345
    %v4433 = vunpack.c.h.b16 %v3345
    %v4434 = vunpack.c.l.b16 %v3346
    %v4435 = vunpack.c.h.b16 %v3346
    %v4436 = vunpack.c.l.b16 %v3347
    %v4437 = vunpack.c.h.b16 %v3347
    %v4438 = vunpack.c.l.b16 %v3348
    %v4439 = vunpack.c.h.b16 %v3348
    %v4440 = vunpack.c.l.b16 %v3349
    %v4441 = vunpack.c.h.b16 %v3349
    %v4442 = vunpack.c.l.b16 %v3350
    %v4443 = vunpack.c.h.b16 %v3350
    %v4444 = vunpack.c.l.b16 %v3351
    %v4445 = vunpack.c.h.b16 %v3351
    %v4446 = vunpack.c.l.b16 %v3352
    %v4447 = vunpack.c.h.b16 %v3352
    %v4448 = vunpack.c.l.b16 %v3353
    %v4449 = vunpack.c.h.b16 %v3353
    %v4450 = vunpack.c.l.b16 %v3354
    %v4451 = vunpack.c.h.b16 %v3354
    %v4452 = vunpack.c.l.b16 %v3355
    %v4453 = vunpack.c.h.b16 %v3355
    %v4454 = vunpack.c.l.b16 %v3356
    %v4455 = vunpack.c.h.b16 %v3356
    %v4456 = vunpack.c.l.b16 %v3357
    %v4457 = vunpack.c.h.b16 %v3357
    %v4458 = vunpack.c.l.b16 %v3358
    %v4459 = vunpack.c.h.b16 %v3358
    %v4460 = vunpack.c.l.b16 %v3359
    %v4461 = vunpack.c.h.b16 %v3359
    %v4462 = vunpack.c.l.b16 %v3360
    %v4463 = vunpack.c.h.b16 %v3360
    %v4464 = vunpack.c.l.b16 %v3361
    %v4465 = vunpack.c.h.b16 %v3361
    %v4466 = vunpack.c.l.b16 %v3362
    %v4467 = vunpack.c.h.b16 %v3362
    %v4468 = vunpack.c.l.b16 %v3363
    %v4469 = vunpack.c.h.b16 %v3363
    %v4470 = vunpack.c.l.b16 %v3364
    %v4471 = vunpack.c.h.b16 %v3364
    %v4472 = vunpack.c.l.b16 %v3365
    %v4473 = vunpack.c.h.b16 %v3365
    %v4474 = vunpack.c.l.b16 %v3366
    %v4475 = vunpack.c.h.b16 %v3366
    %v4476 = vunpack.c.l.b16 %v3367
    %v4477 = vunpack.c.h.b16 %v3367
    %v4478 = vunpack.c.l.b16 %v3368
    %v4479 = vunpack.c.h.b16 %v3368
    %v4480 = vunpack.c.l.b16 %v3369
    %v4481 = vunpack.c.h.b16 %v3369
    %v4482 = vunpack.c.l.b16 %v3370
    %v4483 = vunpack.c.h.b16 %v3370
    %v4484 = vunpack.c.l.b16 %v3371
    %v4485 = vunpack.c.h.b16 %v3371
    %v4486 = vunpack.c.l.b16 %v3372
    %v4487 = vunpack.c.h.b16 %v3372
    %v4488 = vunpack.c.l.b16 %v3373
    %v4489 = vunpack.c.h.b16 %v3373
    %v4490 = vunpack.c.l.b16 %v3374
    %v4491 = vunpack.c.h.b16 %v3374
    %v4492 = vunpack.c.l.b16 %v3375
    %v4493 = vunpack.c.h.b16 %v3375
    %v4494 = vunpack.c.l.b16 %v3376
    %v4495 = vunpack.c.h.b16 %v3376
    %v4496 = vunpack.c.l.b16 %v3377
    %v4497 = vunpack.c.h.b16 %v3377
    %v4498 = vunpack.c.l.b16 %v3378
    %v4499 = vunpack.c.h.b16 %v3378
    %v4500 = vunpack.c.l.b16 %v3379
    %v4501 = vunpack.c.h.b16 %v3379
    %v4502 = vunpack.c.l.b16 %v3380
    %v4503 = vunpack.c.h.b16 %v3380
    %v4504 = vunpack.c.l.b16 %v3381
    %v4505 = vunpack.c.h.b16 %v3381
    %v4506 = vunpack.c.l.b16 %v3382
    %v4507 = vunpack.c.h.b16 %v3382
    %v4508 = vunpack.c.l.b16 %v3383
    %v4509 = vunpack.c.h.b16 %v3383
    %v4510 = vunpack.c.l.b16 %v3384
    %v4511 = vunpack.c.h.b16 %v3384
    %v4512 = vunpack.c.l.b16 %v3385
    %v4513 = vunpack.c.h.b16 %v3385
    %v4514 = vunpack.c.l.b16 %v3386
    %v4515 = vunpack.c.h.b16 %v3386
    %v4516 = vunpack.c.l.b16 %v3387
    %v4517 = vunpack.c.h.b16 %v3387
    %v4518 = vunpack.c.l.b16 %v3388
    %v4519 = vunpack.c.h.b16 %v3388
    %v4520 = vunpack.c.l.b16 %v3389
    %v4521 = vunpack.c.h.b16 %v3389
    %v4522 = vunpack.c.l.b16 %v3390
    %v4523 = vunpack.c.h.b16 %v3390
    %v4524 = vunpack.c.l.b16 %v3391
    %v4525 = vunpack.c.h.b16 %v3391
    %v4526 = vunpack.c.l.b16 %v3392
    %v4527 = vunpack.c.h.b16 %v3392
    %v4528 = vunpack.c.l.b16 %v3393
    %v4529 = vunpack.c.h.b16 %v3393
    %v4530 = vunpack.c.l.b16 %v3394
    %v4531 = vunpack.c.h.b16 %v3394
    %v4532 = vunpack.c.l.b16 %v3395
    %v4533 = vunpack.c.h.b16 %v3395
    %v4534 = vunpack.c.l.b16 %v3396
    %v4535 = vunpack.c.h.b16 %v3396
    %v4536 = vunpack.c.l.b16 %v3397
    %v4537 = vunpack.c.h.b16 %v3397
    %v4538 = vunpack.c.l.b16 %v3398
    %v4539 = vunpack.c.h.b16 %v3398
    %v4540 = vunpack.c.l.b16 %v3399
    %v4541 = vunpack.c.h.b16 %v3399
    %v4542 = vunpack.c.l.b16 %v3400
    %v4543 = vunpack.c.h.b16 %v3400
    %v4544 = vunpack.c.l.b16 %v3401
    %v4545 = vunpack.c.h.b16 %v3401
    %v4546 = vunpack.c.l.b16 %v3402
    %v4547 = vunpack.c.h.b16 %v3402
    %v4548 = vunpack.c.l.b16 %v3403
    %v4549 = vunpack.c.h.b16 %v3403
    %v4550 = vunpack.c.l.b16 %v3404
    %v4551 = vunpack.c.h.b16 %v3404
    %v4552 = vunpack.c.l.b16 %v3405
    %v4553 = vunpack.c.h.b16 %v3405
    %v4554 = vunpack.c.l.b16 %v3406
    %v4555 = vunpack.c.h.b16 %v3406
    %v4556 = vunpack.c.l.b16 %v3407
    %v4557 = vunpack.c.h.b16 %v3407
    %v4558 = vunpack.c.l.b16 %v3408
    %v4559 = vunpack.c.h.b16 %v3408
    %v4560 = vunpack.c.l.b16 %v3409
    %v4561 = vunpack.c.h.b16 %v3409
    %v4562 = vunpack.c.l.b16 %v3410
    %v4563 = vunpack.c.h.b16 %v3410
    %v4564 = vunpack.c.l.b16 %v3411
    %v4565 = vunpack.c.h.b16 %v3411
    %v4566 = vunpack.c.l.b16 %v3412
    %v4567 = vunpack.c.h.b16 %v3412
    %v4568 = vunpack.c.l.b16 %v3413
    %v4569 = vunpack.c.h.b16 %v3413
    %v4570 = vunpack.c.l.b16 %v3414
    %v4571 = vunpack.c.h.b16 %v3414
    %v4572 = vunpack.c.l.b16 %v3415
    %v4573 = vunpack.c.h.b16 %v3415
    %v4574 = vunpack.c.l.b16 %v3416
    %v4575 = vunpack.c.h.b16 %v3416
    %v4576 = vunpack.c.l.b16 %v3417
    %v4577 = vunpack.c.h.b16 %v3417
    %v4578 = vunpack.c.l.b16 %v3418
    %v4579 = vunpack.c.h.b16 %v3418
    %v4580 = vunpack.c.l.b16 %v3419
    %v4581 = vunpack.c.h.b16 %v3419
    %v4582 = vunpack.c.l.b16 %v3420
    %v4583 = vunpack.c.h.b16 %v3420
    %v4584 = vunpack.c.l.b16 %v3421
    %v4585 = vunpack.c.h.b16 %v3421
    %v4586 = vunpack.c.l.b16 %v3422
    %v4587 = vunpack.c.h.b16 %v3422
    %v4588 = vunpack.c.l.b16 %v3423
    %v4589 = vunpack.c.h.b16 %v3423
    %v4590 = vunpack.c.l.b16 %v3424
    %v4591 = vunpack.c.h.b16 %v3424
    %v4592 = vunpack.c.l.b16 %v3425
    %v4593 = vunpack.c.h.b16 %v3425
    %v4594 = vunpack.c.l.b16 %v3426
    %v4595 = vunpack.c.h.b16 %v3426
    %v4596 = vunpack.c.l.b16 %v3427
    %v4597 = vunpack.c.h.b16 %v3427
    %v4598 = vunpack.c.l.b16 %v3428
    %v4599 = vunpack.c.h.b16 %v3428
    %v4600 = vunpack.c.l.b16 %v3429
    %v4601 = vunpack.c.h.b16 %v3429
    %v4602 = vunpack.c.l.b16 %v3430
    %v4603 = vunpack.c.h.b16 %v3430
    %v4604 = vunpack.c.l.b16 %v3431
    %v4605 = vunpack.c.h.b16 %v3431
    %v4606 = vunpack.c.l.b16 %v3432
    %v4607 = vunpack.c.h.b16 %v3432
    %v4608 = vunpack.c.l.b16 %v3433
    %v4609 = vunpack.c.h.b16 %v3433
    %v4610 = vunpack.c.l.b16 %v3434
    %v4611 = vunpack.c.h.b16 %v3434
    %v4612 = vunpack.c.l.b16 %v3435
    %v4613 = vunpack.c.h.b16 %v3435
    %v4614 = vunpack.c.l.b16 %v3436
    %v4615 = vunpack.c.h.b16 %v3436
    %v4616 = vunpack.c.l.b16 %v3437
    %v4617 = vunpack.c.h.b16 %v3437
    %v4618 = vunpack.c.l.b16 %v3438
    %v4619 = vunpack.c.h.b16 %v3438
    %v4620 = vunpack.c.l.b16 %v3439
    %v4621 = vunpack.c.h.b16 %v3439
    %v4622 = vunpack.c.l.b16 %v3440
    %v4623 = vunpack.c.h.b16 %v3440
    %v4624 = vunpack.c.l.b16 %v3441
    %v4625 = vunpack.c.h.b16 %v3441
    %v4626 = vunpack.c.l.b16 %v3442
    %v4627 = vunpack.c.h.b16 %v3442
    %v4628 = vunpack.c.l.b16 %v3443
    %v4629 = vunpack.c.h.b16 %v3443
    %v4630 = vunpack.c.l.b16 %v3444
    %v4631 = vunpack.c.h.b16 %v3444
    %v4632 = vunpack.c.l.b16 %v3445
    %v4633 = vunpack.c.h.b16 %v3445
    %v4634 = vpack.c.b16 %v3852, %v3850
    %v4635 = vpack.c.b16 %v3853, %v3851
    %v4636 = vpack.c.b16 %v3856, %v3854
    %v4637 = vpack.c.b16 %v3857, %v3855
    %v4638 = vpack.c.b16 %v3860, %v3858
    %v4639 = vpack.c.b16 %v3861, %v3859
    %v4640 = vpack.c.b16 %v3864, %v3862
    %v4641 = vpack.c.b16 %v3865, %v3863
    %v4642 = vpack.c.b16 %v3868, %v3866
    %v4643 = vpack.c.b16 %v3869, %v3867
    %v4644 = vpack.c.b16 %v3872, %v3870
    %v4645 = vpack.c.b16 %v3873, %v3871
    %v4646 = vpack.c.b16 %v3876, %v3874
    %v4647 = vpack.c.b16 %v3877, %v3875
    %v4648 = vpack.c.b16 %v3880, %v3878
    %v4649 = vpack.c.b16 %v3881, %v3879
    %v4650 = vpack.c.b16 %v3884, %v3882
    %v4651 = vpack.c.b16 %v3885, %v3883
    %v4652 = vpack.c.b16 %v3888, %v3886
    %v4653 = vpack.c.b16 %v3889, %v3887
    %v4654 = vpack.c.b16 %v3892, %v3890
    %v4655 = vpack.c.b16 %v3893, %v3891
    %v4656 = vpack.c.b16 %v3896, %v3894
    %v4657 = vpack.c.b16 %v3897, %v3895
    %v4658 = vpack.c.b16 %v3900, %v3898
    %v4659 = vpack.c.b16 %v3901, %v3899
    %v4660 = vpack.c.b16 %v3904, %v3902
    %v4661 = vpack.c.b16 %v3905, %v3903
    %v4662 = vpack.c.b16 %v3908, %v3906
    %v4663 = vpack.c.b16 %v3909, %v3907
    %v4664 = vpack.c.b16 %v3912, %v3910
    %v4665 = vpack.c.b16 %v3913, %v3911
    %v4666 = vpack.c.b16 %v3916, %v3914
    %v4667 = vpack.c.b16 %v3917, %v3915
    %v4668 = vpack.c.b16 %v3920, %v3918
    %v4669 = vpack.c.b16 %v3921, %v3919
    %v4670 = vpack.c.b16 %v3924, %v3922
    %v4671 = vpack.c.b16 %v3925, %v3923
    %v4672 = vpack.c.b16 %v3928, %v3926
    %v4673 = vpack.c.b16 %v3929, %v3927
    %v4674 = vpack.c.b16 %v3932, %v3930
    %v4675 = vpack.c.b16 %v3933, %v3931
    %v4676 = vpack.c.b16 %v3936, %v3934
    %v4677 = vpack.c.b16 %v3937, %v3935
    %v4678 = vpack.c.b16 %v3940, %v3938
    %v4679 = vpack.c.b16 %v3941, %v3939
    %v4680 = vpack.c.b16 %v3944, %v3942
    %v4681 = vpack.c.b16 %v3945, %v3943
    %v4682 = vpack.c.b16 %v3948, %v3946
    %v4683 = vpack.c.b16 %v3949, %v3947
    %v4684 = vpack.c.b16 %v3952, %v3950
    %v4685 = vpack.c.b16 %v3953, %v3951
    %v4686 = vpack.c.b16 %v3956, %v3954
    %v4687 = vpack.c.b16 %v3957, %v3955
    %v4688 = vpack.c.b16 %v3960, %v3958
    %v4689 = vpack.c.b16 %v3961, %v3959
    %v4690 = vpack.c.b16 %v3964, %v3962
    %v4691 = vpack.c.b16 %v3965, %v3963
    %v4692 = vpack.c.b16 %v3968, %v3966
    %v4693 = vpack.c.b16 %v3969, %v3967
    %v4694 = vpack.c.b16 %v3972, %v3970
    %v4695 = vpack.c.b16 %v3973, %v3971
    %v4696 = vpack.c.b16 %v3976, %v3974
    %v4697 = vpack.c.b16 %v3977, %v3975
    %v4698 = vpack.c.b16 %v3980, %v3978
    %v4699 = vpack.c.b16 %v3981, %v3979
    %v4700 = vpack.c.b16 %v3984, %v3982
    %v4701 = vpack.c.b16 %v3985, %v3983
    %v4702 = vpack.c.b16 %v3988, %v3986
    %v4703 = vpack.c.b16 %v3989, %v3987
    %v4704 = vpack.c.b16 %v3992, %v3990
    %v4705 = vpack.c.b16 %v3993, %v3991
    %v4706 = vpack.c.b16 %v3996, %v3994
    %v4707 = vpack.c.b16 %v3997, %v3995
    %v4708 = vpack.c.b16 %v4000, %v3998
    %v4709 = vpack.c.b16 %v4001, %v3999
    %v4710 = vpack.c.b16 %v4004, %v4002
    %v4711 = vpack.c.b16 %v4005, %v4003
    %v4712 = vpack.c.b16 %v4008, %v4006
    %v4713 = vpack.c.b16 %v4009, %v4007
    %v4714 = vpack.c.b16 %v4012, %v4010
    %v4715 = vpack.c.b16 %v4013, %v4011
    %v4716 = vpack.c.b16 %v4016, %v4014
    %v4717 = vpack.c.b16 %v4017, %v4015
    %v4718 = vpack.c.b16 %v4020, %v4018
    %v4719 = vpack.c.b16 %v4021, %v4019
    %v4720 = vpack.c.b16 %v4024, %v4022
    %v4721 = vpack.c.b16 %v4025, %v4023
    %v4722 = vpack.c.b16 %v4028, %v4026
    %v4723 = vpack.c.b16 %v4029, %v4027
    %v4724 = vpack.c.b16 %v4032, %v4030
    %v4725 = vpack.c.b16 %v4033, %v4031
    %v4726 = vpack.c.b16 %v4036, %v4034
    %v4727 = vpack.c.b16 %v4037, %v4035
    %v4728 = vpack.c.b16 %v4040, %v4038
    %v4729 = vpack.c.b16 %v4041, %v4039
    %v4730 = vpack.c.b16 %v4044, %v4042
    %v4731 = vpack.c.b16 %v4045, %v4043
    %v4732 = vpack.c.b16 %v4048, %v4046
    %v4733 = vpack.c.b16 %v4049, %v4047
    %v4734 = vpack.c.b16 %v4052, %v4050
    %v4735 = vpack.c.b16 %v4053, %v4051
    %v4736 = vpack.c.b16 %v4056, %v4054
    %v4737 = vpack.c.b16 %v4057, %v4055
    %v4738 = vpack.c.b16 %v4060, %v4058
    %v4739 = vpack.c.b16 %v4061, %v4059
    %v4740 = vpack.c.b16 %v4064, %v4062
    %v4741 = vpack.c.b16 %v4065, %v4063
    %v4742 = vpack.c.b16 %v4068, %v4066
    %v4743 = vpack.c.b16 %v4069, %v4067
    %v4744 = vpack.c.b16 %v4072, %v4070
    %v4745 = vpack.c.b16 %v4073, %v4071
    %v4746 = vpack.c.b16 %v4076, %v4074
    %v4747 = vpack.c.b16 %v4077, %v4075
    %v4748 = vpack.c.b16 %v4080, %v4078
    %v4749 = vpack.c.b16 %v4081, %v4079
    %v4750 = vpack.c.b16 %v4084, %v4082
    %v4751 = vpack.c.b16 %v4085, %v4083
    %v4752 = vpack.c.b16 %v4088, %v4086
    %v4753 = vpack.c.b16 %v4089, %v4087
    %v4754 = vpack.c.b16 %v4092, %v4090
    %v4755 = vpack.c.b16 %v4093, %v4091
    %v4756 = vpack.c.b16 %v4096, %v4094
    %v4757 = vpack.c.b16 %v4097, %v4095
    %v4758 = vpack.c.b16 %v4100, %v4098
    %v4759 = vpack.c.b16 %v4101, %v4099
    %v4760 = vpack.c.b16 %v4104, %v4102
    %v4761 = vpack.c.b16 %v4105, %v4103
    %v4762 = vpack.c.b16 %v4108, %v4106
    %v4763 = vpack.c.b16 %v4109, %v4107
    %v4764 = vpack.c.b16 %v4112, %v4110
    %v4765 = vpack.c.b16 %v4113, %v4111
    %v4766 = vpack.c.b16 %v4116, %v4114
    %v4767 = vpack.c.b16 %v4117, %v4115
    %v4768 = vpack.c.b16 %v4120, %v4118
    %v4769 = vpack.c.b16 %v4121, %v4119
    %v4770 = vpack.c.b16 %v4124, %v4122
    %v4771 = vpack.c.b16 %v4125, %v4123
    %v4772 = vpack.c.b16 %v4128, %v4126
    %v4773 = vpack.c.b16 %v4129, %v4127
    %v4774 = vpack.c.b16 %v4132, %v4130
    %v4775 = vpack.c.b16 %v4133, %v4131
    %v4776 = vpack.c.b16 %v4136, %v4134
    %v4777 = vpack.c.b16 %v4137, %v4135
    %v4778 = vpack.c.b16 %v4140, %v4138
    %v4779 = vpack.c.b16 %v4141, %v4139
    %v4780 = vpack.c.b16 %v4144, %v4142
    %v4781 = vpack.c.b16 %v4145, %v4143
    %v4782 = vpack.c.b16 %v4148, %v4146
    %v4783 = vpack.c.b16 %v4149, %v4147
    %v4784 = vpack.c.b16 %v4152, %v4150
    %v4785 = vpack.c.b16 %v4153, %v4151
    %v4786 = vpack.c.b16 %v4156, %v4154
    %v4787 = vpack.c.b16 %v4157, %v4155
    %v4788 = vpack.c.b16 %v4160, %v4158
    %v4789 = vpack.c.b16 %v4161, %v4159
    %v4790 = vpack.c.b16 %v4164, %v4162
    %v4791 = vpack.c.b16 %v4165, %v4163
    %v4792 = vpack.c.b16 %v4168, %v4166
    %v4793 = vpack.c.b16 %v4169, %v4167
    %v4794 = vpack.c.b16 %v4172, %v4170
    %v4795 = vpack.c.b16 %v4173, %v4171
    %v4796 = vpack.c.b16 %v4176, %v4174
    %v4797 = vpack.c.b16 %v4177, %v4175
    %v4798 = vpack.c.b16 %v4180, %v4178
    %v4799 = vpack.c.b16 %v4181, %v4179
    %v4800 = vpack.c.b16 %v4184, %v4182
    %v4801 = vpack.c.b16 %v4185, %v4183
    %v4802 = vpack.c.b16 %v4188, %v4186
    %v4803 = vpack.c.b16 %v4189, %v4187
    %v4804 = vpack.c.b16 %v4192, %v4190
    %v4805 = vpack.c.b16 %v4193, %v4191
    %v4806 = vpack.c.b16 %v4196, %v4194
    %v4807 = vpack.c.b16 %v4197, %v4195
    %v4808 = vpack.c.b16 %v4200, %v4198
    %v4809 = vpack.c.b16 %v4201, %v4199
    %v4810 = vpack.c.b16 %v4204, %v4202
    %v4811 = vpack.c.b16 %v4205, %v4203
    %v4812 = vpack.c.b16 %v4208, %v4206
    %v4813 = vpack.c.b16 %v4209, %v4207
    %v4814 = vpack.c.b16 %v4212, %v4210
    %v4815 = vpack.c.b16 %v4213, %v4211
    %v4816 = vpack.c.b16 %v4216, %v4214
    %v4817 = vpack.c.b16 %v4217, %v4215
    %v4818 = vpack.c.b16 %v4220, %v4218
    %v4819 = vpack.c.b16 %v4221, %v4219
    %v4820 = vpack.c.b16 %v4224, %v4222
    %v4821 = vpack.c.b16 %v4225, %v4223
    %v4822 = vpack.c.b16 %v4228, %v4226
    %v4823 = vpack.c.b16 %v4229, %v4227
    %v4824 = vpack.c.b16 %v4232, %v4230
    %v4825 = vpack.c.b16 %v4233, %v4231
    %v4826 = vpack.c.b16 %v4236, %v4234
    %v4827 = vpack.c.b16 %v4237, %v4235
    %v4828 = vpack.c.b16 %v4240, %v4238
    %v4829 = vpack.c.b16 %v4241, %v4239
    %v4830 = vpack.c.b16 %v4244, %v4242
    %v4831 = vpack.c.b16 %v4245, %v4243
    %v4832 = vpack.c.b16 %v4248, %v4246
    %v4833 = vpack.c.b16 %v4249, %v4247
    %v4834 = vpack.c.b16 %v4252, %v4250
    %v4835 = vpack.c.b16 %v4253, %v4251
    %v4836 = vpack.c.b16 %v4256, %v4254
    %v4837 = vpack.c.b16 %v4257, %v4255
    %v4838 = vpack.c.b16 %v4260, %v4258
    %v4839 = vpack.c.b16 %v4261, %v4259
    %v4840 = vpack.c.b16 %v4264, %v4262
    %v4841 = vpack.c.b16 %v4265, %v4263
    %v4842 = vpack.c.b16 %v4268, %v4266
    %v4843 = vpack.c.b16 %v4269, %v4267
    %v4844 = vpack.c.b16 %v4272, %v4270
    %v4845 = vpack.c.b16 %v4273, %v4271
    %v4846 = vpack.c.b16 %v4276, %v4274
    %v4847 = vpack.c.b16 %v4277, %v4275
    %v4848 = vpack.c.b16 %v4280, %v4278
    %v4849 = vpack.c.b16 %v4281, %v4279
    %v4850 = vpack.c.b16 %v4284, %v4282
    %v4851 = vpack.c.b16 %v4285, %v4283
    %v4852 = vpack.c.b16 %v4288, %v4286
    %v4853 = vpack.c.b16 %v4289, %v4287
    %v4854 = vpack.c.b16 %v4292, %v4290
    %v4855 = vpack.c.b16 %v4293, %v4291
    %v4856 = vpack.c.b16 %v4296, %v4294
    %v4857 = vpack.c.b16 %v4297, %v4295
    %v4858 = vpack.c.b16 %v4300, %v4298
    %v4859 = vpack.c.b16 %v4301, %v4299
    %v4860 = vpack.c.b16 %v4304, %v4302
    %v4861 = vpack.c.b16 %v4305, %v4303
    %v4862 = vpack.c.b16 %v4308, %v4306
    %v4863 = vpack.c.b16 %v4309, %v4307
    %v4864 = vpack.c.b16 %v4312, %v4310
    %v4865 = vpack.c.b16 %v4313, %v4311
    %v4866 = vpack.c.b16 %v4316, %v4314
    %v4867 = vpack.c.b16 %v4317, %v4315
    %v4868 = vpack.c.b16 %v4320, %v4318
    %v4869 = vpack.c.b16 %v4321, %v4319
    %v4870 = vpack.c.b16 %v4324, %v4322
    %v4871 = vpack.c.b16 %v4325, %v4323
    %v4872 = vpack.c.b16 %v4328, %v4326
    %v4873 = vpack.c.b16 %v4329, %v4327
    %v4874 = vpack.c.b16 %v4332, %v4330
    %v4875 = vpack.c.b16 %v4333, %v4331
    %v4876 = vpack.c.b16 %v4336, %v4334
    %v4877 = vpack.c.b16 %v4337, %v4335
    %v4878 = vpack.c.b16 %v4340, %v4338
    %v4879 = vpack.c.b16 %v4341, %v4339
    %v4880 = vpack.c.b16 %v4344, %v4342
    %v4881 = vpack.c.b16 %v4345, %v4343
    %v4882 = vpack.c.b16 %v4348, %v4346
    %v4883 = vpack.c.b16 %v4349, %v4347
    %v4884 = vpack.c.b16 %v4352, %v4350
    %v4885 = vpack.c.b16 %v4353, %v4351
    %v4886 = vpack.c.b16 %v4356, %v4354
    %v4887 = vpack.c.b16 %v4357, %v4355
    %v4888 = vpack.c.b16 %v4360, %v4358
    %v4889 = vpack.c.b16 %v4361, %v4359
    %v4890 = vpack.c.b16 %v4364, %v4362
    %v4891 = vpack.c.b16 %v4365, %v4363
    %v4892 = vpack.c.b16 %v4368, %v4366
    %v4893 = vpack.c.b16 %v4369, %v4367
    %v4894 = vpack.c.b16 %v4372, %v4370
    %v4895 = vpack.c.b16 %v4373, %v4371
    %v4896 = vpack.c.b16 %v4376, %v4374
    %v4897 = vpack.c.b16 %v4377, %v4375
    %v4898 = vpack.c.b16 %v4380, %v4378
    %v4899 = vpack.c.b16 %v4381, %v4379
    %v4900 = vpack.c.b16 %v4384, %v4382
    %v4901 = vpack.c.b16 %v4385, %v4383
    %v4902 = vpack.c.b16 %v4388, %v4386
    %v4903 = vpack.c.b16 %v4389, %v4387
    %v4904 = vpack.c.b16 %v4392, %v4390
    %v4905 = vpack.c.b16 %v4393, %v4391
    %v4906 = vpack.c.b16 %v4396, %v4394
    %v4907 = vpack.c.b16 %v4397, %v4395
    %v4908 = vpack.c.b16 %v4400, %v4398
    %v4909 = vpack.c.b16 %v4401, %v4399
    %v4910 = vpack.c.b16 %v4404, %v4402
    %v4911 = vpack.c.b16 %v4405, %v4403
    %v4912 = vpack.c.b16 %v4408, %v4406
    %v4913 = vpack.c.b16 %v4409, %v4407
    %v4914 = vpack.c.b16 %v4412, %v4410
    %v4915 = vpack.c.b16 %v4413, %v4411
    %v4916 = vpack.c.b16 %v4416, %v4414
    %v4917 = vpack.c.b16 %v4417, %v4415
    %v4918 = vpack.c.b16 %v4420, %v4418
    %v4919 = vpack.c.b16 %v4421, %v4419
    %v4920 = vpack.c.b16 %v4424, %v4422
    %v4921 = vpack.c.b16 %v4425, %v4423
    %v4922 = vpack.c.b16 %v4428, %v4426
    %v4923 = vpack.c.b16 %v4429, %v4427
    %v4924 = vpack.c.b16 %v4432, %v4430
    %v4925 = vpack.c.b16 %v4433, %v4431
    %v4926 = vpack.c.b16 %v4436, %v4434
    %v4927 = vpack.c.b16 %v4437, %v4435
    %v4928 = vpack.c.b16 %v4440, %v4438
    %v4929 = vpack.c.b16 %v4441, %v4439
    %v4930 = vpack.c.b16 %v4444, %v4442
    %v4931 = vpack.c.b16 %v4445, %v4443
    %v4932 = vpack.c.b16 %v4448, %v4446
    %v4933 = vpack.c.b16 %v4449, %v4447
    %v4934 = vpack.c.b16 %v4452, %v4450
    %v4935 = vpack.c.b16 %v4453, %v4451
    %v4936 = vpack.c.b16 %v4456, %v4454
    %v4937 = vpack.c.b16 %v4457, %v4455
    %v4938 = vpack.c.b16 %v4460, %v4458
    %v4939 = vpack.c.b16 %v4461, %v4459
    %v4940 = vpack.c.b16 %v4464, %v4462
    %v4941 = vpack.c.b16 %v4465, %v4463
    %v4942 = vpack.c.b16 %v4468, %v4466
    %v4943 = vpack.c.b16 %v4469, %v4467
    %v4944 = vpack.c.b16 %v4472, %v4470
    %v4945 = vpack.c.b16 %v4473, %v4471
    %v4946 = vpack.c.b16 %v4476, %v4474
    %v4947 = vpack.c.b16 %v4477, %v4475
    %v4948 = vpack.c.b16 %v4480, %v4478
    %v4949 = vpack.c.b16 %v4481, %v4479
    %v4950 = vpack.c.b16 %v4484, %v4482
    %v4951 = vpack.c.b16 %v4485, %v4483
    %v4952 = vpack.c.b16 %v4488, %v4486
    %v4953 = vpack.c.b16 %v4489, %v4487
    %v4954 = vpack.c.b16 %v4492, %v4490
    %v4955 = vpack.c.b16 %v4493, %v4491
    %v4956 = vpack.c.b16 %v4496, %v4494
    %v4957 = vpack.c.b16 %v4497, %v4495
    %v4958 = vpack.c.b16 %v4500, %v4498
    %v4959 = vpack.c.b16 %v4501, %v4499
    %v4960 = vpack.c.b16 %v4504, %v4502
    %v4961 = vpack.c.b16 %v4505, %v4503
    %v4962 = vpack.c.b16 %v4508, %v4506
    %v4963 = vpack.c.b16 %v4509, %v4507
    %v4964 = vpack.c.b16 %v4512, %v4510
    %v4965 = vpack.c.b16 %v4513, %v4511
    %v4966 = vpack.c.b16 %v4516, %v4514
    %v4967 = vpack.c.b16 %v4517, %v4515
    %v4968 = vpack.c.b16 %v4520, %v4518
    %v4969 = vpack.c.b16 %v4521, %v4519
    %v4970 = vpack.c.b16 %v4524, %v4522
    %v4971 = vpack.c.b16 %v4525, %v4523
    %v4972 = vpack.c.b16 %v4528, %v4526
    %v4973 = vpack.c.b16 %v4529, %v4527
    %v4974 = vpack.c.b16 %v4532, %v4530
    %v4975 = vpack.c.b16 %v4533, %v4531
    %v4976 = vpack.c.b16 %v4536, %v4534
    %v4977 = vpack.c.b16 %v4537, %v4535
    %v4978 = vpack.c.b16 %v4540, %v4538
    %v4979 = vpack.c.b16 %v4541, %v4539
    %v4980 = vpack.c.b16 %v4544, %v4542
    %v4981 = vpack.c.b16 %v4545, %v4543
    %v4982 = vpack.c.b16 %v4548, %v4546
    %v4983 = vpack.c.b16 %v4549, %v4547
    %v4984 = vpack.c.b16 %v4552, %v4550
    %v4985 = vpack.c.b16 %v4553, %v4551
    %v4986 = vpack.c.b16 %v4556, %v4554
    %v4987 = vpack.c.b16 %v4557, %v4555
    %v4988 = vpack.c.b16 %v4560, %v4558
    %v4989 = vpack.c.b16 %v4561, %v4559
    %v4990 = vpack.c.b16 %v4564, %v4562
    %v4991 = vpack.c.b16 %v4565, %v4563
    %v4992 = vpack.c.b16 %v4568, %v4566
    %v4993 = vpack.c.b16 %v4569, %v4567
    %v4994 = vpack.c.b16 %v4572, %v4570
    %v4995 = vpack.c.b16 %v4573, %v4571
    %v4996 = vpack.c.b16 %v4576, %v4574
    %v4997 = vpack.c.b16 %v4577, %v4575
    %v4998 = vpack.c.b16 %v4580, %v4578
    %v4999 = vpack.c.b16 %v4581, %v4579
    %v5000 = vpack.c.b16 %v4584, %v4582
    %v5001 = vpack.c.b16 %v4585, %v4583
    %v5002 = vpack.c.b16 %v4588, %v4586
    %v5003 = vpack.c.b16 %v4589, %v4587
    %v5004 = vpack.c.b16 %v4592, %v4590
    %v5005 = vpack.c.b16 %v4593, %v4591
    %v5006 = vpack.c.b16 %v4596, %v4594
    %v5007 = vpack.c.b16 %v4597, %v4595
    %v5008 = vpack.c.b16 %v4600, %v4598
    %v5009 = vpack.c.b16 %v4601, %v4599
    %v5010 = vpack.c.b16 %v4604, %v4602
    %v5011 = vpack.c.b16 %v4605, %v4603
    %v5012 = vpack.c.b16 %v4608, %v4606
    %v5013 = vpack.c.b16 %v4609, %v4607
    %v5014 = vpack.c.b16 %v4612, %v4610
    %v5015 = vpack.c.b16 %v4613, %v4611
    %v5016 = vpack.c.b16 %v4616, %v4614
    %v5017 = vpack.c.b16 %v4617, %v4615
    %v5018 = vpack.c.b16 %v4620, %v4618
    %v5019 = vpack.c.b16 %v4621, %v4619
    %v5020 = vpack.c.b16 %v4624, %v4622
    %v5021 = vpack.c.b16 %v4625, %v4623
    %v5022 = vpack.c.b16 %v4628, %v4626
    %v5023 = vpack.c.b16 %v4629, %v4627
    %v5024 = vpack.c.b16 %v4632, %v4630
    %v5025 = vpack.c.b16 %v4633, %v4631
    %vm5418 = vcmask 523264
    %v5420 = vsel %vm5418, %v3053, 0
    %5422 = vmatprep.subr.bf16.mxu0 %v4635
    %5423 = vmatpush1.bf16.msra.mxu0 %v4634
    %5424 = vmatprep.subr.bf16.mxu0 %v4637
    %5425 = vmatpush1.bf16.msra.mxu0 %v4636
    %5426 = vmatprep.subr.bf16.mxu0 %v4639
    %5427 = vmatpush1.bf16.msra.mxu0 %v4638
    %5428 = vmatprep.subr.bf16.mxu0 %v4641
    %5429 = vmatpush1.bf16.msra.mxu0 %v4640
    %5430 = vmatprep.subr.bf16.mxu0 %v4643
    %5431 = vmatpush1.bf16.msra.mxu0 %v4642
    %5432 = vmatprep.subr.bf16.mxu0 %v4645
    %5433 = vmatpush1.bf16.msra.mxu0 %v4644
    %5434 = vmatprep.subr.bf16.mxu0 %v4647
    %5435 = vmatpush1.bf16.msra.mxu0 %v4646
    %5436 = vmatprep.subr.bf16.mxu0 %v4649
    %5437 = vmatpush1.bf16.msra.mxu0 %v4648
    %5438 = vmatprep.subr.bf16.mxu0 %v4651
    %5439 = vmatpush1.bf16.msra.mxu0 %v4650
    %5440 = vmatprep.subr.bf16.mxu0 %v4653
    %5441 = vmatpush1.bf16.msra.mxu0 %v4652
    %5442 = vmatprep.subr.bf16.mxu0 %v4655
    %5443 = vmatpush1.bf16.msra.mxu0 %v4654
    %5444 = vmatprep.subr.bf16.mxu0 %v4657
    %5445 = vmatpush1.bf16.msra.mxu0 %v4656
    %5446 = vmatprep.subr.bf16.mxu0 %v4659
    %5447 = vmatpush1.bf16.msra.mxu0 %v4658
    %5448 = vmatprep.subr.bf16.mxu0 %v4661
    %5449 = vmatpush1.bf16.msra.mxu0 %v4660
    %5450 = vmatprep.subr.bf16.mxu0 %v4663
    %5451 = vmatpush1.bf16.msra.mxu0 %v4662
    %5452 = vmatprep.subr.bf16.mxu0 %v4665
    %5453 = vmatpush1.bf16.msra.mxu0 %v4664
    %5454 = vmatprep.mubr.bf16.mxu0 %v3030
    %5455 = vmatmul.mubr.bf16.gmra.mrb[0].mxu0 %v3029
    %v5456 = vpop.f32.mrb[0].mxu0
    %v5457 = vadd.f32 %v3451, %v5456
    %v5458 = vpop.f32.mrb[0].mxu0
    %v5459 = vadd.f32 %v3455, %v5458
    %v5460 = vpop.f32.mrb[0].mxu0
    %v5461 = vpop.f32.mrb[0].mxu0
    %5462 = vdwg.mxu0
    %5463 = vmatprep.subr.bf16.mxu0 %v4667
    %5464 = vmatpush1.bf16.msra.mxu0 %v4666
    %5465 = vmatprep.subr.bf16.mxu0 %v4669
    %5466 = vmatpush1.bf16.msra.mxu0 %v4668
    %5467 = vmatprep.subr.bf16.mxu0 %v4671
    %5468 = vmatpush1.bf16.msra.mxu0 %v4670
    %5469 = vmatprep.subr.bf16.mxu0 %v4673
    %5470 = vmatpush1.bf16.msra.mxu0 %v4672
    %5471 = vmatprep.subr.bf16.mxu0 %v4675
    %5472 = vmatpush1.bf16.msra.mxu0 %v4674
    %5473 = vmatprep.subr.bf16.mxu0 %v4677
    %5474 = vmatpush1.bf16.msra.mxu0 %v4676
    %5475 = vmatprep.subr.bf16.mxu0 %v4679
    %5476 = vmatpush1.bf16.msra.mxu0 %v4678
    %5477 = vmatprep.subr.bf16.mxu0 %v4681
    %5478 = vmatpush1.bf16.msra.mxu0 %v4680
    %5479 = vmatprep.subr.bf16.mxu0 %v4683
    %5480 = vmatpush1.bf16.msra.mxu0 %v4682
    %5481 = vmatprep.subr.bf16.mxu0 %v4685
    %5482 = vmatpush1.bf16.msra.mxu0 %v4684
    %5483 = vmatprep.subr.bf16.mxu0 %v4687
    %5484 = vmatpush1.bf16.msra.mxu0 %v4686
    %5485 = vmatprep.subr.bf16.mxu0 %v4689
    %5486 = vmatpush1.bf16.msra.mxu0 %v4688
    %5487 = vmatprep.subr.bf16.mxu0 %v4691
    %5488 = vmatpush1.bf16.msra.mxu0 %v4690
    %5489 = vmatprep.subr.bf16.mxu0 %v4693
    %5490 = vmatpush1.bf16.msra.mxu0 %v4692
    %5491 = vmatprep.subr.bf16.mxu0 %v4695
    %5492 = vmatpush1.bf16.msra.mxu0 %v4694
    %5493 = vmatprep.subr.bf16.mxu0 %v4697
    %5494 = vmatpush1.bf16.msra.mxu0 %v4696
    %5495 = vmatprep.mubr.bf16.mxu0 %v3032
    %5496 = vmatmul.mubr.bf16.gmra.mrb[0].mxu0 %v3031
    %v5497 = vpop.f32.mrb[0].mxu0
    %v5498 = vadd.f32 %v5457, %v5497
    %v5499 = vpop.f32.mrb[0].mxu0
    %v5500 = vadd.f32 %v5459, %v5499
    %v5501 = vpop.f32.mrb[0].mxu0
    %v5502 = vpop.f32.mrb[0].mxu0
    %5503 = vdwg.mxu0
    %5504 = vmatprep.subr.bf16.mxu0 %v4699
    %5505 = vmatpush1.bf16.msra.mxu0 %v4698
    %5506 = vmatprep.subr.bf16.mxu0 %v4701
    %5507 = vmatpush1.bf16.msra.mxu0 %v4700
    %5508 = vmatprep.subr.bf16.mxu0 %v4703
    %5509 = vmatpush1.bf16.msra.mxu0 %v4702
    %5510 = vmatprep.subr.bf16.mxu0 %v4705
    %5511 = vmatpush1.bf16.msra.mxu0 %v4704
    %5512 = vmatprep.subr.bf16.mxu0 %v4707
    %5513 = vmatpush1.bf16.msra.mxu0 %v4706
    %5514 = vmatprep.subr.bf16.mxu0 %v4709
    %5515 = vmatpush1.bf16.msra.mxu0 %v4708
    %5516 = vmatprep.subr.bf16.mxu0 %v4711
    %5517 = vmatpush1.bf16.msra.mxu0 %v4710
    %5518 = vmatprep.subr.bf16.mxu0 %v4713
    %5519 = vmatpush1.bf16.msra.mxu0 %v4712
    %5520 = vmatprep.subr.bf16.mxu0 %v4715
    %5521 = vmatpush1.bf16.msra.mxu0 %v4714
    %5522 = vmatprep.subr.bf16.mxu0 %v4717
    %5523 = vmatpush1.bf16.msra.mxu0 %v4716
    %5524 = vmatprep.subr.bf16.mxu0 %v4719
    %5525 = vmatpush1.bf16.msra.mxu0 %v4718
    %5526 = vmatprep.subr.bf16.mxu0 %v4721
    %5527 = vmatpush1.bf16.msra.mxu0 %v4720
    %5528 = vmatprep.subr.bf16.mxu0 %v4723
    %5529 = vmatpush1.bf16.msra.mxu0 %v4722
    %5530 = vmatprep.subr.bf16.mxu0 %v4725
    %5531 = vmatpush1.bf16.msra.mxu0 %v4724
    %5532 = vmatprep.subr.bf16.mxu0 %v4727
    %5533 = vmatpush1.bf16.msra.mxu0 %v4726
    %5534 = vmatprep.subr.bf16.mxu0 %v4729
    %5535 = vmatpush1.bf16.msra.mxu0 %v4728
    %5536 = vmatprep.mubr.bf16.mxu0 %v3034
    %5537 = vmatmul.mubr.bf16.gmra.mrb[0].mxu0 %v3033
    %v5538 = vpop.f32.mrb[0].mxu0
    %v5539 = vadd.f32 %v5498, %v5538
    %v5540 = vpop.f32.mrb[0].mxu0
    %v5541 = vadd.f32 %v5500, %v5540
    %v5542 = vpop.f32.mrb[0].mxu0
    %v5543 = vpop.f32.mrb[0].mxu0
    %5544 = vdwg.mxu0
    %5545 = vmatprep.subr.bf16.mxu0 %v4731
    %5546 = vmatpush1.bf16.msra.mxu0 %v4730
    %5547 = vmatprep.subr.bf16.mxu0 %v4733
    %5548 = vmatpush1.bf16.msra.mxu0 %v4732
    %5549 = vmatprep.subr.bf16.mxu0 %v4735
    %5550 = vmatpush1.bf16.msra.mxu0 %v4734
    %5551 = vmatprep.subr.bf16.mxu0 %v4737
    %5552 = vmatpush1.bf16.msra.mxu0 %v4736
    %5553 = vmatprep.subr.bf16.mxu0 %v4739
    %5554 = vmatpush1.bf16.msra.mxu0 %v4738
    %5555 = vmatprep.subr.bf16.mxu0 %v4741
    %5556 = vmatpush1.bf16.msra.mxu0 %v4740
    %5557 = vmatprep.subr.bf16.mxu0 %v4743
    %5558 = vmatpush1.bf16.msra.mxu0 %v4742
    %5559 = vmatprep.subr.bf16.mxu0 %v4745
    %5560 = vmatpush1.bf16.msra.mxu0 %v4744
    %5561 = vmatprep.subr.bf16.mxu0 %v4747
    %5562 = vmatpush1.bf16.msra.mxu0 %v4746
    %5563 = vmatprep.subr.bf16.mxu0 %v4749
    %5564 = vmatpush1.bf16.msra.mxu0 %v4748
    %5565 = vmatprep.subr.bf16.mxu0 %v4751
    %5566 = vmatpush1.bf16.msra.mxu0 %v4750
    %5567 = vmatprep.subr.bf16.mxu0 %v4753
    %5568 = vmatpush1.bf16.msra.mxu0 %v4752
    %5569 = vmatprep.subr.bf16.mxu0 %v4755
    %5570 = vmatpush1.bf16.msra.mxu0 %v4754
    %5571 = vmatprep.subr.bf16.mxu0 %v4757
    %5572 = vmatpush1.bf16.msra.mxu0 %v4756
    %5573 = vmatprep.subr.bf16.mxu0 %v4759
    %5574 = vmatpush1.bf16.msra.mxu0 %v4758
    %5575 = vmatprep.subr.bf16.mxu0 %v4761
    %5576 = vmatpush1.bf16.msra.mxu0 %v4760
    %5577 = vmatprep.mubr.bf16.mxu0 %v3036
    %5578 = vmatmul.mubr.bf16.gmra.mrb[0].mxu0 %v3035
    %v5579 = vpop.f32.mrb[0].mxu0
    %v5580 = vadd.f32 %v5539, %v5579
    %v5581 = vpop.f32.mrb[0].mxu0
    %v5582 = vadd.f32 %v5541, %v5581
    %v5583 = vpop.f32.mrb[0].mxu0
    %v5584 = vpop.f32.mrb[0].mxu0
    %5585 = vdwg.mxu0
    %5586 = vmatprep.subr.bf16.mxu0 %v4763
    %5587 = vmatpush1.bf16.msra.mxu0 %v4762
    %5588 = vmatprep.subr.bf16.mxu0 %v4765
    %5589 = vmatpush1.bf16.msra.mxu0 %v4764
    %5590 = vmatprep.subr.bf16.mxu0 %v4767
    %5591 = vmatpush1.bf16.msra.mxu0 %v4766
    %5592 = vmatprep.subr.bf16.mxu0 %v4769
    %5593 = vmatpush1.bf16.msra.mxu0 %v4768
    %5594 = vmatprep.subr.bf16.mxu0 %v4771
    %5595 = vmatpush1.bf16.msra.mxu0 %v4770
    %5596 = vmatprep.subr.bf16.mxu0 %v4773
    %5597 = vmatpush1.bf16.msra.mxu0 %v4772
    %5598 = vmatprep.subr.bf16.mxu0 %v4775
    %5599 = vmatpush1.bf16.msra.mxu0 %v4774
    %5600 = vmatprep.subr.bf16.mxu0 %v4777
    %5601 = vmatpush1.bf16.msra.mxu0 %v4776
    %5602 = vmatprep.subr.bf16.mxu0 %v4779
    %5603 = vmatpush1.bf16.msra.mxu0 %v4778
    %5604 = vmatprep.subr.bf16.mxu0 %v4781
    %5605 = vmatpush1.bf16.msra.mxu0 %v4780
    %5606 = vmatprep.subr.bf16.mxu0 %v4783
    %5607 = vmatpush1.bf16.msra.mxu0 %v4782
    %5608 = vmatprep.subr.bf16.mxu0 %v4785
    %5609 = vmatpush1.bf16.msra.mxu0 %v4784
    %5610 = vmatprep.subr.bf16.mxu0 %v4787
    %5611 = vmatpush1.bf16.msra.mxu0 %v4786
    %5612 = vmatprep.subr.bf16.mxu0 %v4789
    %5613 = vmatpush1.bf16.msra.mxu0 %v4788
    %5614 = vmatprep.subr.bf16.mxu0 %v4791
    %5615 = vmatpush1.bf16.msra.mxu0 %v4790
    %5616 = vmatprep.subr.bf16.mxu0 %v4793
    %5617 = vmatpush1.bf16.msra.mxu0 %v4792
    %5618 = vmatprep.mubr.bf16.mxu0 %v3038
    %5619 = vmatmul.mubr.bf16.gmra.mrb[0].mxu0 %v3037
    %v5620 = vpop.f32.mrb[0].mxu0
    %v5621 = vadd.f32 %v5580, %v5620
    %v5622 = vpop.f32.mrb[0].mxu0
    %v5623 = vadd.f32 %v5582, %v5622
    %v5624 = vpop.f32.mrb[0].mxu0
    %v5625 = vpop.f32.mrb[0].mxu0
    %5626 = vdwg.mxu0
    %5627 = vmatprep.subr.bf16.mxu0 %v4795
    %5628 = vmatpush1.bf16.msra.mxu0 %v4794
    %5629 = vmatprep.subr.bf16.mxu0 %v4797
    %5630 = vmatpush1.bf16.msra.mxu0 %v4796
    %5631 = vmatprep.subr.bf16.mxu0 %v4799
    %5632 = vmatpush1.bf16.msra.mxu0 %v4798
    %5633 = vmatprep.subr.bf16.mxu0 %v4801
    %5634 = vmatpush1.bf16.msra.mxu0 %v4800
    %5635 = vmatprep.subr.bf16.mxu0 %v4803
    %5636 = vmatpush1.bf16.msra.mxu0 %v4802
    %5637 = vmatprep.subr.bf16.mxu0 %v4805
    %5638 = vmatpush1.bf16.msra.mxu0 %v4804
    %5639 = vmatprep.subr.bf16.mxu0 %v4807
    %5640 = vmatpush1.bf16.msra.mxu0 %v4806
    %5641 = vmatprep.subr.bf16.mxu0 %v4809
    %5642 = vmatpush1.bf16.msra.mxu0 %v4808
    %5643 = vmatprep.subr.bf16.mxu0 %v4811
    %5644 = vmatpush1.bf16.msra.mxu0 %v4810
    %5645 = vmatprep.subr.bf16.mxu0 %v4813
    %5646 = vmatpush1.bf16.msra.mxu0 %v4812
    %5647 = vmatprep.subr.bf16.mxu0 %v4815
    %5648 = vmatpush1.bf16.msra.mxu0 %v4814
    %5649 = vmatprep.subr.bf16.mxu0 %v4817
    %5650 = vmatpush1.bf16.msra.mxu0 %v4816
    %5651 = vmatprep.subr.bf16.mxu0 %v4819
    %5652 = vmatpush1.bf16.msra.mxu0 %v4818
    %5653 = vmatprep.subr.bf16.mxu0 %v4821
    %5654 = vmatpush1.bf16.msra.mxu0 %v4820
    %5655 = vmatprep.subr.bf16.mxu0 %v4823
    %5656 = vmatpush1.bf16.msra.mxu0 %v4822
    %5657 = vmatprep.subr.bf16.mxu0 %v4825
    %5658 = vmatpush1.bf16.msra.mxu0 %v4824
    %5659 = vmatprep.mubr.bf16.mxu0 %v3040
    %5660 = vmatmul.mubr.bf16.gmra.mrb[0].mxu0 %v3039
    %v5661 = vpop.f32.mrb[0].mxu0
    %v5662 = vadd.f32 %v5621, %v5661
    %v5663 = vpop.f32.mrb[0].mxu0
    %v5664 = vadd.f32 %v5623, %v5663
    %v5665 = vpop.f32.mrb[0].mxu0
    %v5666 = vpop.f32.mrb[0].mxu0
    %5667 = vdwg.mxu0
    %5668 = vmatprep.subr.bf16.mxu0 %v4827
    %5669 = vmatpush1.bf16.msra.mxu0 %v4826
    %5670 = vmatprep.subr.bf16.mxu0 %v4829
    %5671 = vmatpush1.bf16.msra.mxu0 %v4828
    %5672 = vmatprep.subr.bf16.mxu0 %v4831
    %5673 = vmatpush1.bf16.msra.mxu0 %v4830
    %5674 = vmatprep.subr.bf16.mxu0 %v4833
    %5675 = vmatpush1.bf16.msra.mxu0 %v4832
    %5676 = vmatprep.subr.bf16.mxu0 %v4835
    %5677 = vmatpush1.bf16.msra.mxu0 %v4834
    %5678 = vmatprep.subr.bf16.mxu0 %v4837
    %5679 = vmatpush1.bf16.msra.mxu0 %v4836
    %5680 = vmatprep.subr.bf16.mxu0 %v4839
    %5681 = vmatpush1.bf16.msra.mxu0 %v4838
    %5682 = vmatprep.subr.bf16.mxu0 %v4841
    %5683 = vmatpush1.bf16.msra.mxu0 %v4840
    %5684 = vmatprep.subr.bf16.mxu0 %v4843
    %5685 = vmatpush1.bf16.msra.mxu0 %v4842
    %5686 = vmatprep.subr.bf16.mxu0 %v4845
    %5687 = vmatpush1.bf16.msra.mxu0 %v4844
    %5688 = vmatprep.subr.bf16.mxu0 %v4847
    %5689 = vmatpush1.bf16.msra.mxu0 %v4846
    %5690 = vmatprep.subr.bf16.mxu0 %v4849
    %5691 = vmatpush1.bf16.msra.mxu0 %v4848
    %5692 = vmatprep.subr.bf16.mxu0 %v4851
    %5693 = vmatpush1.bf16.msra.mxu0 %v4850
    %5694 = vmatprep.subr.bf16.mxu0 %v4853
    %5695 = vmatpush1.bf16.msra.mxu0 %v4852
    %5696 = vmatprep.subr.bf16.mxu0 %v4855
    %5697 = vmatpush1.bf16.msra.mxu0 %v4854
    %5698 = vmatprep.subr.bf16.mxu0 %v4857
    %5699 = vmatpush1.bf16.msra.mxu0 %v4856
    %5700 = vmatprep.mubr.bf16.mxu0 %v3042
    %5701 = vmatmul.mubr.bf16.gmra.mrb[0].mxu0 %v3041
    %v5702 = vpop.f32.mrb[0].mxu0
    %v5703 = vadd.f32 %v5662, %v5702
    %v5704 = vpop.f32.mrb[0].mxu0
    %v5705 = vadd.f32 %v5664, %v5704
    %v5706 = vpop.f32.mrb[0].mxu0
    %v5707 = vpop.f32.mrb[0].mxu0
    %5708 = vdwg.mxu0
    %5709 = vmatprep.subr.bf16.mxu0 %v4859
    %5710 = vmatpush1.bf16.msra.mxu0 %v4858
    %5711 = vmatprep.subr.bf16.mxu0 %v4861
    %5712 = vmatpush1.bf16.msra.mxu0 %v4860
    %5713 = vmatprep.subr.bf16.mxu0 %v4863
    %5714 = vmatpush1.bf16.msra.mxu0 %v4862
    %5715 = vmatprep.subr.bf16.mxu0 %v4865
    %5716 = vmatpush1.bf16.msra.mxu0 %v4864
    %5717 = vmatprep.subr.bf16.mxu0 %v4867
    %5718 = vmatpush1.bf16.msra.mxu0 %v4866
    %5719 = vmatprep.subr.bf16.mxu0 %v4869
    %5720 = vmatpush1.bf16.msra.mxu0 %v4868
    %5721 = vmatprep.subr.bf16.mxu0 %v4871
    %5722 = vmatpush1.bf16.msra.mxu0 %v4870
    %5723 = vmatprep.subr.bf16.mxu0 %v4873
    %5724 = vmatpush1.bf16.msra.mxu0 %v4872
    %5725 = vmatprep.subr.bf16.mxu0 %v4875
    %5726 = vmatpush1.bf16.msra.mxu0 %v4874
    %5727 = vmatprep.subr.bf16.mxu0 %v4877
    %5728 = vmatpush1.bf16.msra.mxu0 %v4876
    %5729 = vmatprep.subr.bf16.mxu0 %v4879
    %5730 = vmatpush1.bf16.msra.mxu0 %v4878
    %5731 = vmatprep.subr.bf16.mxu0 %v4881
    %5732 = vmatpush1.bf16.msra.mxu0 %v4880
    %5733 = vmatprep.subr.bf16.mxu0 %v4883
    %5734 = vmatpush1.bf16.msra.mxu0 %v4882
    %5735 = vmatprep.subr.bf16.mxu0 %v4885
    %5736 = vmatpush1.bf16.msra.mxu0 %v4884
    %5737 = vmatprep.subr.bf16.mxu0 %v4887
    %5738 = vmatpush1.bf16.msra.mxu0 %v4886
    %5739 = vmatprep.subr.bf16.mxu0 %v4889
    %5740 = vmatpush1.bf16.msra.mxu0 %v4888
    %5741 = vmatprep.mubr.bf16.mxu0 %v3044
    %5742 = vmatmul.mubr.bf16.gmra.mrb[0].mxu0 %v3043
    %v5743 = vpop.f32.mrb[0].mxu0
    %v5744 = vadd.f32 %v5703, %v5743
    %v5745 = vpop.f32.mrb[0].mxu0
    %v5746 = vadd.f32 %v5705, %v5745
    %v5747 = vpop.f32.mrb[0].mxu0
    %v5748 = vpop.f32.mrb[0].mxu0
    %5749 = vdwg.mxu0
    %5750 = vmatprep.subr.bf16.mxu0 %v4891
    %5751 = vmatpush1.bf16.msra.mxu0 %v4890
    %5752 = vmatprep.subr.bf16.mxu0 %v4893
    %5753 = vmatpush1.bf16.msra.mxu0 %v4892
    %5754 = vmatprep.subr.bf16.mxu0 %v4895
    %5755 = vmatpush1.bf16.msra.mxu0 %v4894
    %5756 = vmatprep.subr.bf16.mxu0 %v4897
    %5757 = vmatpush1.bf16.msra.mxu0 %v4896
    %5758 = vmatprep.subr.bf16.mxu0 %v4899
    %5759 = vmatpush1.bf16.msra.mxu0 %v4898
    %5760 = vmatprep.subr.bf16.mxu0 %v4901
    %5761 = vmatpush1.bf16.msra.mxu0 %v4900
    %5762 = vmatprep.subr.bf16.mxu0 %v4903
    %5763 = vmatpush1.bf16.msra.mxu0 %v4902
    %5764 = vmatprep.subr.bf16.mxu0 %v4905
    %5765 = vmatpush1.bf16.msra.mxu0 %v4904
    %5766 = vmatprep.subr.bf16.mxu0 %v4907
    %5767 = vmatpush1.bf16.msra.mxu0 %v4906
    %5768 = vmatprep.subr.bf16.mxu0 %v4909
    %5769 = vmatpush1.bf16.msra.mxu0 %v4908
    %5770 = vmatprep.subr.bf16.mxu0 %v4911
    %5771 = vmatpush1.bf16.msra.mxu0 %v4910
    %5772 = vmatprep.subr.bf16.mxu0 %v4913
    %5773 = vmatpush1.bf16.msra.mxu0 %v4912
    %5774 = vmatprep.subr.bf16.mxu0 %v4915
    %5775 = vmatpush1.bf16.msra.mxu0 %v4914
    %5776 = vmatprep.subr.bf16.mxu0 %v4917
    %5777 = vmatpush1.bf16.msra.mxu0 %v4916
    %5778 = vmatprep.subr.bf16.mxu0 %v4919
    %5779 = vmatpush1.bf16.msra.mxu0 %v4918
    %5780 = vmatprep.subr.bf16.mxu0 %v4921
    %5781 = vmatpush1.bf16.msra.mxu0 %v4920
    %5782 = vmatprep.mubr.bf16.mxu0 %v3046
    %5783 = vmatmul.mubr.bf16.gmra.mrb[0].mxu0 %v3045
    %v5784 = vpop.f32.mrb[0].mxu0
    %v5785 = vadd.f32 %v5744, %v5784
    %v5786 = vpop.f32.mrb[0].mxu0
    %v5787 = vadd.f32 %v5746, %v5786
    %v5788 = vpop.f32.mrb[0].mxu0
    %v5789 = vpop.f32.mrb[0].mxu0
    %5790 = vdwg.mxu0
    %5791 = vmatprep.subr.bf16.mxu0 %v4923
    %5792 = vmatpush1.bf16.msra.mxu0 %v4922
    %5793 = vmatprep.subr.bf16.mxu0 %v4925
    %5794 = vmatpush1.bf16.msra.mxu0 %v4924
    %5795 = vmatprep.subr.bf16.mxu0 %v4927
    %5796 = vmatpush1.bf16.msra.mxu0 %v4926
    %5797 = vmatprep.subr.bf16.mxu0 %v4929
    %5798 = vmatpush1.bf16.msra.mxu0 %v4928
    %5799 = vmatprep.subr.bf16.mxu0 %v4931
    %5800 = vmatpush1.bf16.msra.mxu0 %v4930
    %5801 = vmatprep.subr.bf16.mxu0 %v4933
    %5802 = vmatpush1.bf16.msra.mxu0 %v4932
    %5803 = vmatprep.subr.bf16.mxu0 %v4935
    %5804 = vmatpush1.bf16.msra.mxu0 %v4934
    %5805 = vmatprep.subr.bf16.mxu0 %v4937
    %5806 = vmatpush1.bf16.msra.mxu0 %v4936
    %5807 = vmatprep.subr.bf16.mxu0 %v4939
    %5808 = vmatpush1.bf16.msra.mxu0 %v4938
    %5809 = vmatprep.subr.bf16.mxu0 %v4941
    %5810 = vmatpush1.bf16.msra.mxu0 %v4940
    %5811 = vmatprep.subr.bf16.mxu0 %v4943
    %5812 = vmatpush1.bf16.msra.mxu0 %v4942
    %5813 = vmatprep.subr.bf16.mxu0 %v4945
    %5814 = vmatpush1.bf16.msra.mxu0 %v4944
    %5815 = vmatprep.subr.bf16.mxu0 %v4947
    %5816 = vmatpush1.bf16.msra.mxu0 %v4946
    %5817 = vmatprep.subr.bf16.mxu0 %v4949
    %5818 = vmatpush1.bf16.msra.mxu0 %v4948
    %5819 = vmatprep.subr.bf16.mxu0 %v4951
    %5820 = vmatpush1.bf16.msra.mxu0 %v4950
    %5821 = vmatprep.subr.bf16.mxu0 %v4953
    %5822 = vmatpush1.bf16.msra.mxu0 %v4952
    %5823 = vmatprep.mubr.bf16.mxu0 %v3048
    %5824 = vmatmul.mubr.bf16.gmra.mrb[0].mxu0 %v3047
    %v5825 = vpop.f32.mrb[0].mxu0
    %v5826 = vadd.f32 %v5785, %v5825
    %v5827 = vpop.f32.mrb[0].mxu0
    %v5828 = vadd.f32 %v5787, %v5827
    %v5829 = vpop.f32.mrb[0].mxu0
    %v5830 = vpop.f32.mrb[0].mxu0
    %5831 = vdwg.mxu0
    %5832 = vmatprep.subr.bf16.mxu0 %v4955
    %5833 = vmatpush1.bf16.msra.mxu0 %v4954
    %5834 = vmatprep.subr.bf16.mxu0 %v4957
    %5835 = vmatpush1.bf16.msra.mxu0 %v4956
    %5836 = vmatprep.subr.bf16.mxu0 %v4959
    %5837 = vmatpush1.bf16.msra.mxu0 %v4958
    %5838 = vmatprep.subr.bf16.mxu0 %v4961
    %5839 = vmatpush1.bf16.msra.mxu0 %v4960
    %5840 = vmatprep.subr.bf16.mxu0 %v4963
    %5841 = vmatpush1.bf16.msra.mxu0 %v4962
    %5842 = vmatprep.subr.bf16.mxu0 %v4965
    %5843 = vmatpush1.bf16.msra.mxu0 %v4964
    %5844 = vmatprep.subr.bf16.mxu0 %v4967
    %5845 = vmatpush1.bf16.msra.mxu0 %v4966
    %5846 = vmatprep.subr.bf16.mxu0 %v4969
    %5847 = vmatpush1.bf16.msra.mxu0 %v4968
    %5848 = vmatprep.subr.bf16.mxu0 %v4971
    %5849 = vmatpush1.bf16.msra.mxu0 %v4970
    %5850 = vmatprep.subr.bf16.mxu0 %v4973
    %5851 = vmatpush1.bf16.msra.mxu0 %v4972
    %5852 = vmatprep.subr.bf16.mxu0 %v4975
    %5853 = vmatpush1.bf16.msra.mxu0 %v4974
    %5854 = vmatprep.subr.bf16.mxu0 %v4977
    %5855 = vmatpush1.bf16.msra.mxu0 %v4976
    %5856 = vmatprep.subr.bf16.mxu0 %v4979
    %5857 = vmatpush1.bf16.msra.mxu0 %v4978
    %5858 = vmatprep.subr.bf16.mxu0 %v4981
    %5859 = vmatpush1.bf16.msra.mxu0 %v4980
    %5860 = vmatprep.subr.bf16.mxu0 %v4983
    %5861 = vmatpush1.bf16.msra.mxu0 %v4982
    %5862 = vmatprep.subr.bf16.mxu0 %v4985
    %5863 = vmatpush1.bf16.msra.mxu0 %v4984
    %5864 = vmatprep.mubr.bf16.mxu0 %v3050
    %5865 = vmatmul.mubr.bf16.gmra.mrb[0].mxu0 %v3049
    %v5866 = vpop.f32.mrb[0].mxu0
    %v5867 = vadd.f32 %v5826, %v5866
    %v5868 = vpop.f32.mrb[0].mxu0
    %v5869 = vadd.f32 %v5828, %v5868
    %v5870 = vpop.f32.mrb[0].mxu0
    %v5871 = vpop.f32.mrb[0].mxu0
    %5872 = vdwg.mxu0
    %5873 = vmatprep.subr.bf16.mxu0 %v4987
    %5874 = vmatpush1.bf16.msra.mxu0 %v4986
    %5875 = vmatprep.subr.bf16.mxu0 %v4989
    %5876 = vmatpush1.bf16.msra.mxu0 %v4988
    %5877 = vmatprep.subr.bf16.mxu0 %v4991
    %5878 = vmatpush1.bf16.msra.mxu0 %v4990
    %5879 = vmatprep.subr.bf16.mxu0 %v4993
    %5880 = vmatpush1.bf16.msra.mxu0 %v4992
    %5881 = vmatprep.subr.bf16.mxu0 %v4995
    %5882 = vmatpush1.bf16.msra.mxu0 %v4994
    %5883 = vmatprep.subr.bf16.mxu0 %v4997
    %5884 = vmatpush1.bf16.msra.mxu0 %v4996
    %5885 = vmatprep.subr.bf16.mxu0 %v4999
    %5886 = vmatpush1.bf16.msra.mxu0 %v4998
    %5887 = vmatprep.subr.bf16.mxu0 %v5001
    %5888 = vmatpush1.bf16.msra.mxu0 %v5000
    %5889 = vmatprep.subr.bf16.mxu0 %v5003
    %5890 = vmatpush1.bf16.msra.mxu0 %v5002
    %5891 = vmatprep.subr.bf16.mxu0 %v5005
    %5892 = vmatpush1.bf16.msra.mxu0 %v5004
    %5893 = vmatprep.subr.bf16.mxu0 %v5007
    %5894 = vmatpush1.bf16.msra.mxu0 %v5006
    %5895 = vmatprep.subr.bf16.mxu0 %v5009
    %5896 = vmatpush1.bf16.msra.mxu0 %v5008
    %5897 = vmatprep.subr.bf16.mxu0 %v5011
    %5898 = vmatpush1.bf16.msra.mxu0 %v5010
    %5899 = vmatprep.subr.bf16.mxu0 %v5013
    %5900 = vmatpush1.bf16.msra.mxu0 %v5012
    %5901 = vmatprep.subr.bf16.mxu0 %v5015
    %5902 = vmatpush1.bf16.msra.mxu0 %v5014
    %5903 = vmatprep.subr.bf16.mxu0 %v5017
    %5904 = vmatpush1.bf16.msra.mxu0 %v5016
    %5905 = vmatprep.mubr.bf16.mxu0 %v3052
    %5906 = vmatmul.mubr.bf16.gmra.mrb[0].mxu0 %v3051
    %v5907 = vpop.f32.mrb[0].mxu0
    %v5908 = vadd.f32 %v5867, %v5907
    %v5909 = vpop.f32.mrb[0].mxu0
    %v5910 = vadd.f32 %v5869, %v5909
    %v5911 = vpop.f32.mrb[0].mxu0
    %v5912 = vpop.f32.mrb[0].mxu0
    %5913 = vdwg.mxu0
    %5914 = vmatprep.subr.bf16.mxu0 %v5019
    %5915 = vmatpush1.bf16.msra.mxu0 %v5018
    %5916 = vmatprep.subr.bf16.mxu0 %v5021
    %5917 = vmatpush1.bf16.msra.mxu0 %v5020
    %5918 = vmatprep.subr.bf16.mxu0 %v5023
    %5919 = vmatpush1.bf16.msra.mxu0 %v5022
    %5920 = vmatprep.subr.bf16.mxu0 %v5025
    %5921 = vmatpush1.bf16.msra.mxu0 %v5024
    %5922 = vmatprep.subr.bf16.mxu0 0
    %5923 = vmatpush1.bf16.msra.mxu0 0
    %5924 = vmatprep.subr.bf16.mxu0 0
    %5925 = vmatpush1.bf16.msra.mxu0 0
    %5926 = vmatprep.subr.bf16.mxu0 0
    %5927 = vmatpush1.bf16.msra.mxu0 0
    %5928 = vmatprep.subr.bf16.mxu0 0
    %5929 = vmatpush1.bf16.msra.mxu0 0
    %5930 = vmatprep.subr.bf16.mxu0 0
    %5931 = vmatpush1.bf16.msra.mxu0 0
    %5932 = vmatprep.subr.bf16.mxu0 0
    %5933 = vmatpush1.bf16.msra.mxu0 0
    %5934 = vmatprep.subr.bf16.mxu0 0
    %5935 = vmatpush1.bf16.msra.mxu0 0
    %5936 = vmatprep.subr.bf16.mxu0 0
    %5937 = vmatpush1.bf16.msra.mxu0 0
    %5938 = vmatprep.subr.bf16.mxu0 0
    %5939 = vmatpush1.bf16.msra.mxu0 0
    %5940 = vmatprep.subr.bf16.mxu0 0
    %5941 = vmatpush1.bf16.msra.mxu0 0
    %5942 = vmatprep.subr.bf16.mxu0 0
    %5943 = vmatpush1.bf16.msra.mxu0 0
    %5944 = vmatprep.subr.bf16.mxu0 0
    %5945 = vmatpush1.bf16.msra.mxu0 0
    %5946 = vmatprep.mubr.bf16.mxu0 0
    %5947 = vmatmul.mubr.bf16.gmra.mrb[0].mxu0 %v5420
    %v5948 = vpop.f32.mrb[0].mxu0
    %v5949 = vadd.f32 %v5908, %v5948
    %v5950 = vpop.f32.mrb[0].mxu0
    %v5951 = vadd.f32 %v5910, %v5950
    %v5952 = vpop.f32.mrb[0].mxu0
    %v5953 = vpop.f32.mrb[0].mxu0
    %5954 = vdwg.mxu0
    %v5955 = vmax.f32 %v5949, 0.0
    %v5956 = vmax.f32 %v5951, 0.0
    %v5957 = vpack.c.bf16 %v5955, %v5955
    %v5958 = vpack.c.bf16 %v5956, %v5956
    %v5959 = vld [vmem:[%s5] sm:$0xff]
    %v5960 = vld [vmem:[%s5 + $0x8] sm:$0xff]
    %v5961 = vld [vmem:[%s5 + $0x10] sm:$0xff]
    %v5962 = vld [vmem:[%s5 + $0x18] sm:$0xff]
    %v5963 = vld [vmem:[%s5 + $0x20] sm:$0xff]
    %v5964 = vld [vmem:[%s5 + $0x28] sm:$0xff]
    %v5965 = vld [vmem:[%s5 + $0x30] sm:$0xff]
    %v5966 = vld [vmem:[%s5 + $0x38] sm:$0xff]
    %v5967 = vld [vmem:[%s5 + $0x40] sm:$0xff]
    %v5968 = vld [vmem:[%s5 + $0x48] sm:$0xff]
    %v5969 = vld [vmem:[%s5 + $0x50] sm:$0xff]
    %v5970 = vld [vmem:[%s5 + $0x58] sm:$0xff]
    %v5971 = vld [vmem:[%s5 + $0x60] sm:$0xff]
    %v5972 = vld [vmem:[%s5 + $0x68] sm:$0xff]
    %v5973 = vld [vmem:[%s5 + $0x70] sm:$0xff]
    %v5974 = vld [vmem:[%s5 + $0x78] sm:$0xff]
    %v5975 = vld [vmem:[%s5 + $0x80] sm:$0xff]
    %v5976 = vld [vmem:[%s5 + $0x88] sm:$0xff]
    %v5977 = vld [vmem:[%s5 + $0x90] sm:$0xff]
    %v5978 = vld [vmem:[%s5 + $0x98] sm:$0xff]
    %v5979 = vld [vmem:[%s5 + $0xa0] sm:$0xff]
    %v5980 = vld [vmem:[%s5 + $0xa8] sm:$0xff]
    %v5981 = vld [vmem:[%s5 + $0xb0] sm:$0xff]
    %v5982 = vld [vmem:[%s5 + $0xb8] sm:$0xff]
    %v5983 = vld [vmem:[%s5 + $0xc0] sm:$0xff]
    %v5984 = vld [vmem:[%s5 + $0xc8] sm:$0xff]
    %v5985 = vld [vmem:[%s5 + $0xd0] sm:$0xff]
    %v5986 = vld [vmem:[%s5 + $0xd8] sm:$0xff]
    %v5987 = vld [vmem:[%s5 + $0xe0] sm:$0xff]
    %v5988 = vld [vmem:[%s5 + $0xe8] sm:$0xff]
    %v5989 = vld [vmem:[%s5 + $0xf0] sm:$0xff]
    %v5990 = vld [vmem:[%s5 + $0xf8] sm:$0xff]
    %v5991 = vld [vmem:[%s6] sm:$0x3]
    %v5993 = vlaneseq
    %v5994 = vshrl.u32 %v5993, 7
    %v5995 = vsub.s32 0, %v5994
    %v5996 = vrot.slane %v5991, %v5995
    %v5997 = vlaneseq
    %v5998 = vshrl.u32 %v5997, 7
    %v5999 = vsub.s32 1, %v5998
    %v6000 = vrot.slane %v5991, %v5999
    %v6035 = vunpack.c.l.b16 %v5959
    %v6036 = vunpack.c.h.b16 %v5959
    %v6037 = vunpack.c.l.b16 %v5960
    %v6038 = vunpack.c.h.b16 %v5960
    %v6039 = vunpack.c.l.b16 %v5961
    %v6040 = vunpack.c.h.b16 %v5961
    %v6041 = vunpack.c.l.b16 %v5962
    %v6042 = vunpack.c.h.b16 %v5962
    %v6043 = vunpack.c.l.b16 %v5963
    %v6044 = vunpack.c.h.b16 %v5963
    %v6045 = vunpack.c.l.b16 %v5964
    %v6046 = vunpack.c.h.b16 %v5964
    %v6047 = vunpack.c.l.b16 %v5965
    %v6048 = vunpack.c.h.b16 %v5965
    %v6049 = vunpack.c.l.b16 %v5966
    %v6050 = vunpack.c.h.b16 %v5966
    %v6051 = vunpack.c.l.b16 %v5967
    %v6052 = vunpack.c.h.b16 %v5967
    %v6053 = vunpack.c.l.b16 %v5968
    %v6054 = vunpack.c.h.b16 %v5968
    %v6055 = vunpack.c.l.b16 %v5969
    %v6056 = vunpack.c.h.b16 %v5969
    %v6057 = vunpack.c.l.b16 %v5970
    %v6058 = vunpack.c.h.b16 %v5970
    %v6059 = vunpack.c.l.b16 %v5971
    %v6060 = vunpack.c.h.b16 %v5971
    %v6061 = vunpack.c.l.b16 %v5972
    %v6062 = vunpack.c.h.b16 %v5972
    %v6063 = vunpack.c.l.b16 %v5973
    %v6064 = vunpack.c.h.b16 %v5973
    %v6065 = vunpack.c.l.b16 %v5974
    %v6066 = vunpack.c.h.b16 %v5974
    %v6067 = vunpack.c.l.b16 %v5975
    %v6068 = vunpack.c.h.b16 %v5975
    %v6069 = vunpack.c.l.b16 %v5976
    %v6070 = vunpack.c.h.b16 %v5976
    %v6071 = vunpack.c.l.b16 %v5977
    %v6072 = vunpack.c.h.b16 %v5977
    %v6073 = vunpack.c.l.b16 %v5978
    %v6074 = vunpack.c.h.b16 %v5978
    %v6075 = vunpack.c.l.b16 %v5979
    %v6076 = vunpack.c.h.b16 %v5979
    %v6077 = vunpack.c.l.b16 %v5980
    %v6078 = vunpack.c.h.b16 %v5980
    %v6079 = vunpack.c.l.b16 %v5981
    %v6080 = vunpack.c.h.b16 %v5981
    %v6081 = vunpack.c.l.b16 %v5982
    %v6082 = vunpack.c.h.b16 %v5982
    %v6083 = vunpack.c.l.b16 %v5983
    %v6084 = vunpack.c.h.b16 %v5983
    %v6085 = vunpack.c.l.b16 %v5984
    %v6086 = vunpack.c.h.b16 %v5984
    %v6087 = vunpack.c.l.b16 %v5985
    %v6088 = vunpack.c.h.b16 %v5985
    %v6089 = vunpack.c.l.b16 %v5986
    %v6090 = vunpack.c.h.b16 %v5986
    %v6091 = vunpack.c.l.b16 %v5987
    %v6092 = vunpack.c.h.b16 %v5987
    %v6093 = vunpack.c.l.b16 %v5988
    %v6094 = vunpack.c.h.b16 %v5988
    %v6095 = vunpack.c.l.b16 %v5989
    %v6096 = vunpack.c.h.b16 %v5989
    %v6097 = vunpack.c.l.b16 %v5990
    %v6098 = vunpack.c.h.b16 %v5990
    %v6099 = vpack.c.b16 %v6037, %v6035
    %v6100 = vpack.c.b16 %v6038, %v6036
    %v6101 = vpack.c.b16 %v6041, %v6039
    %v6102 = vpack.c.b16 %v6042, %v6040
    %v6103 = vpack.c.b16 %v6045, %v6043
    %v6104 = vpack.c.b16 %v6046, %v6044
    %v6105 = vpack.c.b16 %v6049, %v6047
    %v6106 = vpack.c.b16 %v6050, %v6048
    %v6107 = vpack.c.b16 %v6053, %v6051
    %v6108 = vpack.c.b16 %v6054, %v6052
    %v6109 = vpack.c.b16 %v6057, %v6055
    %v6110 = vpack.c.b16 %v6058, %v6056
    %v6111 = vpack.c.b16 %v6061, %v6059
    %v6112 = vpack.c.b16 %v6062, %v6060
    %v6113 = vpack.c.b16 %v6065, %v6063
    %v6114 = vpack.c.b16 %v6066, %v6064
    %v6115 = vpack.c.b16 %v6069, %v6067
    %v6116 = vpack.c.b16 %v6070, %v6068
    %v6117 = vpack.c.b16 %v6073, %v6071
    %v6118 = vpack.c.b16 %v6074, %v6072
    %v6119 = vpack.c.b16 %v6077, %v6075
    %v6120 = vpack.c.b16 %v6078, %v6076
    %v6121 = vpack.c.b16 %v6081, %v6079
    %v6122 = vpack.c.b16 %v6082, %v6080
    %v6123 = vpack.c.b16 %v6085, %v6083
    %v6124 = vpack.c.b16 %v6086, %v6084
    %v6125 = vpack.c.b16 %v6089, %v6087
    %v6126 = vpack.c.b16 %v6090, %v6088
    %v6127 = vpack.c.b16 %v6093, %v6091
    %v6128 = vpack.c.b16 %v6094, %v6092
    %v6129 = vpack.c.b16 %v6097, %v6095
    %v6130 = vpack.c.b16 %v6098, %v6096
    %6163 = vmatprep.subr.bf16.mxu0 %v6100
    %6164 = vmatpush1.bf16.msra.mxu0 %v6099
    %6165 = vmatprep.subr.bf16.mxu0 %v6102
    %6166 = vmatpush1.bf16.msra.mxu0 %v6101
    %6167 = vmatprep.subr.bf16.mxu0 %v6104
    %6168 = vmatpush1.bf16.msra.mxu0 %v6103
    %6169 = vmatprep.subr.bf16.mxu0 %v6106
    %6170 = vmatpush1.bf16.msra.mxu0 %v6105
    %6171 = vmatprep.subr.bf16.mxu0 %v6108
    %6172 = vmatpush1.bf16.msra.mxu0 %v6107
    %6173 = vmatprep.subr.bf16.mxu0 %v6110
    %6174 = vmatpush1.bf16.msra.mxu0 %v6109
    %6175 = vmatprep.subr.bf16.mxu0 %v6112
    %6176 = vmatpush1.bf16.msra.mxu0 %v6111
    %6177 = vmatprep.subr.bf16.mxu0 %v6114
    %6178 = vmatpush1.bf16.msra.mxu0 %v6113
    %6179 = vmatprep.subr.bf16.mxu0 %v6116
    %6180 = vmatpush1.bf16.msra.mxu0 %v6115
    %6181 = vmatprep.subr.bf16.mxu0 %v6118
    %6182 = vmatpush1.bf16.msra.mxu0 %v6117
    %6183 = vmatprep.subr.bf16.mxu0 %v6120
    %6184 = vmatpush1.bf16.msra.mxu0 %v6119
    %6185 = vmatprep.subr.bf16.mxu0 %v6122
    %6186 = vmatpush1.bf16.msra.mxu0 %v6121
    %6187 = vmatprep.subr.bf16.mxu0 %v6124
    %6188 = vmatpush1.bf16.msra.mxu0 %v6123
    %6189 = vmatprep.subr.bf16.mxu0 %v6126
    %6190 = vmatpush1.bf16.msra.mxu0 %v6125
    %6191 = vmatprep.subr.bf16.mxu0 %v6128
    %6192 = vmatpush1.bf16.msra.mxu0 %v6127
    %6193 = vmatprep.subr.bf16.mxu0 %v6130
    %6194 = vmatpush1.bf16.msra.mxu0 %v6129
    %6195 = vmatprep.mubr.bf16.mxu0 %v5958
    %6196 = vmatmul.mubr.bf16.gmra.mrb[0].mxu0 %v5957
    %v6197 = vpop.f32.mrb[0].mxu0
    %v6198 = vadd.f32 %v5996, %v6197
    %v6199 = vpop.f32.mrb[0].mxu0
    %v6200 = vadd.f32 %v6000, %v6199
    %v6201 = vpop.f32.mrb[0].mxu0
    %v6202 = vpop.f32.mrb[0].mxu0
    %6203 = vdwg.mxu0
    %v6204 = vmul.f32 %v6200, 0.5
    %v6205 = vmul.f32 %v6204, 1.442695
    %v6206 = vpow.pop %v6205
    %v6207 = vld [vmem:[%s12] sm:$0xf]
    %v6208 = vmul.f32 %v6206, %v6207
    %v6209 = vadd.f32 %v6198, %v6208
    %6210 = vst [vmem:[#allocation2] sm:$0xf] %v6209
    %v6211 = vpack.c.bf16 %v6209, %v6209
    %v6212 = vld [vmem:[%s7] sm:$0xff]
    %v6213 = vld [vmem:[%s7 + $0x8] sm:$0xff]
    %v6214 = vld [vmem:[%s7 + $0x10] sm:$0xff]
    %v6215 = vld [vmem:[%s7 + $0x18] sm:$0xff]
    %v6216 = vld [vmem:[%s7 + $0x20] sm:$0xff]
    %v6217 = vld [vmem:[%s7 + $0x28] sm:$0xff]
    %v6218 = vld [vmem:[%s7 + $0x30] sm:$0xff]
    %v6219 = vld [vmem:[%s7 + $0x38] sm:$0xff]
    %v6220 = vld [vmem:[%s7 + $0x40] sm:$0xff]
    %v6221 = vld [vmem:[%s7 + $0x48] sm:$0xff]
    %v6222 = vld [vmem:[%s7 + $0x50] sm:$0xff]
    %v6223 = vld [vmem:[%s7 + $0x58] sm:$0xff]
    %v6224 = vld [vmem:[%s7 + $0x60] sm:$0xff]
    %v6225 = vld [vmem:[%s7 + $0x68] sm:$0xff]
    %v6226 = vld [vmem:[%s7 + $0x70] sm:$0xff]
    %v6227 = vld [vmem:[%s7 + $0x78] sm:$0xff]
    %v6228 = vld [vmem:[%s8] sm:$0x3]
    %v6230 = vlaneseq
    %v6231 = vshrl.u32 %v6230, 7
    %v6232 = vsub.s32 0, %v6231
    %v6233 = vrot.slane %v6228, %v6232
    %v6234 = vlaneseq
    %v6235 = vshrl.u32 %v6234, 7
    %v6236 = vsub.s32 1, %v6235
    %v6237 = vrot.slane %v6228, %v6236
    %v6256 = vunpack.c.l.b16 %v6212
    %v6257 = vunpack.c.h.b16 %v6212
    %v6258 = vunpack.c.l.b16 %v6213
    %v6259 = vunpack.c.h.b16 %v6213
    %v6260 = vunpack.c.l.b16 %v6214
    %v6261 = vunpack.c.h.b16 %v6214
    %v6262 = vunpack.c.l.b16 %v6215
    %v6263 = vunpack.c.h.b16 %v6215
    %v6264 = vunpack.c.l.b16 %v6216
    %v6265 = vunpack.c.h.b16 %v6216
    %v6266 = vunpack.c.l.b16 %v6217
    %v6267 = vunpack.c.h.b16 %v6217
    %v6268 = vunpack.c.l.b16 %v6218
    %v6269 = vunpack.c.h.b16 %v6218
    %v6270 = vunpack.c.l.b16 %v6219
    %v6271 = vunpack.c.h.b16 %v6219
    %v6272 = vunpack.c.l.b16 %v6220
    %v6273 = vunpack.c.h.b16 %v6220
    %v6274 = vunpack.c.l.b16 %v6221
    %v6275 = vunpack.c.h.b16 %v6221
    %v6276 = vunpack.c.l.b16 %v6222
    %v6277 = vunpack.c.h.b16 %v6222
    %v6278 = vunpack.c.l.b16 %v6223
    %v6279 = vunpack.c.h.b16 %v6223
    %v6280 = vunpack.c.l.b16 %v6224
    %v6281 = vunpack.c.h.b16 %v6224
    %v6282 = vunpack.c.l.b16 %v6225
    %v6283 = vunpack.c.h.b16 %v6225
    %v6284 = vunpack.c.l.b16 %v6226
    %v6285 = vunpack.c.h.b16 %v6226
    %v6286 = vunpack.c.l.b16 %v6227
    %v6287 = vunpack.c.h.b16 %v6227
    %v6288 = vpack.c.b16 %v6258, %v6256
    %v6289 = vpack.c.b16 %v6259, %v6257
    %v6290 = vpack.c.b16 %v6262, %v6260
    %v6291 = vpack.c.b16 %v6263, %v6261
    %v6292 = vpack.c.b16 %v6266, %v6264
    %v6293 = vpack.c.b16 %v6267, %v6265
    %v6294 = vpack.c.b16 %v6270, %v6268
    %v6295 = vpack.c.b16 %v6271, %v6269
    %v6296 = vpack.c.b16 %v6274, %v6272
    %v6297 = vpack.c.b16 %v6275, %v6273
    %v6298 = vpack.c.b16 %v6278, %v6276
    %v6299 = vpack.c.b16 %v6279, %v6277
    %v6300 = vpack.c.b16 %v6282, %v6280
    %v6301 = vpack.c.b16 %v6283, %v6281
    %v6302 = vpack.c.b16 %v6286, %v6284
    %v6303 = vpack.c.b16 %v6287, %v6285
    %6320 = vmatprep.subr.bf16.mxu0 %v6289
    %6321 = vmatpush1.bf16.msra.mxu0 %v6288
    %6322 = vmatprep.subr.bf16.mxu0 %v6291
    %6323 = vmatpush1.bf16.msra.mxu0 %v6290
    %6324 = vmatprep.subr.bf16.mxu0 %v6293
    %6325 = vmatpush1.bf16.msra.mxu0 %v6292
    %6326 = vmatprep.subr.bf16.mxu0 %v6295
    %6327 = vmatpush1.bf16.msra.mxu0 %v6294
    %6328 = vmatprep.subr.bf16.mxu0 %v6297
    %6329 = vmatpush1.bf16.msra.mxu0 %v6296
    %6330 = vmatprep.subr.bf16.mxu0 %v6299
    %6331 = vmatpush1.bf16.msra.mxu0 %v6298
    %6332 = vmatprep.subr.bf16.mxu0 %v6301
    %6333 = vmatpush1.bf16.msra.mxu0 %v6300
    %6334 = vmatprep.subr.bf16.mxu0 %v6303
    %6335 = vmatpush1.bf16.msra.mxu0 %v6302
    %6336 = vmatprep.subr.bf16.mxu0 0
    %6337 = vmatpush1.bf16.msra.mxu0 0
    %6338 = vmatprep.subr.bf16.mxu0 0
    %6339 = vmatpush1.bf16.msra.mxu0 0
    %6340 = vmatprep.subr.bf16.mxu0 0
    %6341 = vmatpush1.bf16.msra.mxu0 0
    %6342 = vmatprep.subr.bf16.mxu0 0
    %6343 = vmatpush1.bf16.msra.mxu0 0
    %6344 = vmatprep.subr.bf16.mxu0 0
    %6345 = vmatpush1.bf16.msra.mxu0 0
    %6346 = vmatprep.subr.bf16.mxu0 0
    %6347 = vmatpush1.bf16.msra.mxu0 0
    %6348 = vmatprep.subr.bf16.mxu0 0
    %6349 = vmatpush1.bf16.msra.mxu0 0
    %6350 = vmatprep.subr.bf16.mxu0 0
    %6351 = vmatpush1.bf16.msra.mxu0 0
    %6352 = vmatprep.mubr.bf16.mxu0 0
    %6353 = vmatmul.mubr.bf16.gmra.mrb[0].mxu0 %v6211
    %v6354 = vpop.f32.mrb[0].mxu0
    %v6355 = vadd.f32 %v6233, %v6354
    %v6356 = vpop.f32.mrb[0].mxu0
    %v6357 = vadd.f32 %v6237, %v6356
    %v6358 = vpop.f32.mrb[0].mxu0
    %v6359 = vpop.f32.mrb[0].mxu0
    %6360 = vdwg.mxu0
    %v6361 = vmax.f32 %v6355, 0.0
    %v6362 = vmax.f32 %v6357, 0.0
    %v6363 = vpack.c.bf16 %v6361, %v6361
    %v6364 = vpack.c.bf16 %v6362, %v6362
    %v6365 = vld [vmem:[%s9] sm:$0xff]
    %v6366 = vld [vmem:[%s9 + $0x8] sm:$0xff]
    %v6367 = vld [vmem:[%s9 + $0x10] sm:$0xff]
    %v6368 = vld [vmem:[%s9 + $0x18] sm:$0xf]
    %v6369 = vld [vmem:[%s9 + $0x1c] sm:$0xff]
    %v6370 = vld [vmem:[%s9 + $0x24] sm:$0xff]
    %v6371 = vld [vmem:[%s9 + $0x2c] sm:$0xff]
    %v6372 = vld [vmem:[%s9 + $0x34] sm:$0xf]
    %v6373 = vld [vmem:[%s9 + $0x38] sm:$0xff]
    %v6374 = vld [vmem:[%s9 + $0x40] sm:$0xff]
    %v6375 = vld [vmem:[%s9 + $0x48] sm:$0xff]
    %v6376 = vld [vmem:[%s9 + $0x50] sm:$0xf]
    %v6377 = vld [vmem:[%s9 + $0x54] sm:$0xff]
    %v6378 = vld [vmem:[%s9 + $0x5c] sm:$0xff]
    %v6379 = vld [vmem:[%s9 + $0x64] sm:$0xff]
    %v6380 = vld [vmem:[%s9 + $0x6c] sm:$0xf]
    %v6381 = vld [vmem:[%s9 + $0x70] sm:$0xff]
    %v6382 = vld [vmem:[%s9 + $0x78] sm:$0xff]
    %v6383 = vld [vmem:[%s9 + $0x80] sm:$0xff]
    %v6384 = vld [vmem:[%s9 + $0x88] sm:$0xf]
    %v6385 = vld [vmem:[%s9 + $0x8c] sm:$0xff]
    %v6386 = vld [vmem:[%s9 + $0x94] sm:$0xff]
    %v6387 = vld [vmem:[%s9 + $0x9c] sm:$0xff]
    %v6388 = vld [vmem:[%s9 + $0xa4] sm:$0xf]
    %v6389 = vld [vmem:[%s9 + $0xa8] sm:$0xff]
    %v6390 = vld [vmem:[%s9 + $0xb0] sm:$0xff]
    %v6391 = vld [vmem:[%s9 + $0xb8] sm:$0xff]
    %v6392 = vld [vmem:[%s9 + $0xc0] sm:$0xf]
    %v6393 = vld [vmem:[%s9 + $0xc4] sm:$0xff]
    %v6394 = vld [vmem:[%s9 + $0xcc] sm:$0xff]
    %v6395 = vld [vmem:[%s9 + $0xd4] sm:$0xff]
    %v6396 = vld [vmem:[%s9 + $0xdc] sm:$0xf]
    %v6397 = vld [vmem:[%s9 + $0xe0] sm:$0xff]
    %v6398 = vld [vmem:[%s9 + $0xe8] sm:$0xff]
    %v6399 = vld [vmem:[%s9 + $0xf0] sm:$0xff]
    %v6400 = vld [vmem:[%s9 + $0xf8] sm:$0xf]
    %v6401 = vld [vmem:[%s9 + $0xfc] sm:$0xff]
    %v6402 = vld [vmem:[%s9 + $0x104] sm:$0xff]
    %v6403 = vld [vmem:[%s9 + $0x10c] sm:$0xff]
    %v6404 = vld [vmem:[%s9 + $0x114] sm:$0xf]
    %v6405 = vld [vmem:[%s9 + $0x118] sm:$0xff]
    %v6406 = vld [vmem:[%s9 + $0x120] sm:$0xff]
    %v6407 = vld [vmem:[%s9 + $0x128] sm:$0xff]
    %v6408 = vld [vmem:[%s9 + $0x130] sm:$0xf]
    %v6409 = vld [vmem:[%s9 + $0x134] sm:$0xff]
    %v6410 = vld [vmem:[%s9 + $0x13c] sm:$0xff]
    %v6411 = vld [vmem:[%s9 + $0x144] sm:$0xff]
    %v6412 = vld [vmem:[%s9 + $0x14c] sm:$0xf]
    %v6413 = vld [vmem:[%s9 + $0x150] sm:$0xff]
    %v6414 = vld [vmem:[%s9 + $0x158] sm:$0xff]
    %v6415 = vld [vmem:[%s9 + $0x160] sm:$0xff]
    %v6416 = vld [vmem:[%s9 + $0x168] sm:$0xf]
    %v6417 = vld [vmem:[%s9 + $0x16c] sm:$0xff]
    %v6418 = vld [vmem:[%s9 + $0x174] sm:$0xff]
    %v6419 = vld [vmem:[%s9 + $0x17c] sm:$0xff]
    %v6420 = vld [vmem:[%s9 + $0x184] sm:$0xf]
    %v6421 = vld [vmem:[%s9 + $0x188] sm:$0xff]
    %v6422 = vld [vmem:[%s9 + $0x190] sm:$0xff]
    %v6423 = vld [vmem:[%s9 + $0x198] sm:$0xff]
    %v6424 = vld [vmem:[%s9 + $0x1a0] sm:$0xf]
    %v6425 = vld [vmem:[%s9 + $0x1a4] sm:$0xff]
    %v6426 = vld [vmem:[%s9 + $0x1ac] sm:$0xff]
    %v6427 = vld [vmem:[%s9 + $0x1b4] sm:$0xff]
    %v6428 = vld [vmem:[%s9 + $0x1bc] sm:$0xf]
    %v6429 = vld [vmem:[%s9 + $0x1c0] sm:$0xff]
    %v6430 = vld [vmem:[%s9 + $0x1c8] sm:$0xff]
    %v6431 = vld [vmem:[%s9 + $0x1d0] sm:$0xff]
    %v6432 = vld [vmem:[%s9 + $0x1d8] sm:$0xf]
    %v6433 = vld [vmem:[%s9 + $0x1dc] sm:$0xff]
    %v6434 = vld [vmem:[%s9 + $0x1e4] sm:$0xff]
    %v6435 = vld [vmem:[%s9 + $0x1ec] sm:$0xff]
    %v6436 = vld [vmem:[%s9 + $0x1f4] sm:$0xf]
    %v6437 = vld [vmem:[%s9 + $0x1f8] sm:$0xff]
    %v6438 = vld [vmem:[%s9 + $0x200] sm:$0xff]
    %v6439 = vld [vmem:[%s9 + $0x208] sm:$0xff]
    %v6440 = vld [vmem:[%s9 + $0x210] sm:$0xf]
    %v6441 = vld [vmem:[%s9 + $0x214] sm:$0xff]
    %v6442 = vld [vmem:[%s9 + $0x21c] sm:$0xff]
    %v6443 = vld [vmem:[%s9 + $0x224] sm:$0xff]
    %v6444 = vld [vmem:[%s9 + $0x22c] sm:$0xf]
    %v6445 = vld [vmem:[%s9 + $0x230] sm:$0xff]
    %v6446 = vld [vmem:[%s9 + $0x238] sm:$0xff]
    %v6447 = vld [vmem:[%s9 + $0x240] sm:$0xff]
    %v6448 = vld [vmem:[%s9 + $0x248] sm:$0xf]
    %v6449 = vld [vmem:[%s9 + $0x24c] sm:$0xff]
    %v6450 = vld [vmem:[%s9 + $0x254] sm:$0xff]
    %v6451 = vld [vmem:[%s9 + $0x25c] sm:$0xff]
    %v6452 = vld [vmem:[%s9 + $0x264] sm:$0xf]
    %v6453 = vld [vmem:[%s9 + $0x268] sm:$0xff]
    %v6454 = vld [vmem:[%s9 + $0x270] sm:$0xff]
    %v6455 = vld [vmem:[%s9 + $0x278] sm:$0xff]
    %v6456 = vld [vmem:[%s9 + $0x280] sm:$0xf]
    %v6457 = vld [vmem:[%s9 + $0x284] sm:$0xff]
    %v6458 = vld [vmem:[%s9 + $0x28c] sm:$0xff]
    %v6459 = vld [vmem:[%s9 + $0x294] sm:$0xff]
    %v6460 = vld [vmem:[%s9 + $0x29c] sm:$0xf]
    %v6461 = vld [vmem:[%s9 + $0x2a0] sm:$0xff]
    %v6462 = vld [vmem:[%s9 + $0x2a8] sm:$0xff]
    %v6463 = vld [vmem:[%s9 + $0x2b0] sm:$0xff]
    %v6464 = vld [vmem:[%s9 + $0x2b8] sm:$0xf]
    %v6465 = vld [vmem:[%s9 + $0x2bc] sm:$0xff]
    %v6466 = vld [vmem:[%s9 + $0x2c4] sm:$0xff]
    %v6467 = vld [vmem:[%s9 + $0x2cc] sm:$0xff]
    %v6468 = vld [vmem:[%s9 + $0x2d4] sm:$0xf]
    %v6469 = vld [vmem:[%s9 + $0x2d8] sm:$0xff]
    %v6470 = vld [vmem:[%s9 + $0x2e0] sm:$0xff]
    %v6471 = vld [vmem:[%s9 + $0x2e8] sm:$0xff]
    %v6472 = vld [vmem:[%s9 + $0x2f0] sm:$0xf]
    %v6473 = vld [vmem:[%s9 + $0x2f4] sm:$0xff]
    %v6474 = vld [vmem:[%s9 + $0x2fc] sm:$0xff]
    %v6475 = vld [vmem:[%s9 + $0x304] sm:$0xff]
    %v6476 = vld [vmem:[%s9 + $0x30c] sm:$0xf]
    %v6477 = vld [vmem:[%s9 + $0x310] sm:$0xff]
    %v6478 = vld [vmem:[%s9 + $0x318] sm:$0xff]
    %v6479 = vld [vmem:[%s9 + $0x320] sm:$0xff]
    %v6480 = vld [vmem:[%s9 + $0x328] sm:$0xf]
    %v6481 = vld [vmem:[%s9 + $0x32c] sm:$0xff]
    %v6482 = vld [vmem:[%s9 + $0x334] sm:$0xff]
    %v6483 = vld [vmem:[%s9 + $0x33c] sm:$0xff]
    %v6484 = vld [vmem:[%s9 + $0x344] sm:$0xf]
    %v6485 = vld [vmem:[%s9 + $0x348] sm:$0xff]
    %v6486 = vld [vmem:[%s9 + $0x350] sm:$0xff]
    %v6487 = vld [vmem:[%s9 + $0x358] sm:$0xff]
    %v6488 = vld [vmem:[%s9 + $0x360] sm:$0xf]
    %v6489 = vld [vmem:[%s9 + $0x364] sm:$0xff]
    %v6490 = vld [vmem:[%s9 + $0x36c] sm:$0xff]
    %v6491 = vld [vmem:[%s9 + $0x374] sm:$0xff]
    %v6492 = vld [vmem:[%s9 + $0x37c] sm:$0xf]
    %v6493 = vld [vmem:[%s10] sm:$0xff]
    %v6495 = vlaneseq
    %v6496 = vshrl.u32 %v6495, 7
    %v6497 = vsub.s32 0, %v6496
    %v6498 = vrot.slane %v6493, %v6497
    %v6499 = vlaneseq
    %v6500 = vshrl.u32 %v6499, 7
    %v6501 = vsub.s32 1, %v6500
    %v6502 = vrot.slane %v6493, %v6501
    %v6503 = vlaneseq
    %v6504 = vshrl.u32 %v6503, 7
    %v6505 = vsub.s32 2, %v6504
    %v6506 = vrot.slane %v6493, %v6505
    %v6507 = vlaneseq
    %v6508 = vshrl.u32 %v6507, 7
    %v6509 = vsub.s32 3, %v6508
    %v6510 = vrot.slane %v6493, %v6509
    %v6511 = vlaneseq
    %v6512 = vshrl.u32 %v6511, 7
    %v6513 = vsub.s32 4, %v6512
    %v6514 = vrot.slane %v6493, %v6513
    %v6515 = vlaneseq
    %v6516 = vshrl.u32 %v6515, 7
    %v6517 = vsub.s32 5, %v6516
    %v6518 = vrot.slane %v6493, %v6517
    %v6519 = vlaneseq
    %v6520 = vshrl.u32 %v6519, 7
    %v6521 = vsub.s32 6, %v6520
    %v6522 = vrot.slane %v6493, %v6521
    %v6658 = vunpack.c.l.b16 %v6365
    %v6659 = vunpack.c.h.b16 %v6365
    %v6660 = vunpack.c.l.b16 %v6366
    %v6661 = vunpack.c.h.b16 %v6366
    %v6662 = vunpack.c.l.b16 %v6367
    %v6663 = vunpack.c.h.b16 %v6367
    %v6664 = vunpack.c.l.b16 %v6368
    %v6665 = vunpack.c.l.b16 %v6369
    %v6666 = vunpack.c.h.b16 %v6369
    %v6667 = vunpack.c.l.b16 %v6370
    %v6668 = vunpack.c.h.b16 %v6370
    %v6669 = vunpack.c.l.b16 %v6371
    %v6670 = vunpack.c.h.b16 %v6371
    %v6671 = vunpack.c.l.b16 %v6372
    %v6672 = vunpack.c.l.b16 %v6373
    %v6673 = vunpack.c.h.b16 %v6373
    %v6674 = vunpack.c.l.b16 %v6374
    %v6675 = vunpack.c.h.b16 %v6374
    %v6676 = vunpack.c.l.b16 %v6375
    %v6677 = vunpack.c.h.b16 %v6375
    %v6678 = vunpack.c.l.b16 %v6376
    %v6679 = vunpack.c.l.b16 %v6377
    %v6680 = vunpack.c.h.b16 %v6377
    %v6681 = vunpack.c.l.b16 %v6378
    %v6682 = vunpack.c.h.b16 %v6378
    %v6683 = vunpack.c.l.b16 %v6379
    %v6684 = vunpack.c.h.b16 %v6379
    %v6685 = vunpack.c.l.b16 %v6380
    %v6686 = vunpack.c.l.b16 %v6381
    %v6687 = vunpack.c.h.b16 %v6381
    %v6688 = vunpack.c.l.b16 %v6382
    %v6689 = vunpack.c.h.b16 %v6382
    %v6690 = vunpack.c.l.b16 %v6383
    %v6691 = vunpack.c.h.b16 %v6383
    %v6692 = vunpack.c.l.b16 %v6384
    %v6693 = vunpack.c.l.b16 %v6385
    %v6694 = vunpack.c.h.b16 %v6385
    %v6695 = vunpack.c.l.b16 %v6386
    %v6696 = vunpack.c.h.b16 %v6386
    %v6697 = vunpack.c.l.b16 %v6387
    %v6698 = vunpack.c.h.b16 %v6387
    %v6699 = vunpack.c.l.b16 %v6388
    %v6700 = vunpack.c.l.b16 %v6389
    %v6701 = vunpack.c.h.b16 %v6389
    %v6702 = vunpack.c.l.b16 %v6390
    %v6703 = vunpack.c.h.b16 %v6390
    %v6704 = vunpack.c.l.b16 %v6391
    %v6705 = vunpack.c.h.b16 %v6391
    %v6706 = vunpack.c.l.b16 %v6392
    %v6707 = vunpack.c.l.b16 %v6393
    %v6708 = vunpack.c.h.b16 %v6393
    %v6709 = vunpack.c.l.b16 %v6394
    %v6710 = vunpack.c.h.b16 %v6394
    %v6711 = vunpack.c.l.b16 %v6395
    %v6712 = vunpack.c.h.b16 %v6395
    %v6713 = vunpack.c.l.b16 %v6396
    %v6714 = vunpack.c.l.b16 %v6397
    %v6715 = vunpack.c.h.b16 %v6397
    %v6716 = vunpack.c.l.b16 %v6398
    %v6717 = vunpack.c.h.b16 %v6398
    %v6718 = vunpack.c.l.b16 %v6399
    %v6719 = vunpack.c.h.b16 %v6399
    %v6720 = vunpack.c.l.b16 %v6400
    %v6721 = vunpack.c.l.b16 %v6401
    %v6722 = vunpack.c.h.b16 %v6401
    %v6723 = vunpack.c.l.b16 %v6402
    %v6724 = vunpack.c.h.b16 %v6402
    %v6725 = vunpack.c.l.b16 %v6403
    %v6726 = vunpack.c.h.b16 %v6403
    %v6727 = vunpack.c.l.b16 %v6404
    %v6728 = vunpack.c.l.b16 %v6405
    %v6729 = vunpack.c.h.b16 %v6405
    %v6730 = vunpack.c.l.b16 %v6406
    %v6731 = vunpack.c.h.b16 %v6406
    %v6732 = vunpack.c.l.b16 %v6407
    %v6733 = vunpack.c.h.b16 %v6407
    %v6734 = vunpack.c.l.b16 %v6408
    %v6735 = vunpack.c.l.b16 %v6409
    %v6736 = vunpack.c.h.b16 %v6409
    %v6737 = vunpack.c.l.b16 %v6410
    %v6738 = vunpack.c.h.b16 %v6410
    %v6739 = vunpack.c.l.b16 %v6411
    %v6740 = vunpack.c.h.b16 %v6411
    %v6741 = vunpack.c.l.b16 %v6412
    %v6742 = vunpack.c.l.b16 %v6413
    %v6743 = vunpack.c.h.b16 %v6413
    %v6744 = vunpack.c.l.b16 %v6414
    %v6745 = vunpack.c.h.b16 %v6414
    %v6746 = vunpack.c.l.b16 %v6415
    %v6747 = vunpack.c.h.b16 %v6415
    %v6748 = vunpack.c.l.b16 %v6416
    %v6749 = vunpack.c.l.b16 %v6417
    %v6750 = vunpack.c.h.b16 %v6417
    %v6751 = vunpack.c.l.b16 %v6418
    %v6752 = vunpack.c.h.b16 %v6418
    %v6753 = vunpack.c.l.b16 %v6419
    %v6754 = vunpack.c.h.b16 %v6419
    %v6755 = vunpack.c.l.b16 %v6420
    %v6756 = vunpack.c.l.b16 %v6421
    %v6757 = vunpack.c.h.b16 %v6421
    %v6758 = vunpack.c.l.b16 %v6422
    %v6759 = vunpack.c.h.b16 %v6422
    %v6760 = vunpack.c.l.b16 %v6423
    %v6761 = vunpack.c.h.b16 %v6423
    %v6762 = vunpack.c.l.b16 %v6424
    %v6763 = vunpack.c.l.b16 %v6425
    %v6764 = vunpack.c.h.b16 %v6425
    %v6765 = vunpack.c.l.b16 %v6426
    %v6766 = vunpack.c.h.b16 %v6426
    %v6767 = vunpack.c.l.b16 %v6427
    %v6768 = vunpack.c.h.b16 %v6427
    %v6769 = vunpack.c.l.b16 %v6428
    %v6770 = vunpack.c.l.b16 %v6429
    %v6771 = vunpack.c.h.b16 %v6429
    %v6772 = vunpack.c.l.b16 %v6430
    %v6773 = vunpack.c.h.b16 %v6430
    %v6774 = vunpack.c.l.b16 %v6431
    %v6775 = vunpack.c.h.b16 %v6431
    %v6776 = vunpack.c.l.b16 %v6432
    %v6777 = vunpack.c.l.b16 %v6433
    %v6778 = vunpack.c.h.b16 %v6433
    %v6779 = vunpack.c.l.b16 %v6434
    %v6780 = vunpack.c.h.b16 %v6434
    %v6781 = vunpack.c.l.b16 %v6435
    %v6782 = vunpack.c.h.b16 %v6435
    %v6783 = vunpack.c.l.b16 %v6436
    %v6784 = vunpack.c.l.b16 %v6437
    %v6785 = vunpack.c.h.b16 %v6437
    %v6786 = vunpack.c.l.b16 %v6438
    %v6787 = vunpack.c.h.b16 %v6438
    %v6788 = vunpack.c.l.b16 %v6439
    %v6789 = vunpack.c.h.b16 %v6439
    %v6790 = vunpack.c.l.b16 %v6440
    %v6791 = vunpack.c.l.b16 %v6441
    %v6792 = vunpack.c.h.b16 %v6441
    %v6793 = vunpack.c.l.b16 %v6442
    %v6794 = vunpack.c.h.b16 %v6442
    %v6795 = vunpack.c.l.b16 %v6443
    %v6796 = vunpack.c.h.b16 %v6443
    %v6797 = vunpack.c.l.b16 %v6444
    %v6798 = vunpack.c.l.b16 %v6445
    %v6799 = vunpack.c.h.b16 %v6445
    %v6800 = vunpack.c.l.b16 %v6446
    %v6801 = vunpack.c.h.b16 %v6446
    %v6802 = vunpack.c.l.b16 %v6447
    %v6803 = vunpack.c.h.b16 %v6447
    %v6804 = vunpack.c.l.b16 %v6448
    %v6805 = vunpack.c.l.b16 %v6449
    %v6806 = vunpack.c.h.b16 %v6449
    %v6807 = vunpack.c.l.b16 %v6450
    %v6808 = vunpack.c.h.b16 %v6450
    %v6809 = vunpack.c.l.b16 %v6451
    %v6810 = vunpack.c.h.b16 %v6451
    %v6811 = vunpack.c.l.b16 %v6452
    %v6812 = vunpack.c.l.b16 %v6453
    %v6813 = vunpack.c.h.b16 %v6453
    %v6814 = vunpack.c.l.b16 %v6454
    %v6815 = vunpack.c.h.b16 %v6454
    %v6816 = vunpack.c.l.b16 %v6455
    %v6817 = vunpack.c.h.b16 %v6455
    %v6818 = vunpack.c.l.b16 %v6456
    %v6819 = vunpack.c.l.b16 %v6457
    %v6820 = vunpack.c.h.b16 %v6457
    %v6821 = vunpack.c.l.b16 %v6458
    %v6822 = vunpack.c.h.b16 %v6458
    %v6823 = vunpack.c.l.b16 %v6459
    %v6824 = vunpack.c.h.b16 %v6459
    %v6825 = vunpack.c.l.b16 %v6460
    %v6826 = vunpack.c.l.b16 %v6461
    %v6827 = vunpack.c.h.b16 %v6461
    %v6828 = vunpack.c.l.b16 %v6462
    %v6829 = vunpack.c.h.b16 %v6462
    %v6830 = vunpack.c.l.b16 %v6463
    %v6831 = vunpack.c.h.b16 %v6463
    %v6832 = vunpack.c.l.b16 %v6464
    %v6833 = vunpack.c.l.b16 %v6465
    %v6834 = vunpack.c.h.b16 %v6465
    %v6835 = vunpack.c.l.b16 %v6466
    %v6836 = vunpack.c.h.b16 %v6466
    %v6837 = vunpack.c.l.b16 %v6467
    %v6838 = vunpack.c.h.b16 %v6467
    %v6839 = vunpack.c.l.b16 %v6468
    %v6840 = vunpack.c.l.b16 %v6469
    %v6841 = vunpack.c.h.b16 %v6469
    %v6842 = vunpack.c.l.b16 %v6470
    %v6843 = vunpack.c.h.b16 %v6470
    %v6844 = vunpack.c.l.b16 %v6471
    %v6845 = vunpack.c.h.b16 %v6471
    %v6846 = vunpack.c.l.b16 %v6472
    %v6847 = vunpack.c.l.b16 %v6473
    %v6848 = vunpack.c.h.b16 %v6473
    %v6849 = vunpack.c.l.b16 %v6474
    %v6850 = vunpack.c.h.b16 %v6474
    %v6851 = vunpack.c.l.b16 %v6475
    %v6852 = vunpack.c.h.b16 %v6475
    %v6853 = vunpack.c.l.b16 %v6476
    %v6854 = vunpack.c.l.b16 %v6477
    %v6855 = vunpack.c.h.b16 %v6477
    %v6856 = vunpack.c.l.b16 %v6478
    %v6857 = vunpack.c.h.b16 %v6478
    %v6858 = vunpack.c.l.b16 %v6479
    %v6859 = vunpack.c.h.b16 %v6479
    %v6860 = vunpack.c.l.b16 %v6480
    %v6861 = vunpack.c.l.b16 %v6481
    %v6862 = vunpack.c.h.b16 %v6481
    %v6863 = vunpack.c.l.b16 %v6482
    %v6864 = vunpack.c.h.b16 %v6482
    %v6865 = vunpack.c.l.b16 %v6483
    %v6866 = vunpack.c.h.b16 %v6483
    %v6867 = vunpack.c.l.b16 %v6484
    %v6868 = vunpack.c.l.b16 %v6485
    %v6869 = vunpack.c.h.b16 %v6485
    %v6870 = vunpack.c.l.b16 %v6486
    %v6871 = vunpack.c.h.b16 %v6486
    %v6872 = vunpack.c.l.b16 %v6487
    %v6873 = vunpack.c.h.b16 %v6487
    %v6874 = vunpack.c.l.b16 %v6488
    %v6875 = vunpack.c.l.b16 %v6489
    %v6876 = vunpack.c.h.b16 %v6489
    %v6877 = vunpack.c.l.b16 %v6490
    %v6878 = vunpack.c.h.b16 %v6490
    %v6879 = vunpack.c.l.b16 %v6491
    %v6880 = vunpack.c.h.b16 %v6491
    %v6881 = vunpack.c.l.b16 %v6492
    %v6882 = vpack.c.b16 %v6665, %v6658
    %v6883 = vpack.c.b16 %v6666, %v6659
    %v6884 = vpack.c.b16 %v6667, %v6660
    %v6885 = vpack.c.b16 %v6668, %v6661
    %v6886 = vpack.c.b16 %v6669, %v6662
    %v6887 = vpack.c.b16 %v6670, %v6663
    %v6888 = vpack.c.b16 %v6671, %v6664
    %v6889 = vpack.c.b16 %v6679, %v6672
    %v6890 = vpack.c.b16 %v6680, %v6673
    %v6891 = vpack.c.b16 %v6681, %v6674
    %v6892 = vpack.c.b16 %v6682, %v6675
    %v6893 = vpack.c.b16 %v6683, %v6676
    %v6894 = vpack.c.b16 %v6684, %v6677
    %v6895 = vpack.c.b16 %v6685, %v6678
    %v6896 = vpack.c.b16 %v6693, %v6686
    %v6897 = vpack.c.b16 %v6694, %v6687
    %v6898 = vpack.c.b16 %v6695, %v6688
    %v6899 = vpack.c.b16 %v6696, %v6689
    %v6900 = vpack.c.b16 %v6697, %v6690
    %v6901 = vpack.c.b16 %v6698, %v6691
    %v6902 = vpack.c.b16 %v6699, %v6692
    %v6903 = vpack.c.b16 %v6707, %v6700
    %v6904 = vpack.c.b16 %v6708, %v6701
    %v6905 = vpack.c.b16 %v6709, %v6702
    %v6906 = vpack.c.b16 %v6710, %v6703
    %v6907 = vpack.c.b16 %v6711, %v6704
    %v6908 = vpack.c.b16 %v6712, %v6705
    %v6909 = vpack.c.b16 %v6713, %v6706
    %v6910 = vpack.c.b16 %v6721, %v6714
    %v6911 = vpack.c.b16 %v6722, %v6715
    %v6912 = vpack.c.b16 %v6723, %v6716
    %v6913 = vpack.c.b16 %v6724, %v6717
    %v6914 = vpack.c.b16 %v6725, %v6718
    %v6915 = vpack.c.b16 %v6726, %v6719
    %v6916 = vpack.c.b16 %v6727, %v6720
    %v6917 = vpack.c.b16 %v6735, %v6728
    %v6918 = vpack.c.b16 %v6736, %v6729
    %v6919 = vpack.c.b16 %v6737, %v6730
    %v6920 = vpack.c.b16 %v6738, %v6731
    %v6921 = vpack.c.b16 %v6739, %v6732
    %v6922 = vpack.c.b16 %v6740, %v6733
    %v6923 = vpack.c.b16 %v6741, %v6734
    %v6924 = vpack.c.b16 %v6749, %v6742
    %v6925 = vpack.c.b16 %v6750, %v6743
    %v6926 = vpack.c.b16 %v6751, %v6744
    %v6927 = vpack.c.b16 %v6752, %v6745
    %v6928 = vpack.c.b16 %v6753, %v6746
    %v6929 = vpack.c.b16 %v6754, %v6747
    %v6930 = vpack.c.b16 %v6755, %v6748
    %v6931 = vpack.c.b16 %v6763, %v6756
    %v6932 = vpack.c.b16 %v6764, %v6757
    %v6933 = vpack.c.b16 %v6765, %v6758
    %v6934 = vpack.c.b16 %v6766, %v6759
    %v6935 = vpack.c.b16 %v6767, %v6760
    %v6936 = vpack.c.b16 %v6768, %v6761
    %v6937 = vpack.c.b16 %v6769, %v6762
    %v6938 = vpack.c.b16 %v6777, %v6770
    %v6939 = vpack.c.b16 %v6778, %v6771
    %v6940 = vpack.c.b16 %v6779, %v6772
    %v6941 = vpack.c.b16 %v6780, %v6773
    %v6942 = vpack.c.b16 %v6781, %v6774
    %v6943 = vpack.c.b16 %v6782, %v6775
    %v6944 = vpack.c.b16 %v6783, %v6776
    %v6945 = vpack.c.b16 %v6791, %v6784
    %v6946 = vpack.c.b16 %v6792, %v6785
    %v6947 = vpack.c.b16 %v6793, %v6786
    %v6948 = vpack.c.b16 %v6794, %v6787
    %v6949 = vpack.c.b16 %v6795, %v6788
    %v6950 = vpack.c.b16 %v6796, %v6789
    %v6951 = vpack.c.b16 %v6797, %v6790
    %v6952 = vpack.c.b16 %v6805, %v6798
    %v6953 = vpack.c.b16 %v6806, %v6799
    %v6954 = vpack.c.b16 %v6807, %v6800
    %v6955 = vpack.c.b16 %v6808, %v6801
    %v6956 = vpack.c.b16 %v6809, %v6802
    %v6957 = vpack.c.b16 %v6810, %v6803
    %v6958 = vpack.c.b16 %v6811, %v6804
    %v6959 = vpack.c.b16 %v6819, %v6812
    %v6960 = vpack.c.b16 %v6820, %v6813
    %v6961 = vpack.c.b16 %v6821, %v6814
    %v6962 = vpack.c.b16 %v6822, %v6815
    %v6963 = vpack.c.b16 %v6823, %v6816
    %v6964 = vpack.c.b16 %v6824, %v6817
    %v6965 = vpack.c.b16 %v6825, %v6818
    %v6966 = vpack.c.b16 %v6833, %v6826
    %v6967 = vpack.c.b16 %v6834, %v6827
    %v6968 = vpack.c.b16 %v6835, %v6828
    %v6969 = vpack.c.b16 %v6836, %v6829
    %v6970 = vpack.c.b16 %v6837, %v6830
    %v6971 = vpack.c.b16 %v6838, %v6831
    %v6972 = vpack.c.b16 %v6839, %v6832
    %v6973 = vpack.c.b16 %v6847, %v6840
    %v6974 = vpack.c.b16 %v6848, %v6841
    %v6975 = vpack.c.b16 %v6849, %v6842
    %v6976 = vpack.c.b16 %v6850, %v6843
    %v6977 = vpack.c.b16 %v6851, %v6844
    %v6978 = vpack.c.b16 %v6852, %v6845
    %v6979 = vpack.c.b16 %v6853, %v6846
    %v6980 = vpack.c.b16 %v6861, %v6854
    %v6981 = vpack.c.b16 %v6862, %v6855
    %v6982 = vpack.c.b16 %v6863, %v6856
    %v6983 = vpack.c.b16 %v6864, %v6857
    %v6984 = vpack.c.b16 %v6865, %v6858
    %v6985 = vpack.c.b16 %v6866, %v6859
    %v6986 = vpack.c.b16 %v6867, %v6860
    %v6987 = vpack.c.b16 %v6875, %v6868
    %v6988 = vpack.c.b16 %v6876, %v6869
    %v6989 = vpack.c.b16 %v6877, %v6870
    %v6990 = vpack.c.b16 %v6878, %v6871
    %v6991 = vpack.c.b16 %v6879, %v6872
    %v6992 = vpack.c.b16 %v6880, %v6873
    %v6993 = vpack.c.b16 %v6881, %v6874
    %7106 = vmatprep.subr.bf16.mxu0 %v6883
    %7107 = vmatpush1.bf16.msra.mxu0 %v6882
    %7108 = vmatprep.subr.bf16.mxu0 %v6890
    %7109 = vmatpush1.bf16.msra.mxu0 %v6889
    %7110 = vmatprep.subr.bf16.mxu0 %v6897
    %7111 = vmatpush1.bf16.msra.mxu0 %v6896
    %7112 = vmatprep.subr.bf16.mxu0 %v6904
    %7113 = vmatpush1.bf16.msra.mxu0 %v6903
    %7114 = vmatprep.subr.bf16.mxu0 %v6911
    %7115 = vmatpush1.bf16.msra.mxu0 %v6910
    %7116 = vmatprep.subr.bf16.mxu0 %v6918
    %7117 = vmatpush1.bf16.msra.mxu0 %v6917
    %7118 = vmatprep.subr.bf16.mxu0 %v6925
    %7119 = vmatpush1.bf16.msra.mxu0 %v6924
    %7120 = vmatprep.subr.bf16.mxu0 %v6932
    %7121 = vmatpush1.bf16.msra.mxu0 %v6931
    %7122 = vmatprep.subr.bf16.mxu0 %v6939
    %7123 = vmatpush1.bf16.msra.mxu0 %v6938
    %7124 = vmatprep.subr.bf16.mxu0 %v6946
    %7125 = vmatpush1.bf16.msra.mxu0 %v6945
    %7126 = vmatprep.subr.bf16.mxu0 %v6953
    %7127 = vmatpush1.bf16.msra.mxu0 %v6952
    %7128 = vmatprep.subr.bf16.mxu0 %v6960
    %7129 = vmatpush1.bf16.msra.mxu0 %v6959
    %7130 = vmatprep.subr.bf16.mxu0 %v6967
    %7131 = vmatpush1.bf16.msra.mxu0 %v6966
    %7132 = vmatprep.subr.bf16.mxu0 %v6974
    %7133 = vmatpush1.bf16.msra.mxu0 %v6973
    %7134 = vmatprep.subr.bf16.mxu0 %v6981
    %7135 = vmatpush1.bf16.msra.mxu0 %v6980
    %7136 = vmatprep.subr.bf16.mxu0 %v6988
    %7137 = vmatpush1.bf16.msra.mxu0 %v6987
    %7138 = vmatprep.mubr.bf16.mxu0 %v6364
    %7139 = vmatmul.mubr.bf16.gmra.mrb[0].mxu0 %v6363
    %v7140 = vpop.f32.mrb[0].mxu0
    %v7141 = vadd.f32 %v6498, %v7140
    %v7142 = vpop.f32.mrb[0].mxu0
    %v7143 = vadd.f32 %v6502, %v7142
    %v7144 = vpop.f32.mrb[0].mxu0
    %v7145 = vpop.f32.mrb[0].mxu0
    %7146 = vdwg.mxu0
    %7147 = vmatprep.subr.bf16.mxu0 %v6885
    %7148 = vmatpush1.bf16.msra.mxu0 %v6884
    %7149 = vmatprep.subr.bf16.mxu0 %v6892
    %7150 = vmatpush1.bf16.msra.mxu0 %v6891
    %7151 = vmatprep.subr.bf16.mxu0 %v6899
    %7152 = vmatpush1.bf16.msra.mxu0 %v6898
    %7153 = vmatprep.subr.bf16.mxu0 %v6906
    %7154 = vmatpush1.bf16.msra.mxu0 %v6905
    %7155 = vmatprep.subr.bf16.mxu0 %v6913
    %7156 = vmatpush1.bf16.msra.mxu0 %v6912
    %7157 = vmatprep.subr.bf16.mxu0 %v6920
    %7158 = vmatpush1.bf16.msra.mxu0 %v6919
    %7159 = vmatprep.subr.bf16.mxu0 %v6927
    %7160 = vmatpush1.bf16.msra.mxu0 %v6926
    %7161 = vmatprep.subr.bf16.mxu0 %v6934
    %7162 = vmatpush1.bf16.msra.mxu0 %v6933
    %7163 = vmatprep.subr.bf16.mxu0 %v6941
    %7164 = vmatpush1.bf16.msra.mxu0 %v6940
    %7165 = vmatprep.subr.bf16.mxu0 %v6948
    %7166 = vmatpush1.bf16.msra.mxu0 %v6947
    %7167 = vmatprep.subr.bf16.mxu0 %v6955
    %7168 = vmatpush1.bf16.msra.mxu0 %v6954
    %7169 = vmatprep.subr.bf16.mxu0 %v6962
    %7170 = vmatpush1.bf16.msra.mxu0 %v6961
    %7171 = vmatprep.subr.bf16.mxu0 %v6969
    %7172 = vmatpush1.bf16.msra.mxu0 %v6968
    %7173 = vmatprep.subr.bf16.mxu0 %v6976
    %7174 = vmatpush1.bf16.msra.mxu0 %v6975
    %7175 = vmatprep.subr.bf16.mxu0 %v6983
    %7176 = vmatpush1.bf16.msra.mxu0 %v6982
    %7177 = vmatprep.subr.bf16.mxu0 %v6990
    %7178 = vmatpush1.bf16.msra.mxu0 %v6989
    %7179 = vmatprep.mubr.bf16.mxu0 %v6364
    %7180 = vmatmul.mubr.bf16.gmra.mrb[0].mxu0 %v6363
    %v7181 = vpop.f32.mrb[0].mxu0
    %v7182 = vadd.f32 %v6506, %v7181
    %v7183 = vpop.f32.mrb[0].mxu0
    %v7184 = vadd.f32 %v6510, %v7183
    %v7185 = vpop.f32.mrb[0].mxu0
    %v7186 = vpop.f32.mrb[0].mxu0
    %7187 = vdwg.mxu0
    %7188 = vmatprep.subr.bf16.mxu0 %v6887
    %7189 = vmatpush1.bf16.msra.mxu0 %v6886
    %7190 = vmatprep.subr.bf16.mxu0 %v6894
    %7191 = vmatpush1.bf16.msra.mxu0 %v6893
    %7192 = vmatprep.subr.bf16.mxu0 %v6901
    %7193 = vmatpush1.bf16.msra.mxu0 %v6900
    %7194 = vmatprep.subr.bf16.mxu0 %v6908
    %7195 = vmatpush1.bf16.msra.mxu0 %v6907
    %7196 = vmatprep.subr.bf16.mxu0 %v6915
    %7197 = vmatpush1.bf16.msra.mxu0 %v6914
    %7198 = vmatprep.subr.bf16.mxu0 %v6922
    %7199 = vmatpush1.bf16.msra.mxu0 %v6921
    %7200 = vmatprep.subr.bf16.mxu0 %v6929
    %7201 = vmatpush1.bf16.msra.mxu0 %v6928
    %7202 = vmatprep.subr.bf16.mxu0 %v6936
    %7203 = vmatpush1.bf16.msra.mxu0 %v6935
    %7204 = vmatprep.subr.bf16.mxu0 %v6943
    %7205 = vmatpush1.bf16.msra.mxu0 %v6942
    %7206 = vmatprep.subr.bf16.mxu0 %v6950
    %7207 = vmatpush1.bf16.msra.mxu0 %v6949
    %7208 = vmatprep.subr.bf16.mxu0 %v6957
    %7209 = vmatpush1.bf16.msra.mxu0 %v6956
    %7210 = vmatprep.subr.bf16.mxu0 %v6964
    %7211 = vmatpush1.bf16.msra.mxu0 %v6963
    %7212 = vmatprep.subr.bf16.mxu0 %v6971
    %7213 = vmatpush1.bf16.msra.mxu0 %v6970
    %7214 = vmatprep.subr.bf16.mxu0 %v6978
    %7215 = vmatpush1.bf16.msra.mxu0 %v6977
    %7216 = vmatprep.subr.bf16.mxu0 %v6985
    %7217 = vmatpush1.bf16.msra.mxu0 %v6984
    %7218 = vmatprep.subr.bf16.mxu0 %v6992
    %7219 = vmatpush1.bf16.msra.mxu0 %v6991
    %7220 = vmatprep.mubr.bf16.mxu0 %v6364
    %7221 = vmatmul.mubr.bf16.gmra.mrb[0].mxu0 %v6363
    %v7222 = vpop.f32.mrb[0].mxu0
    %v7223 = vadd.f32 %v6514, %v7222
    %v7224 = vpop.f32.mrb[0].mxu0
    %v7225 = vadd.f32 %v6518, %v7224
    %v7226 = vpop.f32.mrb[0].mxu0
    %v7227 = vpop.f32.mrb[0].mxu0
    %7228 = vdwg.mxu0
    %7229 = vmatprep.subr.bf16.mxu0 0
    %7230 = vmatpush1.bf16.msra.mxu0 %v6888
    %7231 = vmatprep.subr.bf16.mxu0 0
    %7232 = vmatpush1.bf16.msra.mxu0 %v6895
    %7233 = vmatprep.subr.bf16.mxu0 0
    %7234 = vmatpush1.bf16.msra.mxu0 %v6902
    %7235 = vmatprep.subr.bf16.mxu0 0
    %7236 = vmatpush1.bf16.msra.mxu0 %v6909
    %7237 = vmatprep.subr.bf16.mxu0 0
    %7238 = vmatpush1.bf16.msra.mxu0 %v6916
    %7239 = vmatprep.subr.bf16.mxu0 0
    %7240 = vmatpush1.bf16.msra.mxu0 %v6923
    %7241 = vmatprep.subr.bf16.mxu0 0
    %7242 = vmatpush1.bf16.msra.mxu0 %v6930
    %7243 = vmatprep.subr.bf16.mxu0 0
    %7244 = vmatpush1.bf16.msra.mxu0 %v6937
    %7245 = vmatprep.subr.bf16.mxu0 0
    %7246 = vmatpush1.bf16.msra.mxu0 %v6944
    %7247 = vmatprep.subr.bf16.mxu0 0
    %7248 = vmatpush1.bf16.msra.mxu0 %v6951
    %7249 = vmatprep.subr.bf16.mxu0 0
    %7250 = vmatpush1.bf16.msra.mxu0 %v6958
    %7251 = vmatprep.subr.bf16.mxu0 0
    %7252 = vmatpush1.bf16.msra.mxu0 %v6965
    %7253 = vmatprep.subr.bf16.mxu0 0
    %7254 = vmatpush1.bf16.msra.mxu0 %v6972
    %7255 = vmatprep.subr.bf16.mxu0 0
    %7256 = vmatpush1.bf16.msra.mxu0 %v6979
    %7257 = vmatprep.subr.bf16.mxu0 0
    %7258 = vmatpush1.bf16.msra.mxu0 %v6986
    %7259 = vmatprep.subr.bf16.mxu0 0
    %7260 = vmatpush1.bf16.msra.mxu0 %v6993
    %7261 = vmatprep.mubr.bf16.mxu0 %v6364
    %7262 = vmatmul.mubr.bf16.gmra.mrb[0].mxu0 %v6363
    %v7263 = vpop.f32.mrb[0].mxu0
    %v7264 = vadd.f32 %v6522, %v7263
    %v7265 = vpop.f32.mrb[0].mxu0
    %v7266 = vpop.f32.mrb[0].mxu0
    %v7267 = vpop.f32.mrb[0].mxu0
    %7268 = vdwg.mxu0
    %v7269 = vxor.u32 %v7141, 2147483648
    %v7270 = vxor.u32 %v7143, 2147483648
    %v7271 = vxor.u32 %v7182, 2147483648
    %v7272 = vxor.u32 %v7184, 2147483648
    %v7273 = vxor.u32 %v7223, 2147483648
    %v7274 = vxor.u32 %v7225, 2147483648
    %v7275 = vxor.u32 %v7264, 2147483648
    %v7276 = vmul.f32 %v7269, 1.442695
    %v7277 = vpow.pop %v7276
    %v7278 = vmul.f32 %v7270, 1.442695
    %v7279 = vpow.pop %v7278
    %v7280 = vmul.f32 %v7271, 1.442695
    %v7281 = vpow.pop %v7280
    %v7282 = vmul.f32 %v7272, 1.442695
    %v7283 = vpow.pop %v7282
    %v7284 = vmul.f32 %v7273, 1.442695
    %v7285 = vpow.pop %v7284
    %v7286 = vmul.f32 %v7274, 1.442695
    %v7287 = vpow.pop %v7286
    %v7288 = vmul.f32 %v7275, 1.442695
    %v7289 = vpow.pop %v7288
    %v7290 = vadd.f32 %v7277, 1.0
    %v7291 = vadd.f32 %v7279, 1.0
    %v7292 = vadd.f32 %v7281, 1.0
    %v7293 = vadd.f32 %v7283, 1.0
    %v7294 = vadd.f32 %v7285, 1.0
    %v7295 = vadd.f32 %v7287, 1.0
    %v7296 = vadd.f32 %v7289, 1.0
    %v7297 = vrcp.pop %v7290
    %v7298 = vmul.f32 1.0, %v7297
    %v7299 = vrcp.pop %v7291
    %v7300 = vmul.f32 1.0, %v7299
    %v7301 = vrcp.pop %v7292
    %v7302 = vmul.f32 1.0, %v7301
    %v7303 = vrcp.pop %v7293
    %v7304 = vmul.f32 1.0, %v7303
    %v7305 = vrcp.pop %v7294
    %v7306 = vmul.f32 1.0, %v7305
    %v7307 = vrcp.pop %v7295
    %v7308 = vmul.f32 1.0, %v7307
    %v7309 = vrcp.pop %v7296
    %v7310 = vmul.f32 1.0, %v7309
    %v7317 = vcombine.low %v7298, %v7300
    %v7318 = vcombine.low %v7302, %v7304
    %v7319 = vcombine.low %v7306, %v7308
    %7323 = vst [vmem:[%s14] sm:$0xff] %v7317
    %7324 = vst [vmem:[%s14 + $0x8] sm:$0xff] %v7318
    %7325 = vst [vmem:[%s14 + $0x10] sm:$0xff] %v7319
    %7326 = vst [vmem:[%s14 + $0x18] sm:$0xf] %v7310
    %v7327 = vmul.f32 %v6198, %v6198
    %v7328 = vmul.f32 %v6200, 1.442695
    %v7329 = vpow.pop %v7328
    %v7330 = vadd.f32 %v7327, %v7329
    %v7331 = vsub.f32 %v7330, %v6200
    %v7332 = vsub.f32 %v7331, 1.0
    %vm7333 = vcmask 1043456
    %v7334 = vsel %vm7333, %v7332, 0.0
    %7335 = vadd.xlane.f32.xlu0 %v7334
    %v7336 = vpop.xlane.xlu0 %7335
    %v7337 = vmul.f32 %v7336, 0.5
    %v7338 = vlaneseq
    %v7339 = vand.u32 %v7338, 127
    %v7340 = vadd.s32 %v7339, 128
    %v7341 = vadd.s32 %v7339, 256
    %v7342 = vadd.s32 %v7339, 384
    %v7343 = vadd.s32 %v7339, 512
    %v7344 = vadd.s32 %v7339, 640
    %v7345 = vadd.s32 %v7339, 768
    %v7346 = vld [vmem:[%s11] sm:$0xff]
    %v7347 = vld [vmem:[%s11 + $0x8] sm:$0xff]
    %v7348 = vld [vmem:[%s11 + $0x10] sm:$0xff]
    %v7349 = vld [vmem:[%s11 + $0x18] sm:$0xf]
    %v7350 = vsub.f32 %v7346, %v7317
    %v7351 = vsub.f32 %v7347, %v7318
    %v7352 = vsub.f32 %v7348, %v7319
    %v7353 = vsub.f32 %v7349, %v7310
    %v7354 = vmul.f32 %v7350, %v7350
    %v7355 = vmul.f32 %v7351, %v7351
    %v7356 = vmul.f32 %v7352, %v7352
    %v7357 = vmul.f32 %v7353, %v7353
    %v7358 = vmul.f32 %v7354, -50.0
    %v7359 = vmul.f32 %v7355, -50.0
    %v7360 = vmul.f32 %v7356, -50.0
    %v7361 = vmul.f32 %v7357, -50.0
    %v7362 = vsub.f32 %v7358, -1.3836466
    %v7363 = vsub.f32 %v7359, -1.3836466
    %v7364 = vsub.f32 %v7360, -1.3836466
    %v7365 = vsub.f32 %v7361, -1.3836466
    %vm7366 = vcmp.lt.s32.totalorder %v7339, 784
    %vm7367 = vcmp.lt.s32.totalorder %v7340, 784
    %vm7368 = vcmp.lt.s32.totalorder %v7341, 784
    %vm7369 = vcmp.lt.s32.totalorder %v7342, 784
    %vm7370 = vcmp.lt.s32.totalorder %v7343, 784
    %vm7371 = vcmp.lt.s32.totalorder %v7344, 784
    %vm7372 = vcmp.lt.s32.totalorder %v7345, 784
    %v7376 = vcombine.high %v7362, %v7362
    %v7377 = vcombine.high %v7363, %v7363
    %v7378 = vcombine.high %v7364, %v7364
    %v7382 = vsel %vm7366, %v7362, 0.0
    %v7383 = vsel %vm7367, %v7376, 0.0
    %v7384 = vsel %vm7368, %v7363, 0.0
    %v7385 = vsel %vm7369, %v7377, 0.0
    %v7386 = vsel %vm7370, %v7364, 0.0
    %v7387 = vsel %vm7371, %v7378, 0.0
    %v7388 = vsel %vm7372, %v7365, 0.0
    %v7389 = vsel %vm7333, %v7382, 0.0
    %v7390 = vsel %vm7333, %v7383, 0.0
    %v7391 = vadd.f32 %v7389, %v7390
    %v7392 = vsel %vm7333, %v7384, 0.0
    %v7393 = vadd.f32 %v7391, %v7392
    %v7394 = vsel %vm7333, %v7385, 0.0
    %v7395 = vadd.f32 %v7393, %v7394
    %v7396 = vsel %vm7333, %v7386, 0.0
    %v7397 = vadd.f32 %v7395, %v7396
    %v7398 = vsel %vm7333, %v7387, 0.0
    %v7399 = vadd.f32 %v7397, %v7398
    %v7400 = vsel %vm7333, %v7388, 0.0
    %v7401 = vadd.f32 %v7399, %v7400
    %7402 = vadd.xlane.f32.xlu0 %v7401
    %v7403 = vpop.xlane.xlu0 %7402
    %v7404 = vld [vmem:[%s13] sm:$0xf]
    %v7407 = vunpack.c.l.s4 1966171168
    %v7408 = vunpack.c.0.s8 %v7407
    %v7409 = vlaneseq
    %v7410 = vshrl.u32 %v7409, 7
    %v7411 = vsub.s32 %v7408, %v7410
    %v7412 = vrot.slane %v7404, %v7411
    %v7413 = vcombine.high %v7412, %v7412
    %v7415 = vunpack.c.l.s4 1966171168
    %v7416 = vunpack.c.0.s8 %v7415
    %v7417 = vlaneseq
    %v7418 = vshrl.u32 %v7417, 7
    %v7419 = vsub.s32 %v7416, %v7418
    %v7420 = vrot.slane %v7412, %v7419
    %v7422 = vunpack.c.l.s4 1966171168
    %v7423 = vunpack.c.0.s8 %v7422
    %v7424 = vlaneseq
    %v7425 = vshrl.u32 %v7424, 7
    %v7426 = vsub.s32 %v7423, %v7425
    %v7427 = vrot.slane %v7413, %v7426
    %v7428 = vcombine.high %v7420, %v7420
    %v7429 = vcombine.high %v7427, %v7427
    %v7430 = vlaneseq
    %v7431 = vshrl.u32 %v7430, 7
    %v7432 = vsub.s32 0, %v7431
    %v7433 = vrot.slane %v7420, %v7432
    %v7434 = vlaneseq
    %v7435 = vshrl.u32 %v7434, 7
    %v7436 = vsub.s32 0, %v7435
    %v7437 = vrot.slane %v7427, %v7436
    %v7438 = vlaneseq
    %v7439 = vshrl.u32 %v7438, 7
    %v7440 = vsub.s32 0, %v7439
    %v7441 = vrot.slane %v7428, %v7440
    %v7442 = vlaneseq
    %v7443 = vshrl.u32 %v7442, 7
    %v7444 = vsub.s32 0, %v7443
    %v7445 = vrot.slane %v7429, %v7444
    %v7450 = vsub.f32 %v7404, %v7433
    %v7451 = vsub.f32 %v7404, %v7437
    %v7452 = vsub.f32 %v7404, %v7441
    %v7453 = vsub.f32 %v7404, %v7445
    %v7454 = vmul.f32 %v7450, %v7450
    %v7455 = vmul.f32 %v7451, %v7451
    %v7456 = vmul.f32 %v7452, %v7452
    %v7457 = vmul.f32 %v7453, %v7453
    %v7460 = vunpack.c.l.s4 1966171168
    %v7461 = vunpack.c.0.s8 %v7460
    %v7462 = vlaneseq
    %v7463 = vshrl.u32 %v7462, 7
    %v7464 = vsub.s32 %v7461, %v7463
    %v7465 = vrot.slane %v6209, %v7464
    %v7466 = vcombine.high %v7465, %v7465
    %v7468 = vunpack.c.l.s4 1966171168
    %v7469 = vunpack.c.0.s8 %v7468
    %v7470 = vlaneseq
    %v7471 = vshrl.u32 %v7470, 7
    %v7472 = vsub.s32 %v7469, %v7471
    %v7473 = vrot.slane %v7465, %v7472
    %v7475 = vunpack.c.l.s4 1966171168
    %v7476 = vunpack.c.0.s8 %v7475
    %v7477 = vlaneseq
    %v7478 = vshrl.u32 %v7477, 7
    %v7479 = vsub.s32 %v7476, %v7478
    %v7480 = vrot.slane %v7466, %v7479
    %v7481 = vcombine.high %v7473, %v7473
    %v7482 = vcombine.high %v7480, %v7480
    %v7483 = vlaneseq
    %v7484 = vshrl.u32 %v7483, 7
    %v7485 = vsub.s32 0, %v7484
    %v7486 = vrot.slane %v7473, %v7485
    %v7487 = vlaneseq
    %v7488 = vshrl.u32 %v7487, 7
    %v7489 = vsub.s32 0, %v7488
    %v7490 = vrot.slane %v7480, %v7489
    %v7491 = vlaneseq
    %v7492 = vshrl.u32 %v7491, 7
    %v7493 = vsub.s32 0, %v7492
    %v7494 = vrot.slane %v7481, %v7493
    %v7495 = vlaneseq
    %v7496 = vshrl.u32 %v7495, 7
    %v7497 = vsub.s32 0, %v7496
    %v7498 = vrot.slane %v7482, %v7497
    %v7503 = vsub.f32 %v6209, %v7486
    %v7504 = vsub.f32 %v6209, %v7490
    %v7505 = vsub.f32 %v6209, %v7494
    %v7506 = vsub.f32 %v6209, %v7498
    %v7507 = vmul.f32 %v7503, %v7503
    %v7508 = vmul.f32 %v7504, %v7504
    %v7509 = vmul.f32 %v7505, %v7505
    %v7510 = vmul.f32 %v7506, %v7506
    %v7511 = vsub.f32 %v7404, %v7486
    %v7512 = vsub.f32 %v7404, %v7490
    %v7513 = vsub.f32 %v7404, %v7494
    %v7514 = vsub.f32 %v7404, %v7498
    %v7515 = vmul.f32 %v7511, %v7511
    %v7516 = vmul.f32 %v7512, %v7512
    %v7517 = vmul.f32 %v7513, %v7513
    %v7518 = vmul.f32 %v7514, %v7514
    %v7519 = vlaneseq
    %v7520 = vshrl.u32 %v7519, 7
    %vm7521 = vcmp.eq.s32.totalorder %v7520, %v7339
    %v7522 = vsel %vm7521, 0.0, 1.0
    %v7523 = vlaneseq
    %v7524 = vshrl.u32 %v7523, 7
    %v7525 = vsub.s32 0, %v7524
    %v7526 = vrot.slane %v7522, %v7525
    %7528 = vbcast.lane.b32.xlu0 %v7526, 256
    %v7529 = vpop.permute.xlu0 %7528
    %v7530 = vlaneseq
    %v7531 = vshrl.u32 %v7530, 7
    %v7532 = vsub.s32 1, %v7531
    %v7533 = vrot.slane %v7522, %v7532
    %7535 = vbcast.lane.b32.xlu0 %v7533, 256
    %v7536 = vpop.permute.xlu0 %7535
    %v7537 = vlaneseq
    %v7538 = vshrl.u32 %v7537, 7
    %v7539 = vsub.s32 2, %v7538
    %v7540 = vrot.slane %v7522, %v7539
    %7542 = vbcast.lane.b32.xlu0 %v7540, 256
    %v7543 = vpop.permute.xlu0 %7542
    %v7544 = vlaneseq
    %v7545 = vshrl.u32 %v7544, 7
    %v7546 = vsub.s32 3, %v7545
    %v7547 = vrot.slane %v7522, %v7546
    %7549 = vbcast.lane.b32.xlu0 %v7547, 256
    %v7550 = vpop.permute.xlu0 %7549
    %v7551 = vadd.f32 %v7454, 0.2
    %v7552 = vadd.f32 %v7455, 0.2
    %v7553 = vadd.f32 %v7456, 0.2
    %v7554 = vadd.f32 %v7457, 0.2
    %v7555 = vrcp.pop %v7551
    %v7556 = vrcp.pop %v7552
    %v7557 = vrcp.pop %v7553
    %v7558 = vrcp.pop %v7554
    %v7559 = vmul.f32 %v7555, 0.2
    %v7560 = vmul.f32 %v7556, 0.2
    %v7561 = vmul.f32 %v7557, 0.2
    %v7562 = vmul.f32 %v7558, 0.2
    %v7563 = vadd.f32 %v7507, 0.2
    %v7564 = vadd.f32 %v7508, 0.2
    %v7565 = vadd.f32 %v7509, 0.2
    %v7566 = vadd.f32 %v7510, 0.2
    %v7567 = vrcp.pop %v7563
    %v7568 = vrcp.pop %v7564
    %v7569 = vrcp.pop %v7565
    %v7570 = vrcp.pop %v7566
    %v7571 = vmul.f32 %v7567, 0.2
    %v7572 = vmul.f32 %v7568, 0.2
    %v7573 = vmul.f32 %v7569, 0.2
    %v7574 = vmul.f32 %v7570, 0.2
    %v7575 = vadd.f32 %v7559, %v7571
    %v7576 = vadd.f32 %v7560, %v7572
    %v7577 = vadd.f32 %v7561, %v7573
    %v7578 = vadd.f32 %v7562, %v7574
    %v7579 = vmul.f32 %v7529, %v7575
    %v7580 = vmul.f32 %v7536, %v7576
    %v7581 = vmul.f32 %v7543, %v7577
    %v7582 = vmul.f32 %v7550, %v7578
    %v7583 = vsel %vm7333, %v7579, 0.0
    %v7584 = vsel %vm7333, %v7580, 0.0
    %v7585 = vadd.f32 %v7583, %v7584
    %v7586 = vsel %vm7333, %v7581, 0.0
    %v7587 = vadd.f32 %v7585, %v7586
    %v7588 = vsel %vm7333, %v7582, 0.0
    %v7589 = vadd.f32 %v7587, %v7588
    %v7590 = vsel %vm7333, %v7589, 0.0
    %v7591 = vrot.slane %v7590, 4
    %v7592 = vadd.f32 %v7590, %v7591
    %v7593 = vrot.slane %v7592, 2
    %v7594 = vadd.f32 %v7592, %v7593
    %v7595 = vrot.slane %v7594, 1
    %v7596 = vadd.f32 %v7594, %v7595
    %v7597 = vrcp.pop 3.0
    %v7598 = vmul.f32 %v7596, %v7597
    %v7599 = vadd.f32 %v7515, 0.2
    %v7600 = vadd.f32 %v7516, 0.2
    %v7601 = vadd.f32 %v7517, 0.2
    %v7602 = vadd.f32 %v7518, 0.2
    %v7603 = vrcp.pop %v7599
    %v7604 = vrcp.pop %v7600
    %v7605 = vrcp.pop %v7601
    %v7606 = vrcp.pop %v7602
    %v7607 = vmul.f32 %v7603, 0.2
    %v7608 = vmul.f32 %v7604, 0.2
    %v7609 = vmul.f32 %v7605, 0.2
    %v7610 = vmul.f32 %v7606, 0.2
    %v7611 = vsel %vm7333, %v7607, 0.0
    %v7612 = vsel %vm7333, %v7608, 0.0
    %v7613 = vadd.f32 %v7611, %v7612
    %v7614 = vsel %vm7333, %v7609, 0.0
    %v7615 = vadd.f32 %v7613, %v7614
    %v7616 = vsel %vm7333, %v7610, 0.0
    %v7617 = vadd.f32 %v7615, %v7616
    %v7618 = vsel %vm7333, %v7617, 0.0
    %v7619 = vrot.slane %v7618, 4
    %v7620 = vadd.f32 %v7618, %v7619
    %v7621 = vrot.slane %v7620, 2
    %v7622 = vadd.f32 %v7620, %v7621
    %v7623 = vrot.slane %v7622, 1
    %v7624 = vadd.f32 %v7622, %v7623
    %v7625 = vmul.f32 %v7624, 0.5
    %v7626 = vsub.f32 %v7598, %v7625
    %v7627 = vadd.f32 %v7626, 0.0
    %v7628 = vadd.f32 %v7454, 0.4
    %v7629 = vadd.f32 %v7455, 0.4
    %v7630 = vadd.f32 %v7456, 0.4
    %v7631 = vadd.f32 %v7457, 0.4
    %v7632 = vrcp.pop %v7628
    %v7633 = vrcp.pop %v7629
    %v7634 = vrcp.pop %v7630
    %v7635 = vrcp.pop %v7631
    %v7636 = vmul.f32 %v7632, 0.4
    %v7637 = vmul.f32 %v7633, 0.4
    %v7638 = vmul.f32 %v7634, 0.4
    %v7639 = vmul.f32 %v7635, 0.4
    %v7640 = vadd.f32 %v7507, 0.4
    %v7641 = vadd.f32 %v7508, 0.4
    %v7642 = vadd.f32 %v7509, 0.4
    %v7643 = vadd.f32 %v7510, 0.4
    %v7644 = vrcp.pop %v7640
    %v7645 = vrcp.pop %v7641
    %v7646 = vrcp.pop %v7642
    %v7647 = vrcp.pop %v7643
    %v7648 = vmul.f32 %v7644, 0.4
    %v7649 = vmul.f32 %v7645, 0.4
    %v7650 = vmul.f32 %v7646, 0.4
    %v7651 = vmul.f32 %v7647, 0.4
    %v7652 = vadd.f32 %v7636, %v7648
    %v7653 = vadd.f32 %v7637, %v7649
    %v7654 = vadd.f32 %v7638, %v7650
    %v7655 = vadd.f32 %v7639, %v7651
    %v7656 = vmul.f32 %v7529, %v7652
    %v7657 = vmul.f32 %v7536, %v7653
    %v7658 = vmul.f32 %v7543, %v7654
    %v7659 = vmul.f32 %v7550, %v7655
    %v7660 = vsel %vm7333, %v7656, 0.0
    %v7661 = vsel %vm7333, %v7657, 0.0
    %v7662 = vadd.f32 %v7660, %v7661
    %v7663 = vsel %vm7333, %v7658, 0.0
    %v7664 = vadd.f32 %v7662, %v7663
    %v7665 = vsel %vm7333, %v7659, 0.0
    %v7666 = vadd.f32 %v7664, %v7665
    %v7667 = vsel %vm7333, %v7666, 0.0
    %v7668 = vrot.slane %v7667, 4
    %v7669 = vadd.f32 %v7667, %v7668
    %v7670 = vrot.slane %v7669, 2
    %v7671 = vadd.f32 %v7669, %v7670
    %v7672 = vrot.slane %v7671, 1
    %v7673 = vadd.f32 %v7671, %v7672
    %v7674 = vmul.f32 %v7673, %v7597
    %v7675 = vadd.f32 %v7515, 0.4
    %v7676 = vadd.f32 %v7516, 0.4
    %v7677 = vadd.f32 %v7517, 0.4
    %v7678 = vadd.f32 %v7518, 0.4
    %v7679 = vrcp.pop %v7675
    %v7680 = vrcp.pop %v7676
    %v7681 = vrcp.pop %v7677
    %v7682 = vrcp.pop %v7678
    %v7683 = vmul.f32 %v7679, 0.4
    %v7684 = vmul.f32 %v7680, 0.4
    %v7685 = vmul.f32 %v7681, 0.4
    %v7686 = vmul.f32 %v7682, 0.4
    %v7687 = vsel %vm7333, %v7683, 0.0
    %v7688 = vsel %vm7333, %v7684, 0.0
    %v7689 = vadd.f32 %v7687, %v7688
    %v7690 = vsel %vm7333, %v7685, 0.0
    %v7691 = vadd.f32 %v7689, %v7690
    %v7692 = vsel %vm7333, %v7686, 0.0
    %v7693 = vadd.f32 %v7691, %v7692
    %v7694 = vsel %vm7333, %v7693, 0.0
    %v7695 = vrot.slane %v7694, 4
    %v7696 = vadd.f32 %v7694, %v7695
    %v7697 = vrot.slane %v7696, 2
    %v7698 = vadd.f32 %v7696, %v7697
    %v7699 = vrot.slane %v7698, 1
    %v7700 = vadd.f32 %v7698, %v7699
    %v7701 = vmul.f32 %v7700, 0.5
    %v7702 = vsub.f32 %v7674, %v7701
    %v7703 = vadd.f32 %v7627, %v7702
    %v7704 = vadd.f32 %v7454, 1.0
    %v7705 = vadd.f32 %v7455, 1.0
    %v7706 = vadd.f32 %v7456, 1.0
    %v7707 = vadd.f32 %v7457, 1.0
    %v7708 = vrcp.pop %v7704
    %v7709 = vrcp.pop %v7705
    %v7710 = vrcp.pop %v7706
    %v7711 = vrcp.pop %v7707
    %v7712 = vadd.f32 %v7507, 1.0
    %v7713 = vadd.f32 %v7508, 1.0
    %v7714 = vadd.f32 %v7509, 1.0
    %v7715 = vadd.f32 %v7510, 1.0
    %v7716 = vrcp.pop %v7712
    %v7717 = vrcp.pop %v7713
    %v7718 = vrcp.pop %v7714
    %v7719 = vrcp.pop %v7715
    %v7720 = vadd.f32 %v7708, %v7716
    %v7721 = vadd.f32 %v7709, %v7717
    %v7722 = vadd.f32 %v7710, %v7718
    %v7723 = vadd.f32 %v7711, %v7719
    %v7724 = vmul.f32 %v7529, %v7720
    %v7725 = vmul.f32 %v7536, %v7721
    %v7726 = vmul.f32 %v7543, %v7722
    %v7727 = vmul.f32 %v7550, %v7723
    %v7728 = vsel %vm7333, %v7724, 0.0
    %v7729 = vsel %vm7333, %v7725, 0.0
    %v7730 = vadd.f32 %v7728, %v7729
    %v7731 = vsel %vm7333, %v7726, 0.0
    %v7732 = vadd.f32 %v7730, %v7731
    %v7733 = vsel %vm7333, %v7727, 0.0
    %v7734 = vadd.f32 %v7732, %v7733
    %v7735 = vsel %vm7333, %v7734, 0.0
    %v7736 = vrot.slane %v7735, 4
    %v7737 = vadd.f32 %v7735, %v7736
    %v7738 = vrot.slane %v7737, 2
    %v7739 = vadd.f32 %v7737, %v7738
    %v7740 = vrot.slane %v7739, 1
    %v7741 = vadd.f32 %v7739, %v7740
    %v7742 = vmul.f32 %v7741, %v7597
    %v7743 = vadd.f32 %v7515, 1.0
    %v7744 = vadd.f32 %v7516, 1.0
    %v7745 = vadd.f32 %v7517, 1.0
    %v7746 = vadd.f32 %v7518, 1.0
    %v7747 = vrcp.pop %v7743
    %v7748 = vrcp.pop %v7744
    %v7749 = vrcp.pop %v7745
    %v7750 = vrcp.pop %v7746
    %v7751 = vsel %vm7333, %v7747, 0.0
    %v7752 = vsel %vm7333, %v7748, 0.0
    %v7753 = vadd.f32 %v7751, %v7752
    %v7754 = vsel %vm7333, %v7749, 0.0
    %v7755 = vadd.f32 %v7753, %v7754
    %v7756 = vsel %vm7333, %v7750, 0.0
    %v7757 = vadd.f32 %v7755, %v7756
    %v7758 = vsel %vm7333, %v7757, 0.0
    %v7759 = vrot.slane %v7758, 4
    %v7760 = vadd.f32 %v7758, %v7759
    %v7761 = vrot.slane %v7760, 2
    %v7762 = vadd.f32 %v7760, %v7761
    %v7763 = vrot.slane %v7762, 1
    %v7764 = vadd.f32 %v7762, %v7763
    %v7765 = vmul.f32 %v7764, 0.5
    %v7766 = vsub.f32 %v7742, %v7765
    %v7767 = vadd.f32 %v7703, %v7766
    %v7768 = vadd.f32 %v7454, 2.0
    %v7769 = vadd.f32 %v7455, 2.0
    %v7770 = vadd.f32 %v7456, 2.0
    %v7771 = vadd.f32 %v7457, 2.0
    %v7772 = vrcp.pop %v7768
    %v7773 = vrcp.pop %v7769
    %v7774 = vrcp.pop %v7770
    %v7775 = vrcp.pop %v7771
    %v7776 = vmul.f32 %v7772, 2.0
    %v7777 = vmul.f32 %v7773, 2.0
    %v7778 = vmul.f32 %v7774, 2.0
    %v7779 = vmul.f32 %v7775, 2.0
    %v7780 = vadd.f32 %v7507, 2.0
    %v7781 = vadd.f32 %v7508, 2.0
    %v7782 = vadd.f32 %v7509, 2.0
    %v7783 = vadd.f32 %v7510, 2.0
    %v7784 = vrcp.pop %v7780
    %v7785 = vrcp.pop %v7781
    %v7786 = vrcp.pop %v7782
    %v7787 = vrcp.pop %v7783
    %v7788 = vmul.f32 %v7784, 2.0
    %v7789 = vmul.f32 %v7785, 2.0
    %v7790 = vmul.f32 %v7786, 2.0
    %v7791 = vmul.f32 %v7787, 2.0
    %v7792 = vadd.f32 %v7776, %v7788
    %v7793 = vadd.f32 %v7777, %v7789
    %v7794 = vadd.f32 %v7778, %v7790
    %v7795 = vadd.f32 %v7779, %v7791
    %v7796 = vmul.f32 %v7529, %v7792
    %v7797 = vmul.f32 %v7536, %v7793
    %v7798 = vmul.f32 %v7543, %v7794
    %v7799 = vmul.f32 %v7550, %v7795
    %v7800 = vsel %vm7333, %v7796, 0.0
    %v7801 = vsel %vm7333, %v7797, 0.0
    %v7802 = vadd.f32 %v7800, %v7801
    %v7803 = vsel %vm7333, %v7798, 0.0
    %v7804 = vadd.f32 %v7802, %v7803
    %v7805 = vsel %vm7333, %v7799, 0.0
    %v7806 = vadd.f32 %v7804, %v7805
    %v7807 = vsel %vm7333, %v7806, 0.0
    %v7808 = vrot.slane %v7807, 4
    %v7809 = vadd.f32 %v7807, %v7808
    %v7810 = vrot.slane %v7809, 2
    %v7811 = vadd.f32 %v7809, %v7810
    %v7812 = vrot.slane %v7811, 1
    %v7813 = vadd.f32 %v7811, %v7812
    %v7814 = vmul.f32 %v7813, %v7597
    %v7815 = vadd.f32 %v7515, 2.0
    %v7816 = vadd.f32 %v7516, 2.0
    %v7817 = vadd.f32 %v7517, 2.0
    %v7818 = vadd.f32 %v7518, 2.0
    %v7819 = vrcp.pop %v7815
    %v7820 = vrcp.pop %v7816
    %v7821 = vrcp.pop %v7817
    %v7822 = vrcp.pop %v7818
    %v7823 = vmul.f32 %v7819, 2.0
    %v7824 = vmul.f32 %v7820, 2.0
    %v7825 = vmul.f32 %v7821, 2.0
    %v7826 = vmul.f32 %v7822, 2.0
    %v7827 = vsel %vm7333, %v7823, 0.0
    %v7828 = vsel %vm7333, %v7824, 0.0
    %v7829 = vadd.f32 %v7827, %v7828
    %v7830 = vsel %vm7333, %v7825, 0.0
    %v7831 = vadd.f32 %v7829, %v7830
    %v7832 = vsel %vm7333, %v7826, 0.0
    %v7833 = vadd.f32 %v7831, %v7832
    %v7834 = vsel %vm7333, %v7833, 0.0
    %v7835 = vrot.slane %v7834, 4
    %v7836 = vadd.f32 %v7834, %v7835
    %v7837 = vrot.slane %v7836, 2
    %v7838 = vadd.f32 %v7836, %v7837
    %v7839 = vrot.slane %v7838, 1
    %v7840 = vadd.f32 %v7838, %v7839
    %v7841 = vmul.f32 %v7840, 0.5
    %v7842 = vsub.f32 %v7814, %v7841
    %v7843 = vadd.f32 %v7767, %v7842
    %v7844 = vadd.f32 %v7454, 4.0
    %v7845 = vadd.f32 %v7455, 4.0
    %v7846 = vadd.f32 %v7456, 4.0
    %v7847 = vadd.f32 %v7457, 4.0
    %v7848 = vrcp.pop %v7844
    %v7849 = vrcp.pop %v7845
    %v7850 = vrcp.pop %v7846
    %v7851 = vrcp.pop %v7847
    %v7852 = vmul.f32 %v7848, 4.0
    %v7853 = vmul.f32 %v7849, 4.0
    %v7854 = vmul.f32 %v7850, 4.0
    %v7855 = vmul.f32 %v7851, 4.0
    %v7856 = vadd.f32 %v7507, 4.0
    %v7857 = vadd.f32 %v7508, 4.0
    %v7858 = vadd.f32 %v7509, 4.0
    %v7859 = vadd.f32 %v7510, 4.0
    %v7860 = vrcp.pop %v7856
    %v7861 = vrcp.pop %v7857
    %v7862 = vrcp.pop %v7858
    %v7863 = vrcp.pop %v7859
    %v7864 = vmul.f32 %v7860, 4.0
    %v7865 = vmul.f32 %v7861, 4.0
    %v7866 = vmul.f32 %v7862, 4.0
    %v7867 = vmul.f32 %v7863, 4.0
    %v7868 = vadd.f32 %v7852, %v7864
    %v7869 = vadd.f32 %v7853, %v7865
    %v7870 = vadd.f32 %v7854, %v7866
    %v7871 = vadd.f32 %v7855, %v7867
    %v7872 = vmul.f32 %v7529, %v7868
    %v7873 = vmul.f32 %v7536, %v7869
    %v7874 = vmul.f32 %v7543, %v7870
    %v7875 = vmul.f32 %v7550, %v7871
    %v7876 = vsel %vm7333, %v7872, 0.0
    %v7877 = vsel %vm7333, %v7873, 0.0
    %v7878 = vadd.f32 %v7876, %v7877
    %v7879 = vsel %vm7333, %v7874, 0.0
    %v7880 = vadd.f32 %v7878, %v7879
    %v7881 = vsel %vm7333, %v7875, 0.0
    %v7882 = vadd.f32 %v7880, %v7881
    %v7883 = vsel %vm7333, %v7882, 0.0
    %v7884 = vrot.slane %v7883, 4
    %v7885 = vadd.f32 %v7883, %v7884
    %v7886 = vrot.slane %v7885, 2
    %v7887 = vadd.f32 %v7885, %v7886
    %v7888 = vrot.slane %v7887, 1
    %v7889 = vadd.f32 %v7887, %v7888
    %v7890 = vmul.f32 %v7889, %v7597
    %v7891 = vadd.f32 %v7515, 4.0
    %v7892 = vadd.f32 %v7516, 4.0
    %v7893 = vadd.f32 %v7517, 4.0
    %v7894 = vadd.f32 %v7518, 4.0
    %v7895 = vrcp.pop %v7891
    %v7896 = vrcp.pop %v7892
    %v7897 = vrcp.pop %v7893
    %v7898 = vrcp.pop %v7894
    %v7899 = vmul.f32 %v7895, 4.0
    %v7900 = vmul.f32 %v7896, 4.0
    %v7901 = vmul.f32 %v7897, 4.0
    %v7902 = vmul.f32 %v7898, 4.0
    %v7903 = vsel %vm7333, %v7899, 0.0
    %v7904 = vsel %vm7333, %v7900, 0.0
    %v7905 = vadd.f32 %v7903, %v7904
    %v7906 = vsel %vm7333, %v7901, 0.0
    %v7907 = vadd.f32 %v7905, %v7906
    %v7908 = vsel %vm7333, %v7902, 0.0
    %v7909 = vadd.f32 %v7907, %v7908
    %v7910 = vsel %vm7333, %v7909, 0.0
    %v7911 = vrot.slane %v7910, 4
    %v7912 = vadd.f32 %v7910, %v7911
    %v7913 = vrot.slane %v7912, 2
    %v7914 = vadd.f32 %v7912, %v7913
    %v7915 = vrot.slane %v7914, 1
    %v7916 = vadd.f32 %v7914, %v7915
    %v7917 = vmul.f32 %v7916, 0.5
    %v7918 = vsub.f32 %v7890, %v7917
    %v7919 = vadd.f32 %v7843, %v7918
    %v7920 = vadd.f32 %v7454, 10.0
    %v7921 = vadd.f32 %v7455, 10.0
    %v7922 = vadd.f32 %v7456, 10.0
    %v7923 = vadd.f32 %v7457, 10.0
    %v7924 = vrcp.pop %v7920
    %v7925 = vrcp.pop %v7921
    %v7926 = vrcp.pop %v7922
    %v7927 = vrcp.pop %v7923
    %v7928 = vmul.f32 %v7924, 10.0
    %v7929 = vmul.f32 %v7925, 10.0
    %v7930 = vmul.f32 %v7926, 10.0
    %v7931 = vmul.f32 %v7927, 10.0
    %v7932 = vadd.f32 %v7507, 10.0
    %v7933 = vadd.f32 %v7508, 10.0
    %v7934 = vadd.f32 %v7509, 10.0
    %v7935 = vadd.f32 %v7510, 10.0
    %v7936 = vrcp.pop %v7932
    %v7937 = vrcp.pop %v7933
    %v7938 = vrcp.pop %v7934
    %v7939 = vrcp.pop %v7935
    %v7940 = vmul.f32 %v7936, 10.0
    %v7941 = vmul.f32 %v7937, 10.0
    %v7942 = vmul.f32 %v7938, 10.0
    %v7943 = vmul.f32 %v7939, 10.0
    %v7944 = vadd.f32 %v7928, %v7940
    %v7945 = vadd.f32 %v7929, %v7941
    %v7946 = vadd.f32 %v7930, %v7942
    %v7947 = vadd.f32 %v7931, %v7943
    %v7948 = vmul.f32 %v7529, %v7944
    %v7949 = vmul.f32 %v7536, %v7945
    %v7950 = vmul.f32 %v7543, %v7946
    %v7951 = vmul.f32 %v7550, %v7947
    %v7952 = vsel %vm7333, %v7948, 0.0
    %v7953 = vsel %vm7333, %v7949, 0.0
    %v7954 = vadd.f32 %v7952, %v7953
    %v7955 = vsel %vm7333, %v7950, 0.0
    %v7956 = vadd.f32 %v7954, %v7955
    %v7957 = vsel %vm7333, %v7951, 0.0
    %v7958 = vadd.f32 %v7956, %v7957
    %v7959 = vsel %vm7333, %v7958, 0.0
    %v7960 = vrot.slane %v7959, 4
    %v7961 = vadd.f32 %v7959, %v7960
    %v7962 = vrot.slane %v7961, 2
    %v7963 = vadd.f32 %v7961, %v7962
    %v7964 = vrot.slane %v7963, 1
    %v7965 = vadd.f32 %v7963, %v7964
    %v7966 = vmul.f32 %v7965, %v7597
    %v7967 = vadd.f32 %v7515, 10.0
    %v7968 = vadd.f32 %v7516, 10.0
    %v7969 = vadd.f32 %v7517, 10.0
    %v7970 = vadd.f32 %v7518, 10.0
    %v7971 = vrcp.pop %v7967
    %v7972 = vrcp.pop %v7968
    %v7973 = vrcp.pop %v7969
    %v7974 = vrcp.pop %v7970
    %v7975 = vmul.f32 %v7971, 10.0
    %v7976 = vmul.f32 %v7972, 10.0
    %v7977 = vmul.f32 %v7973, 10.0
    %v7978 = vmul.f32 %v7974, 10.0
    %v7979 = vsel %vm7333, %v7975, 0.0
    %v7980 = vsel %vm7333, %v7976, 0.0
    %v7981 = vadd.f32 %v7979, %v7980
    %v7982 = vsel %vm7333, %v7977, 0.0
    %v7983 = vadd.f32 %v7981, %v7982
    %v7984 = vsel %vm7333, %v7978, 0.0
    %v7985 = vadd.f32 %v7983, %v7984
    %v7986 = vsel %vm7333, %v7985, 0.0
    %v7987 = vrot.slane %v7986, 4
    %v7988 = vadd.f32 %v7986, %v7987
    %v7989 = vrot.slane %v7988, 2
    %v7990 = vadd.f32 %v7988, %v7989
    %v7991 = vrot.slane %v7990, 1
    %v7992 = vadd.f32 %v7990, %v7991
    %v7993 = vmul.f32 %v7992, 0.5
    %v7994 = vsub.f32 %v7966, %v7993
    %v7995 = vadd.f32 %v7919, %v7994
    %vm7996 = vcmask 1040384
    %v7997 = vsel %vm7996, %v7995, 0.0
    %7998 = vadd.xlane.f32.xlu0 %v7997
    %v7999 = vpop.xlane.xlu0 %7998
    %v8000 = vrot.slane %v7999, 4
    %v8001 = vadd.f32 %v7999, %v8000
    %v8002 = vrot.slane %v8001, 2
    %v8003 = vadd.f32 %v8001, %v8002
    %v8004 = vrot.slane %v8003, 1
    %v8005 = vadd.f32 %v8003, %v8004
    %s8006 = vtos %v8005
    %v8007 = vrcp.pop 4.0
    %s8008 = vtos %v8007
    %s8009 = smul.f32 %s8006, %s8008
    %v8010 = vsub.f32 %v7403, %v7337
    %v8011 = vstv %s8009
    %v8012 = vsub.f32 %v8010, %v8011
    %v8013 = vsub.f32 0.0, %v8012
    %vm8014 = vcmp.eq.s32.totalorder %v7339, 0
    %v8015 = vsel %vm8014, %v7337, 0.0
    %vm8016 = vcmp.eq.s32.totalorder %v7339, 1
    %v8017 = vsel %vm8016, %v7403, 0.0
    %v8018 = vadd.f32 %v8015, %v8017
    %vm8019 = vcmp.eq.s32.totalorder %v7339, 2
    %v8020 = vsel %vm8019, %v8011, 0.0
    %v8021 = vadd.f32 %v8018, %v8020
    %vm8022 = vcmp.eq.s32.totalorder %v7339, 3
    %v8023 = vsel %vm8022, %v8012, 0.0
    %v8024 = vadd.f32 %v8021, %v8023
    %vm8025 = vcmp.eq.s32.totalorder %v7339, 4
    %v8026 = vsel %vm8025, %v8013, 0.0
    %v8027 = vadd.f32 %v8024, %v8026
    %8028 = vst [vmem:[%s16] sm:$0xf] %v8027
    // Predicated region
    $region58: #{base_vae_forward.3} parent=1 // pred_check
      _
    $region59: #{base_vae_forward.3} parent=1 // pred_check_branch
      %8030 = sbr.rel (0) target = $region61
    $region60: #{base_vae_forward.3} parent=1 // pred_region
      _
    $region61: #{base_vae_forward.3} parent=1 // pred_fallthru
      _
    // Predicated region
    $region62: #{base_vae_forward.3} parent=1 // pred_check
      _
    $region63: #{base_vae_forward.3} parent=1 // pred_check_branch
      %8032 = sbr.rel (0) target = $region65
    $region64: #{base_vae_forward.3} parent=1 // pred_region
      %s8034 = ssub.s32 64, 64
      %8035 = vsyncadd [#allocation3], %s8034
      %s8037 = sshll.u32 [#allocation2], 4
      %s8038 = int_to_ptr.vmem [resolvable:$true] %s8037
      %8040 = dma.vmem_to_hbm [thread:$0]  %s8038, 64, %s15, [#allocation3]
    $region65: #{base_vae_forward.3} parent=1 // pred_fallthru
      _
    // Predicated region
    $region66: #{base_vae_forward.3} parent=1 // pred_check
      _
    $region67: #{base_vae_forward.3} parent=1 // pred_check_branch
      %8042 = sbr.rel (0) target = $region69
    $region68: #{base_vae_forward.3} parent=1 // pred_region
      _
    $region69: #{base_vae_forward.3} parent=1 // pred_fallthru
      _
    // Predicated region
    $region70: #{base_vae_forward.3} parent=1 // pred_check
      _
    $region71: #{base_vae_forward.3} parent=1 // pred_check_branch
      %8044 = sbr.rel (0) target = $region73
    $region72: #{base_vae_forward.3} parent=1 // pred_region
      _
    $region73: #{base_vae_forward.3} parent=1 // pred_fallthru
      _
    // Predicated region
    $region74: #{base_vae_forward.3} parent=1 // pred_check
      _
    $region75: #{base_vae_forward.3} parent=1 // pred_check_branch
      %8046 = sbr.rel (0) target = $region77
    $region76: #{base_vae_forward.3} parent=1 // pred_region
      %8047 = dma.done [#allocation3], 64
    $region77: #{base_vae_forward.3} parent=1 // pred_fallthru
      _
    // Predicated region
    $region78: #{base_vae_forward.3} parent=1 // pred_check
      _
    $region79: #{base_vae_forward.3} parent=1 // pred_check_branch
      %8049 = sbr.rel (0) target = $region81
    $region80: #{base_vae_forward.3} parent=1 // pred_region
      _
    $region81: #{base_vae_forward.3} parent=1 // pred_fallthru
      _
    %8050 = vsyncpa [#allocation3], 1

</llo_original>
